<compile_context>
chip_gen: v7x
topology: tpu7x:2x2x1
jax: 0.10.0
libtpu: 0.0.40
codegen_flags: <defaults>
</compile_context>

<pallas_src>
import functools

import jax
import jax.numpy as jnp
from jax.experimental import pallas as pl
from jax.experimental.pallas import tpu as pltpu

BN_EPS = 1e-5
LANE = 128
VMEM_LIMIT_BYTES = 40 * 1024 * 1024

# pltpu.roll shift that yields out[i] = in[i-1]; 0 => fall back to sliced taps.
_ROLL_DOWN_SHIFT = None


# ----------------------------------------------------------------------------- helpers
def _round_up(x, m):
    return (x + m - 1) // m * m


def _pad_to(a, shape):
    return jnp.pad(a, [(0, t - s) for s, t in zip(a.shape, shape)])


def _largest_divisor_leq(n, cap):
    for d in range(min(n, cap), 0, -1):
        if n % d == 0:
            return d
    return 1


def _conv_row_cap(cp):
    """Flattened-row tile cap keeping the conv kernel's VMEM footprint well under 40 MiB."""
    return int(min(4096, max(256, (12 * 1024 * 1024) // (32 * cp))))


def _pick_th(h, w2p, cp):
    """Even divisor of H for the conv row-block, preferring >=2 grid steps (megacore)."""
    cap = max(2, _conv_row_cap(cp) // w2p)
    if h >= 4:
        cap = min(cap, h // 2)
    best = 2
    d = 2
    while d <= min(h, cap):
        if h % d == 0:
            best = d
        d += 2
    return best


def _pick_imgrow_tile(total, w2p, cp):
    """Divisor of `total` image rows for the 1x1 / residual kernels (>=2 steps preferred)."""
    cap = max(1, _conv_row_cap(cp) // w2p)
    if total >= 2:
        cap = min(cap, total // 2)
    return _largest_divisor_leq(total, max(1, cap))


# ----------------------------------------------------------------------------- roll probe
def _roll_probe_kernel(x_ref, o_ref):
    o_ref[...] = pltpu.roll(x_ref[...], 1, 0)


def _detect_roll_down_shift():
    """Detect (once) the pltpu.roll shift giving out[i] = in[i-1]; 0 => roll unusable."""
    global _ROLL_DOWN_SHIFT
    if _ROLL_DOWN_SHIFT is None:
        try:
            x = jnp.arange(32 * 128, dtype=jnp.float32).reshape(32, 128)
            out = pl.pallas_call(
                _roll_probe_kernel,
                out_shape=jax.ShapeDtypeStruct((32, 128), jnp.float32),
            )(x)
            if bool(jnp.array_equal(out, jnp.roll(x, 1, axis=0))):
                _ROLL_DOWN_SHIFT = 1
            elif bool(jnp.array_equal(out, jnp.roll(x, -1, axis=0))):
                _ROLL_DOWN_SHIFT = -1
            else:
                _ROLL_DOWN_SHIFT = 0
        except Exception:
            _ROLL_DOWN_SHIFT = 0
    return _ROLL_DOWN_SHIFT


# ----------------------------------------------------------------------------- kernels
def _col_valid_mask(num_rows, w2p, wv):
    """(num_rows, 1) f32 mask: 1.0 where (flat row % w2p) is a real pixel column [1, wv]."""
    ri = jax.lax.broadcasted_iota(jnp.int32, (num_rows, 1), 0).astype(jnp.float32)
    q = jnp.floor((ri + 0.5) * (1.0 / w2p))          # exact integer div for small ints
    col = ri - q * w2p
    return jnp.logical_and(col >= 0.5, col <= wv + 0.5).astype(jnp.float32)


def _conv1x1_kernel(x_ref, w_ref, b_ref, o_ref, *, w2p, wv):
    # (tm, Cin_p) bf16 @ (Cin_p, Cout_p) bf16 -> f32, + bias, pad columns zeroed.
    y = jnp.dot(x_ref[...], w_ref[...], preferred_element_type=jnp.float32) + b_ref[...]
    mask = _col_valid_mask(y.shape[0], w2p, wv)
    o_ref[...] = (y * mask).astype(o_ref.dtype)


def _conv3x3_stats_kernel(xb_ref, xm_ref, xf_ref, w_ref, a_ref, c_ref, y_ref, st_ref,
                          *, r, hb, w2p, wv, fuse, roll_down):
    """Fused [prev-CBR affine+ReLU] -> 3x3 conv (9 aligned matmuls) -> bf16 y + BN partials.

    xb/xm/xf: (1, hb|r|hb, Cp) bf16  back-halo / main / forward-halo row windows
    w_ref:    (9, Cp, Cp)     bf16  resident weights (tap = kh*3 + kw)
    a_ref/c_ref: (1, Cp)      f32   previous CBR's folded BN affine (used iff fuse)
    y_ref:    (1, r, Cp)      bf16  pre-BN conv output of this CBR
    st_ref:   (1, 1, 2, Cp)   f32   per-tile [sum, sum-of-squares] over valid columns
    """
    f32 = jnp.float32
    j = pl.program_id(1)
    nj = pl.num_programs(1)
    rows_tot = r + 2 * hb

    def prev_cbr(v):
        # Previous CBR's folded BN affine + ReLU fused into this conv's input path.
        if fuse:
            return jnp.maximum(v * a_ref[...] + c_ref[...], 0.0)
        return v

    # Top / bottom image boundary halos must be *zero activations* -> zero post-affine.
    back = prev_cbr(xb_ref[0, :, :].astype(f32)) * jnp.where(j > 0, 1.0, 0.0)
    main = prev_cbr(xm_ref[0, :, :].astype(f32))
    fwd = prev_cbr(xf_ref[0, :, :].astype(f32)) * jnp.where(j < nj - 1, 1.0, 0.0)
    act = jnp.concatenate([back, main, fwd], axis=0)        # (rows_tot, Cp) f32

    colmask = _col_valid_mask(rows_tot, w2p, wv)
    if fuse:
        act = act * colmask          # width-pad columns of the activation must be zero

    act_b0 = act.astype(jnp.bfloat16)
    if roll_down != 0:
        act_bm = pltpu.roll(act, roll_down, 0).astype(jnp.bfloat16)    # [i] = act[i-1]
        act_bp = pltpu.roll(act, -roll_down, 0).astype(jnp.bfloat16)   # [i] = act[i+1]

    cp = y_ref.shape[2]
    acc = jnp.zeros((r, cp), f32)
    for kh in range(3):
        base = (kh + 1) * w2p                      # multiple of 16 -> aligned slices
        for kw in range(3):
            if kw == 1:
                operand = act_b0[base:base + r, :]
            elif roll_down != 0:
                operand = (act_bm if kw == 0 else act_bp)[base:base + r, :]
            else:
                off = base + kw - 1                # fallback: unaligned slice (relayout)
                operand = act_b0[off:off + r, :]
            acc = acc + jnp.dot(operand, w_ref[kh * 3 + kw, :, :],
                                preferred_element_type=f32)

    y_ref[0, :, :] = acc.astype(y_ref.dtype)

    # BN partial statistics over the valid output columns of this tile (f32).
    smask = colmask[hb:hb + r, :]
    masked = acc * smask
    st_ref[0, 0, :, :] = jnp.concatenate(
        [jnp.sum(masked, axis=0, keepdims=True),
         jnp.sum(masked * acc, axis=0, keepdims=True)], axis=0)


def _residual_out_kernel(y_ref, x1_ref, a_ref, c_ref, o_ref):
    # Last CBR's folded BN affine + ReLU fused with the residual add: out = x1 + relu(a*y+c).
    act = jnp.maximum(y_ref[...].astype(jnp.float32) * a_ref[...] + c_ref[...], 0.0)
    o_ref[...] = x1_ref[...].astype(jnp.float32) + act


# ----------------------------------------------------------------------------- wrappers
def _conv1x1(x_flat, w_p, b_row, *, w2p, wv, n_imgrows):
    m, cin_p = x_flat.shape
    cout_p = w_p.shape[1]
    tm = _pick_imgrow_tile(n_imgrows, w2p, cout_p) * w2p
    kernel = functools.partial(_conv1x1_kernel, w2p=w2p, wv=wv)
    return pl.pallas_call(
        kernel,
        out_shape=jax.ShapeDtypeStruct((m, cout_p), jnp.bfloat16),
        grid_spec=pltpu.PrefetchScalarGridSpec(
            num_scalar_prefetch=0,
            grid=(m // tm,),
            in_specs=[
                pl.BlockSpec((tm, cin_p), lambda i: (i, 0)),
                pl.BlockSpec((cin_p, cout_p), lambda i: (0, 0)),    # resident
                pl.BlockSpec((1, cout_p), lambda i: (0, 0)),        # resident
            ],
            out_specs=pl.BlockSpec((tm, cout_p), lambda i: (i, 0)),
        ),
        compiler_params=pltpu.CompilerParams(
            dimension_semantics=("parallel",),
            vmem_limit_bytes=VMEM_LIMIT_BYTES),
    )(x_flat, w_p, b_row)


def _conv3x3_stats(x3d, w9, a_row, c_row, *, w2p, wv, th, fuse, roll_down):
    n, rows, cp = x3d.shape
    h = rows // w2p
    r = th * w2p
    hb = 2 * w2p
    nblk = h // th
    nhalo = rows // hb
    steps = r // hb

    kernel = functools.partial(_conv3x3_stats_kernel, r=r, hb=hb, w2p=w2p, wv=wv,
                               fuse=fuse, roll_down=roll_down)

    return pl.pallas_call(
        kernel,
        out_shape=(jax.ShapeDtypeStruct((n, rows, cp), jnp.bfloat16),
                   jax.ShapeDtypeStruct((n, nblk, 2, cp), jnp.float32)),
        grid_spec=pltpu.PrefetchScalarGridSpec(
            num_scalar_prefetch=0,
            grid=(n, nblk),
            in_specs=[
                pl.BlockSpec((1, hb, cp),
                             lambda i, j: (i, jnp.maximum(j * steps - 1, 0), 0)),
                pl.BlockSpec((1, r, cp), lambda i, j: (i, j, 0)),
                pl.BlockSpec((1, hb, cp),
                             lambda i, j: (i, jnp.minimum((j + 1) * steps, nhalo - 1), 0)),
                pl.BlockSpec((9, cp, cp), lambda i, j: (0, 0, 0)),   # resident weights
                pl.BlockSpec((1, cp), lambda i, j: (0, 0)),          # resident affine a
                pl.BlockSpec((1, cp), lambda i, j: (0, 0)),          # resident affine c
            ],
            out_specs=[
                pl.BlockSpec((1, r, cp), lambda i, j: (i, j, 0)),
                pl.BlockSpec((1, 1, 2, cp), lambda i, j: (i, j, 0, 0)),
            ],
        ),
        compiler_params=pltpu.CompilerParams(
            dimension_semantics=("parallel", "parallel"),
            vmem_limit_bytes=VMEM_LIMIT_BYTES),
    )(x3d, x3d, x3d, w9, a_row, c_row)


def _residual_out(y_flat, x1_flat, a_row, c_row, *, w2p, n_imgrows):
    m, cp = y_flat.shape
    tm = _pick_imgrow_tile(n_imgrows, w2p, cp) * w2p
    return pl.pallas_call(
        _residual_out_kernel,
        out_shape=jax.ShapeDtypeStruct((m, cp), jnp.float32),
        grid_spec=pltpu.PrefetchScalarGridSpec(
            num_scalar_prefetch=0,
            grid=(m // tm,),
            in_specs=[
                pl.BlockSpec((tm, cp), lambda i: (i, 0)),
                pl.BlockSpec((tm, cp), lambda i: (i, 0)),
                pl.BlockSpec((1, cp), lambda i: (0, 0)),
                pl.BlockSpec((1, cp), lambda i: (0, 0)),
            ],
            out_specs=pl.BlockSpec((tm, cp), lambda i: (i, 0)),
        ),
        compiler_params=pltpu.CompilerParams(
            dimension_semantics=("parallel",),
            vmem_limit_bytes=VMEM_LIMIT_BYTES),
    )(y_flat, x1_flat, a_row, c_row)


def _bn_affine(stats, gamma_p, beta_p, count, scale):
    """Exact global batch stats from per-tile partials -> folded affine (optionally x2)."""
    ssum = jnp.sum(stats[:, :, 0, :], axis=(0, 1))
    ssq = jnp.sum(stats[:, :, 1, :], axis=(0, 1))
    mean = ssum / count
    var = jnp.maximum(ssq / count - mean * mean, 0.0)
    a0 = gamma_p * jax.lax.rsqrt(var + BN_EPS)
    a = (scale * a0).reshape(1, -1).astype(jnp.float32)
    c = (scale * (beta_p - mean * a0)).reshape(1, -1).astype(jnp.float32)
    return a, c


# ----------------------------------------------------------------------------- forward
@functools.partial(jax.jit, static_argnames=("t", "roll_down"))
def _forward_impl(x_nchw, params, t, roll_down):
    n, in_ch, h, w = x_nchw.shape
    out_ch = params["conv1x1_w"].shape[0]
    assert t >= 1
    assert h % 2 == 0 and w >= 1, "this kernel assumes an even H and W >= 1"

    cin_p = _round_up(in_ch, LANE)
    cp = _round_up(out_ch, LANE)
    w2p = _round_up(w + 2, 16)              # pixels live at columns [1, w]; rest is zero
    th = _pick_th(h, w2p, cp)
    cnt = float(n * h * w)

    # ---- layout glue (once): NCHW -> lane-dense, width-padded, flattened rows.
    x = jnp.transpose(x_nchw, (0, 2, 3, 1))
    x = jnp.pad(x, ((0, 0), (0, 0), (1, w2p - w - 1), (0, 0)))
    x = _pad_to(x, (n, h, w2p, cin_p)).astype(jnp.bfloat16)
    x_flat = x.reshape(n * h * w2p, cin_p)

    # ---- parameter prep (tiny, once per call).
    w1 = jnp.transpose(params["conv1x1_w"].reshape(out_ch, in_ch), (1, 0))
    w1 = _pad_to(w1, (cin_p, cp)).astype(jnp.bfloat16)
    b1 = _pad_to(params["conv1x1_b"].astype(jnp.float32), (cp,)).reshape(1, cp)

    def prep3x3(key):
        wt = jnp.transpose(params[key], (2, 3, 1, 0)).reshape(9, out_ch, out_ch)
        return _pad_to(wt, (9, cp, cp)).astype(jnp.bfloat16)

    def prep_gb(gkey, bkey):
        g = jnp.pad(params[gkey].astype(jnp.float32), (0, cp - out_ch), constant_values=1.0)
        b = _pad_to(params[bkey].astype(jnp.float32), (cp,))
        return g, b

    w3a = prep3x3("rb1_w")
    ga, bea = prep_gb("rb1_gamma", "rb1_beta")
    w3b = prep3x3("rb2_w")
    gb, beb = prep_gb("rb2_gamma", "rb2_beta")
    # NOTE: the 3x3 conv biases (rb1_b / rb2_b) cancel exactly inside train-mode BN.

    ones_row = jnp.ones((1, cp), jnp.float32)
    zeros_row = jnp.zeros((1, cp), jnp.float32)

    # ---- x1 = 1x1 conv (+ bias), stored once as bf16 in the padded layout.
    x1 = _conv1x1(x_flat, w1, b1, w2p=w2p, wv=w, n_imgrows=n * h)
    x1_3d = x1.reshape(n, h * w2p, cp)

    conv = functools.partial(_conv3x3_stats, w2p=w2p, wv=w, th=th, roll_down=roll_down)

    # ---- RB1 = CBR(2*CBR(x1)); RB2 = CBR(2*CBR(.)). The `x + x` doubling is folded
    #      into the producing CBR's BN affine (relu(2u) == 2*relu(u)).
    y1, st1 = conv(x1_3d, w3a, ones_row, zeros_row, fuse=False)
    a1, c1 = _bn_affine(st1, ga, bea, cnt, 2.0)
    y2, st2 = conv(y1, w3a, a1, c1, fuse=True)
    a2, c2 = _bn_affine(st2, ga, bea, cnt, 1.0)
    y3, st3 = conv(y2, w3b, a2, c2, fuse=True)
    a3, c3 = _bn_affine(st3, gb, beb, cnt, 2.0)
    y4, st4 = conv(y3, w3b, a3, c3, fuse=True)
    a4, c4 = _bn_affine(st4, gb, beb, cnt, 1.0)

    # ---- out = x1 + last CBR activation (affine + ReLU + residual fused in one pass).
    out_flat = _residual_out(y4.reshape(n * h * w2p, cp), x1, a4, c4,
                             w2p=w2p, n_imgrows=n * h)

    out = out_flat.reshape(n, h, w2p, cp)[:, :, 1:w + 1, :out_ch]
    return jnp.transpose(out, (0, 3, 1, 2))


def rrcnn_block_forward(x_nchw, params, t=2):
    """RRCNN_block forward (training-mode BatchNorm).  For any t >= 1 the PyTorch
    Recurrent_block reduces to conv(2*conv(z)), since the carry is only written at i==0
    and train-mode BN is a pure function of its input."""
    rd = _detect_roll_down_shift()
    try:
        return _forward_impl(x_nchw, params, int(t), rd)
    except Exception:
        if rd == 0:
            raise
        # Defensive fallback: retry with the roll-free (sliced-tap) kernel variant.
        return _forward_impl(x_nchw, params, int(t), 0)


# ----------------------------------------------------------------------------- reference
def _reference_forward(x_nchw, params):
    """Pure-JAX reference mirroring the kernel's dtype strategy (bf16 operands / storage,
    f32 statistics). The 3x3 conv bias is kept here; it cancels exactly inside BN."""
    f32, bf16 = jnp.float32, jnp.bfloat16

    def conv(z, w, pad):
        return jax.lax.conv_general_dilated(
            z.astype(bf16), w.astype(bf16), (1, 1), [(pad, pad), (pad, pad)],
            dimension_numbers=("NCHW", "OIHW", "NCHW"), preferred_element_type=f32)

    def cbr(z, w, b, g, be, scale):
        b4 = b.reshape(1, -1, 1, 1)
        y = conv(z, w, 1) + b4
        mu = jnp.mean(y, axis=(0, 2, 3), keepdims=True)
        var = jnp.mean((y - mu) ** 2, axis=(0, 2, 3), keepdims=True)
        # The kernels keep the bias-free pre-BN conv output in bf16; mirror that rounding.
        yq = (y - b4).astype(bf16).astype(f32)
        out = (yq - (mu - b4)) * jax.lax.rsqrt(var + BN_EPS) * g.reshape(1, -1, 1, 1) \
            + be.reshape(1, -1, 1, 1)
        return jnp.maximum(out, 0.0) * scale

    def rblock(z, w, b, g, be):
        a = cbr(z, w, b, g, be, 2.0)       # folded `x + x`
        return cbr(a, w, b, g, be, 1.0)

    x1 = conv(x_nchw.astype(f32), params["conv1x1_w"], 0) \
        + params["conv1x1_b"].reshape(1, -1, 1, 1)
    x1 = x1.astype(bf16).astype(f32)       # kernel stores x1 as bf16
    r = rblock(x1, params["rb1_w"], params["rb1_b"], params["rb1_gamma"], params["rb1_beta"])
    r = rblock(r, params["rb2_w"], params["rb2_b"], params["rb2_gamma"], params["rb2_beta"])
    return x1 + r


# ----------------------------------------------------------------------------- main
if __name__ == "__main__":
    in_ch, out_ch, t = 4, 8, 2
    N, H, W = 2, 16, 16

    key = jax.random.PRNGKey(0)
    keys = jax.random.split(key, 11)
    params = {
        "conv1x1_w": jax.random.normal(keys[0], (out_ch, in_ch, 1, 1), jnp.float32) * 0.3,
        "conv1x1_b": jax.random.normal(keys[1], (out_ch,), jnp.float32) * 0.1,
        "rb1_w": jax.random.normal(keys[2], (out_ch, out_ch, 3, 3), jnp.float32) * 0.1,
        "rb1_b": jax.random.normal(keys[3], (out_ch,), jnp.float32) * 0.1,
        "rb1_gamma": 1.0 + 0.1 * jax.random.normal(keys[4], (out_ch,), jnp.float32),
        "rb1_beta": 0.1 * jax.random.normal(keys[5], (out_ch,), jnp.float32),
        "rb2_w": jax.random.normal(keys[6], (out_ch, out_ch, 3, 3), jnp.float32) * 0.1,
        "rb2_b": jax.random.normal(keys[7], (out_ch,), jnp.float32) * 0.1,
        "rb2_gamma": 1.0 + 0.1 * jax.random.normal(keys[8], (out_ch,), jnp.float32),
        "rb2_beta": 0.1 * jax.random.normal(keys[9], (out_ch,), jnp.float32),
    }
    x = jax.random.normal(keys[10], (N, in_ch, H, W), jnp.float32)

    out = rrcnn_block_forward(x, params, t=t)
    out = jax.block_until_ready(out)

    ref = _reference_forward(x, params)
    assert out.shape == ref.shape == (N, out_ch, H, W), (out.shape, ref.shape)
    max_err = float(jnp.max(jnp.abs(out - ref)))
    assert jnp.allclose(out, ref, rtol=2e-2, atol=2e-2), f"mismatch vs reference: {max_err}"

    print("KERNEL_OK")
</pallas_src>

<mosaic_0001>
module attributes {stable_mosaic.version = 11 : i64} {
  func.func @_roll_probe_kernel(%arg0: memref<32x128xf32, #tpu.memory_space<vmem>>, %arg1: memref<32x128xf32, #tpu.memory_space<vmem>>) attributes {dimension_semantics = [], scalar_prefetch = 0 : i64, scratch_operands = 0 : i64, tpu.core_type = #tpu.core_type<tc>} {
    %c0 = arith.constant 0 : index
    %c0_0 = arith.constant 0 : index
    %0 = vector.load %arg0[%c0, %c0_0] : memref<32x128xf32, #tpu.memory_space<vmem>>, vector<32x128xf32>
    %c1_i32 = arith.constant 1 : i32
    %1 = tpu.dynamic_rotate %0 by %c1_i32 dim 0 : vector<32x128xf32>, i32 -> vector<32x128xf32>
    %c0_1 = arith.constant 0 : index
    %c0_2 = arith.constant 0 : index
    %2 = vector.load %arg1[%c0_1, %c0_2] : memref<32x128xf32, #tpu.memory_space<vmem>>, vector<32x128xf32>
    tpu.vector_store %arg1[%c0_1, %c0_2], %1 {strides = array<i32>} : memref<32x128xf32, #tpu.memory_space<vmem>>, vector<32x128xf32>,
    return
  }
}

module attributes {stable_mosaic.version = 11 : i64} {
  func.func @_conv1x1_kernel(%arg0: i32, %arg1: memref<512x128xbf16, #tpu.memory_space<vmem>>, %arg2: memref<128x128xbf16, #tpu.memory_space<vmem>>, %arg3: memref<1x128xf32, #tpu.memory_space<vmem>>, %arg4: memref<512x128xbf16, #tpu.memory_space<vmem>>) attributes {dimension_semantics = [#tpu.dimension_semantics<parallel>], iteration_bounds = array<i64: 2>, scalar_prefetch = 0 : i64, scratch_operands = 0 : i64, tpu.core_type = #tpu.core_type<tc>, window_params = [{transform_indices = @transform_0, window_bounds = array<i64: 512, 128>}, {pipeline_mode = #tpu.pipeline_mode<synchronous>, transform_indices = @transform_1, window_bounds = array<i64: 128, 128>}, {pipeline_mode = #tpu.pipeline_mode<synchronous>, transform_indices = @transform_2, window_bounds = array<i64: 1, 128>}, {transform_indices = @transform_3, window_bounds = array<i64: 512, 128>}]} {
    %c0 = arith.constant 0 : index
    %c0_0 = arith.constant 0 : index
    %0 = vector.load %arg1[%c0, %c0_0] : memref<512x128xbf16, #tpu.memory_space<vmem>>, vector<512x128xbf16>
    %c0_1 = arith.constant 0 : index
    %c0_2 = arith.constant 0 : index
    %1 = vector.load %arg2[%c0_1, %c0_2] : memref<128x128xbf16, #tpu.memory_space<vmem>>, vector<128x128xbf16>
    %cst = arith.constant dense<0.000000e+00> : vector<512x128xf32>
    %2 = tpu.matmul %0, %1, %cst {dimension_numbers = #tpu.dot_dimension_numbers<[1], [0], [0], [1], [0, 0, 1, 1], [], []>} : vector<512x128xbf16>, vector<128x128xbf16>, vector<512x128xf32> -> vector<512x128xf32>
    %c0_3 = arith.constant 0 : index
    %c0_4 = arith.constant 0 : index
    %3 = vector.load %arg3[%c0_3, %c0_4] : memref<1x128xf32, #tpu.memory_space<vmem>>, vector<1x128xf32>
    %4 = vector.broadcast %3 : vector<1x128xf32> to vector<512x128xf32>
    %5 = arith.addf %2, %4 : vector<512x128xf32>
    %6 = tpu.iota {dimensions = array<i32: 0>} : vector<512x1xi32>
    %7 = arith.sitofp %6 : vector<512x1xi32> to vector<512x1xf32>
    %cst_5 = arith.constant 5.000000e-01 : f32
    %8 = vector.broadcast %cst_5 : f32 to vector<512x1xf32>
    %9 = arith.addf %7, %8 : vector<512x1xf32>
    %cst_6 = arith.constant 3.125000e-02 : f32
    %10 = vector.broadcast %cst_6 : f32 to vector<512x1xf32>
    %11 = arith.mulf %9, %10 : vector<512x1xf32>
    %12 = math.floor %11 : vector<512x1xf32>
    %cst_7 = arith.constant 3.200000e+01 : f32
    %13 = vector.broadcast %cst_7 : f32 to vector<512x1xf32>
    %14 = arith.mulf %12, %13 : vector<512x1xf32>
    %15 = arith.subf %7, %14 : vector<512x1xf32>
    %cst_8 = arith.constant 5.000000e-01 : f32
    %16 = vector.broadcast %cst_8 : f32 to vector<512x1xf32>
    %17 = arith.cmpf oge, %15, %16 : vector<512x1xf32>
    %cst_9 = arith.constant 1.650000e+01 : f32
    %18 = vector.broadcast %cst_9 : f32 to vector<512x1xf32>
    %19 = arith.cmpf ole, %15, %18 : vector<512x1xf32>
    %20 = arith.andi %17, %19 : vector<512x1xi1>
    %21 = arith.extui %20 : vector<512x1xi1> to vector<512x1xi32>
    %22 = arith.sitofp %21 : vector<512x1xi32> to vector<512x1xf32>
    %23 = vector.broadcast %22 : vector<512x1xf32> to vector<512x128xf32>
    %24 = arith.mulf %5, %23 : vector<512x128xf32>
    %25 = arith.truncf %24 : vector<512x128xf32> to vector<512x128xbf16>
    %c0_10 = arith.constant 0 : index
    %c0_11 = arith.constant 0 : index
    %26 = vector.load %arg4[%c0_10, %c0_11] : memref<512x128xbf16, #tpu.memory_space<vmem>>, vector<512x128xbf16>
    tpu.vector_store %arg4[%c0_10, %c0_11], %25 {strides = array<i32>} : memref<512x128xbf16, #tpu.memory_space<vmem>>, vector<512x128xbf16>,
    return
  }
  func.func @transform_0(%arg0: i32) -> (i32, i32) {
    %c0_i32 = arith.constant 0 : i32
    %c0_i32_0 = arith.constant 0 : i32
    return %arg0, %c0_i32 : i32, i32
  }
  func.func @transform_1(%arg0: i32) -> (i32, i32) {
    %c0_i32 = arith.constant 0 : i32
    %c0_i32_0 = arith.constant 0 : i32
    %c0_i32_1 = arith.constant 0 : i32
    return %c0_i32, %c0_i32_0 : i32, i32
  }
  func.func @transform_2(%arg0: i32) -> (i32, i32) {
    %c0_i32 = arith.constant 0 : i32
    %c0_i32_0 = arith.constant 0 : i32
    %c0_i32_1 = arith.constant 0 : i32
    return %c0_i32, %c0_i32_0 : i32, i32
  }
  func.func @transform_3(%arg0: i32) -> (i32, i32) {
    %c0_i32 = arith.constant 0 : i32
    %c0_i32_0 = arith.constant 0 : i32
    return %arg0, %c0_i32 : i32, i32
  }
}

module attributes {stable_mosaic.version = 11 : i64} {
  func.func @_conv3x3_stats_kernel(%arg0: i32, %arg1: i32, %arg2: memref<1x64x128xbf16, #tpu.memory_space<vmem>>, %arg3: memref<1x256x128xbf16, #tpu.memory_space<vmem>>, %arg4: memref<1x64x128xbf16, #tpu.memory_space<vmem>>, %arg5: memref<9x128x128xbf16, #tpu.memory_space<vmem>>, %arg6: memref<1x128xf32, #tpu.memory_space<vmem>>, %arg7: memref<1x128xf32, #tpu.memory_space<vmem>>, %arg8: memref<1x256x128xbf16, #tpu.memory_space<vmem>>, %arg9: memref<1x1x2x128xf32, #tpu.memory_space<vmem>>) attributes {dimension_semantics = [#tpu.dimension_semantics<parallel>, #tpu.dimension_semantics<parallel>], iteration_bounds = array<i64: 2, 2>, scalar_prefetch = 0 : i64, scratch_operands = 0 : i64, tpu.core_type = #tpu.core_type<tc>, window_params = [{transform_indices = @transform_0, window_bounds = array<i64: 1, 64, 128>}, {transform_indices = @transform_1, window_bounds = array<i64: 1, 256, 128>}, {transform_indices = @transform_2, window_bounds = array<i64: 1, 64, 128>}, {pipeline_mode = #tpu.pipeline_mode<synchronous>, transform_indices = @transform_3, window_bounds = array<i64: 9, 128, 128>}, {pipeline_mode = #tpu.pipeline_mode<synchronous>, transform_indices = @transform_4, window_bounds = array<i64: 1, 128>}, {pipeline_mode = #tpu.pipeline_mode<synchronous>, transform_indices = @transform_5, window_bounds = array<i64: 1, 128>}, {transform_indices = @transform_6, window_bounds = array<i64: 1, 256, 128>}, {transform_indices = @transform_7, window_bounds = array<i64: 1, 1, 2, 128>}]} {
    %c0 = arith.constant 0 : index
    %c0_0 = arith.constant 0 : index
    %c0_1 = arith.constant 0 : index
    %0 = vector.load %arg2[%c0, %c0_0, %c0_1] : memref<1x64x128xbf16, #tpu.memory_space<vmem>>, vector<1x64x128xbf16>
    %1 = vector.shape_cast %0 : vector<1x64x128xbf16> to vector<64x128xbf16>
    %2 = arith.extf %1 : vector<64x128xbf16> to vector<64x128xf32>
    %c0_i32 = arith.constant 0 : i32
    %3 = arith.cmpi sgt, %arg1, %c0_i32 : i32
    %cst = arith.constant 1.000000e+00 : f32
    %cst_2 = arith.constant 0.000000e+00 : f32
    %4 = arith.select %3, %cst, %cst_2 : f32
    %5 = vector.broadcast %4 : f32 to vector<64x128xf32>
    %6 = arith.mulf %2, %5 : vector<64x128xf32>
    %c0_3 = arith.constant 0 : index
    %c0_4 = arith.constant 0 : index
    %c0_5 = arith.constant 0 : index
    %7 = vector.load %arg3[%c0_3, %c0_4, %c0_5] : memref<1x256x128xbf16, #tpu.memory_space<vmem>>, vector<1x256x128xbf16>
    %8 = vector.shape_cast %7 : vector<1x256x128xbf16> to vector<256x128xbf16>
    %9 = arith.extf %8 : vector<256x128xbf16> to vector<256x128xf32>
    %c0_6 = arith.constant 0 : index
    %c0_7 = arith.constant 0 : index
    %c0_8 = arith.constant 0 : index
    %10 = vector.load %arg4[%c0_6, %c0_7, %c0_8] : memref<1x64x128xbf16, #tpu.memory_space<vmem>>, vector<1x64x128xbf16>
    %11 = vector.shape_cast %10 : vector<1x64x128xbf16> to vector<64x128xbf16>
    %12 = arith.extf %11 : vector<64x128xbf16> to vector<64x128xf32>
    %c1_i32 = arith.constant 1 : i32
    %13 = arith.cmpi slt, %arg1, %c1_i32 : i32
    %cst_9 = arith.constant 1.000000e+00 : f32
    %cst_10 = arith.constant 0.000000e+00 : f32
    %14 = arith.select %13, %cst_9, %cst_10 : f32
    %15 = vector.broadcast %14 : f32 to vector<64x128xf32>
    %16 = arith.mulf %12, %15 : vector<64x128xf32>
    %17 = tpu.concatenate %6, %9, %16 in 0 : vector<64x128xf32>, vector<256x128xf32>, vector<64x128xf32> -> vector<384x128xf32>
    %18 = tpu.iota {dimensions = array<i32: 0>} : vector<384x1xi32>
    %19 = arith.sitofp %18 : vector<384x1xi32> to vector<384x1xf32>
    %cst_11 = arith.constant 5.000000e-01 : f32
    %20 = vector.broadcast %cst_11 : f32 to vector<384x1xf32>
    %21 = arith.addf %19, %20 : vector<384x1xf32>
    %cst_12 = arith.constant 3.125000e-02 : f32
    %22 = vector.broadcast %cst_12 : f32 to vector<384x1xf32>
    %23 = arith.mulf %21, %22 : vector<384x1xf32>
    %24 = math.floor %23 : vector<384x1xf32>
    %cst_13 = arith.constant 3.200000e+01 : f32
    %25 = vector.broadcast %cst_13 : f32 to vector<384x1xf32>
    %26 = arith.mulf %24, %25 : vector<384x1xf32>
    %27 = arith.subf %19, %26 : vector<384x1xf32>
    %cst_14 = arith.constant 5.000000e-01 : f32
    %28 = vector.broadcast %cst_14 : f32 to vector<384x1xf32>
    %29 = arith.cmpf oge, %27, %28 : vector<384x1xf32>
    %cst_15 = arith.constant 1.650000e+01 : f32
    %30 = vector.broadcast %cst_15 : f32 to vector<384x1xf32>
    %31 = arith.cmpf ole, %27, %30 : vector<384x1xf32>
    %32 = arith.andi %29, %31 : vector<384x1xi1>
    %33 = arith.extui %32 : vector<384x1xi1> to vector<384x1xi32>
    %34 = arith.sitofp %33 : vector<384x1xi32> to vector<384x1xf32>
    %35 = arith.truncf %17 : vector<384x128xf32> to vector<384x128xbf16>
    %cst_16 = arith.constant 0.000000e+00 : f32
    %36 = vector.broadcast %cst_16 : f32 to vector<256x128xf32>
    %37 = vector.extract_strided_slice %35 {offsets = [31, 0], sizes = [256, 128], strides = [1, 1]} : vector<384x128xbf16> to vector<256x128xbf16>
    %c0_17 = arith.constant 0 : index
    %c0_18 = arith.constant 0 : index
    %c0_19 = arith.constant 0 : index
    %38 = vector.load %arg5[%c0_17, %c0_18, %c0_19] : memref<9x128x128xbf16, #tpu.memory_space<vmem>>, vector<1x128x128xbf16>
    %39 = vector.shape_cast %38 : vector<1x128x128xbf16> to vector<128x128xbf16>
    %cst_20 = arith.constant dense<0.000000e+00> : vector<256x128xf32>
    %40 = tpu.matmul %37, %39, %cst_20 {dimension_numbers = #tpu.dot_dimension_numbers<[1], [0], [0], [1], [0, 0, 1, 1], [], []>} : vector<256x128xbf16>, vector<128x128xbf16>, vector<256x128xf32> -> vector<256x128xf32>
    %41 = arith.addf %36, %40 : vector<256x128xf32>
    %42 = vector.extract_strided_slice %35 {offsets = [32, 0], sizes = [256, 128], strides = [1, 1]} : vector<384x128xbf16> to vector<256x128xbf16>
    %c1 = arith.constant 1 : index
    %c0_21 = arith.constant 0 : index
    %c0_22 = arith.constant 0 : index
    %43 = vector.load %arg5[%c1, %c0_21, %c0_22] : memref<9x128x128xbf16, #tpu.memory_space<vmem>>, vector<1x128x128xbf16>
    %44 = vector.shape_cast %43 : vector<1x128x128xbf16> to vector<128x128xbf16>
    %cst_23 = arith.constant dense<0.000000e+00> : vector<256x128xf32>
    %45 = tpu.matmul %42, %44, %cst_23 {dimension_numbers = #tpu.dot_dimension_numbers<[1], [0], [0], [1], [0, 0, 1, 1], [], []>} : vector<256x128xbf16>, vector<128x128xbf16>, vector<256x128xf32> -> vector<256x128xf32>
    %46 = arith.addf %41, %45 : vector<256x128xf32>
    %47 = vector.extract_strided_slice %35 {offsets = [33, 0], sizes = [256, 128], strides = [1, 1]} : vector<384x128xbf16> to vector<256x128xbf16>
    %c2 = arith.constant 2 : index
    %c0_24 = arith.constant 0 : index
    %c0_25 = arith.constant 0 : index
    %48 = vector.load %arg5[%c2, %c0_24, %c0_25] : memref<9x128x128xbf16, #tpu.memory_space<vmem>>, vector<1x128x128xbf16>
    %49 = vector.shape_cast %48 : vector<1x128x128xbf16> to vector<128x128xbf16>
    %cst_26 = arith.constant dense<0.000000e+00> : vector<256x128xf32>
    %50 = tpu.matmul %47, %49, %cst_26 {dimension_numbers = #tpu.dot_dimension_numbers<[1], [0], [0], [1], [0, 0, 1, 1], [], []>} : vector<256x128xbf16>, vector<128x128xbf16>, vector<256x128xf32> -> vector<256x128xf32>
    %51 = arith.addf %46, %50 : vector<256x128xf32>
    %52 = vector.extract_strided_slice %35 {offsets = [63, 0], sizes = [256, 128], strides = [1, 1]} : vector<384x128xbf16> to vector<256x128xbf16>
    %c3 = arith.constant 3 : index
    %c0_27 = arith.constant 0 : index
    %c0_28 = arith.constant 0 : index
    %53 = vector.load %arg5[%c3, %c0_27, %c0_28] : memref<9x128x128xbf16, #tpu.memory_space<vmem>>, vector<1x128x128xbf16>
    %54 = vector.shape_cast %53 : vector<1x128x128xbf16> to vector<128x128xbf16>
    %cst_29 = arith.constant dense<0.000000e+00> : vector<256x128xf32>
    %55 = tpu.matmul %52, %54, %cst_29 {dimension_numbers = #tpu.dot_dimension_numbers<[1], [0], [0], [1], [0, 0, 1, 1], [], []>} : vector<256x128xbf16>, vector<128x128xbf16>, vector<256x128xf32> -> vector<256x128xf32>
    %56 = arith.addf %51, %55 : vector<256x128xf32>
    %57 = vector.extract_strided_slice %35 {offsets = [64, 0], sizes = [256, 128], strides = [1, 1]} : vector<384x128xbf16> to vector<256x128xbf16>
    %c4 = arith.constant 4 : index
    %c0_30 = arith.constant 0 : index
    %c0_31 = arith.constant 0 : index
    %58 = vector.load %arg5[%c4, %c0_30, %c0_31] : memref<9x128x128xbf16, #tpu.memory_space<vmem>>, vector<1x128x128xbf16>
    %59 = vector.shape_cast %58 : vector<1x128x128xbf16> to vector<128x128xbf16>
    %cst_32 = arith.constant dense<0.000000e+00> : vector<256x128xf32>
    %60 = tpu.matmul %57, %59, %cst_32 {dimension_numbers = #tpu.dot_dimension_numbers<[1], [0], [0], [1], [0, 0, 1, 1], [], []>} : vector<256x128xbf16>, vector<128x128xbf16>, vector<256x128xf32> -> vector<256x128xf32>
    %61 = arith.addf %56, %60 : vector<256x128xf32>
    %62 = vector.extract_strided_slice %35 {offsets = [65, 0], sizes = [256, 128], strides = [1, 1]} : vector<384x128xbf16> to vector<256x128xbf16>
    %c5 = arith.constant 5 : index
    %c0_33 = arith.constant 0 : index
    %c0_34 = arith.constant 0 : index
    %63 = vector.load %arg5[%c5, %c0_33, %c0_34] : memref<9x128x128xbf16, #tpu.memory_space<vmem>>, vector<1x128x128xbf16>
    %64 = vector.shape_cast %63 : vector<1x128x128xbf16> to vector<128x128xbf16>
    %cst_35 = arith.constant dense<0.000000e+00> : vector<256x128xf32>
    %65 = tpu.matmul %62, %64, %cst_35 {dimension_numbers = #tpu.dot_dimension_numbers<[1], [0], [0], [1], [0, 0, 1, 1], [], []>} : vector<256x128xbf16>, vector<128x128xbf16>, vector<256x128xf32> -> vector<256x128xf32>
    %66 = arith.addf %61, %65 : vector<256x128xf32>
    %67 = vector.extract_strided_slice %35 {offsets = [95, 0], sizes = [256, 128], strides = [1, 1]} : vector<384x128xbf16> to vector<256x128xbf16>
    %c6 = arith.constant 6 : index
    %c0_36 = arith.constant 0 : index
    %c0_37 = arith.constant 0 : index
    %68 = vector.load %arg5[%c6, %c0_36, %c0_37] : memref<9x128x128xbf16, #tpu.memory_space<vmem>>, vector<1x128x128xbf16>
    %69 = vector.shape_cast %68 : vector<1x128x128xbf16> to vector<128x128xbf16>
    %cst_38 = arith.constant dense<0.000000e+00> : vector<256x128xf32>
    %70 = tpu.matmul %67, %69, %cst_38 {dimension_numbers = #tpu.dot_dimension_numbers<[1], [0], [0], [1], [0, 0, 1, 1], [], []>} : vector<256x128xbf16>, vector<128x128xbf16>, vector<256x128xf32> -> vector<256x128xf32>
    %71 = arith.addf %66, %70 : vector<256x128xf32>
    %72 = vector.extract_strided_slice %35 {offsets = [96, 0], sizes = [256, 128], strides = [1, 1]} : vector<384x128xbf16> to vector<256x128xbf16>
    %c7 = arith.constant 7 : index
    %c0_39 = arith.constant 0 : index
    %c0_40 = arith.constant 0 : index
    %73 = vector.load %arg5[%c7, %c0_39, %c0_40] : memref<9x128x128xbf16, #tpu.memory_space<vmem>>, vector<1x128x128xbf16>
    %74 = vector.shape_cast %73 : vector<1x128x128xbf16> to vector<128x128xbf16>
    %cst_41 = arith.constant dense<0.000000e+00> : vector<256x128xf32>
    %75 = tpu.matmul %72, %74, %cst_41 {dimension_numbers = #tpu.dot_dimension_numbers<[1], [0], [0], [1], [0, 0, 1, 1], [], []>} : vector<256x128xbf16>, vector<128x128xbf16>, vector<256x128xf32> -> vector<256x128xf32>
    %76 = arith.addf %71, %75 : vector<256x128xf32>
    %77 = vector.extract_strided_slice %35 {offsets = [97, 0], sizes = [256, 128], strides = [1, 1]} : vector<384x128xbf16> to vector<256x128xbf16>
    %c8 = arith.constant 8 : index
    %c0_42 = arith.constant 0 : index
    %c0_43 = arith.constant 0 : index
    %78 = vector.load %arg5[%c8, %c0_42, %c0_43] : memref<9x128x128xbf16, #tpu.memory_space<vmem>>, vector<1x128x128xbf16>
    %79 = vector.shape_cast %78 : vector<1x128x128xbf16> to vector<128x128xbf16>
    %cst_44 = arith.constant dense<0.000000e+00> : vector<256x128xf32>
    %80 = tpu.matmul %77, %79, %cst_44 {dimension_numbers = #tpu.dot_dimension_numbers<[1], [0], [0], [1], [0, 0, 1, 1], [], []>} : vector<256x128xbf16>, vector<128x128xbf16>, vector<256x128xf32> -> vector<256x128xf32>
    %81 = arith.addf %76, %80 : vector<256x128xf32>
    %82 = arith.truncf %81 : vector<256x128xf32> to vector<256x128xbf16>
    %c0_45 = arith.constant 0 : index
    %c0_46 = arith.constant 0 : index
    %c0_47 = arith.constant 0 : index
    %83 = vector.load %arg8[%c0_45, %c0_46, %c0_47] : memref<1x256x128xbf16, #tpu.memory_space<vmem>>, vector<1x256x128xbf16>
    %84 = vector.shape_cast %83 : vector<1x256x128xbf16> to vector<256x128xbf16>
    %85 = vector.shape_cast %82 : vector<256x128xbf16> to vector<1x256x128xbf16>
    tpu.vector_store %arg8[%c0_45, %c0_46, %c0_47], %85 {strides = array<i32>} : memref<1x256x128xbf16, #tpu.memory_space<vmem>>, vector<1x256x128xbf16>,
    %86 = vector.extract_strided_slice %34 {offsets = [64, 0], sizes = [256, 1], strides = [1, 1]} : vector<384x1xf32> to vector<256x1xf32>
    %87 = vector.broadcast %86 : vector<256x1xf32> to vector<256x128xf32>
    %88 = arith.mulf %81, %87 : vector<256x128xf32>
    %cst_48 = arith.constant dense<0.000000e+00> : vector<128xf32>
    %89 = vector.multi_reduction <add>, %88, %cst_48 [0] : vector<256x128xf32> to vector<128xf32>
    %90 = vector.shape_cast %89 : vector<128xf32> to vector<1x128xf32>
    %91 = arith.mulf %88, %81 : vector<256x128xf32>
    %cst_49 = arith.constant dense<0.000000e+00> : vector<128xf32>
    %92 = vector.multi_reduction <add>, %91, %cst_49 [0] : vector<256x128xf32> to vector<128xf32>
    %93 = vector.shape_cast %92 : vector<128xf32> to vector<1x128xf32>
    %94 = tpu.concatenate %90, %93 in 0 : vector<1x128xf32>, vector<1x128xf32> -> vector<2x128xf32>
    %c0_50 = arith.constant 0 : index
    %c0_51 = arith.constant 0 : index
    %c0_52 = arith.constant 0 : index
    %c0_53 = arith.constant 0 : index
    %95 = vector.load %arg9[%c0_50, %c0_51, %c0_52, %c0_53] : memref<1x1x2x128xf32, #tpu.memory_space<vmem>>, vector<1x1x2x128xf32>
    %96 = vector.shape_cast %95 : vector<1x1x2x128xf32> to vector<2x128xf32>
    %97 = vector.shape_cast %94 : vector<2x128xf32> to vector<1x1x2x128xf32>
    tpu.vector_store %arg9[%c0_50, %c0_51, %c0_52, %c0_53], %97 {strides = array<i32>} : memref<1x1x2x128xf32, #tpu.memory_space<vmem>>, vector<1x1x2x128xf32>,
    return
  }
  func.func @transform_0(%arg0: i32, %arg1: i32) -> (i32, i32, i32) {
    %c4_i32 = arith.constant 4 : i32
    %0 = arith.muli %arg1, %c4_i32 : i32
    %c1_i32 = arith.constant 1 : i32
    %1 = arith.subi %0, %c1_i32 : i32
    %c0_i32 = arith.constant 0 : i32
    %2 = arith.maxsi %1, %c0_i32 : i32
    %c0_i32_0 = arith.constant 0 : i32
    %c0_i32_1 = arith.constant 0 : i32
    return %arg0, %2, %c0_i32_0 : i32, i32, i32
  }
  func.func @transform_1(%arg0: i32, %arg1: i32) -> (i32, i32, i32) {
    %c0_i32 = arith.constant 0 : i32
    %c0_i32_0 = arith.constant 0 : i32
    return %arg0, %arg1, %c0_i32 : i32, i32, i32
  }
  func.func @transform_2(%arg0: i32, %arg1: i32) -> (i32, i32, i32) {
    %c1_i32 = arith.constant 1 : i32
    %0 = arith.addi %arg1, %c1_i32 : i32
    %c4_i32 = arith.constant 4 : i32
    %1 = arith.muli %0, %c4_i32 : i32
    %c7_i32 = arith.constant 7 : i32
    %2 = arith.minsi %1, %c7_i32 : i32
    %c0_i32 = arith.constant 0 : i32
    %c0_i32_0 = arith.constant 0 : i32
    return %arg0, %2, %c0_i32 : i32, i32, i32
  }
  func.func @transform_3(%arg0: i32, %arg1: i32) -> (i32, i32, i32) {
    %c0_i32 = arith.constant 0 : i32
    %c0_i32_0 = arith.constant 0 : i32
    %c0_i32_1 = arith.constant 0 : i32
    %c0_i32_2 = arith.constant 0 : i32
    return %c0_i32, %c0_i32_0, %c0_i32_1 : i32, i32, i32
  }
  func.func @transform_4(%arg0: i32, %arg1: i32) -> (i32, i32) {
    %c0_i32 = arith.constant 0 : i32
    %c0_i32_0 = arith.constant 0 : i32
    %c0_i32_1 = arith.constant 0 : i32
    return %c0_i32, %c0_i32_0 : i32, i32
  }
  func.func @transform_5(%arg0: i32, %arg1: i32) -> (i32, i32) {
    %c0_i32 = arith.constant 0 : i32
    %c0_i32_0 = arith.constant 0 : i32
    %c0_i32_1 = arith.constant 0 : i32
    return %c0_i32, %c0_i32_0 : i32, i32
  }
  func.func @transform_6(%arg0: i32, %arg1: i32) -> (i32, i32, i32) {
    %c0_i32 = arith.constant 0 : i32
    %c0_i32_0 = arith.constant 0 : i32
    return %arg0, %arg1, %c0_i32 : i32, i32, i32
  }
  func.func @transform_7(%arg0: i32, %arg1: i32) -> (i32, i32, i32, i32) {
    %c0_i32 = arith.constant 0 : i32
    %c0_i32_0 = arith.constant 0 : i32
    %c0_i32_1 = arith.constant 0 : i32
    return %arg0, %arg1, %c0_i32, %c0_i32_0 : i32, i32, i32, i32
  }
}

module attributes {stable_mosaic.version = 11 : i64} {
  func.func @_residual_out_kernel(%arg0: i32, %arg1: memref<512x128xbf16, #tpu.memory_space<vmem>>, %arg2: memref<512x128xbf16, #tpu.memory_space<vmem>>, %arg3: memref<1x128xf32, #tpu.memory_space<vmem>>, %arg4: memref<1x128xf32, #tpu.memory_space<vmem>>, %arg5: memref<512x128xf32, #tpu.memory_space<vmem>>) attributes {dimension_semantics = [#tpu.dimension_semantics<parallel>], iteration_bounds = array<i64: 2>, scalar_prefetch = 0 : i64, scratch_operands = 0 : i64, tpu.core_type = #tpu.core_type<tc>, window_params = [{transform_indices = @transform_0, window_bounds = array<i64: 512, 128>}, {transform_indices = @transform_1, window_bounds = array<i64: 512, 128>}, {pipeline_mode = #tpu.pipeline_mode<synchronous>, transform_indices = @transform_2, window_bounds = array<i64: 1, 128>}, {pipeline_mode = #tpu.pipeline_mode<synchronous>, transform_indices = @transform_3, window_bounds = array<i64: 1, 128>}, {transform_indices = @transform_4, window_bounds = array<i64: 512, 128>}]} {
    %c0 = arith.constant 0 : index
    %c0_0 = arith.constant 0 : index
    %0 = vector.load %arg1[%c0, %c0_0] : memref<512x128xbf16, #tpu.memory_space<vmem>>, vector<512x128xbf16>
    %1 = arith.extf %0 : vector<512x128xbf16> to vector<512x128xf32>
    %c0_1 = arith.constant 0 : index
    %c0_2 = arith.constant 0 : index
    %2 = vector.load %arg3[%c0_1, %c0_2] : memref<1x128xf32, #tpu.memory_space<vmem>>, vector<1x128xf32>
    %3 = vector.broadcast %2 : vector<1x128xf32> to vector<512x128xf32>
    %4 = arith.mulf %1, %3 : vector<512x128xf32>
    %c0_3 = arith.constant 0 : index
    %c0_4 = arith.constant 0 : index
    %5 = vector.load %arg4[%c0_3, %c0_4] : memref<1x128xf32, #tpu.memory_space<vmem>>, vector<1x128xf32>
    %6 = vector.broadcast %5 : vector<1x128xf32> to vector<512x128xf32>
    %7 = arith.addf %4, %6 : vector<512x128xf32>
    %cst = arith.constant 0.000000e+00 : f32
    %8 = vector.broadcast %cst : f32 to vector<512x128xf32>
    %9 = arith.maximumf %7, %8 : vector<512x128xf32>
    %c0_5 = arith.constant 0 : index
    %c0_6 = arith.constant 0 : index
    %10 = vector.load %arg2[%c0_5, %c0_6] : memref<512x128xbf16, #tpu.memory_space<vmem>>, vector<512x128xbf16>
    %11 = arith.extf %10 : vector<512x128xbf16> to vector<512x128xf32>
    %12 = arith.addf %11, %9 : vector<512x128xf32>
    %c0_7 = arith.constant 0 : index
    %c0_8 = arith.constant 0 : index
    %13 = vector.load %arg5[%c0_7, %c0_8] : memref<512x128xf32, #tpu.memory_space<vmem>>, vector<512x128xf32>
    tpu.vector_store %arg5[%c0_7, %c0_8], %12 {strides = array<i32>} : memref<512x128xf32, #tpu.memory_space<vmem>>, vector<512x128xf32>,
    return
  }
  func.func @transform_0(%arg0: i32) -> (i32, i32) {
    %c0_i32 = arith.constant 0 : i32
    %c0_i32_0 = arith.constant 0 : i32
    return %arg0, %c0_i32 : i32, i32
  }
  func.func @transform_1(%arg0: i32) -> (i32, i32) {
    %c0_i32 = arith.constant 0 : i32
    %c0_i32_0 = arith.constant 0 : i32
    return %arg0, %c0_i32 : i32, i32
  }
  func.func @transform_2(%arg0: i32) -> (i32, i32) {
    %c0_i32 = arith.constant 0 : i32
    %c0_i32_0 = arith.constant 0 : i32
    %c0_i32_1 = arith.constant 0 : i32
    return %c0_i32, %c0_i32_0 : i32, i32
  }
  func.func @transform_3(%arg0: i32) -> (i32, i32) {
    %c0_i32 = arith.constant 0 : i32
    %c0_i32_0 = arith.constant 0 : i32
    %c0_i32_1 = arith.constant 0 : i32
    return %c0_i32, %c0_i32_0 : i32, i32
  }
  func.func @transform_4(%arg0: i32) -> (i32, i32) {
    %c0_i32 = arith.constant 0 : i32
    %c0_i32_0 = arith.constant 0 : i32
    return %arg0, %c0_i32 : i32, i32
  }
}

module attributes {stable_mosaic.version = 11 : i64} {
  func.func @_conv3x3_stats_kernel(%arg0: i32, %arg1: i32, %arg2: memref<1x64x128xbf16, #tpu.memory_space<vmem>>, %arg3: memref<1x256x128xbf16, #tpu.memory_space<vmem>>, %arg4: memref<1x64x128xbf16, #tpu.memory_space<vmem>>, %arg5: memref<9x128x128xbf16, #tpu.memory_space<vmem>>, %arg6: memref<1x128xf32, #tpu.memory_space<vmem>>, %arg7: memref<1x128xf32, #tpu.memory_space<vmem>>, %arg8: memref<1x256x128xbf16, #tpu.memory_space<vmem>>, %arg9: memref<1x1x2x128xf32, #tpu.memory_space<vmem>>) attributes {dimension_semantics = [#tpu.dimension_semantics<parallel>, #tpu.dimension_semantics<parallel>], iteration_bounds = array<i64: 2, 2>, scalar_prefetch = 0 : i64, scratch_operands = 0 : i64, tpu.core_type = #tpu.core_type<tc>, window_params = [{transform_indices = @transform_0, window_bounds = array<i64: 1, 64, 128>}, {transform_indices = @transform_1, window_bounds = array<i64: 1, 256, 128>}, {transform_indices = @transform_2, window_bounds = array<i64: 1, 64, 128>}, {pipeline_mode = #tpu.pipeline_mode<synchronous>, transform_indices = @transform_3, window_bounds = array<i64: 9, 128, 128>}, {pipeline_mode = #tpu.pipeline_mode<synchronous>, transform_indices = @transform_4, window_bounds = array<i64: 1, 128>}, {pipeline_mode = #tpu.pipeline_mode<synchronous>, transform_indices = @transform_5, window_bounds = array<i64: 1, 128>}, {transform_indices = @transform_6, window_bounds = array<i64: 1, 256, 128>}, {transform_indices = @transform_7, window_bounds = array<i64: 1, 1, 2, 128>}]} {
    %c0 = arith.constant 0 : index
    %c0_0 = arith.constant 0 : index
    %c0_1 = arith.constant 0 : index
    %0 = vector.load %arg2[%c0, %c0_0, %c0_1] : memref<1x64x128xbf16, #tpu.memory_space<vmem>>, vector<1x64x128xbf16>
    %1 = vector.shape_cast %0 : vector<1x64x128xbf16> to vector<64x128xbf16>
    %2 = arith.extf %1 : vector<64x128xbf16> to vector<64x128xf32>
    %c0_2 = arith.constant 0 : index
    %c0_3 = arith.constant 0 : index
    %3 = vector.load %arg6[%c0_2, %c0_3] : memref<1x128xf32, #tpu.memory_space<vmem>>, vector<1x128xf32>
    %4 = vector.broadcast %3 : vector<1x128xf32> to vector<64x128xf32>
    %5 = arith.mulf %2, %4 : vector<64x128xf32>
    %c0_4 = arith.constant 0 : index
    %c0_5 = arith.constant 0 : index
    %6 = vector.load %arg7[%c0_4, %c0_5] : memref<1x128xf32, #tpu.memory_space<vmem>>, vector<1x128xf32>
    %7 = vector.broadcast %6 : vector<1x128xf32> to vector<64x128xf32>
    %8 = arith.addf %5, %7 : vector<64x128xf32>
    %cst = arith.constant 0.000000e+00 : f32
    %9 = vector.broadcast %cst : f32 to vector<64x128xf32>
    %10 = arith.maximumf %8, %9 : vector<64x128xf32>
    %c0_i32 = arith.constant 0 : i32
    %11 = arith.cmpi sgt, %arg1, %c0_i32 : i32
    %cst_6 = arith.constant 1.000000e+00 : f32
    %cst_7 = arith.constant 0.000000e+00 : f32
    %12 = arith.select %11, %cst_6, %cst_7 : f32
    %13 = vector.broadcast %12 : f32 to vector<64x128xf32>
    %14 = arith.mulf %10, %13 : vector<64x128xf32>
    %c0_8 = arith.constant 0 : index
    %c0_9 = arith.constant 0 : index
    %c0_10 = arith.constant 0 : index
    %15 = vector.load %arg3[%c0_8, %c0_9, %c0_10] : memref<1x256x128xbf16, #tpu.memory_space<vmem>>, vector<1x256x128xbf16>
    %16 = vector.shape_cast %15 : vector<1x256x128xbf16> to vector<256x128xbf16>
    %17 = arith.extf %16 : vector<256x128xbf16> to vector<256x128xf32>
    %c0_11 = arith.constant 0 : index
    %c0_12 = arith.constant 0 : index
    %18 = vector.load %arg6[%c0_11, %c0_12] : memref<1x128xf32, #tpu.memory_space<vmem>>, vector<1x128xf32>
    %19 = vector.broadcast %18 : vector<1x128xf32> to vector<256x128xf32>
    %20 = arith.mulf %17, %19 : vector<256x128xf32>
    %c0_13 = arith.constant 0 : index
    %c0_14 = arith.constant 0 : index
    %21 = vector.load %arg7[%c0_13, %c0_14] : memref<1x128xf32, #tpu.memory_space<vmem>>, vector<1x128xf32>
    %22 = vector.broadcast %21 : vector<1x128xf32> to vector<256x128xf32>
    %23 = arith.addf %20, %22 : vector<256x128xf32>
    %cst_15 = arith.constant 0.000000e+00 : f32
    %24 = vector.broadcast %cst_15 : f32 to vector<256x128xf32>
    %25 = arith.maximumf %23, %24 : vector<256x128xf32>
    %c0_16 = arith.constant 0 : index
    %c0_17 = arith.constant 0 : index
    %c0_18 = arith.constant 0 : index
    %26 = vector.load %arg4[%c0_16, %c0_17, %c0_18] : memref<1x64x128xbf16, #tpu.memory_space<vmem>>, vector<1x64x128xbf16>
    %27 = vector.shape_cast %26 : vector<1x64x128xbf16> to vector<64x128xbf16>
    %28 = arith.extf %27 : vector<64x128xbf16> to vector<64x128xf32>
    %c0_19 = arith.constant 0 : index
    %c0_20 = arith.constant 0 : index
    %29 = vector.load %arg6[%c0_19, %c0_20] : memref<1x128xf32, #tpu.memory_space<vmem>>, vector<1x128xf32>
    %30 = vector.broadcast %29 : vector<1x128xf32> to vector<64x128xf32>
    %31 = arith.mulf %28, %30 : vector<64x128xf32>
    %c0_21 = arith.constant 0 : index
    %c0_22 = arith.constant 0 : index
    %32 = vector.load %arg7[%c0_21, %c0_22] : memref<1x128xf32, #tpu.memory_space<vmem>>, vector<1x128xf32>
    %33 = vector.broadcast %32 : vector<1x128xf32> to vector<64x128xf32>
    %34 = arith.addf %31, %33 : vector<64x128xf32>
    %cst_23 = arith.constant 0.000000e+00 : f32
    %35 = vector.broadcast %cst_23 : f32 to vector<64x128xf32>
    %36 = arith.maximumf %34, %35 : vector<64x128xf32>
    %c1_i32 = arith.constant 1 : i32
    %37 = arith.cmpi slt, %arg1, %c1_i32 : i32
    %cst_24 = arith.constant 1.000000e+00 : f32
    %cst_25 = arith.constant 0.000000e+00 : f32
    %38 = arith.select %37, %cst_24, %cst_25 : f32
    %39 = vector.broadcast %38 : f32 to vector<64x128xf32>
    %40 = arith.mulf %36, %39 : vector<64x128xf32>
    %41 = tpu.concatenate %14, %25, %40 in 0 : vector<64x128xf32>, vector<256x128xf32>, vector<64x128xf32> -> vector<384x128xf32>
    %42 = tpu.iota {dimensions = array<i32: 0>} : vector<384x1xi32>
    %43 = arith.sitofp %42 : vector<384x1xi32> to vector<384x1xf32>
    %cst_26 = arith.constant 5.000000e-01 : f32
    %44 = vector.broadcast %cst_26 : f32 to vector<384x1xf32>
    %45 = arith.addf %43, %44 : vector<384x1xf32>
    %cst_27 = arith.constant 3.125000e-02 : f32
    %46 = vector.broadcast %cst_27 : f32 to vector<384x1xf32>
    %47 = arith.mulf %45, %46 : vector<384x1xf32>
    %48 = math.floor %47 : vector<384x1xf32>
    %cst_28 = arith.constant 3.200000e+01 : f32
    %49 = vector.broadcast %cst_28 : f32 to vector<384x1xf32>
    %50 = arith.mulf %48, %49 : vector<384x1xf32>
    %51 = arith.subf %43, %50 : vector<384x1xf32>
    %cst_29 = arith.constant 5.000000e-01 : f32
    %52 = vector.broadcast %cst_29 : f32 to vector<384x1xf32>
    %53 = arith.cmpf oge, %51, %52 : vector<384x1xf32>
    %cst_30 = arith.constant 1.650000e+01 : f32
    %54 = vector.broadcast %cst_30 : f32 to vector<384x1xf32>
    %55 = arith.cmpf ole, %51, %54 : vector<384x1xf32>
    %56 = arith.andi %53, %55 : vector<384x1xi1>
    %57 = arith.extui %56 : vector<384x1xi1> to vector<384x1xi32>
    %58 = arith.sitofp %57 : vector<384x1xi32> to vector<384x1xf32>
    %59 = vector.broadcast %58 : vector<384x1xf32> to vector<384x128xf32>
    %60 = arith.mulf %41, %59 : vector<384x128xf32>
    %61 = arith.truncf %60 : vector<384x128xf32> to vector<384x128xbf16>
    %cst_31 = arith.constant 0.000000e+00 : f32
    %62 = vector.broadcast %cst_31 : f32 to vector<256x128xf32>
    %63 = vector.extract_strided_slice %61 {offsets = [31, 0], sizes = [256, 128], strides = [1, 1]} : vector<384x128xbf16> to vector<256x128xbf16>
    %c0_32 = arith.constant 0 : index
    %c0_33 = arith.constant 0 : index
    %c0_34 = arith.constant 0 : index
    %64 = vector.load %arg5[%c0_32, %c0_33, %c0_34] : memref<9x128x128xbf16, #tpu.memory_space<vmem>>, vector<1x128x128xbf16>
    %65 = vector.shape_cast %64 : vector<1x128x128xbf16> to vector<128x128xbf16>
    %cst_35 = arith.constant dense<0.000000e+00> : vector<256x128xf32>
    %66 = tpu.matmul %63, %65, %cst_35 {dimension_numbers = #tpu.dot_dimension_numbers<[1], [0], [0], [1], [0, 0, 1, 1], [], []>} : vector<256x128xbf16>, vector<128x128xbf16>, vector<256x128xf32> -> vector<256x128xf32>
    %67 = arith.addf %62, %66 : vector<256x128xf32>
    %68 = vector.extract_strided_slice %61 {offsets = [32, 0], sizes = [256, 128], strides = [1, 1]} : vector<384x128xbf16> to vector<256x128xbf16>
    %c1 = arith.constant 1 : index
    %c0_36 = arith.constant 0 : index
    %c0_37 = arith.constant 0 : index
    %69 = vector.load %arg5[%c1, %c0_36, %c0_37] : memref<9x128x128xbf16, #tpu.memory_space<vmem>>, vector<1x128x128xbf16>
    %70 = vector.shape_cast %69 : vector<1x128x128xbf16> to vector<128x128xbf16>
    %cst_38 = arith.constant dense<0.000000e+00> : vector<256x128xf32>
    %71 = tpu.matmul %68, %70, %cst_38 {dimension_numbers = #tpu.dot_dimension_numbers<[1], [0], [0], [1], [0, 0, 1, 1], [], []>} : vector<256x128xbf16>, vector<128x128xbf16>, vector<256x128xf32> -> vector<256x128xf32>
    %72 = arith.addf %67, %71 : vector<256x128xf32>
    %73 = vector.extract_strided_slice %61 {offsets = [33, 0], sizes = [256, 128], strides = [1, 1]} : vector<384x128xbf16> to vector<256x128xbf16>
    %c2 = arith.constant 2 : index
    %c0_39 = arith.constant 0 : index
    %c0_40 = arith.constant 0 : index
    %74 = vector.load %arg5[%c2, %c0_39, %c0_40] : memref<9x128x128xbf16, #tpu.memory_space<vmem>>, vector<1x128x128xbf16>
    %75 = vector.shape_cast %74 : vector<1x128x128xbf16> to vector<128x128xbf16>
    %cst_41 = arith.constant dense<0.000000e+00> : vector<256x128xf32>
    %76 = tpu.matmul %73, %75, %cst_41 {dimension_numbers = #tpu.dot_dimension_numbers<[1], [0], [0], [1], [0, 0, 1, 1], [], []>} : vector<256x128xbf16>, vector<128x128xbf16>, vector<256x128xf32> -> vector<256x128xf32>
    %77 = arith.addf %72, %76 : vector<256x128xf32>
    %78 = vector.extract_strided_slice %61 {offsets = [63, 0], sizes = [256, 128], strides = [1, 1]} : vector<384x128xbf16> to vector<256x128xbf16>
    %c3 = arith.constant 3 : index
    %c0_42 = arith.constant 0 : index
    %c0_43 = arith.constant 0 : index
    %79 = vector.load %arg5[%c3, %c0_42, %c0_43] : memref<9x128x128xbf16, #tpu.memory_space<vmem>>, vector<1x128x128xbf16>
    %80 = vector.shape_cast %79 : vector<1x128x128xbf16> to vector<128x128xbf16>
    %cst_44 = arith.constant dense<0.000000e+00> : vector<256x128xf32>
    %81 = tpu.matmul %78, %80, %cst_44 {dimension_numbers = #tpu.dot_dimension_numbers<[1], [0], [0], [1], [0, 0, 1, 1], [], []>} : vector<256x128xbf16>, vector<128x128xbf16>, vector<256x128xf32> -> vector<256x128xf32>
    %82 = arith.addf %77, %81 : vector<256x128xf32>
    %83 = vector.extract_strided_slice %61 {offsets = [64, 0], sizes = [256, 128], strides = [1, 1]} : vector<384x128xbf16> to vector<256x128xbf16>
    %c4 = arith.constant 4 : index
    %c0_45 = arith.constant 0 : index
    %c0_46 = arith.constant 0 : index
    %84 = vector.load %arg5[%c4, %c0_45, %c0_46] : memref<9x128x128xbf16, #tpu.memory_space<vmem>>, vector<1x128x128xbf16>
    %85 = vector.shape_cast %84 : vector<1x128x128xbf16> to vector<128x128xbf16>
    %cst_47 = arith.constant dense<0.000000e+00> : vector<256x128xf32>
    %86 = tpu.matmul %83, %85, %cst_47 {dimension_numbers = #tpu.dot_dimension_numbers<[1], [0], [0], [1], [0, 0, 1, 1], [], []>} : vector<256x128xbf16>, vector<128x128xbf16>, vector<256x128xf32> -> vector<256x128xf32>
    %87 = arith.addf %82, %86 : vector<256x128xf32>
    %88 = vector.extract_strided_slice %61 {offsets = [65, 0], sizes = [256, 128], strides = [1, 1]} : vector<384x128xbf16> to vector<256x128xbf16>
    %c5 = arith.constant 5 : index
    %c0_48 = arith.constant 0 : index
    %c0_49 = arith.constant 0 : index
    %89 = vector.load %arg5[%c5, %c0_48, %c0_49] : memref<9x128x128xbf16, #tpu.memory_space<vmem>>, vector<1x128x128xbf16>
    %90 = vector.shape_cast %89 : vector<1x128x128xbf16> to vector<128x128xbf16>
    %cst_50 = arith.constant dense<0.000000e+00> : vector<256x128xf32>
    %91 = tpu.matmul %88, %90, %cst_50 {dimension_numbers = #tpu.dot_dimension_numbers<[1], [0], [0], [1], [0, 0, 1, 1], [], []>} : vector<256x128xbf16>, vector<128x128xbf16>, vector<256x128xf32> -> vector<256x128xf32>
    %92 = arith.addf %87, %91 : vector<256x128xf32>
    %93 = vector.extract_strided_slice %61 {offsets = [95, 0], sizes = [256, 128], strides = [1, 1]} : vector<384x128xbf16> to vector<256x128xbf16>
    %c6 = arith.constant 6 : index
    %c0_51 = arith.constant 0 : index
    %c0_52 = arith.constant 0 : index
    %94 = vector.load %arg5[%c6, %c0_51, %c0_52] : memref<9x128x128xbf16, #tpu.memory_space<vmem>>, vector<1x128x128xbf16>
    %95 = vector.shape_cast %94 : vector<1x128x128xbf16> to vector<128x128xbf16>
    %cst_53 = arith.constant dense<0.000000e+00> : vector<256x128xf32>
    %96 = tpu.matmul %93, %95, %cst_53 {dimension_numbers = #tpu.dot_dimension_numbers<[1], [0], [0], [1], [0, 0, 1, 1], [], []>} : vector<256x128xbf16>, vector<128x128xbf16>, vector<256x128xf32> -> vector<256x128xf32>
    %97 = arith.addf %92, %96 : vector<256x128xf32>
    %98 = vector.extract_strided_slice %61 {offsets = [96, 0], sizes = [256, 128], strides = [1, 1]} : vector<384x128xbf16> to vector<256x128xbf16>
    %c7 = arith.constant 7 : index
    %c0_54 = arith.constant 0 : index
    %c0_55 = arith.constant 0 : index
    %99 = vector.load %arg5[%c7, %c0_54, %c0_55] : memref<9x128x128xbf16, #tpu.memory_space<vmem>>, vector<1x128x128xbf16>
    %100 = vector.shape_cast %99 : vector<1x128x128xbf16> to vector<128x128xbf16>
    %cst_56 = arith.constant dense<0.000000e+00> : vector<256x128xf32>
    %101 = tpu.matmul %98, %100, %cst_56 {dimension_numbers = #tpu.dot_dimension_numbers<[1], [0], [0], [1], [0, 0, 1, 1], [], []>} : vector<256x128xbf16>, vector<128x128xbf16>, vector<256x128xf32> -> vector<256x128xf32>
    %102 = arith.addf %97, %101 : vector<256x128xf32>
    %103 = vector.extract_strided_slice %61 {offsets = [97, 0], sizes = [256, 128], strides = [1, 1]} : vector<384x128xbf16> to vector<256x128xbf16>
    %c8 = arith.constant 8 : index
    %c0_57 = arith.constant 0 : index
    %c0_58 = arith.constant 0 : index
    %104 = vector.load %arg5[%c8, %c0_57, %c0_58] : memref<9x128x128xbf16, #tpu.memory_space<vmem>>, vector<1x128x128xbf16>
    %105 = vector.shape_cast %104 : vector<1x128x128xbf16> to vector<128x128xbf16>
    %cst_59 = arith.constant dense<0.000000e+00> : vector<256x128xf32>
    %106 = tpu.matmul %103, %105, %cst_59 {dimension_numbers = #tpu.dot_dimension_numbers<[1], [0], [0], [1], [0, 0, 1, 1], [], []>} : vector<256x128xbf16>, vector<128x128xbf16>, vector<256x128xf32> -> vector<256x128xf32>
    %107 = arith.addf %102, %106 : vector<256x128xf32>
    %108 = arith.truncf %107 : vector<256x128xf32> to vector<256x128xbf16>
    %c0_60 = arith.constant 0 : index
    %c0_61 = arith.constant 0 : index
    %c0_62 = arith.constant 0 : index
    %109 = vector.load %arg8[%c0_60, %c0_61, %c0_62] : memref<1x256x128xbf16, #tpu.memory_space<vmem>>, vector<1x256x128xbf16>
    %110 = vector.shape_cast %109 : vector<1x256x128xbf16> to vector<256x128xbf16>
    %111 = vector.shape_cast %108 : vector<256x128xbf16> to vector<1x256x128xbf16>
    tpu.vector_store %arg8[%c0_60, %c0_61, %c0_62], %111 {strides = array<i32>} : memref<1x256x128xbf16, #tpu.memory_space<vmem>>, vector<1x256x128xbf16>,
    %112 = vector.extract_strided_slice %58 {offsets = [64, 0], sizes = [256, 1], strides = [1, 1]} : vector<384x1xf32> to vector<256x1xf32>
    %113 = vector.broadcast %112 : vector<256x1xf32> to vector<256x128xf32>
    %114 = arith.mulf %107, %113 : vector<256x128xf32>
    %cst_63 = arith.constant dense<0.000000e+00> : vector<128xf32>
    %115 = vector.multi_reduction <add>, %114, %cst_63 [0] : vector<256x128xf32> to vector<128xf32>
    %116 = vector.shape_cast %115 : vector<128xf32> to vector<1x128xf32>
    %117 = arith.mulf %114, %107 : vector<256x128xf32>
    %cst_64 = arith.constant dense<0.000000e+00> : vector<128xf32>
    %118 = vector.multi_reduction <add>, %117, %cst_64 [0] : vector<256x128xf32> to vector<128xf32>
    %119 = vector.shape_cast %118 : vector<128xf32> to vector<1x128xf32>
    %120 = tpu.concatenate %116, %119 in 0 : vector<1x128xf32>, vector<1x128xf32> -> vector<2x128xf32>
    %c0_65 = arith.constant 0 : index
    %c0_66 = arith.constant 0 : index
    %c0_67 = arith.constant 0 : index
    %c0_68 = arith.constant 0 : index
    %121 = vector.load %arg9[%c0_65, %c0_66, %c0_67, %c0_68] : memref<1x1x2x128xf32, #tpu.memory_space<vmem>>, vector<1x1x2x128xf32>
    %122 = vector.shape_cast %121 : vector<1x1x2x128xf32> to vector<2x128xf32>
    %123 = vector.shape_cast %120 : vector<2x128xf32> to vector<1x1x2x128xf32>
    tpu.vector_store %arg9[%c0_65, %c0_66, %c0_67, %c0_68], %123 {strides = array<i32>} : memref<1x1x2x128xf32, #tpu.memory_space<vmem>>, vector<1x1x2x128xf32>,
    return
  }
  func.func @transform_0(%arg0: i32, %arg1: i32) -> (i32, i32, i32) {
    %c4_i32 = arith.constant 4 : i32
    %0 = arith.muli %arg1, %c4_i32 : i32
    %c1_i32 = arith.constant 1 : i32
    %1 = arith.subi %0, %c1_i32 : i32
    %c0_i32 = arith.constant 0 : i32
    %2 = arith.maxsi %1, %c0_i32 : i32
    %c0_i32_0 = arith.constant 0 : i32
    %c0_i32_1 = arith.constant 0 : i32
    return %arg0, %2, %c0_i32_0 : i32, i32, i32
  }
  func.func @transform_1(%arg0: i32, %arg1: i32) -> (i32, i32, i32) {
    %c0_i32 = arith.constant 0 : i32
    %c0_i32_0 = arith.constant 0 : i32
    return %arg0, %arg1, %c0_i32 : i32, i32, i32
  }
  func.func @transform_2(%arg0: i32, %arg1: i32) -> (i32, i32, i32) {
    %c1_i32 = arith.constant 1 : i32
    %0 = arith.addi %arg1, %c1_i32 : i32
    %c4_i32 = arith.constant 4 : i32
    %1 = arith.muli %0, %c4_i32 : i32
    %c7_i32 = arith.constant 7 : i32
    %2 = arith.minsi %1, %c7_i32 : i32
    %c0_i32 = arith.constant 0 : i32
    %c0_i32_0 = arith.constant 0 : i32
    return %arg0, %2, %c0_i32 : i32, i32, i32
  }
  func.func @transform_3(%arg0: i32, %arg1: i32) -> (i32, i32, i32) {
    %c0_i32 = arith.constant 0 : i32
    %c0_i32_0 = arith.constant 0 : i32
    %c0_i32_1 = arith.constant 0 : i32
    %c0_i32_2 = arith.constant 0 : i32
    return %c0_i32, %c0_i32_0, %c0_i32_1 : i32, i32, i32
  }
  func.func @transform_4(%arg0: i32, %arg1: i32) -> (i32, i32) {
    %c0_i32 = arith.constant 0 : i32
    %c0_i32_0 = arith.constant 0 : i32
    %c0_i32_1 = arith.constant 0 : i32
    return %c0_i32, %c0_i32_0 : i32, i32
  }
  func.func @transform_5(%arg0: i32, %arg1: i32) -> (i32, i32) {
    %c0_i32 = arith.constant 0 : i32
    %c0_i32_0 = arith.constant 0 : i32
    %c0_i32_1 = arith.constant 0 : i32
    return %c0_i32, %c0_i32_0 : i32, i32
  }
  func.func @transform_6(%arg0: i32, %arg1: i32) -> (i32, i32, i32) {
    %c0_i32 = arith.constant 0 : i32
    %c0_i32_0 = arith.constant 0 : i32
    return %arg0, %arg1, %c0_i32 : i32, i32, i32
  }
  func.func @transform_7(%arg0: i32, %arg1: i32) -> (i32, i32, i32, i32) {
    %c0_i32 = arith.constant 0 : i32
    %c0_i32_0 = arith.constant 0 : i32
    %c0_i32_1 = arith.constant 0 : i32
    return %arg0, %arg1, %c0_i32, %c0_i32_0 : i32, i32, i32, i32
  }
}

</mosaic_0001>

<llo_original>
// kernel: tpu_custom_call.1
$region0: #{tpu_custom_call.1}
  #allocation0 [shape = 'u32[]', space=smem, size = 0x4, offset = 0x4, fixed_abs, tag = 'smem constant byte address 0x4 - core index']
  #allocation1 [shape = 'u32[144,128]{1,0:T(1,128)}', space=vmem, size = 0x12000, scoped, tag = 'internal scratch']
  %s0 = inlined_call_operand.hbm [shape: f32[32,128], index: 0, kind: input, shape index: {}]
  %s1 = inlined_call_operand.hbm [shape: f32[32,128], index: 1, kind: output, shape index: {}]
  %s2 = sld [smem:[#allocation0]]
  $region18: #{tpu_custom_call.1} parent=0
    _
  %s4 = ssub.s32 1, %s2
  %s5 = scalar_select 0, %s4, %s2
  $region1: #{tpu_custom_call.1} parent=0
    #allocation2 [shape = 'u8[16384]{0}', space=vmem, size = 0x4000, scoped, tag = 'input window, operand 0, single buffered']
    #allocation3 [shape = 's32[1]{0}', space=sflag, size = 0x4, scoped, tag = 'scoped memory for tpu_custom_call.1']
    #allocation4 [shape = 's32[1]{0}', space=sflag, size = 0x4, scoped, tag = 'scoped memory for tpu_custom_call.1']
    #allocation5 [shape = 'u8[16384]{0}', space=vmem, size = 0x4000, scoped, tag = 'output window, operand 0, single buffered']
    %6 = vsyncpa [#allocation3], 0
    %7 = vsyncpa [#allocation4], 0
    // Predicated region
    $region2: #{tpu_custom_call.1} parent=1 // pred_check
      _
    $region3: #{tpu_custom_call.1} parent=1 // pred_check_branch
      %9 = sbr.rel (0) target = $region5
    $region4: #{tpu_custom_call.1} parent=1 // pred_region
      %s11 = ssub.s32 512, 512
      %12 = vsyncadd [#allocation3], %s11
      %s13 = sshll.u32 [#allocation2], 4
      %s14 = int_to_ptr.vmem [resolvable:$true] %s13
      %19 = dma.hbm_to_vmem [thread:$0]  %s0, 512, %s14, [#allocation3], 128, 128, 8
    $region5: #{tpu_custom_call.1} parent=1 // pred_fallthru
      _
    // Predicated region
    $region6: #{tpu_custom_call.1} parent=1 // pred_check
      _
    $region7: #{tpu_custom_call.1} parent=1 // pred_check_branch
      %21 = sbr.rel (0) target = $region9
    $region8: #{tpu_custom_call.1} parent=1 // pred_region
      %22 = dma.done [#allocation3], 512
    $region9: #{tpu_custom_call.1} parent=1 // pred_fallthru
      _
    %v23 = vld [vmem:[#allocation2] sm:$0xff]
    %v24 = vld [vmem:[#allocation2 + $0x8] sm:$0xff]
    %v25 = vld [vmem:[#allocation2 + $0x10] sm:$0xff]
    %v26 = vld [vmem:[#allocation2 + $0x18] sm:$0xff]
    %v27 = vrot.slane %v23, 7
    %v28 = vrot.slane %v24, 7
    %v29 = vrot.slane %v25, 7
    %v30 = vrot.slane %v26, 7
    %v31 = vlaneseq
    %v32 = vshrl.u32 %v31, 7
    %vm33 = vcmp.lt.s32.totalorder %v32, 1
    %v34 = vsel %vm33, %v29, %v30
    %v35 = vsel %vm33, %v28, %v29
    %v36 = vsel %vm33, %v27, %v28
    %v37 = vsel %vm33, %v30, %v27
    %38 = vst [vmem:[#allocation5] sm:$0xff] %v37
    %39 = vst [vmem:[#allocation5 + $0x8] sm:$0xff] %v36
    %40 = vst [vmem:[#allocation5 + $0x10] sm:$0xff] %v35
    %41 = vst [vmem:[#allocation5 + $0x18] sm:$0xff] %v34
    // Predicated region
    $region10: #{tpu_custom_call.1} parent=1 // pred_check
      _
    $region11: #{tpu_custom_call.1} parent=1 // pred_check_branch
      %43 = sbr.rel (0) target = $region13
    $region12: #{tpu_custom_call.1} parent=1 // pred_region
      %s45 = ssub.s32 512, 512
      %46 = vsyncadd [#allocation4], %s45
      %s47 = sshll.u32 [#allocation5], 4
      %s48 = int_to_ptr.vmem [resolvable:$true] %s47
      %53 = dma.vmem_to_hbm [thread:$0]  %s48, 512, %s1, [#allocation4], 128, 128, 8
    $region13: #{tpu_custom_call.1} parent=1 // pred_fallthru
      _
    // Predicated region
    $region14: #{tpu_custom_call.1} parent=1 // pred_check
      _
    $region15: #{tpu_custom_call.1} parent=1 // pred_check_branch
      %55 = sbr.rel (0) target = $region17
    $region16: #{tpu_custom_call.1} parent=1 // pred_region
      %56 = dma.done [#allocation4], 512
    $region17: #{tpu_custom_call.1} parent=1 // pred_fallthru
      _
    %57 = vsyncpa [#allocation3], 1
    %58 = vsyncpa [#allocation4], 1

// kernel: _forward_impl.11
$region0: #{_forward_impl.11}
  #allocation0 [shape = 'u32[]', space=smem, size = 0x4, offset = 0x4, fixed_abs, tag = 'smem constant byte address 0x4 - core index']
  #allocation1 [shape = 'u32[144,128]{1,0:T(1,128)}', space=vmem, size = 0x12000, scoped, tag = 'internal scratch']
  %s0 = inlined_call_operand.vmem [shape: bf16[1024,128], index: 0, kind: input, shape index: {}]
  %s1 = inlined_call_operand.vmem [shape: bf16[1024,128], index: 1, kind: input, shape index: {}]
  %s2 = inlined_call_operand.vmem [shape: f32[1,128], index: 2, kind: input, shape index: {}]
  %s3 = inlined_call_operand.vmem [shape: f32[1,128], index: 3, kind: input, shape index: {}]
  %s4 = inlined_call_operand.vmem [shape: f32[1024,128], index: 4, kind: output, shape index: {}]
  %s5 = sld [smem:[#allocation0]]
  $region49: #{_forward_impl.11} parent=0
    _
  %s7 = ssub.s32 1, %s5
  %s8 = scalar_select 0, %s7, %s5
  loop: start=0, step=1, limit=4
  $region2: #{_forward_impl.11} parent=0 // loop_pre_header
    _
  $region3: #{_forward_impl.11} parent=0 // loop_header
    %s10 = sphi 0, %s14
    %p11 = scmp.ge.s32.totalorder %s10, 4
    %s20 = sphi 0, %s22
    %s23 = sphi 0, %s20
    %s24 = sphi 0, %s23
    %s40 = sphi 0, %s24
    %s46 = sphi 0, %s48
    %s49 = sphi 0, %s46
    %s50 = sphi 0, %s49
    %s66 = sphi 0, %s50
    %s70 = sphi 0, %s70
    %s72 = sphi 0, %s70
    %s73 = sphi 0, %s72
    %s87 = sphi 0, %s73
    %s91 = sphi 0, %s91
    %s93 = sphi 0, %s91
    %s94 = sphi 0, %s93
    %s108 = sphi 0, %s94
    %s114 = sphi 0, %s116
    %s117 = sphi 0, %s114
    %s118 = sphi 0, %s117
    %s134 = sphi 0, %s118
  $region4: #{_forward_impl.11} parent=0 // loop_header_branch
    %13 = sbr.rel (%p11) target = $region8
  $region5: #{_forward_impl.11} parent=0 // loop_body
    %s15 = ssub.s32 %s10, 1
    %s16 = ssub.s32 %s10, 2
    %s17 = sadd.s32 %s10, 1
    %s18 = ssub.s32 %s10, %s17
    %p19 = scmp.eq.s32.totalorder %s18, 0
    %s21 = sadd.s32 %s20, 1
    %s22 = scalar_select %p19, %s20, %s21
    %p25 = pneg %p19
    %p26 = scmp.eq.s32.totalorder %s10, 1
    %p27 = por %p25, %p26
    %p28 = scmp.ne.s32.totalorder %s20, %s23
    %p29 = scmp.eq.s32.totalorder %s10, 0
    %p30 = por %p28, %p29
    %p31 = scmp.ne.s32.totalorder %s20, %s23
    %p32 = scmp.eq.s32.totalorder %s15, 1
    %p33 = por %p31, %p32
    %p34 = scmp.ne.s32.totalorder %s23, %s24
    %p35 = scmp.eq.s32.totalorder %s15, 0
    %p36 = por %p34, %p35
    %p37 = scmp.ne.s32.totalorder %s23, %s24
    %p38 = scmp.eq.s32.totalorder %s16, 1
    %p39 = por %p37, %p38
    %p41 = scmp.ne.s32.totalorder %s24, %s40
    %p42 = scmp.eq.s32.totalorder %s16, 0
    %p43 = por %p41, %p42
    %s44 = ssub.s32 %s10, %s17
    %p45 = scmp.eq.s32.totalorder %s44, 0
    %s47 = sadd.s32 %s46, 1
    %s48 = scalar_select %p45, %s46, %s47
    %p51 = pneg %p45
    %p52 = scmp.eq.s32.totalorder %s10, 1
    %p53 = por %p51, %p52
    %p54 = scmp.ne.s32.totalorder %s46, %s49
    %p55 = scmp.eq.s32.totalorder %s10, 0
    %p56 = por %p54, %p55
    %p57 = scmp.ne.s32.totalorder %s46, %s49
    %p58 = scmp.eq.s32.totalorder %s15, 1
    %p59 = por %p57, %p58
    %p60 = scmp.ne.s32.totalorder %s49, %s50
    %p61 = scmp.eq.s32.totalorder %s15, 0
    %p62 = por %p60, %p61
    %p63 = scmp.ne.s32.totalorder %s49, %s50
    %p64 = scmp.eq.s32.totalorder %s16, 1
    %p65 = por %p63, %p64
    %p67 = scmp.ne.s32.totalorder %s50, %s66
    %p68 = scmp.eq.s32.totalorder %s16, 0
    %p69 = por %p67, %p68
    %s71 = sadd.s32 %s70, 1
    %p74 = scmp.eq.s32.totalorder %s10, 1
    %p75 = scmp.ne.s32.totalorder %s70, %s72
    %p76 = scmp.eq.s32.totalorder %s10, 0
    %p77 = por %p75, %p76
    %p78 = scmp.ne.s32.totalorder %s70, %s72
    %p79 = scmp.eq.s32.totalorder %s15, 1
    %p80 = por %p78, %p79
    %p81 = scmp.ne.s32.totalorder %s72, %s73
    %p82 = scmp.eq.s32.totalorder %s15, 0
    %p83 = por %p81, %p82
    %p84 = scmp.ne.s32.totalorder %s72, %s73
    %p85 = scmp.eq.s32.totalorder %s16, 1
    %p86 = por %p84, %p85
    %p88 = scmp.ne.s32.totalorder %s73, %s87
    %p89 = scmp.eq.s32.totalorder %s16, 0
    %p90 = por %p88, %p89
    %s92 = sadd.s32 %s91, 1
    %p95 = scmp.eq.s32.totalorder %s10, 1
    %p96 = scmp.ne.s32.totalorder %s91, %s93
    %p97 = scmp.eq.s32.totalorder %s10, 0
    %p98 = por %p96, %p97
    %p99 = scmp.ne.s32.totalorder %s91, %s93
    %p100 = scmp.eq.s32.totalorder %s15, 1
    %p101 = por %p99, %p100
    %p102 = scmp.ne.s32.totalorder %s93, %s94
    %p103 = scmp.eq.s32.totalorder %s15, 0
    %p104 = por %p102, %p103
    %p105 = scmp.ne.s32.totalorder %s93, %s94
    %p106 = scmp.eq.s32.totalorder %s16, 1
    %p107 = por %p105, %p106
    %p109 = scmp.ne.s32.totalorder %s94, %s108
    %p110 = scmp.eq.s32.totalorder %s16, 0
    %p111 = por %p109, %p110
    %s112 = ssub.s32 %s10, %s17
    %p113 = scmp.eq.s32.totalorder %s112, 0
    %s115 = sadd.s32 %s114, 1
    %s116 = scalar_select %p113, %s114, %s115
    %p119 = pneg %p113
    %p120 = scmp.eq.s32.totalorder %s10, 1
    %p121 = por %p119, %p120
    %p122 = scmp.ne.s32.totalorder %s114, %s117
    %p123 = scmp.eq.s32.totalorder %s10, 0
    %p124 = por %p122, %p123
    %p125 = scmp.ne.s32.totalorder %s114, %s117
    %p126 = scmp.eq.s32.totalorder %s15, 1
    %p127 = por %p125, %p126
    %p128 = scmp.ne.s32.totalorder %s117, %s118
    %p129 = scmp.eq.s32.totalorder %s15, 0
    %p130 = por %p128, %p129
    %p131 = scmp.ne.s32.totalorder %s117, %s118
    %p132 = scmp.eq.s32.totalorder %s16, 1
    %p133 = por %p131, %p132
    %p135 = scmp.ne.s32.totalorder %s118, %s134
    %p136 = scmp.eq.s32.totalorder %s16, 0
    %p137 = por %p135, %p136
    %p138 = scmp.le.s32.totalorder 1, %s10
    %p139 = scmp.lt.s32.totalorder %s10, 3
    %p140 = pnand %p138, %p139
    %p141 = pneg %p140
    // Predicated region
    $region9: #{_forward_impl.11} parent=5 // pred_check
      _
    $region10: #{_forward_impl.11} parent=5 // pred_check_branch
      %143 = sbr.rel (%p140) target = $region12
    $region11: #{_forward_impl.11} parent=5 // pred_region
      %s144 = ssub.s32 %s10, 1
      // Predicated region
      $region13: #{_forward_impl.11} parent=11 // pred_check
        %p145 = pneg %p83
      $region14: #{_forward_impl.11} parent=11 // pred_check_branch
        %147 = sbr.rel (%p145) target = $region16
      $region15: #{_forward_impl.11} parent=11 // pred_region
        _
      $region16: #{_forward_impl.11} parent=11 // pred_fallthru
        _
      // Predicated region
      $region17: #{_forward_impl.11} parent=11 // pred_check
        %p148 = pneg %p104
      $region18: #{_forward_impl.11} parent=11 // pred_check_branch
        %150 = sbr.rel (%p148) target = $region20
      $region19: #{_forward_impl.11} parent=11 // pred_region
        _
      $region20: #{_forward_impl.11} parent=11 // pred_fallthru
        _
    $region12: #{_forward_impl.11} parent=5 // pred_fallthru
      _
    %p151 = scmp.lt.s32.totalorder %s10, 2
    // Predicated region
    $region21: #{_forward_impl.11} parent=5 // pred_check
      %p152 = pneg %p151
    $region22: #{_forward_impl.11} parent=5 // pred_check_branch
      %154 = sbr.rel (%p152) target = $region24
    $region23: #{_forward_impl.11} parent=5 // pred_region
      // Predicated region
      $region25: #{_forward_impl.11} parent=23 // pred_check
        %p155 = pneg %p30
      $region26: #{_forward_impl.11} parent=23 // pred_check_branch
        %157 = sbr.rel (%p155) target = $region28
      $region27: #{_forward_impl.11} parent=23 // pred_region
        %s158 = smul.u32 64, %s10
        %p159 = scmp.lt.s32.totalorder %s158, 127
        %s160 = scalar_select %p159, %s158, 127
        %s161 = smul.addr %s160, 4
        %s162 = scalar_lea.vmem %s0, %s161
        %s163 = smul.u32 64, %s10
      $region28: #{_forward_impl.11} parent=23 // pred_fallthru
        _
      // Predicated region
      $region29: #{_forward_impl.11} parent=23 // pred_check
        %p164 = pneg %p56
      $region30: #{_forward_impl.11} parent=23 // pred_check_branch
        %166 = sbr.rel (%p164) target = $region32
      $region31: #{_forward_impl.11} parent=23 // pred_region
        %s167 = smul.u32 64, %s10
        %p168 = scmp.lt.s32.totalorder %s167, 127
        %s169 = scalar_select %p168, %s167, 127
        %s170 = smul.addr %s169, 4
        %s171 = scalar_lea.vmem %s1, %s170
        %s172 = smul.u32 64, %s10
      $region32: #{_forward_impl.11} parent=23 // pred_fallthru
        _
    $region24: #{_forward_impl.11} parent=5 // pred_fallthru
      _
    %p173 = scmp.le.s32.totalorder 1, %s10
    %p174 = scmp.lt.s32.totalorder %s10, 3
    %p175 = pnand %p173, %p174
    %p176 = pneg %p175
    // Predicated region
    $region33: #{_forward_impl.11} parent=5 // pred_check
      _
    $region34: #{_forward_impl.11} parent=5 // pred_check_branch
      %178 = sbr.rel (%p175) target = $region36
    $region35: #{_forward_impl.11} parent=5 // pred_region
      %s179 = ssub.s32 %s10, 1
      %s180 = smul.u32 64, %s15
      %p181 = scmp.lt.s32.totalorder %s180, 127
      %s182 = scalar_select %p181, %s180, 127
      %s183 = smul.addr %s182, 4
      %s184 = scalar_lea.vmem %s0, %s183
      %p185 = pneg %p36
      %p186 = pneg %p33
      %s187 = smul.u32 64, %s15
      %p188 = scmp.lt.s32.totalorder %s187, 127
      %s189 = scalar_select %p188, %s187, 127
      %s190 = smul.addr %s189, 4
      %s191 = scalar_lea.vmem %s1, %s190
      %p192 = pneg %p62
      %p193 = pneg %p59
      %p194 = pneg %p83
      %p195 = pneg %p80
      %p196 = pneg %p104
      %p197 = pneg %p101
      %p198 = pneg %p130
      %p199 = pneg %p127
      %s200 = smul.u32 64, %s15
      %p201 = scmp.lt.s32.totalorder %s200, 127
      %s202 = scalar_select %p201, %s200, 127
      %s203 = smul.addr %s202, 8
      %s204 = scalar_lea.vmem %s4, %s203
      %s205 = smul.u32 64, %s15
      %p206 = scmp.lt.s32.totalorder %s205, 127
      %s207 = scalar_select %p206, %s205, 127
      %s208 = smul.addr %s207, 4
      %s209 = scalar_lea.vmem %s0, %s208
      %s210 = smul.u32 64, %s15
      %s211 = smul.u32 64, %s15
      %p212 = scmp.lt.s32.totalorder %s211, 127
      %s213 = scalar_select %p212, %s211, 127
      %s214 = smul.addr %s213, 4
      %s215 = scalar_lea.vmem %s1, %s214
      %s216 = smul.u32 64, %s15
      %s217 = smul.u32 64, %s15
      %p218 = scmp.lt.s32.totalorder %s217, 127
      %s219 = scalar_select %p218, %s217, 127
      %s220 = smul.addr %s219, 8
      %s221 = scalar_lea.vmem %s4, %s220
      %s222 = smul.u32 64, %s15
      %v223 = vld [vmem:[%s209] sm:$0xf]
      %v224 = vld [vmem:[%s209 + $0x4] sm:$0xf]
      %v225 = vld [vmem:[%s209 + $0x8] sm:$0xf]
      %v226 = vld [vmem:[%s209 + $0xc] sm:$0xf]
      %v227 = vld [vmem:[%s209 + $0x10] sm:$0xf]
      %v228 = vld [vmem:[%s209 + $0x14] sm:$0xf]
      %v229 = vld [vmem:[%s209 + $0x18] sm:$0xf]
      %v230 = vld [vmem:[%s209 + $0x1c] sm:$0xf]
      %v231 = vld [vmem:[%s209 + $0x20] sm:$0xf]
      %v232 = vld [vmem:[%s209 + $0x24] sm:$0xf]
      %v233 = vld [vmem:[%s209 + $0x28] sm:$0xf]
      %v234 = vld [vmem:[%s209 + $0x2c] sm:$0xf]
      %v235 = vld [vmem:[%s209 + $0x30] sm:$0xf]
      %v236 = vld [vmem:[%s209 + $0x34] sm:$0xf]
      %v237 = vld [vmem:[%s209 + $0x38] sm:$0xf]
      %v238 = vld [vmem:[%s209 + $0x3c] sm:$0xf]
      %v239 = vld [vmem:[%s209 + $0x40] sm:$0xf]
      %v240 = vld [vmem:[%s209 + $0x44] sm:$0xf]
      %v241 = vld [vmem:[%s209 + $0x48] sm:$0xf]
      %v242 = vld [vmem:[%s209 + $0x4c] sm:$0xf]
      %v243 = vld [vmem:[%s209 + $0x50] sm:$0xf]
      %v244 = vld [vmem:[%s209 + $0x54] sm:$0xf]
      %v245 = vld [vmem:[%s209 + $0x58] sm:$0xf]
      %v246 = vld [vmem:[%s209 + $0x5c] sm:$0xf]
      %v247 = vld [vmem:[%s209 + $0x60] sm:$0xf]
      %v248 = vld [vmem:[%s209 + $0x64] sm:$0xf]
      %v249 = vld [vmem:[%s209 + $0x68] sm:$0xf]
      %v250 = vld [vmem:[%s209 + $0x6c] sm:$0xf]
      %v251 = vld [vmem:[%s209 + $0x70] sm:$0xf]
      %v252 = vld [vmem:[%s209 + $0x74] sm:$0xf]
      %v253 = vld [vmem:[%s209 + $0x78] sm:$0xf]
      %v254 = vld [vmem:[%s209 + $0x7c] sm:$0xf]
      %v255 = vld [vmem:[%s209 + $0x80] sm:$0xf]
      %v256 = vld [vmem:[%s209 + $0x84] sm:$0xf]
      %v257 = vld [vmem:[%s209 + $0x88] sm:$0xf]
      %v258 = vld [vmem:[%s209 + $0x8c] sm:$0xf]
      %v259 = vld [vmem:[%s209 + $0x90] sm:$0xf]
      %v260 = vld [vmem:[%s209 + $0x94] sm:$0xf]
      %v261 = vld [vmem:[%s209 + $0x98] sm:$0xf]
      %v262 = vld [vmem:[%s209 + $0x9c] sm:$0xf]
      %v263 = vld [vmem:[%s209 + $0xa0] sm:$0xf]
      %v264 = vld [vmem:[%s209 + $0xa4] sm:$0xf]
      %v265 = vld [vmem:[%s209 + $0xa8] sm:$0xf]
      %v266 = vld [vmem:[%s209 + $0xac] sm:$0xf]
      %v267 = vld [vmem:[%s209 + $0xb0] sm:$0xf]
      %v268 = vld [vmem:[%s209 + $0xb4] sm:$0xf]
      %v269 = vld [vmem:[%s209 + $0xb8] sm:$0xf]
      %v270 = vld [vmem:[%s209 + $0xbc] sm:$0xf]
      %v271 = vld [vmem:[%s209 + $0xc0] sm:$0xf]
      %v272 = vld [vmem:[%s209 + $0xc4] sm:$0xf]
      %v273 = vld [vmem:[%s209 + $0xc8] sm:$0xf]
      %v274 = vld [vmem:[%s209 + $0xcc] sm:$0xf]
      %v275 = vld [vmem:[%s209 + $0xd0] sm:$0xf]
      %v276 = vld [vmem:[%s209 + $0xd4] sm:$0xf]
      %v277 = vld [vmem:[%s209 + $0xd8] sm:$0xf]
      %v278 = vld [vmem:[%s209 + $0xdc] sm:$0xf]
      %v279 = vld [vmem:[%s209 + $0xe0] sm:$0xf]
      %v280 = vld [vmem:[%s209 + $0xe4] sm:$0xf]
      %v281 = vld [vmem:[%s209 + $0xe8] sm:$0xf]
      %v282 = vld [vmem:[%s209 + $0xec] sm:$0xf]
      %v283 = vld [vmem:[%s209 + $0xf0] sm:$0xf]
      %v284 = vld [vmem:[%s209 + $0xf4] sm:$0xf]
      %v285 = vld [vmem:[%s209 + $0xf8] sm:$0xf]
      %v286 = vld [vmem:[%s209 + $0xfc] sm:$0xf]
      %v287 = vunpack.c.l.bf16 %v223
      %v288 = vunpack.c.l.bf16 %v224
      %v289 = vunpack.c.l.bf16 %v225
      %v290 = vunpack.c.l.bf16 %v226
      %v291 = vunpack.c.l.bf16 %v227
      %v292 = vunpack.c.l.bf16 %v228
      %v293 = vunpack.c.l.bf16 %v229
      %v294 = vunpack.c.l.bf16 %v230
      %v295 = vunpack.c.l.bf16 %v231
      %v296 = vunpack.c.l.bf16 %v232
      %v297 = vunpack.c.l.bf16 %v233
      %v298 = vunpack.c.l.bf16 %v234
      %v299 = vunpack.c.l.bf16 %v235
      %v300 = vunpack.c.l.bf16 %v236
      %v301 = vunpack.c.l.bf16 %v237
      %v302 = vunpack.c.l.bf16 %v238
      %v303 = vunpack.c.l.bf16 %v239
      %v304 = vunpack.c.l.bf16 %v240
      %v305 = vunpack.c.l.bf16 %v241
      %v306 = vunpack.c.l.bf16 %v242
      %v307 = vunpack.c.l.bf16 %v243
      %v308 = vunpack.c.l.bf16 %v244
      %v309 = vunpack.c.l.bf16 %v245
      %v310 = vunpack.c.l.bf16 %v246
      %v311 = vunpack.c.l.bf16 %v247
      %v312 = vunpack.c.l.bf16 %v248
      %v313 = vunpack.c.l.bf16 %v249
      %v314 = vunpack.c.l.bf16 %v250
      %v315 = vunpack.c.l.bf16 %v251
      %v316 = vunpack.c.l.bf16 %v252
      %v317 = vunpack.c.l.bf16 %v253
      %v318 = vunpack.c.l.bf16 %v254
      %v319 = vunpack.c.l.bf16 %v255
      %v320 = vunpack.c.l.bf16 %v256
      %v321 = vunpack.c.l.bf16 %v257
      %v322 = vunpack.c.l.bf16 %v258
      %v323 = vunpack.c.l.bf16 %v259
      %v324 = vunpack.c.l.bf16 %v260
      %v325 = vunpack.c.l.bf16 %v261
      %v326 = vunpack.c.l.bf16 %v262
      %v327 = vunpack.c.l.bf16 %v263
      %v328 = vunpack.c.l.bf16 %v264
      %v329 = vunpack.c.l.bf16 %v265
      %v330 = vunpack.c.l.bf16 %v266
      %v331 = vunpack.c.l.bf16 %v267
      %v332 = vunpack.c.l.bf16 %v268
      %v333 = vunpack.c.l.bf16 %v269
      %v334 = vunpack.c.l.bf16 %v270
      %v335 = vunpack.c.l.bf16 %v271
      %v336 = vunpack.c.l.bf16 %v272
      %v337 = vunpack.c.l.bf16 %v273
      %v338 = vunpack.c.l.bf16 %v274
      %v339 = vunpack.c.l.bf16 %v275
      %v340 = vunpack.c.l.bf16 %v276
      %v341 = vunpack.c.l.bf16 %v277
      %v342 = vunpack.c.l.bf16 %v278
      %v343 = vunpack.c.l.bf16 %v279
      %v344 = vunpack.c.l.bf16 %v280
      %v345 = vunpack.c.l.bf16 %v281
      %v346 = vunpack.c.l.bf16 %v282
      %v347 = vunpack.c.l.bf16 %v283
      %v348 = vunpack.c.l.bf16 %v284
      %v349 = vunpack.c.l.bf16 %v285
      %v350 = vunpack.c.l.bf16 %v286
      %v351 = vld [vmem:[%s2] sm:$0x1]
      %v353 = vlaneseq
      %v354 = vshrl.u32 %v353, 7
      %v355 = vsub.s32 0, %v354
      %v356 = vrot.slane %v351, %v355
      %v358 = vmul.f32 %v287, %v356
      %v359 = vmul.f32 %v288, %v356
      %v360 = vmul.f32 %v289, %v356
      %v361 = vmul.f32 %v290, %v356
      %v362 = vmul.f32 %v291, %v356
      %v363 = vmul.f32 %v292, %v356
      %v364 = vmul.f32 %v293, %v356
      %v365 = vmul.f32 %v294, %v356
      %v366 = vmul.f32 %v295, %v356
      %v367 = vmul.f32 %v296, %v356
      %v368 = vmul.f32 %v297, %v356
      %v369 = vmul.f32 %v298, %v356
      %v370 = vmul.f32 %v299, %v356
      %v371 = vmul.f32 %v300, %v356
      %v372 = vmul.f32 %v301, %v356
      %v373 = vmul.f32 %v302, %v356
      %v374 = vmul.f32 %v303, %v356
      %v375 = vmul.f32 %v304, %v356
      %v376 = vmul.f32 %v305, %v356
      %v377 = vmul.f32 %v306, %v356
      %v378 = vmul.f32 %v307, %v356
      %v379 = vmul.f32 %v308, %v356
      %v380 = vmul.f32 %v309, %v356
      %v381 = vmul.f32 %v310, %v356
      %v382 = vmul.f32 %v311, %v356
      %v383 = vmul.f32 %v312, %v356
      %v384 = vmul.f32 %v313, %v356
      %v385 = vmul.f32 %v314, %v356
      %v386 = vmul.f32 %v315, %v356
      %v387 = vmul.f32 %v316, %v356
      %v388 = vmul.f32 %v317, %v356
      %v389 = vmul.f32 %v318, %v356
      %v390 = vmul.f32 %v319, %v356
      %v391 = vmul.f32 %v320, %v356
      %v392 = vmul.f32 %v321, %v356
      %v393 = vmul.f32 %v322, %v356
      %v394 = vmul.f32 %v323, %v356
      %v395 = vmul.f32 %v324, %v356
      %v396 = vmul.f32 %v325, %v356
      %v397 = vmul.f32 %v326, %v356
      %v398 = vmul.f32 %v327, %v356
      %v399 = vmul.f32 %v328, %v356
      %v400 = vmul.f32 %v329, %v356
      %v401 = vmul.f32 %v330, %v356
      %v402 = vmul.f32 %v331, %v356
      %v403 = vmul.f32 %v332, %v356
      %v404 = vmul.f32 %v333, %v356
      %v405 = vmul.f32 %v334, %v356
      %v406 = vmul.f32 %v335, %v356
      %v407 = vmul.f32 %v336, %v356
      %v408 = vmul.f32 %v337, %v356
      %v409 = vmul.f32 %v338, %v356
      %v410 = vmul.f32 %v339, %v356
      %v411 = vmul.f32 %v340, %v356
      %v412 = vmul.f32 %v341, %v356
      %v413 = vmul.f32 %v342, %v356
      %v414 = vmul.f32 %v343, %v356
      %v415 = vmul.f32 %v344, %v356
      %v416 = vmul.f32 %v345, %v356
      %v417 = vmul.f32 %v346, %v356
      %v418 = vmul.f32 %v347, %v356
      %v419 = vmul.f32 %v348, %v356
      %v420 = vmul.f32 %v349, %v356
      %v421 = vmul.f32 %v350, %v356
      %v422 = vld [vmem:[%s3] sm:$0x1]
      %v424 = vlaneseq
      %v425 = vshrl.u32 %v424, 7
      %v426 = vsub.s32 0, %v425
      %v427 = vrot.slane %v422, %v426
      %v429 = vadd.f32 %v358, %v427
      %v430 = vadd.f32 %v359, %v427
      %v431 = vadd.f32 %v360, %v427
      %v432 = vadd.f32 %v361, %v427
      %v433 = vadd.f32 %v362, %v427
      %v434 = vadd.f32 %v363, %v427
      %v435 = vadd.f32 %v364, %v427
      %v436 = vadd.f32 %v365, %v427
      %v437 = vadd.f32 %v366, %v427
      %v438 = vadd.f32 %v367, %v427
      %v439 = vadd.f32 %v368, %v427
      %v440 = vadd.f32 %v369, %v427
      %v441 = vadd.f32 %v370, %v427
      %v442 = vadd.f32 %v371, %v427
      %v443 = vadd.f32 %v372, %v427
      %v444 = vadd.f32 %v373, %v427
      %v445 = vadd.f32 %v374, %v427
      %v446 = vadd.f32 %v375, %v427
      %v447 = vadd.f32 %v376, %v427
      %v448 = vadd.f32 %v377, %v427
      %v449 = vadd.f32 %v378, %v427
      %v450 = vadd.f32 %v379, %v427
      %v451 = vadd.f32 %v380, %v427
      %v452 = vadd.f32 %v381, %v427
      %v453 = vadd.f32 %v382, %v427
      %v454 = vadd.f32 %v383, %v427
      %v455 = vadd.f32 %v384, %v427
      %v456 = vadd.f32 %v385, %v427
      %v457 = vadd.f32 %v386, %v427
      %v458 = vadd.f32 %v387, %v427
      %v459 = vadd.f32 %v388, %v427
      %v460 = vadd.f32 %v389, %v427
      %v461 = vadd.f32 %v390, %v427
      %v462 = vadd.f32 %v391, %v427
      %v463 = vadd.f32 %v392, %v427
      %v464 = vadd.f32 %v393, %v427
      %v465 = vadd.f32 %v394, %v427
      %v466 = vadd.f32 %v395, %v427
      %v467 = vadd.f32 %v396, %v427
      %v468 = vadd.f32 %v397, %v427
      %v469 = vadd.f32 %v398, %v427
      %v470 = vadd.f32 %v399, %v427
      %v471 = vadd.f32 %v400, %v427
      %v472 = vadd.f32 %v401, %v427
      %v473 = vadd.f32 %v402, %v427
      %v474 = vadd.f32 %v403, %v427
      %v475 = vadd.f32 %v404, %v427
      %v476 = vadd.f32 %v405, %v427
      %v477 = vadd.f32 %v406, %v427
      %v478 = vadd.f32 %v407, %v427
      %v479 = vadd.f32 %v408, %v427
      %v480 = vadd.f32 %v409, %v427
      %v481 = vadd.f32 %v410, %v427
      %v482 = vadd.f32 %v411, %v427
      %v483 = vadd.f32 %v412, %v427
      %v484 = vadd.f32 %v413, %v427
      %v485 = vadd.f32 %v414, %v427
      %v486 = vadd.f32 %v415, %v427
      %v487 = vadd.f32 %v416, %v427
      %v488 = vadd.f32 %v417, %v427
      %v489 = vadd.f32 %v418, %v427
      %v490 = vadd.f32 %v419, %v427
      %v491 = vadd.f32 %v420, %v427
      %v492 = vadd.f32 %v421, %v427
      %v493 = vmax.f32 %v429, 0.0
      %v494 = vmax.f32 %v430, 0.0
      %v495 = vmax.f32 %v431, 0.0
      %v496 = vmax.f32 %v432, 0.0
      %v497 = vmax.f32 %v433, 0.0
      %v498 = vmax.f32 %v434, 0.0
      %v499 = vmax.f32 %v435, 0.0
      %v500 = vmax.f32 %v436, 0.0
      %v501 = vmax.f32 %v437, 0.0
      %v502 = vmax.f32 %v438, 0.0
      %v503 = vmax.f32 %v439, 0.0
      %v504 = vmax.f32 %v440, 0.0
      %v505 = vmax.f32 %v441, 0.0
      %v506 = vmax.f32 %v442, 0.0
      %v507 = vmax.f32 %v443, 0.0
      %v508 = vmax.f32 %v444, 0.0
      %v509 = vmax.f32 %v445, 0.0
      %v510 = vmax.f32 %v446, 0.0
      %v511 = vmax.f32 %v447, 0.0
      %v512 = vmax.f32 %v448, 0.0
      %v513 = vmax.f32 %v449, 0.0
      %v514 = vmax.f32 %v450, 0.0
      %v515 = vmax.f32 %v451, 0.0
      %v516 = vmax.f32 %v452, 0.0
      %v517 = vmax.f32 %v453, 0.0
      %v518 = vmax.f32 %v454, 0.0
      %v519 = vmax.f32 %v455, 0.0
      %v520 = vmax.f32 %v456, 0.0
      %v521 = vmax.f32 %v457, 0.0
      %v522 = vmax.f32 %v458, 0.0
      %v523 = vmax.f32 %v459, 0.0
      %v524 = vmax.f32 %v460, 0.0
      %v525 = vmax.f32 %v461, 0.0
      %v526 = vmax.f32 %v462, 0.0
      %v527 = vmax.f32 %v463, 0.0
      %v528 = vmax.f32 %v464, 0.0
      %v529 = vmax.f32 %v465, 0.0
      %v530 = vmax.f32 %v466, 0.0
      %v531 = vmax.f32 %v467, 0.0
      %v532 = vmax.f32 %v468, 0.0
      %v533 = vmax.f32 %v469, 0.0
      %v534 = vmax.f32 %v470, 0.0
      %v535 = vmax.f32 %v471, 0.0
      %v536 = vmax.f32 %v472, 0.0
      %v537 = vmax.f32 %v473, 0.0
      %v538 = vmax.f32 %v474, 0.0
      %v539 = vmax.f32 %v475, 0.0
      %v540 = vmax.f32 %v476, 0.0
      %v541 = vmax.f32 %v477, 0.0
      %v542 = vmax.f32 %v478, 0.0
      %v543 = vmax.f32 %v479, 0.0
      %v544 = vmax.f32 %v480, 0.0
      %v545 = vmax.f32 %v481, 0.0
      %v546 = vmax.f32 %v482, 0.0
      %v547 = vmax.f32 %v483, 0.0
      %v548 = vmax.f32 %v484, 0.0
      %v549 = vmax.f32 %v485, 0.0
      %v550 = vmax.f32 %v486, 0.0
      %v551 = vmax.f32 %v487, 0.0
      %v552 = vmax.f32 %v488, 0.0
      %v553 = vmax.f32 %v489, 0.0
      %v554 = vmax.f32 %v490, 0.0
      %v555 = vmax.f32 %v491, 0.0
      %v556 = vmax.f32 %v492, 0.0
      %v557 = vld [vmem:[%s215] sm:$0xf]
      %v558 = vld [vmem:[%s215 + $0x4] sm:$0xf]
      %v559 = vld [vmem:[%s215 + $0x8] sm:$0xf]
      %v560 = vld [vmem:[%s215 + $0xc] sm:$0xf]
      %v561 = vld [vmem:[%s215 + $0x10] sm:$0xf]
      %v562 = vld [vmem:[%s215 + $0x14] sm:$0xf]
      %v563 = vld [vmem:[%s215 + $0x18] sm:$0xf]
      %v564 = vld [vmem:[%s215 + $0x1c] sm:$0xf]
      %v565 = vld [vmem:[%s215 + $0x20] sm:$0xf]
      %v566 = vld [vmem:[%s215 + $0x24] sm:$0xf]
      %v567 = vld [vmem:[%s215 + $0x28] sm:$0xf]
      %v568 = vld [vmem:[%s215 + $0x2c] sm:$0xf]
      %v569 = vld [vmem:[%s215 + $0x30] sm:$0xf]
      %v570 = vld [vmem:[%s215 + $0x34] sm:$0xf]
      %v571 = vld [vmem:[%s215 + $0x38] sm:$0xf]
      %v572 = vld [vmem:[%s215 + $0x3c] sm:$0xf]
      %v573 = vld [vmem:[%s215 + $0x40] sm:$0xf]
      %v574 = vld [vmem:[%s215 + $0x44] sm:$0xf]
      %v575 = vld [vmem:[%s215 + $0x48] sm:$0xf]
      %v576 = vld [vmem:[%s215 + $0x4c] sm:$0xf]
      %v577 = vld [vmem:[%s215 + $0x50] sm:$0xf]
      %v578 = vld [vmem:[%s215 + $0x54] sm:$0xf]
      %v579 = vld [vmem:[%s215 + $0x58] sm:$0xf]
      %v580 = vld [vmem:[%s215 + $0x5c] sm:$0xf]
      %v581 = vld [vmem:[%s215 + $0x60] sm:$0xf]
      %v582 = vld [vmem:[%s215 + $0x64] sm:$0xf]
      %v583 = vld [vmem:[%s215 + $0x68] sm:$0xf]
      %v584 = vld [vmem:[%s215 + $0x6c] sm:$0xf]
      %v585 = vld [vmem:[%s215 + $0x70] sm:$0xf]
      %v586 = vld [vmem:[%s215 + $0x74] sm:$0xf]
      %v587 = vld [vmem:[%s215 + $0x78] sm:$0xf]
      %v588 = vld [vmem:[%s215 + $0x7c] sm:$0xf]
      %v589 = vld [vmem:[%s215 + $0x80] sm:$0xf]
      %v590 = vld [vmem:[%s215 + $0x84] sm:$0xf]
      %v591 = vld [vmem:[%s215 + $0x88] sm:$0xf]
      %v592 = vld [vmem:[%s215 + $0x8c] sm:$0xf]
      %v593 = vld [vmem:[%s215 + $0x90] sm:$0xf]
      %v594 = vld [vmem:[%s215 + $0x94] sm:$0xf]
      %v595 = vld [vmem:[%s215 + $0x98] sm:$0xf]
      %v596 = vld [vmem:[%s215 + $0x9c] sm:$0xf]
      %v597 = vld [vmem:[%s215 + $0xa0] sm:$0xf]
      %v598 = vld [vmem:[%s215 + $0xa4] sm:$0xf]
      %v599 = vld [vmem:[%s215 + $0xa8] sm:$0xf]
      %v600 = vld [vmem:[%s215 + $0xac] sm:$0xf]
      %v601 = vld [vmem:[%s215 + $0xb0] sm:$0xf]
      %v602 = vld [vmem:[%s215 + $0xb4] sm:$0xf]
      %v603 = vld [vmem:[%s215 + $0xb8] sm:$0xf]
      %v604 = vld [vmem:[%s215 + $0xbc] sm:$0xf]
      %v605 = vld [vmem:[%s215 + $0xc0] sm:$0xf]
      %v606 = vld [vmem:[%s215 + $0xc4] sm:$0xf]
      %v607 = vld [vmem:[%s215 + $0xc8] sm:$0xf]
      %v608 = vld [vmem:[%s215 + $0xcc] sm:$0xf]
      %v609 = vld [vmem:[%s215 + $0xd0] sm:$0xf]
      %v610 = vld [vmem:[%s215 + $0xd4] sm:$0xf]
      %v611 = vld [vmem:[%s215 + $0xd8] sm:$0xf]
      %v612 = vld [vmem:[%s215 + $0xdc] sm:$0xf]
      %v613 = vld [vmem:[%s215 + $0xe0] sm:$0xf]
      %v614 = vld [vmem:[%s215 + $0xe4] sm:$0xf]
      %v615 = vld [vmem:[%s215 + $0xe8] sm:$0xf]
      %v616 = vld [vmem:[%s215 + $0xec] sm:$0xf]
      %v617 = vld [vmem:[%s215 + $0xf0] sm:$0xf]
      %v618 = vld [vmem:[%s215 + $0xf4] sm:$0xf]
      %v619 = vld [vmem:[%s215 + $0xf8] sm:$0xf]
      %v620 = vld [vmem:[%s215 + $0xfc] sm:$0xf]
      %v621 = vunpack.c.l.bf16 %v557
      %v622 = vunpack.c.l.bf16 %v558
      %v623 = vunpack.c.l.bf16 %v559
      %v624 = vunpack.c.l.bf16 %v560
      %v625 = vunpack.c.l.bf16 %v561
      %v626 = vunpack.c.l.bf16 %v562
      %v627 = vunpack.c.l.bf16 %v563
      %v628 = vunpack.c.l.bf16 %v564
      %v629 = vunpack.c.l.bf16 %v565
      %v630 = vunpack.c.l.bf16 %v566
      %v631 = vunpack.c.l.bf16 %v567
      %v632 = vunpack.c.l.bf16 %v568
      %v633 = vunpack.c.l.bf16 %v569
      %v634 = vunpack.c.l.bf16 %v570
      %v635 = vunpack.c.l.bf16 %v571
      %v636 = vunpack.c.l.bf16 %v572
      %v637 = vunpack.c.l.bf16 %v573
      %v638 = vunpack.c.l.bf16 %v574
      %v639 = vunpack.c.l.bf16 %v575
      %v640 = vunpack.c.l.bf16 %v576
      %v641 = vunpack.c.l.bf16 %v577
      %v642 = vunpack.c.l.bf16 %v578
      %v643 = vunpack.c.l.bf16 %v579
      %v644 = vunpack.c.l.bf16 %v580
      %v645 = vunpack.c.l.bf16 %v581
      %v646 = vunpack.c.l.bf16 %v582
      %v647 = vunpack.c.l.bf16 %v583
      %v648 = vunpack.c.l.bf16 %v584
      %v649 = vunpack.c.l.bf16 %v585
      %v650 = vunpack.c.l.bf16 %v586
      %v651 = vunpack.c.l.bf16 %v587
      %v652 = vunpack.c.l.bf16 %v588
      %v653 = vunpack.c.l.bf16 %v589
      %v654 = vunpack.c.l.bf16 %v590
      %v655 = vunpack.c.l.bf16 %v591
      %v656 = vunpack.c.l.bf16 %v592
      %v657 = vunpack.c.l.bf16 %v593
      %v658 = vunpack.c.l.bf16 %v594
      %v659 = vunpack.c.l.bf16 %v595
      %v660 = vunpack.c.l.bf16 %v596
      %v661 = vunpack.c.l.bf16 %v597
      %v662 = vunpack.c.l.bf16 %v598
      %v663 = vunpack.c.l.bf16 %v599
      %v664 = vunpack.c.l.bf16 %v600
      %v665 = vunpack.c.l.bf16 %v601
      %v666 = vunpack.c.l.bf16 %v602
      %v667 = vunpack.c.l.bf16 %v603
      %v668 = vunpack.c.l.bf16 %v604
      %v669 = vunpack.c.l.bf16 %v605
      %v670 = vunpack.c.l.bf16 %v606
      %v671 = vunpack.c.l.bf16 %v607
      %v672 = vunpack.c.l.bf16 %v608
      %v673 = vunpack.c.l.bf16 %v609
      %v674 = vunpack.c.l.bf16 %v610
      %v675 = vunpack.c.l.bf16 %v611
      %v676 = vunpack.c.l.bf16 %v612
      %v677 = vunpack.c.l.bf16 %v613
      %v678 = vunpack.c.l.bf16 %v614
      %v679 = vunpack.c.l.bf16 %v615
      %v680 = vunpack.c.l.bf16 %v616
      %v681 = vunpack.c.l.bf16 %v617
      %v682 = vunpack.c.l.bf16 %v618
      %v683 = vunpack.c.l.bf16 %v619
      %v684 = vunpack.c.l.bf16 %v620
      %v685 = vadd.f32 %v621, %v493
      %v686 = vadd.f32 %v622, %v494
      %v687 = vadd.f32 %v623, %v495
      %v688 = vadd.f32 %v624, %v496
      %v689 = vadd.f32 %v625, %v497
      %v690 = vadd.f32 %v626, %v498
      %v691 = vadd.f32 %v627, %v499
      %v692 = vadd.f32 %v628, %v500
      %v693 = vadd.f32 %v629, %v501
      %v694 = vadd.f32 %v630, %v502
      %v695 = vadd.f32 %v631, %v503
      %v696 = vadd.f32 %v632, %v504
      %v697 = vadd.f32 %v633, %v505
      %v698 = vadd.f32 %v634, %v506
      %v699 = vadd.f32 %v635, %v507
      %v700 = vadd.f32 %v636, %v508
      %v701 = vadd.f32 %v637, %v509
      %v702 = vadd.f32 %v638, %v510
      %v703 = vadd.f32 %v639, %v511
      %v704 = vadd.f32 %v640, %v512
      %v705 = vadd.f32 %v641, %v513
      %v706 = vadd.f32 %v642, %v514
      %v707 = vadd.f32 %v643, %v515
      %v708 = vadd.f32 %v644, %v516
      %v709 = vadd.f32 %v645, %v517
      %v710 = vadd.f32 %v646, %v518
      %v711 = vadd.f32 %v647, %v519
      %v712 = vadd.f32 %v648, %v520
      %v713 = vadd.f32 %v649, %v521
      %v714 = vadd.f32 %v650, %v522
      %v715 = vadd.f32 %v651, %v523
      %v716 = vadd.f32 %v652, %v524
      %v717 = vadd.f32 %v653, %v525
      %v718 = vadd.f32 %v654, %v526
      %v719 = vadd.f32 %v655, %v527
      %v720 = vadd.f32 %v656, %v528
      %v721 = vadd.f32 %v657, %v529
      %v722 = vadd.f32 %v658, %v530
      %v723 = vadd.f32 %v659, %v531
      %v724 = vadd.f32 %v660, %v532
      %v725 = vadd.f32 %v661, %v533
      %v726 = vadd.f32 %v662, %v534
      %v727 = vadd.f32 %v663, %v535
      %v728 = vadd.f32 %v664, %v536
      %v729 = vadd.f32 %v665, %v537
      %v730 = vadd.f32 %v666, %v538
      %v731 = vadd.f32 %v667, %v539
      %v732 = vadd.f32 %v668, %v540
      %v733 = vadd.f32 %v669, %v541
      %v734 = vadd.f32 %v670, %v542
      %v735 = vadd.f32 %v671, %v543
      %v736 = vadd.f32 %v672, %v544
      %v737 = vadd.f32 %v673, %v545
      %v738 = vadd.f32 %v674, %v546
      %v739 = vadd.f32 %v675, %v547
      %v740 = vadd.f32 %v676, %v548
      %v741 = vadd.f32 %v677, %v549
      %v742 = vadd.f32 %v678, %v550
      %v743 = vadd.f32 %v679, %v551
      %v744 = vadd.f32 %v680, %v552
      %v745 = vadd.f32 %v681, %v553
      %v746 = vadd.f32 %v682, %v554
      %v747 = vadd.f32 %v683, %v555
      %v748 = vadd.f32 %v684, %v556
      %749 = vst [vmem:[%s221] sm:$0xff] %v685
      %750 = vst [vmem:[%s221 + $0x8] sm:$0xff] %v686
      %751 = vst [vmem:[%s221 + $0x10] sm:$0xff] %v687
      %752 = vst [vmem:[%s221 + $0x18] sm:$0xff] %v688
      %753 = vst [vmem:[%s221 + $0x20] sm:$0xff] %v689
      %754 = vst [vmem:[%s221 + $0x28] sm:$0xff] %v690
      %755 = vst [vmem:[%s221 + $0x30] sm:$0xff] %v691
      %756 = vst [vmem:[%s221 + $0x38] sm:$0xff] %v692
      %757 = vst [vmem:[%s221 + $0x40] sm:$0xff] %v693
      %758 = vst [vmem:[%s221 + $0x48] sm:$0xff] %v694
      %759 = vst [vmem:[%s221 + $0x50] sm:$0xff] %v695
      %760 = vst [vmem:[%s221 + $0x58] sm:$0xff] %v696
      %761 = vst [vmem:[%s221 + $0x60] sm:$0xff] %v697
      %762 = vst [vmem:[%s221 + $0x68] sm:$0xff] %v698
      %763 = vst [vmem:[%s221 + $0x70] sm:$0xff] %v699
      %764 = vst [vmem:[%s221 + $0x78] sm:$0xff] %v700
      %765 = vst [vmem:[%s221 + $0x80] sm:$0xff] %v701
      %766 = vst [vmem:[%s221 + $0x88] sm:$0xff] %v702
      %767 = vst [vmem:[%s221 + $0x90] sm:$0xff] %v703
      %768 = vst [vmem:[%s221 + $0x98] sm:$0xff] %v704
      %769 = vst [vmem:[%s221 + $0xa0] sm:$0xff] %v705
      %770 = vst [vmem:[%s221 + $0xa8] sm:$0xff] %v706
      %771 = vst [vmem:[%s221 + $0xb0] sm:$0xff] %v707
      %772 = vst [vmem:[%s221 + $0xb8] sm:$0xff] %v708
      %773 = vst [vmem:[%s221 + $0xc0] sm:$0xff] %v709
      %774 = vst [vmem:[%s221 + $0xc8] sm:$0xff] %v710
      %775 = vst [vmem:[%s221 + $0xd0] sm:$0xff] %v711
      %776 = vst [vmem:[%s221 + $0xd8] sm:$0xff] %v712
      %777 = vst [vmem:[%s221 + $0xe0] sm:$0xff] %v713
      %778 = vst [vmem:[%s221 + $0xe8] sm:$0xff] %v714
      %779 = vst [vmem:[%s221 + $0xf0] sm:$0xff] %v715
      %780 = vst [vmem:[%s221 + $0xf8] sm:$0xff] %v716
      %781 = vst [vmem:[%s221 + $0x100] sm:$0xff] %v717
      %782 = vst [vmem:[%s221 + $0x108] sm:$0xff] %v718
      %783 = vst [vmem:[%s221 + $0x110] sm:$0xff] %v719
      %784 = vst [vmem:[%s221 + $0x118] sm:$0xff] %v720
      %785 = vst [vmem:[%s221 + $0x120] sm:$0xff] %v721
      %786 = vst [vmem:[%s221 + $0x128] sm:$0xff] %v722
      %787 = vst [vmem:[%s221 + $0x130] sm:$0xff] %v723
      %788 = vst [vmem:[%s221 + $0x138] sm:$0xff] %v724
      %789 = vst [vmem:[%s221 + $0x140] sm:$0xff] %v725
      %790 = vst [vmem:[%s221 + $0x148] sm:$0xff] %v726
      %791 = vst [vmem:[%s221 + $0x150] sm:$0xff] %v727
      %792 = vst [vmem:[%s221 + $0x158] sm:$0xff] %v728
      %793 = vst [vmem:[%s221 + $0x160] sm:$0xff] %v729
      %794 = vst [vmem:[%s221 + $0x168] sm:$0xff] %v730
      %795 = vst [vmem:[%s221 + $0x170] sm:$0xff] %v731
      %796 = vst [vmem:[%s221 + $0x178] sm:$0xff] %v732
      %797 = vst [vmem:[%s221 + $0x180] sm:$0xff] %v733
      %798 = vst [vmem:[%s221 + $0x188] sm:$0xff] %v734
      %799 = vst [vmem:[%s221 + $0x190] sm:$0xff] %v735
      %800 = vst [vmem:[%s221 + $0x198] sm:$0xff] %v736
      %801 = vst [vmem:[%s221 + $0x1a0] sm:$0xff] %v737
      %802 = vst [vmem:[%s221 + $0x1a8] sm:$0xff] %v738
      %803 = vst [vmem:[%s221 + $0x1b0] sm:$0xff] %v739
      %804 = vst [vmem:[%s221 + $0x1b8] sm:$0xff] %v740
      %805 = vst [vmem:[%s221 + $0x1c0] sm:$0xff] %v741
      %806 = vst [vmem:[%s221 + $0x1c8] sm:$0xff] %v742
      %807 = vst [vmem:[%s221 + $0x1d0] sm:$0xff] %v743
      %808 = vst [vmem:[%s221 + $0x1d8] sm:$0xff] %v744
      %809 = vst [vmem:[%s221 + $0x1e0] sm:$0xff] %v745
      %810 = vst [vmem:[%s221 + $0x1e8] sm:$0xff] %v746
      %811 = vst [vmem:[%s221 + $0x1f0] sm:$0xff] %v747
      %812 = vst [vmem:[%s221 + $0x1f8] sm:$0xff] %v748
      %s813 = smul.u32 64, %s15
      %p814 = scmp.lt.s32.totalorder %s813, 127
      %s815 = scalar_select %p814, %s813, 127
      %s816 = smul.addr %s815, 8
      %s817 = scalar_lea.vmem %s4, %s816
      // Predicated region
      $region37: #{_forward_impl.11} parent=35 // pred_check
        %p818 = pneg %p127
      $region38: #{_forward_impl.11} parent=35 // pred_check_branch
        %820 = sbr.rel (%p818) target = $region40
      $region39: #{_forward_impl.11} parent=35 // pred_region
        %s821 = smul.u32 64, %s15
      $region40: #{_forward_impl.11} parent=35 // pred_fallthru
        _
    $region36: #{_forward_impl.11} parent=5 // pred_fallthru
      _
    %p822 = scmp.le.s32.totalorder 2, %s10
    // Predicated region
    $region41: #{_forward_impl.11} parent=5 // pred_check
      %p823 = pneg %p822
    $region42: #{_forward_impl.11} parent=5 // pred_check_branch
      %825 = sbr.rel (%p823) target = $region44
    $region43: #{_forward_impl.11} parent=5 // pred_region
      %s826 = ssub.s32 %s10, 2
      // Predicated region
      $region45: #{_forward_impl.11} parent=43 // pred_check
        %p827 = pneg %p133
      $region46: #{_forward_impl.11} parent=43 // pred_check_branch
        %829 = sbr.rel (%p827) target = $region48
      $region47: #{_forward_impl.11} parent=43 // pred_region
        %s830 = smul.u32 64, %s16
        %p831 = scmp.lt.s32.totalorder %s830, 127
        %s832 = scalar_select %p831, %s830, 127
        %s833 = smul.addr %s832, 8
        %s834 = scalar_lea.vmem %s4, %s833
      $region48: #{_forward_impl.11} parent=43 // pred_fallthru
        _
    $region44: #{_forward_impl.11} parent=5 // pred_fallthru
      _
  $region6: #{_forward_impl.11} parent=0 // loop_footer
    %s14 = sadd.s32 1, %s10
  $region7: #{_forward_impl.11} parent=0 // loop_footer_branch
    %9 = sbr.rel target = $region3
  $region8: #{_forward_impl.11} parent=0 // loop_exit
    _

// kernel: _forward_impl.6
$region0: #{_forward_impl.6}
  #allocation0 [shape = 'u32[]', space=smem, size = 0x4, offset = 0x4, fixed_abs, tag = 'smem constant byte address 0x4 - core index']
  #allocation1 [shape = 'u32[144,128]{1,0:T(1,128)}', space=vmem, size = 0x12000, scoped, tag = 'internal scratch']
  %s0 = inlined_call_operand.vmem [shape: bf16[1024,128], index: 0, kind: input, shape index: {}]
  %s1 = inlined_call_operand.vmem [shape: bf16[128,128], index: 1, kind: input, shape index: {}]
  %s2 = inlined_call_operand.vmem [shape: f32[1,128], index: 2, kind: input, shape index: {}]
  %s3 = inlined_call_operand.vmem [shape: bf16[1024,128], index: 3, kind: output, shape index: {}]
  %s4 = sld [smem:[#allocation0]]
  $region45: #{_forward_impl.6} parent=0
    _
  %s6 = ssub.s32 1, %s4
  %s7 = scalar_select 0, %s6, %s4
  loop: start=0, step=1, limit=4
  $region2: #{_forward_impl.6} parent=0 // loop_pre_header
    _
  $region3: #{_forward_impl.6} parent=0 // loop_header
    %s9 = sphi 0, %s13
    %p10 = scmp.ge.s32.totalorder %s9, 4
    %s19 = sphi 0, %s21
    %s22 = sphi 0, %s19
    %s23 = sphi 0, %s22
    %s39 = sphi 0, %s23
    %s43 = sphi 0, %s43
    %s45 = sphi 0, %s43
    %s46 = sphi 0, %s45
    %s60 = sphi 0, %s46
    %s64 = sphi 0, %s64
    %s66 = sphi 0, %s64
    %s67 = sphi 0, %s66
    %s81 = sphi 0, %s67
    %s87 = sphi 0, %s89
    %s90 = sphi 0, %s87
    %s91 = sphi 0, %s90
    %s107 = sphi 0, %s91
  $region4: #{_forward_impl.6} parent=0 // loop_header_branch
    %12 = sbr.rel (%p10) target = $region8
  $region5: #{_forward_impl.6} parent=0 // loop_body
    %s14 = ssub.s32 %s9, 1
    %s15 = ssub.s32 %s9, 2
    %s16 = sadd.s32 %s9, 1
    %s17 = ssub.s32 %s9, %s16
    %p18 = scmp.eq.s32.totalorder %s17, 0
    %s20 = sadd.s32 %s19, 1
    %s21 = scalar_select %p18, %s19, %s20
    %p24 = pneg %p18
    %p25 = scmp.eq.s32.totalorder %s9, 1
    %p26 = por %p24, %p25
    %p27 = scmp.ne.s32.totalorder %s19, %s22
    %p28 = scmp.eq.s32.totalorder %s9, 0
    %p29 = por %p27, %p28
    %p30 = scmp.ne.s32.totalorder %s19, %s22
    %p31 = scmp.eq.s32.totalorder %s14, 1
    %p32 = por %p30, %p31
    %p33 = scmp.ne.s32.totalorder %s22, %s23
    %p34 = scmp.eq.s32.totalorder %s14, 0
    %p35 = por %p33, %p34
    %p36 = scmp.ne.s32.totalorder %s22, %s23
    %p37 = scmp.eq.s32.totalorder %s15, 1
    %p38 = por %p36, %p37
    %p40 = scmp.ne.s32.totalorder %s23, %s39
    %p41 = scmp.eq.s32.totalorder %s15, 0
    %p42 = por %p40, %p41
    %s44 = sadd.s32 %s43, 1
    %p47 = scmp.eq.s32.totalorder %s9, 1
    %p48 = scmp.ne.s32.totalorder %s43, %s45
    %p49 = scmp.eq.s32.totalorder %s9, 0
    %p50 = por %p48, %p49
    %p51 = scmp.ne.s32.totalorder %s43, %s45
    %p52 = scmp.eq.s32.totalorder %s14, 1
    %p53 = por %p51, %p52
    %p54 = scmp.ne.s32.totalorder %s45, %s46
    %p55 = scmp.eq.s32.totalorder %s14, 0
    %p56 = por %p54, %p55
    %p57 = scmp.ne.s32.totalorder %s45, %s46
    %p58 = scmp.eq.s32.totalorder %s15, 1
    %p59 = por %p57, %p58
    %p61 = scmp.ne.s32.totalorder %s46, %s60
    %p62 = scmp.eq.s32.totalorder %s15, 0
    %p63 = por %p61, %p62
    %s65 = sadd.s32 %s64, 1
    %p68 = scmp.eq.s32.totalorder %s9, 1
    %p69 = scmp.ne.s32.totalorder %s64, %s66
    %p70 = scmp.eq.s32.totalorder %s9, 0
    %p71 = por %p69, %p70
    %p72 = scmp.ne.s32.totalorder %s64, %s66
    %p73 = scmp.eq.s32.totalorder %s14, 1
    %p74 = por %p72, %p73
    %p75 = scmp.ne.s32.totalorder %s66, %s67
    %p76 = scmp.eq.s32.totalorder %s14, 0
    %p77 = por %p75, %p76
    %p78 = scmp.ne.s32.totalorder %s66, %s67
    %p79 = scmp.eq.s32.totalorder %s15, 1
    %p80 = por %p78, %p79
    %p82 = scmp.ne.s32.totalorder %s67, %s81
    %p83 = scmp.eq.s32.totalorder %s15, 0
    %p84 = por %p82, %p83
    %s85 = ssub.s32 %s9, %s16
    %p86 = scmp.eq.s32.totalorder %s85, 0
    %s88 = sadd.s32 %s87, 1
    %s89 = scalar_select %p86, %s87, %s88
    %p92 = pneg %p86
    %p93 = scmp.eq.s32.totalorder %s9, 1
    %p94 = por %p92, %p93
    %p95 = scmp.ne.s32.totalorder %s87, %s90
    %p96 = scmp.eq.s32.totalorder %s9, 0
    %p97 = por %p95, %p96
    %p98 = scmp.ne.s32.totalorder %s87, %s90
    %p99 = scmp.eq.s32.totalorder %s14, 1
    %p100 = por %p98, %p99
    %p101 = scmp.ne.s32.totalorder %s90, %s91
    %p102 = scmp.eq.s32.totalorder %s14, 0
    %p103 = por %p101, %p102
    %p104 = scmp.ne.s32.totalorder %s90, %s91
    %p105 = scmp.eq.s32.totalorder %s15, 1
    %p106 = por %p104, %p105
    %p108 = scmp.ne.s32.totalorder %s91, %s107
    %p109 = scmp.eq.s32.totalorder %s15, 0
    %p110 = por %p108, %p109
    %p111 = scmp.le.s32.totalorder 1, %s9
    %p112 = scmp.lt.s32.totalorder %s9, 3
    %p113 = pnand %p111, %p112
    %p114 = pneg %p113
    // Predicated region
    $region9: #{_forward_impl.6} parent=5 // pred_check
      _
    $region10: #{_forward_impl.6} parent=5 // pred_check_branch
      %116 = sbr.rel (%p113) target = $region12
    $region11: #{_forward_impl.6} parent=5 // pred_region
      %s117 = ssub.s32 %s9, 1
      // Predicated region
      $region13: #{_forward_impl.6} parent=11 // pred_check
        %p118 = pneg %p56
      $region14: #{_forward_impl.6} parent=11 // pred_check_branch
        %120 = sbr.rel (%p118) target = $region16
      $region15: #{_forward_impl.6} parent=11 // pred_region
        _
      $region16: #{_forward_impl.6} parent=11 // pred_fallthru
        _
      // Predicated region
      $region17: #{_forward_impl.6} parent=11 // pred_check
        %p121 = pneg %p77
      $region18: #{_forward_impl.6} parent=11 // pred_check_branch
        %123 = sbr.rel (%p121) target = $region20
      $region19: #{_forward_impl.6} parent=11 // pred_region
        _
      $region20: #{_forward_impl.6} parent=11 // pred_fallthru
        _
    $region12: #{_forward_impl.6} parent=5 // pred_fallthru
      _
    %p124 = scmp.lt.s32.totalorder %s9, 2
    // Predicated region
    $region21: #{_forward_impl.6} parent=5 // pred_check
      %p125 = pneg %p124
    $region22: #{_forward_impl.6} parent=5 // pred_check_branch
      %127 = sbr.rel (%p125) target = $region24
    $region23: #{_forward_impl.6} parent=5 // pred_region
      // Predicated region
      $region25: #{_forward_impl.6} parent=23 // pred_check
        %p128 = pneg %p29
      $region26: #{_forward_impl.6} parent=23 // pred_check_branch
        %130 = sbr.rel (%p128) target = $region28
      $region27: #{_forward_impl.6} parent=23 // pred_region
        %s131 = smul.u32 64, %s9
        %p132 = scmp.lt.s32.totalorder %s131, 127
        %s133 = scalar_select %p132, %s131, 127
        %s134 = smul.addr %s133, 4
        %s135 = scalar_lea.vmem %s0, %s134
        %s136 = smul.u32 64, %s9
      $region28: #{_forward_impl.6} parent=23 // pred_fallthru
        _
    $region24: #{_forward_impl.6} parent=5 // pred_fallthru
      _
    %p137 = scmp.le.s32.totalorder 1, %s9
    %p138 = scmp.lt.s32.totalorder %s9, 3
    %p139 = pnand %p137, %p138
    %p140 = pneg %p139
    // Predicated region
    $region29: #{_forward_impl.6} parent=5 // pred_check
      _
    $region30: #{_forward_impl.6} parent=5 // pred_check_branch
      %142 = sbr.rel (%p139) target = $region32
    $region31: #{_forward_impl.6} parent=5 // pred_region
      %s143 = ssub.s32 %s9, 1
      %s144 = smul.u32 64, %s14
      %p145 = scmp.lt.s32.totalorder %s144, 127
      %s146 = scalar_select %p145, %s144, 127
      %s147 = smul.addr %s146, 4
      %s148 = scalar_lea.vmem %s0, %s147
      %p149 = pneg %p35
      %p150 = pneg %p32
      %p151 = pneg %p56
      %p152 = pneg %p53
      %p153 = pneg %p77
      %p154 = pneg %p74
      %p155 = pneg %p103
      %p156 = pneg %p100
      %s157 = smul.u32 64, %s14
      %p158 = scmp.lt.s32.totalorder %s157, 127
      %s159 = scalar_select %p158, %s157, 127
      %s160 = smul.addr %s159, 4
      %s161 = scalar_lea.vmem %s3, %s160
      %s162 = smul.u32 64, %s14
      %p163 = scmp.lt.s32.totalorder %s162, 127
      %s164 = scalar_select %p163, %s162, 127
      %s165 = smul.addr %s164, 4
      %s166 = scalar_lea.vmem %s0, %s165
      %s167 = smul.u32 64, %s14
      %s168 = smul.u32 64, %s14
      %p169 = scmp.lt.s32.totalorder %s168, 127
      %s170 = scalar_select %p169, %s168, 127
      %s171 = smul.addr %s170, 4
      %s172 = scalar_lea.vmem %s3, %s171
      %s173 = smul.u32 64, %s14
      %v175 = vld [vmem:[%s166] sm:$0xf]
      %v176 = vld [vmem:[%s166 + $0x4] sm:$0xf]
      %v177 = vld [vmem:[%s166 + $0x8] sm:$0xf]
      %v178 = vld [vmem:[%s166 + $0xc] sm:$0xf]
      %v179 = vld [vmem:[%s166 + $0x10] sm:$0xf]
      %v180 = vld [vmem:[%s166 + $0x14] sm:$0xf]
      %v181 = vld [vmem:[%s166 + $0x18] sm:$0xf]
      %v182 = vld [vmem:[%s166 + $0x1c] sm:$0xf]
      %v183 = vld [vmem:[%s166 + $0x20] sm:$0xf]
      %v184 = vld [vmem:[%s166 + $0x24] sm:$0xf]
      %v185 = vld [vmem:[%s166 + $0x28] sm:$0xf]
      %v186 = vld [vmem:[%s166 + $0x2c] sm:$0xf]
      %v187 = vld [vmem:[%s166 + $0x30] sm:$0xf]
      %v188 = vld [vmem:[%s166 + $0x34] sm:$0xf]
      %v189 = vld [vmem:[%s166 + $0x38] sm:$0xf]
      %v190 = vld [vmem:[%s166 + $0x3c] sm:$0xf]
      %v191 = vld [vmem:[%s166 + $0x40] sm:$0xf]
      %v192 = vld [vmem:[%s166 + $0x44] sm:$0xf]
      %v193 = vld [vmem:[%s166 + $0x48] sm:$0xf]
      %v194 = vld [vmem:[%s166 + $0x4c] sm:$0xf]
      %v195 = vld [vmem:[%s166 + $0x50] sm:$0xf]
      %v196 = vld [vmem:[%s166 + $0x54] sm:$0xf]
      %v197 = vld [vmem:[%s166 + $0x58] sm:$0xf]
      %v198 = vld [vmem:[%s166 + $0x5c] sm:$0xf]
      %v199 = vld [vmem:[%s166 + $0x60] sm:$0xf]
      %v200 = vld [vmem:[%s166 + $0x64] sm:$0xf]
      %v201 = vld [vmem:[%s166 + $0x68] sm:$0xf]
      %v202 = vld [vmem:[%s166 + $0x6c] sm:$0xf]
      %v203 = vld [vmem:[%s166 + $0x70] sm:$0xf]
      %v204 = vld [vmem:[%s166 + $0x74] sm:$0xf]
      %v205 = vld [vmem:[%s166 + $0x78] sm:$0xf]
      %v206 = vld [vmem:[%s166 + $0x7c] sm:$0xf]
      %v207 = vld [vmem:[%s166 + $0x80] sm:$0xf]
      %v208 = vld [vmem:[%s166 + $0x84] sm:$0xf]
      %v209 = vld [vmem:[%s166 + $0x88] sm:$0xf]
      %v210 = vld [vmem:[%s166 + $0x8c] sm:$0xf]
      %v211 = vld [vmem:[%s166 + $0x90] sm:$0xf]
      %v212 = vld [vmem:[%s166 + $0x94] sm:$0xf]
      %v213 = vld [vmem:[%s166 + $0x98] sm:$0xf]
      %v214 = vld [vmem:[%s166 + $0x9c] sm:$0xf]
      %v215 = vld [vmem:[%s166 + $0xa0] sm:$0xf]
      %v216 = vld [vmem:[%s166 + $0xa4] sm:$0xf]
      %v217 = vld [vmem:[%s166 + $0xa8] sm:$0xf]
      %v218 = vld [vmem:[%s166 + $0xac] sm:$0xf]
      %v219 = vld [vmem:[%s166 + $0xb0] sm:$0xf]
      %v220 = vld [vmem:[%s166 + $0xb4] sm:$0xf]
      %v221 = vld [vmem:[%s166 + $0xb8] sm:$0xf]
      %v222 = vld [vmem:[%s166 + $0xbc] sm:$0xf]
      %v223 = vld [vmem:[%s166 + $0xc0] sm:$0xf]
      %v224 = vld [vmem:[%s166 + $0xc4] sm:$0xf]
      %v225 = vld [vmem:[%s166 + $0xc8] sm:$0xf]
      %v226 = vld [vmem:[%s166 + $0xcc] sm:$0xf]
      %v227 = vld [vmem:[%s166 + $0xd0] sm:$0xf]
      %v228 = vld [vmem:[%s166 + $0xd4] sm:$0xf]
      %v229 = vld [vmem:[%s166 + $0xd8] sm:$0xf]
      %v230 = vld [vmem:[%s166 + $0xdc] sm:$0xf]
      %v231 = vld [vmem:[%s166 + $0xe0] sm:$0xf]
      %v232 = vld [vmem:[%s166 + $0xe4] sm:$0xf]
      %v233 = vld [vmem:[%s166 + $0xe8] sm:$0xf]
      %v234 = vld [vmem:[%s166 + $0xec] sm:$0xf]
      %v235 = vld [vmem:[%s166 + $0xf0] sm:$0xf]
      %v236 = vld [vmem:[%s166 + $0xf4] sm:$0xf]
      %v237 = vld [vmem:[%s166 + $0xf8] sm:$0xf]
      %v238 = vld [vmem:[%s166 + $0xfc] sm:$0xf]
      %v239 = vld [vmem:[%s1] sm:$0xf]
      %v240 = vld [vmem:[%s1 + $0x4] sm:$0xf]
      %v241 = vld [vmem:[%s1 + $0x8] sm:$0xf]
      %v242 = vld [vmem:[%s1 + $0xc] sm:$0xf]
      %v243 = vld [vmem:[%s1 + $0x10] sm:$0xf]
      %v244 = vld [vmem:[%s1 + $0x14] sm:$0xf]
      %v245 = vld [vmem:[%s1 + $0x18] sm:$0xf]
      %v246 = vld [vmem:[%s1 + $0x1c] sm:$0xf]
      %v247 = vld [vmem:[%s1 + $0x20] sm:$0xf]
      %v248 = vld [vmem:[%s1 + $0x24] sm:$0xf]
      %v249 = vld [vmem:[%s1 + $0x28] sm:$0xf]
      %v250 = vld [vmem:[%s1 + $0x2c] sm:$0xf]
      %v251 = vld [vmem:[%s1 + $0x30] sm:$0xf]
      %v252 = vld [vmem:[%s1 + $0x34] sm:$0xf]
      %v253 = vld [vmem:[%s1 + $0x38] sm:$0xf]
      %v254 = vld [vmem:[%s1 + $0x3c] sm:$0xf]
      %v255 = vld [vmem:[%s2] sm:$0x1]
      %v257 = vlaneseq
      %v258 = vshrl.u32 %v257, 7
      %v259 = vsub.s32 0, %v258
      %v260 = vrot.slane %v255, %v259
      %v326 = vunpack.c.l.b16 %v175
      %v327 = vunpack.c.l.b16 %v176
      %v328 = vunpack.c.l.b16 %v177
      %v329 = vunpack.c.l.b16 %v178
      %v330 = vunpack.c.l.b16 %v179
      %v331 = vunpack.c.l.b16 %v180
      %v332 = vunpack.c.l.b16 %v181
      %v333 = vunpack.c.l.b16 %v182
      %v334 = vunpack.c.l.b16 %v183
      %v335 = vunpack.c.l.b16 %v184
      %v336 = vunpack.c.l.b16 %v185
      %v337 = vunpack.c.l.b16 %v186
      %v338 = vunpack.c.l.b16 %v187
      %v339 = vunpack.c.l.b16 %v188
      %v340 = vunpack.c.l.b16 %v189
      %v341 = vunpack.c.l.b16 %v190
      %v342 = vunpack.c.l.b16 %v191
      %v343 = vunpack.c.l.b16 %v192
      %v344 = vunpack.c.l.b16 %v193
      %v345 = vunpack.c.l.b16 %v194
      %v346 = vunpack.c.l.b16 %v195
      %v347 = vunpack.c.l.b16 %v196
      %v348 = vunpack.c.l.b16 %v197
      %v349 = vunpack.c.l.b16 %v198
      %v350 = vunpack.c.l.b16 %v199
      %v351 = vunpack.c.l.b16 %v200
      %v352 = vunpack.c.l.b16 %v201
      %v353 = vunpack.c.l.b16 %v202
      %v354 = vunpack.c.l.b16 %v203
      %v355 = vunpack.c.l.b16 %v204
      %v356 = vunpack.c.l.b16 %v205
      %v357 = vunpack.c.l.b16 %v206
      %v358 = vunpack.c.l.b16 %v207
      %v359 = vunpack.c.l.b16 %v208
      %v360 = vunpack.c.l.b16 %v209
      %v361 = vunpack.c.l.b16 %v210
      %v362 = vunpack.c.l.b16 %v211
      %v363 = vunpack.c.l.b16 %v212
      %v364 = vunpack.c.l.b16 %v213
      %v365 = vunpack.c.l.b16 %v214
      %v366 = vunpack.c.l.b16 %v215
      %v367 = vunpack.c.l.b16 %v216
      %v368 = vunpack.c.l.b16 %v217
      %v369 = vunpack.c.l.b16 %v218
      %v370 = vunpack.c.l.b16 %v219
      %v371 = vunpack.c.l.b16 %v220
      %v372 = vunpack.c.l.b16 %v221
      %v373 = vunpack.c.l.b16 %v222
      %v374 = vunpack.c.l.b16 %v223
      %v375 = vunpack.c.l.b16 %v224
      %v376 = vunpack.c.l.b16 %v225
      %v377 = vunpack.c.l.b16 %v226
      %v378 = vunpack.c.l.b16 %v227
      %v379 = vunpack.c.l.b16 %v228
      %v380 = vunpack.c.l.b16 %v229
      %v381 = vunpack.c.l.b16 %v230
      %v382 = vunpack.c.l.b16 %v231
      %v383 = vunpack.c.l.b16 %v232
      %v384 = vunpack.c.l.b16 %v233
      %v385 = vunpack.c.l.b16 %v234
      %v386 = vunpack.c.l.b16 %v235
      %v387 = vunpack.c.l.b16 %v236
      %v388 = vunpack.c.l.b16 %v237
      %v389 = vunpack.c.l.b16 %v238
      %v390 = vpack.c.b16 %v327, %v326
      %v391 = vpack.c.b16 %v329, %v328
      %v392 = vpack.c.b16 %v331, %v330
      %v393 = vpack.c.b16 %v333, %v332
      %v394 = vpack.c.b16 %v335, %v334
      %v395 = vpack.c.b16 %v337, %v336
      %v396 = vpack.c.b16 %v339, %v338
      %v397 = vpack.c.b16 %v341, %v340
      %v398 = vpack.c.b16 %v343, %v342
      %v399 = vpack.c.b16 %v345, %v344
      %v400 = vpack.c.b16 %v347, %v346
      %v401 = vpack.c.b16 %v349, %v348
      %v402 = vpack.c.b16 %v351, %v350
      %v403 = vpack.c.b16 %v353, %v352
      %v404 = vpack.c.b16 %v355, %v354
      %v405 = vpack.c.b16 %v357, %v356
      %v406 = vpack.c.b16 %v359, %v358
      %v407 = vpack.c.b16 %v361, %v360
      %v408 = vpack.c.b16 %v363, %v362
      %v409 = vpack.c.b16 %v365, %v364
      %v410 = vpack.c.b16 %v367, %v366
      %v411 = vpack.c.b16 %v369, %v368
      %v412 = vpack.c.b16 %v371, %v370
      %v413 = vpack.c.b16 %v373, %v372
      %v414 = vpack.c.b16 %v375, %v374
      %v415 = vpack.c.b16 %v377, %v376
      %v416 = vpack.c.b16 %v379, %v378
      %v417 = vpack.c.b16 %v381, %v380
      %v418 = vpack.c.b16 %v383, %v382
      %v419 = vpack.c.b16 %v385, %v384
      %v420 = vpack.c.b16 %v387, %v386
      %v421 = vpack.c.b16 %v389, %v388
      %v470 = vunpack.c.l.b16 %v239
      %v471 = vunpack.c.l.b16 %v240
      %v472 = vunpack.c.l.b16 %v241
      %v473 = vunpack.c.l.b16 %v242
      %v474 = vunpack.c.l.b16 %v243
      %v475 = vunpack.c.l.b16 %v244
      %v476 = vunpack.c.l.b16 %v245
      %v477 = vunpack.c.l.b16 %v246
      %v478 = vunpack.c.l.b16 %v247
      %v479 = vunpack.c.l.b16 %v248
      %v480 = vunpack.c.l.b16 %v249
      %v481 = vunpack.c.l.b16 %v250
      %v482 = vunpack.c.l.b16 %v251
      %v483 = vunpack.c.l.b16 %v252
      %v484 = vunpack.c.l.b16 %v253
      %v485 = vunpack.c.l.b16 %v254
      %v486 = vpack.c.b16 %v471, %v470
      %v487 = vpack.c.b16 %v473, %v472
      %v488 = vpack.c.b16 %v475, %v474
      %v489 = vpack.c.b16 %v477, %v476
      %v490 = vpack.c.b16 %v479, %v478
      %v491 = vpack.c.b16 %v481, %v480
      %v492 = vpack.c.b16 %v483, %v482
      %v493 = vpack.c.b16 %v485, %v484
      %502 = vmatprep.subr.bf16.mxu0 0
      %503 = vmatpush1.bf16.msra.mxu0 %v486
      %504 = vmatprep.subr.bf16.mxu0 0
      %505 = vmatpush1.bf16.msra.mxu0 %v487
      %506 = vmatprep.subr.bf16.mxu0 0
      %507 = vmatpush1.bf16.msra.mxu0 %v488
      %508 = vmatprep.subr.bf16.mxu0 0
      %509 = vmatpush1.bf16.msra.mxu0 %v489
      %510 = vmatprep.subr.bf16.mxu0 0
      %511 = vmatpush1.bf16.msra.mxu0 %v490
      %512 = vmatprep.subr.bf16.mxu0 0
      %513 = vmatpush1.bf16.msra.mxu0 %v491
      %514 = vmatprep.subr.bf16.mxu0 0
      %515 = vmatpush1.bf16.msra.mxu0 %v492
      %516 = vmatprep.subr.bf16.mxu0 0
      %517 = vmatpush1.bf16.msra.mxu0 %v493
      %518 = vmatprep.subr.bf16.mxu0 0
      %519 = vmatpush1.bf16.msra.mxu0 0
      %520 = vmatprep.subr.bf16.mxu0 0
      %521 = vmatpush1.bf16.msra.mxu0 0
      %522 = vmatprep.subr.bf16.mxu0 0
      %523 = vmatpush1.bf16.msra.mxu0 0
      %524 = vmatprep.subr.bf16.mxu0 0
      %525 = vmatpush1.bf16.msra.mxu0 0
      %526 = vmatprep.subr.bf16.mxu0 0
      %527 = vmatpush1.bf16.msra.mxu0 0
      %528 = vmatprep.subr.bf16.mxu0 0
      %529 = vmatpush1.bf16.msra.mxu0 0
      %530 = vmatprep.subr.bf16.mxu0 0
      %531 = vmatpush1.bf16.msra.mxu0 0
      %532 = vmatprep.subr.bf16.mxu0 0
      %533 = vmatpush1.bf16.msra.mxu0 0
      %534 = vmatprep.mubr.bf16.mxu0 0
      %535 = vmatmul.mubr.bf16.gmra.mrb[0].mxu0 %v390
      %v536 = vpop.f32.mrb[0].mxu0
      %v537 = vadd.f32 %v260, %v536
      %v538 = vpop.f32.mrb[0].mxu0
      %v539 = vpop.f32.mrb[0].mxu0
      %v540 = vadd.f32 %v260, %v539
      %v541 = vpop.f32.mrb[0].mxu0
      %542 = vmatprep.mubr.bf16.mxu0 0
      %543 = vmatmul.mubr.bf16.gmra.mrb[0].mxu0 %v391
      %v544 = vpop.f32.mrb[0].mxu0
      %v545 = vadd.f32 %v260, %v544
      %v546 = vpop.f32.mrb[0].mxu0
      %v547 = vpop.f32.mrb[0].mxu0
      %v548 = vadd.f32 %v260, %v547
      %v549 = vpop.f32.mrb[0].mxu0
      %550 = vmatprep.mubr.bf16.mxu0 0
      %551 = vmatmul.mubr.bf16.gmra.mrb[0].mxu0 %v392
      %v552 = vpop.f32.mrb[0].mxu0
      %v553 = vadd.f32 %v260, %v552
      %v554 = vpop.f32.mrb[0].mxu0
      %v555 = vpop.f32.mrb[0].mxu0
      %v556 = vadd.f32 %v260, %v555
      %v557 = vpop.f32.mrb[0].mxu0
      %558 = vmatprep.mubr.bf16.mxu0 0
      %559 = vmatmul.mubr.bf16.gmra.mrb[0].mxu0 %v393
      %v560 = vpop.f32.mrb[0].mxu0
      %v561 = vadd.f32 %v260, %v560
      %v562 = vpop.f32.mrb[0].mxu0
      %v563 = vpop.f32.mrb[0].mxu0
      %v564 = vadd.f32 %v260, %v563
      %v565 = vpop.f32.mrb[0].mxu0
      %566 = vmatprep.mubr.bf16.mxu0 0
      %567 = vmatmul.mubr.bf16.gmra.mrb[0].mxu0 %v394
      %v568 = vpop.f32.mrb[0].mxu0
      %v569 = vadd.f32 %v260, %v568
      %v570 = vpop.f32.mrb[0].mxu0
      %v571 = vpop.f32.mrb[0].mxu0
      %v572 = vadd.f32 %v260, %v571
      %v573 = vpop.f32.mrb[0].mxu0
      %574 = vmatprep.mubr.bf16.mxu0 0
      %575 = vmatmul.mubr.bf16.gmra.mrb[0].mxu0 %v395
      %v576 = vpop.f32.mrb[0].mxu0
      %v577 = vadd.f32 %v260, %v576
      %v578 = vpop.f32.mrb[0].mxu0
      %v579 = vpop.f32.mrb[0].mxu0
      %v580 = vadd.f32 %v260, %v579
      %v581 = vpop.f32.mrb[0].mxu0
      %582 = vmatprep.mubr.bf16.mxu0 0
      %583 = vmatmul.mubr.bf16.gmra.mrb[0].mxu0 %v396
      %v584 = vpop.f32.mrb[0].mxu0
      %v585 = vadd.f32 %v260, %v584
      %v586 = vpop.f32.mrb[0].mxu0
      %v587 = vpop.f32.mrb[0].mxu0
      %v588 = vadd.f32 %v260, %v587
      %v589 = vpop.f32.mrb[0].mxu0
      %590 = vmatprep.mubr.bf16.mxu0 0
      %591 = vmatmul.mubr.bf16.gmra.mrb[0].mxu0 %v397
      %v592 = vpop.f32.mrb[0].mxu0
      %v593 = vadd.f32 %v260, %v592
      %v594 = vpop.f32.mrb[0].mxu0
      %v595 = vpop.f32.mrb[0].mxu0
      %v596 = vadd.f32 %v260, %v595
      %v597 = vpop.f32.mrb[0].mxu0
      %598 = vmatprep.mubr.bf16.mxu0 0
      %599 = vmatmul.mubr.bf16.gmra.mrb[0].mxu0 %v398
      %v600 = vpop.f32.mrb[0].mxu0
      %v601 = vadd.f32 %v260, %v600
      %v602 = vpop.f32.mrb[0].mxu0
      %v603 = vpop.f32.mrb[0].mxu0
      %v604 = vadd.f32 %v260, %v603
      %v605 = vpop.f32.mrb[0].mxu0
      %606 = vmatprep.mubr.bf16.mxu0 0
      %607 = vmatmul.mubr.bf16.gmra.mrb[0].mxu0 %v399
      %v608 = vpop.f32.mrb[0].mxu0
      %v609 = vadd.f32 %v260, %v608
      %v610 = vpop.f32.mrb[0].mxu0
      %v611 = vpop.f32.mrb[0].mxu0
      %v612 = vadd.f32 %v260, %v611
      %v613 = vpop.f32.mrb[0].mxu0
      %614 = vmatprep.mubr.bf16.mxu0 0
      %615 = vmatmul.mubr.bf16.gmra.mrb[0].mxu0 %v400
      %v616 = vpop.f32.mrb[0].mxu0
      %v617 = vadd.f32 %v260, %v616
      %v618 = vpop.f32.mrb[0].mxu0
      %v619 = vpop.f32.mrb[0].mxu0
      %v620 = vadd.f32 %v260, %v619
      %v621 = vpop.f32.mrb[0].mxu0
      %622 = vmatprep.mubr.bf16.mxu0 0
      %623 = vmatmul.mubr.bf16.gmra.mrb[0].mxu0 %v401
      %v624 = vpop.f32.mrb[0].mxu0
      %v625 = vadd.f32 %v260, %v624
      %v626 = vpop.f32.mrb[0].mxu0
      %v627 = vpop.f32.mrb[0].mxu0
      %v628 = vadd.f32 %v260, %v627
      %v629 = vpop.f32.mrb[0].mxu0
      %630 = vmatprep.mubr.bf16.mxu0 0
      %631 = vmatmul.mubr.bf16.gmra.mrb[0].mxu0 %v402
      %v632 = vpop.f32.mrb[0].mxu0
      %v633 = vadd.f32 %v260, %v632
      %v634 = vpop.f32.mrb[0].mxu0
      %v635 = vpop.f32.mrb[0].mxu0
      %v636 = vadd.f32 %v260, %v635
      %v637 = vpop.f32.mrb[0].mxu0
      %638 = vmatprep.mubr.bf16.mxu0 0
      %639 = vmatmul.mubr.bf16.gmra.mrb[0].mxu0 %v403
      %v640 = vpop.f32.mrb[0].mxu0
      %v641 = vadd.f32 %v260, %v640
      %v642 = vpop.f32.mrb[0].mxu0
      %v643 = vpop.f32.mrb[0].mxu0
      %v644 = vadd.f32 %v260, %v643
      %v645 = vpop.f32.mrb[0].mxu0
      %646 = vmatprep.mubr.bf16.mxu0 0
      %647 = vmatmul.mubr.bf16.gmra.mrb[0].mxu0 %v404
      %v648 = vpop.f32.mrb[0].mxu0
      %v649 = vadd.f32 %v260, %v648
      %v650 = vpop.f32.mrb[0].mxu0
      %v651 = vpop.f32.mrb[0].mxu0
      %v652 = vadd.f32 %v260, %v651
      %v653 = vpop.f32.mrb[0].mxu0
      %654 = vmatprep.mubr.bf16.mxu0 0
      %655 = vmatmul.mubr.bf16.gmra.mrb[0].mxu0 %v405
      %v656 = vpop.f32.mrb[0].mxu0
      %v657 = vadd.f32 %v260, %v656
      %v658 = vpop.f32.mrb[0].mxu0
      %v659 = vpop.f32.mrb[0].mxu0
      %v660 = vadd.f32 %v260, %v659
      %v661 = vpop.f32.mrb[0].mxu0
      %662 = vmatprep.mubr.bf16.mxu0 0
      %663 = vmatmul.mubr.bf16.gmra.mrb[0].mxu0 %v406
      %v664 = vpop.f32.mrb[0].mxu0
      %v665 = vadd.f32 %v260, %v664
      %v666 = vpop.f32.mrb[0].mxu0
      %v667 = vpop.f32.mrb[0].mxu0
      %v668 = vadd.f32 %v260, %v667
      %v669 = vpop.f32.mrb[0].mxu0
      %670 = vmatprep.mubr.bf16.mxu0 0
      %671 = vmatmul.mubr.bf16.gmra.mrb[0].mxu0 %v407
      %v672 = vpop.f32.mrb[0].mxu0
      %v673 = vadd.f32 %v260, %v672
      %v674 = vpop.f32.mrb[0].mxu0
      %v675 = vpop.f32.mrb[0].mxu0
      %v676 = vadd.f32 %v260, %v675
      %v677 = vpop.f32.mrb[0].mxu0
      %678 = vmatprep.mubr.bf16.mxu0 0
      %679 = vmatmul.mubr.bf16.gmra.mrb[0].mxu0 %v408
      %v680 = vpop.f32.mrb[0].mxu0
      %v681 = vadd.f32 %v260, %v680
      %v682 = vpop.f32.mrb[0].mxu0
      %v683 = vpop.f32.mrb[0].mxu0
      %v684 = vadd.f32 %v260, %v683
      %v685 = vpop.f32.mrb[0].mxu0
      %686 = vmatprep.mubr.bf16.mxu0 0
      %687 = vmatmul.mubr.bf16.gmra.mrb[0].mxu0 %v409
      %v688 = vpop.f32.mrb[0].mxu0
      %v689 = vadd.f32 %v260, %v688
      %v690 = vpop.f32.mrb[0].mxu0
      %v691 = vpop.f32.mrb[0].mxu0
      %v692 = vadd.f32 %v260, %v691
      %v693 = vpop.f32.mrb[0].mxu0
      %694 = vmatprep.mubr.bf16.mxu0 0
      %695 = vmatmul.mubr.bf16.gmra.mrb[0].mxu0 %v410
      %v696 = vpop.f32.mrb[0].mxu0
      %v697 = vadd.f32 %v260, %v696
      %v698 = vpop.f32.mrb[0].mxu0
      %v699 = vpop.f32.mrb[0].mxu0
      %v700 = vadd.f32 %v260, %v699
      %v701 = vpop.f32.mrb[0].mxu0
      %702 = vmatprep.mubr.bf16.mxu0 0
      %703 = vmatmul.mubr.bf16.gmra.mrb[0].mxu0 %v411
      %v704 = vpop.f32.mrb[0].mxu0
      %v705 = vadd.f32 %v260, %v704
      %v706 = vpop.f32.mrb[0].mxu0
      %v707 = vpop.f32.mrb[0].mxu0
      %v708 = vadd.f32 %v260, %v707
      %v709 = vpop.f32.mrb[0].mxu0
      %710 = vmatprep.mubr.bf16.mxu0 0
      %711 = vmatmul.mubr.bf16.gmra.mrb[0].mxu0 %v412
      %v712 = vpop.f32.mrb[0].mxu0
      %v713 = vadd.f32 %v260, %v712
      %v714 = vpop.f32.mrb[0].mxu0
      %v715 = vpop.f32.mrb[0].mxu0
      %v716 = vadd.f32 %v260, %v715
      %v717 = vpop.f32.mrb[0].mxu0
      %718 = vmatprep.mubr.bf16.mxu0 0
      %719 = vmatmul.mubr.bf16.gmra.mrb[0].mxu0 %v413
      %v720 = vpop.f32.mrb[0].mxu0
      %v721 = vadd.f32 %v260, %v720
      %v722 = vpop.f32.mrb[0].mxu0
      %v723 = vpop.f32.mrb[0].mxu0
      %v724 = vadd.f32 %v260, %v723
      %v725 = vpop.f32.mrb[0].mxu0
      %726 = vmatprep.mubr.bf16.mxu0 0
      %727 = vmatmul.mubr.bf16.gmra.mrb[0].mxu0 %v414
      %v728 = vpop.f32.mrb[0].mxu0
      %v729 = vadd.f32 %v260, %v728
      %v730 = vpop.f32.mrb[0].mxu0
      %v731 = vpop.f32.mrb[0].mxu0
      %v732 = vadd.f32 %v260, %v731
      %v733 = vpop.f32.mrb[0].mxu0
      %734 = vmatprep.mubr.bf16.mxu0 0
      %735 = vmatmul.mubr.bf16.gmra.mrb[0].mxu0 %v415
      %v736 = vpop.f32.mrb[0].mxu0
      %v737 = vadd.f32 %v260, %v736
      %v738 = vpop.f32.mrb[0].mxu0
      %v739 = vpop.f32.mrb[0].mxu0
      %v740 = vadd.f32 %v260, %v739
      %v741 = vpop.f32.mrb[0].mxu0
      %742 = vmatprep.mubr.bf16.mxu0 0
      %743 = vmatmul.mubr.bf16.gmra.mrb[0].mxu0 %v416
      %v744 = vpop.f32.mrb[0].mxu0
      %v745 = vadd.f32 %v260, %v744
      %v746 = vpop.f32.mrb[0].mxu0
      %v747 = vpop.f32.mrb[0].mxu0
      %v748 = vadd.f32 %v260, %v747
      %v749 = vpop.f32.mrb[0].mxu0
      %750 = vmatprep.mubr.bf16.mxu0 0
      %751 = vmatmul.mubr.bf16.gmra.mrb[0].mxu0 %v417
      %v752 = vpop.f32.mrb[0].mxu0
      %v753 = vadd.f32 %v260, %v752
      %v754 = vpop.f32.mrb[0].mxu0
      %v755 = vpop.f32.mrb[0].mxu0
      %v756 = vadd.f32 %v260, %v755
      %v757 = vpop.f32.mrb[0].mxu0
      %758 = vmatprep.mubr.bf16.mxu0 0
      %759 = vmatmul.mubr.bf16.gmra.mrb[0].mxu0 %v418
      %v760 = vpop.f32.mrb[0].mxu0
      %v761 = vadd.f32 %v260, %v760
      %v762 = vpop.f32.mrb[0].mxu0
      %v763 = vpop.f32.mrb[0].mxu0
      %v764 = vadd.f32 %v260, %v763
      %v765 = vpop.f32.mrb[0].mxu0
      %766 = vmatprep.mubr.bf16.mxu0 0
      %767 = vmatmul.mubr.bf16.gmra.mrb[0].mxu0 %v419
      %v768 = vpop.f32.mrb[0].mxu0
      %v769 = vadd.f32 %v260, %v768
      %v770 = vpop.f32.mrb[0].mxu0
      %v771 = vpop.f32.mrb[0].mxu0
      %v772 = vadd.f32 %v260, %v771
      %v773 = vpop.f32.mrb[0].mxu0
      %774 = vmatprep.mubr.bf16.mxu0 0
      %775 = vmatmul.mubr.bf16.gmra.mrb[0].mxu0 %v420
      %v776 = vpop.f32.mrb[0].mxu0
      %v777 = vadd.f32 %v260, %v776
      %v778 = vpop.f32.mrb[0].mxu0
      %v779 = vpop.f32.mrb[0].mxu0
      %v780 = vadd.f32 %v260, %v779
      %v781 = vpop.f32.mrb[0].mxu0
      %782 = vmatprep.mubr.bf16.mxu0 0
      %783 = vmatmul.mubr.bf16.gmra.mrb[0].mxu0 %v421
      %v784 = vpop.f32.mrb[0].mxu0
      %v785 = vadd.f32 %v260, %v784
      %v786 = vpop.f32.mrb[0].mxu0
      %v787 = vpop.f32.mrb[0].mxu0
      %v788 = vadd.f32 %v260, %v787
      %v789 = vpop.f32.mrb[0].mxu0
      %790 = vdwg.mxu0
      %v791 = vlaneseq
      %v792 = vshrl.u32 %v791, 7
      %v793 = vadd.s32 %v792, 8
      %v794 = vadd.s32 %v792, 16
      %v795 = vadd.s32 %v792, 24
      %v796 = vadd.s32 %v792, 32
      %v797 = vadd.s32 %v792, 40
      %v798 = vadd.s32 %v792, 48
      %v799 = vadd.s32 %v792, 56
      %v800 = vadd.s32 %v792, 64
      %v801 = vadd.s32 %v792, 72
      %v802 = vadd.s32 %v792, 80
      %v803 = vadd.s32 %v792, 88
      %v804 = vadd.s32 %v792, 96
      %v805 = vadd.s32 %v792, 104
      %v806 = vadd.s32 %v792, 112
      %v807 = vadd.s32 %v792, 120
      %v808 = vadd.s32 %v792, 128
      %v809 = vadd.s32 %v792, 136
      %v810 = vadd.s32 %v792, 144
      %v811 = vadd.s32 %v792, 152
      %v812 = vadd.s32 %v792, 160
      %v813 = vadd.s32 %v792, 168
      %v814 = vadd.s32 %v792, 176
      %v815 = vadd.s32 %v792, 184
      %v816 = vadd.s32 %v792, 192
      %v817 = vadd.s32 %v792, 200
      %v818 = vadd.s32 %v792, 208
      %v819 = vadd.s32 %v792, 216
      %v820 = vadd.s32 %v792, 224
      %v821 = vadd.s32 %v792, 232
      %v822 = vadd.s32 %v792, 240
      %v823 = vadd.s32 %v792, 248
      %v824 = vadd.s32 %v792, 256
      %v825 = vadd.s32 %v792, 264
      %v826 = vadd.s32 %v792, 272
      %v827 = vadd.s32 %v792, 280
      %v828 = vadd.s32 %v792, 288
      %v829 = vadd.s32 %v792, 296
      %v830 = vadd.s32 %v792, 304
      %v831 = vadd.s32 %v792, 312
      %v832 = vadd.s32 %v792, 320
      %v833 = vadd.s32 %v792, 328
      %v834 = vadd.s32 %v792, 336
      %v835 = vadd.s32 %v792, 344
      %v836 = vadd.s32 %v792, 352
      %v837 = vadd.s32 %v792, 360
      %v838 = vadd.s32 %v792, 368
      %v839 = vadd.s32 %v792, 376
      %v840 = vadd.s32 %v792, 384
      %v841 = vadd.s32 %v792, 392
      %v842 = vadd.s32 %v792, 400
      %v843 = vadd.s32 %v792, 408
      %v844 = vadd.s32 %v792, 416
      %v845 = vadd.s32 %v792, 424
      %v846 = vadd.s32 %v792, 432
      %v847 = vadd.s32 %v792, 440
      %v848 = vadd.s32 %v792, 448
      %v849 = vadd.s32 %v792, 456
      %v850 = vadd.s32 %v792, 464
      %v851 = vadd.s32 %v792, 472
      %v852 = vadd.s32 %v792, 480
      %v853 = vadd.s32 %v792, 488
      %v854 = vadd.s32 %v792, 496
      %v855 = vadd.s32 %v792, 504
      %v856 = vcvt.s32.f32 %v792
      %v857 = vcvt.s32.f32 %v793
      %v858 = vcvt.s32.f32 %v794
      %v859 = vcvt.s32.f32 %v795
      %v860 = vcvt.s32.f32 %v796
      %v861 = vcvt.s32.f32 %v797
      %v862 = vcvt.s32.f32 %v798
      %v863 = vcvt.s32.f32 %v799
      %v864 = vcvt.s32.f32 %v800
      %v865 = vcvt.s32.f32 %v801
      %v866 = vcvt.s32.f32 %v802
      %v867 = vcvt.s32.f32 %v803
      %v868 = vcvt.s32.f32 %v804
      %v869 = vcvt.s32.f32 %v805
      %v870 = vcvt.s32.f32 %v806
      %v871 = vcvt.s32.f32 %v807
      %v872 = vcvt.s32.f32 %v808
      %v873 = vcvt.s32.f32 %v809
      %v874 = vcvt.s32.f32 %v810
      %v875 = vcvt.s32.f32 %v811
      %v876 = vcvt.s32.f32 %v812
      %v877 = vcvt.s32.f32 %v813
      %v878 = vcvt.s32.f32 %v814
      %v879 = vcvt.s32.f32 %v815
      %v880 = vcvt.s32.f32 %v816
      %v881 = vcvt.s32.f32 %v817
      %v882 = vcvt.s32.f32 %v818
      %v883 = vcvt.s32.f32 %v819
      %v884 = vcvt.s32.f32 %v820
      %v885 = vcvt.s32.f32 %v821
      %v886 = vcvt.s32.f32 %v822
      %v887 = vcvt.s32.f32 %v823
      %v888 = vcvt.s32.f32 %v824
      %v889 = vcvt.s32.f32 %v825
      %v890 = vcvt.s32.f32 %v826
      %v891 = vcvt.s32.f32 %v827
      %v892 = vcvt.s32.f32 %v828
      %v893 = vcvt.s32.f32 %v829
      %v894 = vcvt.s32.f32 %v830
      %v895 = vcvt.s32.f32 %v831
      %v896 = vcvt.s32.f32 %v832
      %v897 = vcvt.s32.f32 %v833
      %v898 = vcvt.s32.f32 %v834
      %v899 = vcvt.s32.f32 %v835
      %v900 = vcvt.s32.f32 %v836
      %v901 = vcvt.s32.f32 %v837
      %v902 = vcvt.s32.f32 %v838
      %v903 = vcvt.s32.f32 %v839
      %v904 = vcvt.s32.f32 %v840
      %v905 = vcvt.s32.f32 %v841
      %v906 = vcvt.s32.f32 %v842
      %v907 = vcvt.s32.f32 %v843
      %v908 = vcvt.s32.f32 %v844
      %v909 = vcvt.s32.f32 %v845
      %v910 = vcvt.s32.f32 %v846
      %v911 = vcvt.s32.f32 %v847
      %v912 = vcvt.s32.f32 %v848
      %v913 = vcvt.s32.f32 %v849
      %v914 = vcvt.s32.f32 %v850
      %v915 = vcvt.s32.f32 %v851
      %v916 = vcvt.s32.f32 %v852
      %v917 = vcvt.s32.f32 %v853
      %v918 = vcvt.s32.f32 %v854
      %v919 = vcvt.s32.f32 %v855
      %v920 = vadd.f32 %v856, 0.5
      %v921 = vadd.f32 %v857, 0.5
      %v922 = vadd.f32 %v858, 0.5
      %v923 = vadd.f32 %v859, 0.5
      %v924 = vadd.f32 %v860, 0.5
      %v925 = vadd.f32 %v861, 0.5
      %v926 = vadd.f32 %v862, 0.5
      %v927 = vadd.f32 %v863, 0.5
      %v928 = vadd.f32 %v864, 0.5
      %v929 = vadd.f32 %v865, 0.5
      %v930 = vadd.f32 %v866, 0.5
      %v931 = vadd.f32 %v867, 0.5
      %v932 = vadd.f32 %v868, 0.5
      %v933 = vadd.f32 %v869, 0.5
      %v934 = vadd.f32 %v870, 0.5
      %v935 = vadd.f32 %v871, 0.5
      %v936 = vadd.f32 %v872, 0.5
      %v937 = vadd.f32 %v873, 0.5
      %v938 = vadd.f32 %v874, 0.5
      %v939 = vadd.f32 %v875, 0.5
      %v940 = vadd.f32 %v876, 0.5
      %v941 = vadd.f32 %v877, 0.5
      %v942 = vadd.f32 %v878, 0.5
      %v943 = vadd.f32 %v879, 0.5
      %v944 = vadd.f32 %v880, 0.5
      %v945 = vadd.f32 %v881, 0.5
      %v946 = vadd.f32 %v882, 0.5
      %v947 = vadd.f32 %v883, 0.5
      %v948 = vadd.f32 %v884, 0.5
      %v949 = vadd.f32 %v885, 0.5
      %v950 = vadd.f32 %v886, 0.5
      %v951 = vadd.f32 %v887, 0.5
      %v952 = vadd.f32 %v888, 0.5
      %v953 = vadd.f32 %v889, 0.5
      %v954 = vadd.f32 %v890, 0.5
      %v955 = vadd.f32 %v891, 0.5
      %v956 = vadd.f32 %v892, 0.5
      %v957 = vadd.f32 %v893, 0.5
      %v958 = vadd.f32 %v894, 0.5
      %v959 = vadd.f32 %v895, 0.5
      %v960 = vadd.f32 %v896, 0.5
      %v961 = vadd.f32 %v897, 0.5
      %v962 = vadd.f32 %v898, 0.5
      %v963 = vadd.f32 %v899, 0.5
      %v964 = vadd.f32 %v900, 0.5
      %v965 = vadd.f32 %v901, 0.5
      %v966 = vadd.f32 %v902, 0.5
      %v967 = vadd.f32 %v903, 0.5
      %v968 = vadd.f32 %v904, 0.5
      %v969 = vadd.f32 %v905, 0.5
      %v970 = vadd.f32 %v906, 0.5
      %v971 = vadd.f32 %v907, 0.5
      %v972 = vadd.f32 %v908, 0.5
      %v973 = vadd.f32 %v909, 0.5
      %v974 = vadd.f32 %v910, 0.5
      %v975 = vadd.f32 %v911, 0.5
      %v976 = vadd.f32 %v912, 0.5
      %v977 = vadd.f32 %v913, 0.5
      %v978 = vadd.f32 %v914, 0.5
      %v979 = vadd.f32 %v915, 0.5
      %v980 = vadd.f32 %v916, 0.5
      %v981 = vadd.f32 %v917, 0.5
      %v982 = vadd.f32 %v918, 0.5
      %v983 = vadd.f32 %v919, 0.5
      %v984 = vmul.f32 %v920, 0.03125
      %v985 = vmul.f32 %v921, 0.03125
      %v986 = vmul.f32 %v922, 0.03125
      %v987 = vmul.f32 %v923, 0.03125
      %v988 = vmul.f32 %v924, 0.03125
      %v989 = vmul.f32 %v925, 0.03125
      %v990 = vmul.f32 %v926, 0.03125
      %v991 = vmul.f32 %v927, 0.03125
      %v992 = vmul.f32 %v928, 0.03125
      %v993 = vmul.f32 %v929, 0.03125
      %v994 = vmul.f32 %v930, 0.03125
      %v995 = vmul.f32 %v931, 0.03125
      %v996 = vmul.f32 %v932, 0.03125
      %v997 = vmul.f32 %v933, 0.03125
      %v998 = vmul.f32 %v934, 0.03125
      %v999 = vmul.f32 %v935, 0.03125
      %v1000 = vmul.f32 %v936, 0.03125
      %v1001 = vmul.f32 %v937, 0.03125
      %v1002 = vmul.f32 %v938, 0.03125
      %v1003 = vmul.f32 %v939, 0.03125
      %v1004 = vmul.f32 %v940, 0.03125
      %v1005 = vmul.f32 %v941, 0.03125
      %v1006 = vmul.f32 %v942, 0.03125
      %v1007 = vmul.f32 %v943, 0.03125
      %v1008 = vmul.f32 %v944, 0.03125
      %v1009 = vmul.f32 %v945, 0.03125
      %v1010 = vmul.f32 %v946, 0.03125
      %v1011 = vmul.f32 %v947, 0.03125
      %v1012 = vmul.f32 %v948, 0.03125
      %v1013 = vmul.f32 %v949, 0.03125
      %v1014 = vmul.f32 %v950, 0.03125
      %v1015 = vmul.f32 %v951, 0.03125
      %v1016 = vmul.f32 %v952, 0.03125
      %v1017 = vmul.f32 %v953, 0.03125
      %v1018 = vmul.f32 %v954, 0.03125
      %v1019 = vmul.f32 %v955, 0.03125
      %v1020 = vmul.f32 %v956, 0.03125
      %v1021 = vmul.f32 %v957, 0.03125
      %v1022 = vmul.f32 %v958, 0.03125
      %v1023 = vmul.f32 %v959, 0.03125
      %v1024 = vmul.f32 %v960, 0.03125
      %v1025 = vmul.f32 %v961, 0.03125
      %v1026 = vmul.f32 %v962, 0.03125
      %v1027 = vmul.f32 %v963, 0.03125
      %v1028 = vmul.f32 %v964, 0.03125
      %v1029 = vmul.f32 %v965, 0.03125
      %v1030 = vmul.f32 %v966, 0.03125
      %v1031 = vmul.f32 %v967, 0.03125
      %v1032 = vmul.f32 %v968, 0.03125
      %v1033 = vmul.f32 %v969, 0.03125
      %v1034 = vmul.f32 %v970, 0.03125
      %v1035 = vmul.f32 %v971, 0.03125
      %v1036 = vmul.f32 %v972, 0.03125
      %v1037 = vmul.f32 %v973, 0.03125
      %v1038 = vmul.f32 %v974, 0.03125
      %v1039 = vmul.f32 %v975, 0.03125
      %v1040 = vmul.f32 %v976, 0.03125
      %v1041 = vmul.f32 %v977, 0.03125
      %v1042 = vmul.f32 %v978, 0.03125
      %v1043 = vmul.f32 %v979, 0.03125
      %v1044 = vmul.f32 %v980, 0.03125
      %v1045 = vmul.f32 %v981, 0.03125
      %v1046 = vmul.f32 %v982, 0.03125
      %v1047 = vmul.f32 %v983, 0.03125
      %v1048 = vfloor.f32 %v984
      %v1049 = vfloor.f32 %v985
      %v1050 = vfloor.f32 %v986
      %v1051 = vfloor.f32 %v987
      %v1052 = vfloor.f32 %v988
      %v1053 = vfloor.f32 %v989
      %v1054 = vfloor.f32 %v990
      %v1055 = vfloor.f32 %v991
      %v1056 = vfloor.f32 %v992
      %v1057 = vfloor.f32 %v993
      %v1058 = vfloor.f32 %v994
      %v1059 = vfloor.f32 %v995
      %v1060 = vfloor.f32 %v996
      %v1061 = vfloor.f32 %v997
      %v1062 = vfloor.f32 %v998
      %v1063 = vfloor.f32 %v999
      %v1064 = vfloor.f32 %v1000
      %v1065 = vfloor.f32 %v1001
      %v1066 = vfloor.f32 %v1002
      %v1067 = vfloor.f32 %v1003
      %v1068 = vfloor.f32 %v1004
      %v1069 = vfloor.f32 %v1005
      %v1070 = vfloor.f32 %v1006
      %v1071 = vfloor.f32 %v1007
      %v1072 = vfloor.f32 %v1008
      %v1073 = vfloor.f32 %v1009
      %v1074 = vfloor.f32 %v1010
      %v1075 = vfloor.f32 %v1011
      %v1076 = vfloor.f32 %v1012
      %v1077 = vfloor.f32 %v1013
      %v1078 = vfloor.f32 %v1014
      %v1079 = vfloor.f32 %v1015
      %v1080 = vfloor.f32 %v1016
      %v1081 = vfloor.f32 %v1017
      %v1082 = vfloor.f32 %v1018
      %v1083 = vfloor.f32 %v1019
      %v1084 = vfloor.f32 %v1020
      %v1085 = vfloor.f32 %v1021
      %v1086 = vfloor.f32 %v1022
      %v1087 = vfloor.f32 %v1023
      %v1088 = vfloor.f32 %v1024
      %v1089 = vfloor.f32 %v1025
      %v1090 = vfloor.f32 %v1026
      %v1091 = vfloor.f32 %v1027
      %v1092 = vfloor.f32 %v1028
      %v1093 = vfloor.f32 %v1029
      %v1094 = vfloor.f32 %v1030
      %v1095 = vfloor.f32 %v1031
      %v1096 = vfloor.f32 %v1032
      %v1097 = vfloor.f32 %v1033
      %v1098 = vfloor.f32 %v1034
      %v1099 = vfloor.f32 %v1035
      %v1100 = vfloor.f32 %v1036
      %v1101 = vfloor.f32 %v1037
      %v1102 = vfloor.f32 %v1038
      %v1103 = vfloor.f32 %v1039
      %v1104 = vfloor.f32 %v1040
      %v1105 = vfloor.f32 %v1041
      %v1106 = vfloor.f32 %v1042
      %v1107 = vfloor.f32 %v1043
      %v1108 = vfloor.f32 %v1044
      %v1109 = vfloor.f32 %v1045
      %v1110 = vfloor.f32 %v1046
      %v1111 = vfloor.f32 %v1047
      %v1112 = vmul.f32 %v1048, 32.0
      %v1113 = vmul.f32 %v1049, 32.0
      %v1114 = vmul.f32 %v1050, 32.0
      %v1115 = vmul.f32 %v1051, 32.0
      %v1116 = vmul.f32 %v1052, 32.0
      %v1117 = vmul.f32 %v1053, 32.0
      %v1118 = vmul.f32 %v1054, 32.0
      %v1119 = vmul.f32 %v1055, 32.0
      %v1120 = vmul.f32 %v1056, 32.0
      %v1121 = vmul.f32 %v1057, 32.0
      %v1122 = vmul.f32 %v1058, 32.0
      %v1123 = vmul.f32 %v1059, 32.0
      %v1124 = vmul.f32 %v1060, 32.0
      %v1125 = vmul.f32 %v1061, 32.0
      %v1126 = vmul.f32 %v1062, 32.0
      %v1127 = vmul.f32 %v1063, 32.0
      %v1128 = vmul.f32 %v1064, 32.0
      %v1129 = vmul.f32 %v1065, 32.0
      %v1130 = vmul.f32 %v1066, 32.0
      %v1131 = vmul.f32 %v1067, 32.0
      %v1132 = vmul.f32 %v1068, 32.0
      %v1133 = vmul.f32 %v1069, 32.0
      %v1134 = vmul.f32 %v1070, 32.0
      %v1135 = vmul.f32 %v1071, 32.0
      %v1136 = vmul.f32 %v1072, 32.0
      %v1137 = vmul.f32 %v1073, 32.0
      %v1138 = vmul.f32 %v1074, 32.0
      %v1139 = vmul.f32 %v1075, 32.0
      %v1140 = vmul.f32 %v1076, 32.0
      %v1141 = vmul.f32 %v1077, 32.0
      %v1142 = vmul.f32 %v1078, 32.0
      %v1143 = vmul.f32 %v1079, 32.0
      %v1144 = vmul.f32 %v1080, 32.0
      %v1145 = vmul.f32 %v1081, 32.0
      %v1146 = vmul.f32 %v1082, 32.0
      %v1147 = vmul.f32 %v1083, 32.0
      %v1148 = vmul.f32 %v1084, 32.0
      %v1149 = vmul.f32 %v1085, 32.0
      %v1150 = vmul.f32 %v1086, 32.0
      %v1151 = vmul.f32 %v1087, 32.0
      %v1152 = vmul.f32 %v1088, 32.0
      %v1153 = vmul.f32 %v1089, 32.0
      %v1154 = vmul.f32 %v1090, 32.0
      %v1155 = vmul.f32 %v1091, 32.0
      %v1156 = vmul.f32 %v1092, 32.0
      %v1157 = vmul.f32 %v1093, 32.0
      %v1158 = vmul.f32 %v1094, 32.0
      %v1159 = vmul.f32 %v1095, 32.0
      %v1160 = vmul.f32 %v1096, 32.0
      %v1161 = vmul.f32 %v1097, 32.0
      %v1162 = vmul.f32 %v1098, 32.0
      %v1163 = vmul.f32 %v1099, 32.0
      %v1164 = vmul.f32 %v1100, 32.0
      %v1165 = vmul.f32 %v1101, 32.0
      %v1166 = vmul.f32 %v1102, 32.0
      %v1167 = vmul.f32 %v1103, 32.0
      %v1168 = vmul.f32 %v1104, 32.0
      %v1169 = vmul.f32 %v1105, 32.0
      %v1170 = vmul.f32 %v1106, 32.0
      %v1171 = vmul.f32 %v1107, 32.0
      %v1172 = vmul.f32 %v1108, 32.0
      %v1173 = vmul.f32 %v1109, 32.0
      %v1174 = vmul.f32 %v1110, 32.0
      %v1175 = vmul.f32 %v1111, 32.0
      %v1176 = vsub.f32 %v856, %v1112
      %v1177 = vsub.f32 %v857, %v1113
      %v1178 = vsub.f32 %v858, %v1114
      %v1179 = vsub.f32 %v859, %v1115
      %v1180 = vsub.f32 %v860, %v1116
      %v1181 = vsub.f32 %v861, %v1117
      %v1182 = vsub.f32 %v862, %v1118
      %v1183 = vsub.f32 %v863, %v1119
      %v1184 = vsub.f32 %v864, %v1120
      %v1185 = vsub.f32 %v865, %v1121
      %v1186 = vsub.f32 %v866, %v1122
      %v1187 = vsub.f32 %v867, %v1123
      %v1188 = vsub.f32 %v868, %v1124
      %v1189 = vsub.f32 %v869, %v1125
      %v1190 = vsub.f32 %v870, %v1126
      %v1191 = vsub.f32 %v871, %v1127
      %v1192 = vsub.f32 %v872, %v1128
      %v1193 = vsub.f32 %v873, %v1129
      %v1194 = vsub.f32 %v874, %v1130
      %v1195 = vsub.f32 %v875, %v1131
      %v1196 = vsub.f32 %v876, %v1132
      %v1197 = vsub.f32 %v877, %v1133
      %v1198 = vsub.f32 %v878, %v1134
      %v1199 = vsub.f32 %v879, %v1135
      %v1200 = vsub.f32 %v880, %v1136
      %v1201 = vsub.f32 %v881, %v1137
      %v1202 = vsub.f32 %v882, %v1138
      %v1203 = vsub.f32 %v883, %v1139
      %v1204 = vsub.f32 %v884, %v1140
      %v1205 = vsub.f32 %v885, %v1141
      %v1206 = vsub.f32 %v886, %v1142
      %v1207 = vsub.f32 %v887, %v1143
      %v1208 = vsub.f32 %v888, %v1144
      %v1209 = vsub.f32 %v889, %v1145
      %v1210 = vsub.f32 %v890, %v1146
      %v1211 = vsub.f32 %v891, %v1147
      %v1212 = vsub.f32 %v892, %v1148
      %v1213 = vsub.f32 %v893, %v1149
      %v1214 = vsub.f32 %v894, %v1150
      %v1215 = vsub.f32 %v895, %v1151
      %v1216 = vsub.f32 %v896, %v1152
      %v1217 = vsub.f32 %v897, %v1153
      %v1218 = vsub.f32 %v898, %v1154
      %v1219 = vsub.f32 %v899, %v1155
      %v1220 = vsub.f32 %v900, %v1156
      %v1221 = vsub.f32 %v901, %v1157
      %v1222 = vsub.f32 %v902, %v1158
      %v1223 = vsub.f32 %v903, %v1159
      %v1224 = vsub.f32 %v904, %v1160
      %v1225 = vsub.f32 %v905, %v1161
      %v1226 = vsub.f32 %v906, %v1162
      %v1227 = vsub.f32 %v907, %v1163
      %v1228 = vsub.f32 %v908, %v1164
      %v1229 = vsub.f32 %v909, %v1165
      %v1230 = vsub.f32 %v910, %v1166
      %v1231 = vsub.f32 %v911, %v1167
      %v1232 = vsub.f32 %v912, %v1168
      %v1233 = vsub.f32 %v913, %v1169
      %v1234 = vsub.f32 %v914, %v1170
      %v1235 = vsub.f32 %v915, %v1171
      %v1236 = vsub.f32 %v916, %v1172
      %v1237 = vsub.f32 %v917, %v1173
      %v1238 = vsub.f32 %v918, %v1174
      %v1239 = vsub.f32 %v919, %v1175
      %vm1240 = vcmp.ge.f32.partialorder %v1176, 0.5
      %vm1241 = vcmp.ge.f32.partialorder %v1177, 0.5
      %vm1242 = vcmp.ge.f32.partialorder %v1178, 0.5
      %vm1243 = vcmp.ge.f32.partialorder %v1179, 0.5
      %vm1244 = vcmp.ge.f32.partialorder %v1180, 0.5
      %vm1245 = vcmp.ge.f32.partialorder %v1181, 0.5
      %vm1246 = vcmp.ge.f32.partialorder %v1182, 0.5
      %vm1247 = vcmp.ge.f32.partialorder %v1183, 0.5
      %vm1248 = vcmp.ge.f32.partialorder %v1184, 0.5
      %vm1249 = vcmp.ge.f32.partialorder %v1185, 0.5
      %vm1250 = vcmp.ge.f32.partialorder %v1186, 0.5
      %vm1251 = vcmp.ge.f32.partialorder %v1187, 0.5
      %vm1252 = vcmp.ge.f32.partialorder %v1188, 0.5
      %vm1253 = vcmp.ge.f32.partialorder %v1189, 0.5
      %vm1254 = vcmp.ge.f32.partialorder %v1190, 0.5
      %vm1255 = vcmp.ge.f32.partialorder %v1191, 0.5
      %vm1256 = vcmp.ge.f32.partialorder %v1192, 0.5
      %vm1257 = vcmp.ge.f32.partialorder %v1193, 0.5
      %vm1258 = vcmp.ge.f32.partialorder %v1194, 0.5
      %vm1259 = vcmp.ge.f32.partialorder %v1195, 0.5
      %vm1260 = vcmp.ge.f32.partialorder %v1196, 0.5
      %vm1261 = vcmp.ge.f32.partialorder %v1197, 0.5
      %vm1262 = vcmp.ge.f32.partialorder %v1198, 0.5
      %vm1263 = vcmp.ge.f32.partialorder %v1199, 0.5
      %vm1264 = vcmp.ge.f32.partialorder %v1200, 0.5
      %vm1265 = vcmp.ge.f32.partialorder %v1201, 0.5
      %vm1266 = vcmp.ge.f32.partialorder %v1202, 0.5
      %vm1267 = vcmp.ge.f32.partialorder %v1203, 0.5
      %vm1268 = vcmp.ge.f32.partialorder %v1204, 0.5
      %vm1269 = vcmp.ge.f32.partialorder %v1205, 0.5
      %vm1270 = vcmp.ge.f32.partialorder %v1206, 0.5
      %vm1271 = vcmp.ge.f32.partialorder %v1207, 0.5
      %vm1272 = vcmp.ge.f32.partialorder %v1208, 0.5
      %vm1273 = vcmp.ge.f32.partialorder %v1209, 0.5
      %vm1274 = vcmp.ge.f32.partialorder %v1210, 0.5
      %vm1275 = vcmp.ge.f32.partialorder %v1211, 0.5
      %vm1276 = vcmp.ge.f32.partialorder %v1212, 0.5
      %vm1277 = vcmp.ge.f32.partialorder %v1213, 0.5
      %vm1278 = vcmp.ge.f32.partialorder %v1214, 0.5
      %vm1279 = vcmp.ge.f32.partialorder %v1215, 0.5
      %vm1280 = vcmp.ge.f32.partialorder %v1216, 0.5
      %vm1281 = vcmp.ge.f32.partialorder %v1217, 0.5
      %vm1282 = vcmp.ge.f32.partialorder %v1218, 0.5
      %vm1283 = vcmp.ge.f32.partialorder %v1219, 0.5
      %vm1284 = vcmp.ge.f32.partialorder %v1220, 0.5
      %vm1285 = vcmp.ge.f32.partialorder %v1221, 0.5
      %vm1286 = vcmp.ge.f32.partialorder %v1222, 0.5
      %vm1287 = vcmp.ge.f32.partialorder %v1223, 0.5
      %vm1288 = vcmp.ge.f32.partialorder %v1224, 0.5
      %vm1289 = vcmp.ge.f32.partialorder %v1225, 0.5
      %vm1290 = vcmp.ge.f32.partialorder %v1226, 0.5
      %vm1291 = vcmp.ge.f32.partialorder %v1227, 0.5
      %vm1292 = vcmp.ge.f32.partialorder %v1228, 0.5
      %vm1293 = vcmp.ge.f32.partialorder %v1229, 0.5
      %vm1294 = vcmp.ge.f32.partialorder %v1230, 0.5
      %vm1295 = vcmp.ge.f32.partialorder %v1231, 0.5
      %vm1296 = vcmp.ge.f32.partialorder %v1232, 0.5
      %vm1297 = vcmp.ge.f32.partialorder %v1233, 0.5
      %vm1298 = vcmp.ge.f32.partialorder %v1234, 0.5
      %vm1299 = vcmp.ge.f32.partialorder %v1235, 0.5
      %vm1300 = vcmp.ge.f32.partialorder %v1236, 0.5
      %vm1301 = vcmp.ge.f32.partialorder %v1237, 0.5
      %vm1302 = vcmp.ge.f32.partialorder %v1238, 0.5
      %vm1303 = vcmp.ge.f32.partialorder %v1239, 0.5
      %vm1304 = vcmp.le.f32.partialorder %v1176, 16.5
      %vm1305 = vcmp.le.f32.partialorder %v1177, 16.5
      %vm1306 = vcmp.le.f32.partialorder %v1178, 16.5
      %vm1307 = vcmp.le.f32.partialorder %v1179, 16.5
      %vm1308 = vcmp.le.f32.partialorder %v1180, 16.5
      %vm1309 = vcmp.le.f32.partialorder %v1181, 16.5
      %vm1310 = vcmp.le.f32.partialorder %v1182, 16.5
      %vm1311 = vcmp.le.f32.partialorder %v1183, 16.5
      %vm1312 = vcmp.le.f32.partialorder %v1184, 16.5
      %vm1313 = vcmp.le.f32.partialorder %v1185, 16.5
      %vm1314 = vcmp.le.f32.partialorder %v1186, 16.5
      %vm1315 = vcmp.le.f32.partialorder %v1187, 16.5
      %vm1316 = vcmp.le.f32.partialorder %v1188, 16.5
      %vm1317 = vcmp.le.f32.partialorder %v1189, 16.5
      %vm1318 = vcmp.le.f32.partialorder %v1190, 16.5
      %vm1319 = vcmp.le.f32.partialorder %v1191, 16.5
      %vm1320 = vcmp.le.f32.partialorder %v1192, 16.5
      %vm1321 = vcmp.le.f32.partialorder %v1193, 16.5
      %vm1322 = vcmp.le.f32.partialorder %v1194, 16.5
      %vm1323 = vcmp.le.f32.partialorder %v1195, 16.5
      %vm1324 = vcmp.le.f32.partialorder %v1196, 16.5
      %vm1325 = vcmp.le.f32.partialorder %v1197, 16.5
      %vm1326 = vcmp.le.f32.partialorder %v1198, 16.5
      %vm1327 = vcmp.le.f32.partialorder %v1199, 16.5
      %vm1328 = vcmp.le.f32.partialorder %v1200, 16.5
      %vm1329 = vcmp.le.f32.partialorder %v1201, 16.5
      %vm1330 = vcmp.le.f32.partialorder %v1202, 16.5
      %vm1331 = vcmp.le.f32.partialorder %v1203, 16.5
      %vm1332 = vcmp.le.f32.partialorder %v1204, 16.5
      %vm1333 = vcmp.le.f32.partialorder %v1205, 16.5
      %vm1334 = vcmp.le.f32.partialorder %v1206, 16.5
      %vm1335 = vcmp.le.f32.partialorder %v1207, 16.5
      %vm1336 = vcmp.le.f32.partialorder %v1208, 16.5
      %vm1337 = vcmp.le.f32.partialorder %v1209, 16.5
      %vm1338 = vcmp.le.f32.partialorder %v1210, 16.5
      %vm1339 = vcmp.le.f32.partialorder %v1211, 16.5
      %vm1340 = vcmp.le.f32.partialorder %v1212, 16.5
      %vm1341 = vcmp.le.f32.partialorder %v1213, 16.5
      %vm1342 = vcmp.le.f32.partialorder %v1214, 16.5
      %vm1343 = vcmp.le.f32.partialorder %v1215, 16.5
      %vm1344 = vcmp.le.f32.partialorder %v1216, 16.5
      %vm1345 = vcmp.le.f32.partialorder %v1217, 16.5
      %vm1346 = vcmp.le.f32.partialorder %v1218, 16.5
      %vm1347 = vcmp.le.f32.partialorder %v1219, 16.5
      %vm1348 = vcmp.le.f32.partialorder %v1220, 16.5
      %vm1349 = vcmp.le.f32.partialorder %v1221, 16.5
      %vm1350 = vcmp.le.f32.partialorder %v1222, 16.5
      %vm1351 = vcmp.le.f32.partialorder %v1223, 16.5
      %vm1352 = vcmp.le.f32.partialorder %v1224, 16.5
      %vm1353 = vcmp.le.f32.partialorder %v1225, 16.5
      %vm1354 = vcmp.le.f32.partialorder %v1226, 16.5
      %vm1355 = vcmp.le.f32.partialorder %v1227, 16.5
      %vm1356 = vcmp.le.f32.partialorder %v1228, 16.5
      %vm1357 = vcmp.le.f32.partialorder %v1229, 16.5
      %vm1358 = vcmp.le.f32.partialorder %v1230, 16.5
      %vm1359 = vcmp.le.f32.partialorder %v1231, 16.5
      %vm1360 = vcmp.le.f32.partialorder %v1232, 16.5
      %vm1361 = vcmp.le.f32.partialorder %v1233, 16.5
      %vm1362 = vcmp.le.f32.partialorder %v1234, 16.5
      %vm1363 = vcmp.le.f32.partialorder %v1235, 16.5
      %vm1364 = vcmp.le.f32.partialorder %v1236, 16.5
      %vm1365 = vcmp.le.f32.partialorder %v1237, 16.5
      %vm1366 = vcmp.le.f32.partialorder %v1238, 16.5
      %vm1367 = vcmp.le.f32.partialorder %v1239, 16.5
      %vm1368 = vmand %vm1240, %vm1304
      %vm1369 = vmand %vm1241, %vm1305
      %vm1370 = vmand %vm1242, %vm1306
      %vm1371 = vmand %vm1243, %vm1307
      %vm1372 = vmand %vm1244, %vm1308
      %vm1373 = vmand %vm1245, %vm1309
      %vm1374 = vmand %vm1246, %vm1310
      %vm1375 = vmand %vm1247, %vm1311
      %vm1376 = vmand %vm1248, %vm1312
      %vm1377 = vmand %vm1249, %vm1313
      %vm1378 = vmand %vm1250, %vm1314
      %vm1379 = vmand %vm1251, %vm1315
      %vm1380 = vmand %vm1252, %vm1316
      %vm1381 = vmand %vm1253, %vm1317
      %vm1382 = vmand %vm1254, %vm1318
      %vm1383 = vmand %vm1255, %vm1319
      %vm1384 = vmand %vm1256, %vm1320
      %vm1385 = vmand %vm1257, %vm1321
      %vm1386 = vmand %vm1258, %vm1322
      %vm1387 = vmand %vm1259, %vm1323
      %vm1388 = vmand %vm1260, %vm1324
      %vm1389 = vmand %vm1261, %vm1325
      %vm1390 = vmand %vm1262, %vm1326
      %vm1391 = vmand %vm1263, %vm1327
      %vm1392 = vmand %vm1264, %vm1328
      %vm1393 = vmand %vm1265, %vm1329
      %vm1394 = vmand %vm1266, %vm1330
      %vm1395 = vmand %vm1267, %vm1331
      %vm1396 = vmand %vm1268, %vm1332
      %vm1397 = vmand %vm1269, %vm1333
      %vm1398 = vmand %vm1270, %vm1334
      %vm1399 = vmand %vm1271, %vm1335
      %vm1400 = vmand %vm1272, %vm1336
      %vm1401 = vmand %vm1273, %vm1337
      %vm1402 = vmand %vm1274, %vm1338
      %vm1403 = vmand %vm1275, %vm1339
      %vm1404 = vmand %vm1276, %vm1340
      %vm1405 = vmand %vm1277, %vm1341
      %vm1406 = vmand %vm1278, %vm1342
      %vm1407 = vmand %vm1279, %vm1343
      %vm1408 = vmand %vm1280, %vm1344
      %vm1409 = vmand %vm1281, %vm1345
      %vm1410 = vmand %vm1282, %vm1346
      %vm1411 = vmand %vm1283, %vm1347
      %vm1412 = vmand %vm1284, %vm1348
      %vm1413 = vmand %vm1285, %vm1349
      %vm1414 = vmand %vm1286, %vm1350
      %vm1415 = vmand %vm1287, %vm1351
      %vm1416 = vmand %vm1288, %vm1352
      %vm1417 = vmand %vm1289, %vm1353
      %vm1418 = vmand %vm1290, %vm1354
      %vm1419 = vmand %vm1291, %vm1355
      %vm1420 = vmand %vm1292, %vm1356
      %vm1421 = vmand %vm1293, %vm1357
      %vm1422 = vmand %vm1294, %vm1358
      %vm1423 = vmand %vm1295, %vm1359
      %vm1424 = vmand %vm1296, %vm1360
      %vm1425 = vmand %vm1297, %vm1361
      %vm1426 = vmand %vm1298, %vm1362
      %vm1427 = vmand %vm1299, %vm1363
      %vm1428 = vmand %vm1300, %vm1364
      %vm1429 = vmand %vm1301, %vm1365
      %vm1430 = vmand %vm1302, %vm1366
      %vm1431 = vmand %vm1303, %vm1367
      %v1432 = vsel %vm1368, 1, 0
      %v1433 = vsel %vm1369, 1, 0
      %v1434 = vsel %vm1370, 1, 0
      %v1435 = vsel %vm1371, 1, 0
      %v1436 = vsel %vm1372, 1, 0
      %v1437 = vsel %vm1373, 1, 0
      %v1438 = vsel %vm1374, 1, 0
      %v1439 = vsel %vm1375, 1, 0
      %v1440 = vsel %vm1376, 1, 0
      %v1441 = vsel %vm1377, 1, 0
      %v1442 = vsel %vm1378, 1, 0
      %v1443 = vsel %vm1379, 1, 0
      %v1444 = vsel %vm1380, 1, 0
      %v1445 = vsel %vm1381, 1, 0
      %v1446 = vsel %vm1382, 1, 0
      %v1447 = vsel %vm1383, 1, 0
      %v1448 = vsel %vm1384, 1, 0
      %v1449 = vsel %vm1385, 1, 0
      %v1450 = vsel %vm1386, 1, 0
      %v1451 = vsel %vm1387, 1, 0
      %v1452 = vsel %vm1388, 1, 0
      %v1453 = vsel %vm1389, 1, 0
      %v1454 = vsel %vm1390, 1, 0
      %v1455 = vsel %vm1391, 1, 0
      %v1456 = vsel %vm1392, 1, 0
      %v1457 = vsel %vm1393, 1, 0
      %v1458 = vsel %vm1394, 1, 0
      %v1459 = vsel %vm1395, 1, 0
      %v1460 = vsel %vm1396, 1, 0
      %v1461 = vsel %vm1397, 1, 0
      %v1462 = vsel %vm1398, 1, 0
      %v1463 = vsel %vm1399, 1, 0
      %v1464 = vsel %vm1400, 1, 0
      %v1465 = vsel %vm1401, 1, 0
      %v1466 = vsel %vm1402, 1, 0
      %v1467 = vsel %vm1403, 1, 0
      %v1468 = vsel %vm1404, 1, 0
      %v1469 = vsel %vm1405, 1, 0
      %v1470 = vsel %vm1406, 1, 0
      %v1471 = vsel %vm1407, 1, 0
      %v1472 = vsel %vm1408, 1, 0
      %v1473 = vsel %vm1409, 1, 0
      %v1474 = vsel %vm1410, 1, 0
      %v1475 = vsel %vm1411, 1, 0
      %v1476 = vsel %vm1412, 1, 0
      %v1477 = vsel %vm1413, 1, 0
      %v1478 = vsel %vm1414, 1, 0
      %v1479 = vsel %vm1415, 1, 0
      %v1480 = vsel %vm1416, 1, 0
      %v1481 = vsel %vm1417, 1, 0
      %v1482 = vsel %vm1418, 1, 0
      %v1483 = vsel %vm1419, 1, 0
      %v1484 = vsel %vm1420, 1, 0
      %v1485 = vsel %vm1421, 1, 0
      %v1486 = vsel %vm1422, 1, 0
      %v1487 = vsel %vm1423, 1, 0
      %v1488 = vsel %vm1424, 1, 0
      %v1489 = vsel %vm1425, 1, 0
      %v1490 = vsel %vm1426, 1, 0
      %v1491 = vsel %vm1427, 1, 0
      %v1492 = vsel %vm1428, 1, 0
      %v1493 = vsel %vm1429, 1, 0
      %v1494 = vsel %vm1430, 1, 0
      %v1495 = vsel %vm1431, 1, 0
      %v1496 = vcvt.s32.f32 %v1432
      %v1497 = vcvt.s32.f32 %v1433
      %v1498 = vcvt.s32.f32 %v1434
      %v1499 = vcvt.s32.f32 %v1435
      %v1500 = vcvt.s32.f32 %v1436
      %v1501 = vcvt.s32.f32 %v1437
      %v1502 = vcvt.s32.f32 %v1438
      %v1503 = vcvt.s32.f32 %v1439
      %v1504 = vcvt.s32.f32 %v1440
      %v1505 = vcvt.s32.f32 %v1441
      %v1506 = vcvt.s32.f32 %v1442
      %v1507 = vcvt.s32.f32 %v1443
      %v1508 = vcvt.s32.f32 %v1444
      %v1509 = vcvt.s32.f32 %v1445
      %v1510 = vcvt.s32.f32 %v1446
      %v1511 = vcvt.s32.f32 %v1447
      %v1512 = vcvt.s32.f32 %v1448
      %v1513 = vcvt.s32.f32 %v1449
      %v1514 = vcvt.s32.f32 %v1450
      %v1515 = vcvt.s32.f32 %v1451
      %v1516 = vcvt.s32.f32 %v1452
      %v1517 = vcvt.s32.f32 %v1453
      %v1518 = vcvt.s32.f32 %v1454
      %v1519 = vcvt.s32.f32 %v1455
      %v1520 = vcvt.s32.f32 %v1456
      %v1521 = vcvt.s32.f32 %v1457
      %v1522 = vcvt.s32.f32 %v1458
      %v1523 = vcvt.s32.f32 %v1459
      %v1524 = vcvt.s32.f32 %v1460
      %v1525 = vcvt.s32.f32 %v1461
      %v1526 = vcvt.s32.f32 %v1462
      %v1527 = vcvt.s32.f32 %v1463
      %v1528 = vcvt.s32.f32 %v1464
      %v1529 = vcvt.s32.f32 %v1465
      %v1530 = vcvt.s32.f32 %v1466
      %v1531 = vcvt.s32.f32 %v1467
      %v1532 = vcvt.s32.f32 %v1468
      %v1533 = vcvt.s32.f32 %v1469
      %v1534 = vcvt.s32.f32 %v1470
      %v1535 = vcvt.s32.f32 %v1471
      %v1536 = vcvt.s32.f32 %v1472
      %v1537 = vcvt.s32.f32 %v1473
      %v1538 = vcvt.s32.f32 %v1474
      %v1539 = vcvt.s32.f32 %v1475
      %v1540 = vcvt.s32.f32 %v1476
      %v1541 = vcvt.s32.f32 %v1477
      %v1542 = vcvt.s32.f32 %v1478
      %v1543 = vcvt.s32.f32 %v1479
      %v1544 = vcvt.s32.f32 %v1480
      %v1545 = vcvt.s32.f32 %v1481
      %v1546 = vcvt.s32.f32 %v1482
      %v1547 = vcvt.s32.f32 %v1483
      %v1548 = vcvt.s32.f32 %v1484
      %v1549 = vcvt.s32.f32 %v1485
      %v1550 = vcvt.s32.f32 %v1486
      %v1551 = vcvt.s32.f32 %v1487
      %v1552 = vcvt.s32.f32 %v1488
      %v1553 = vcvt.s32.f32 %v1489
      %v1554 = vcvt.s32.f32 %v1490
      %v1555 = vcvt.s32.f32 %v1491
      %v1556 = vcvt.s32.f32 %v1492
      %v1557 = vcvt.s32.f32 %v1493
      %v1558 = vcvt.s32.f32 %v1494
      %v1559 = vcvt.s32.f32 %v1495
      %v1560 = vmul.f32 %v537, %v1496
      %v1561 = vmul.f32 %v540, %v1497
      %v1562 = vmul.f32 %v545, %v1498
      %v1563 = vmul.f32 %v548, %v1499
      %v1564 = vmul.f32 %v553, %v1500
      %v1565 = vmul.f32 %v556, %v1501
      %v1566 = vmul.f32 %v561, %v1502
      %v1567 = vmul.f32 %v564, %v1503
      %v1568 = vmul.f32 %v569, %v1504
      %v1569 = vmul.f32 %v572, %v1505
      %v1570 = vmul.f32 %v577, %v1506
      %v1571 = vmul.f32 %v580, %v1507
      %v1572 = vmul.f32 %v585, %v1508
      %v1573 = vmul.f32 %v588, %v1509
      %v1574 = vmul.f32 %v593, %v1510
      %v1575 = vmul.f32 %v596, %v1511
      %v1576 = vmul.f32 %v601, %v1512
      %v1577 = vmul.f32 %v604, %v1513
      %v1578 = vmul.f32 %v609, %v1514
      %v1579 = vmul.f32 %v612, %v1515
      %v1580 = vmul.f32 %v617, %v1516
      %v1581 = vmul.f32 %v620, %v1517
      %v1582 = vmul.f32 %v625, %v1518
      %v1583 = vmul.f32 %v628, %v1519
      %v1584 = vmul.f32 %v633, %v1520
      %v1585 = vmul.f32 %v636, %v1521
      %v1586 = vmul.f32 %v641, %v1522
      %v1587 = vmul.f32 %v644, %v1523
      %v1588 = vmul.f32 %v649, %v1524
      %v1589 = vmul.f32 %v652, %v1525
      %v1590 = vmul.f32 %v657, %v1526
      %v1591 = vmul.f32 %v660, %v1527
      %v1592 = vmul.f32 %v665, %v1528
      %v1593 = vmul.f32 %v668, %v1529
      %v1594 = vmul.f32 %v673, %v1530
      %v1595 = vmul.f32 %v676, %v1531
      %v1596 = vmul.f32 %v681, %v1532
      %v1597 = vmul.f32 %v684, %v1533
      %v1598 = vmul.f32 %v689, %v1534
      %v1599 = vmul.f32 %v692, %v1535
      %v1600 = vmul.f32 %v697, %v1536
      %v1601 = vmul.f32 %v700, %v1537
      %v1602 = vmul.f32 %v705, %v1538
      %v1603 = vmul.f32 %v708, %v1539
      %v1604 = vmul.f32 %v713, %v1540
      %v1605 = vmul.f32 %v716, %v1541
      %v1606 = vmul.f32 %v721, %v1542
      %v1607 = vmul.f32 %v724, %v1543
      %v1608 = vmul.f32 %v729, %v1544
      %v1609 = vmul.f32 %v732, %v1545
      %v1610 = vmul.f32 %v737, %v1546
      %v1611 = vmul.f32 %v740, %v1547
      %v1612 = vmul.f32 %v745, %v1548
      %v1613 = vmul.f32 %v748, %v1549
      %v1614 = vmul.f32 %v753, %v1550
      %v1615 = vmul.f32 %v756, %v1551
      %v1616 = vmul.f32 %v761, %v1552
      %v1617 = vmul.f32 %v764, %v1553
      %v1618 = vmul.f32 %v769, %v1554
      %v1619 = vmul.f32 %v772, %v1555
      %v1620 = vmul.f32 %v777, %v1556
      %v1621 = vmul.f32 %v780, %v1557
      %v1622 = vmul.f32 %v785, %v1558
      %v1623 = vmul.f32 %v788, %v1559
      %v1624 = vpack.c.bf16 %v1561, %v1560
      %v1625 = vpack.c.bf16 %v1563, %v1562
      %v1626 = vpack.c.bf16 %v1565, %v1564
      %v1627 = vpack.c.bf16 %v1567, %v1566
      %v1628 = vpack.c.bf16 %v1569, %v1568
      %v1629 = vpack.c.bf16 %v1571, %v1570
      %v1630 = vpack.c.bf16 %v1573, %v1572
      %v1631 = vpack.c.bf16 %v1575, %v1574
      %v1632 = vpack.c.bf16 %v1577, %v1576
      %v1633 = vpack.c.bf16 %v1579, %v1578
      %v1634 = vpack.c.bf16 %v1581, %v1580
      %v1635 = vpack.c.bf16 %v1583, %v1582
      %v1636 = vpack.c.bf16 %v1585, %v1584
      %v1637 = vpack.c.bf16 %v1587, %v1586
      %v1638 = vpack.c.bf16 %v1589, %v1588
      %v1639 = vpack.c.bf16 %v1591, %v1590
      %v1640 = vpack.c.bf16 %v1593, %v1592
      %v1641 = vpack.c.bf16 %v1595, %v1594
      %v1642 = vpack.c.bf16 %v1597, %v1596
      %v1643 = vpack.c.bf16 %v1599, %v1598
      %v1644 = vpack.c.bf16 %v1601, %v1600
      %v1645 = vpack.c.bf16 %v1603, %v1602
      %v1646 = vpack.c.bf16 %v1605, %v1604
      %v1647 = vpack.c.bf16 %v1607, %v1606
      %v1648 = vpack.c.bf16 %v1609, %v1608
      %v1649 = vpack.c.bf16 %v1611, %v1610
      %v1650 = vpack.c.bf16 %v1613, %v1612
      %v1651 = vpack.c.bf16 %v1615, %v1614
      %v1652 = vpack.c.bf16 %v1617, %v1616
      %v1653 = vpack.c.bf16 %v1619, %v1618
      %v1654 = vpack.c.bf16 %v1621, %v1620
      %v1655 = vpack.c.bf16 %v1623, %v1622
      %v1688 = vunpack.c.l.b16 %v1624
      %v1689 = vunpack.c.h.b16 %v1624
      %v1690 = vunpack.c.l.b16 %v1625
      %v1691 = vunpack.c.h.b16 %v1625
      %v1692 = vunpack.c.l.b16 %v1626
      %v1693 = vunpack.c.h.b16 %v1626
      %v1694 = vunpack.c.l.b16 %v1627
      %v1695 = vunpack.c.h.b16 %v1627
      %v1696 = vunpack.c.l.b16 %v1628
      %v1697 = vunpack.c.h.b16 %v1628
      %v1698 = vunpack.c.l.b16 %v1629
      %v1699 = vunpack.c.h.b16 %v1629
      %v1700 = vunpack.c.l.b16 %v1630
      %v1701 = vunpack.c.h.b16 %v1630
      %v1702 = vunpack.c.l.b16 %v1631
      %v1703 = vunpack.c.h.b16 %v1631
      %v1704 = vunpack.c.l.b16 %v1632
      %v1705 = vunpack.c.h.b16 %v1632
      %v1706 = vunpack.c.l.b16 %v1633
      %v1707 = vunpack.c.h.b16 %v1633
      %v1708 = vunpack.c.l.b16 %v1634
      %v1709 = vunpack.c.h.b16 %v1634
      %v1710 = vunpack.c.l.b16 %v1635
      %v1711 = vunpack.c.h.b16 %v1635
      %v1712 = vunpack.c.l.b16 %v1636
      %v1713 = vunpack.c.h.b16 %v1636
      %v1714 = vunpack.c.l.b16 %v1637
      %v1715 = vunpack.c.h.b16 %v1637
      %v1716 = vunpack.c.l.b16 %v1638
      %v1717 = vunpack.c.h.b16 %v1638
      %v1718 = vunpack.c.l.b16 %v1639
      %v1719 = vunpack.c.h.b16 %v1639
      %v1720 = vunpack.c.l.b16 %v1640
      %v1721 = vunpack.c.h.b16 %v1640
      %v1722 = vunpack.c.l.b16 %v1641
      %v1723 = vunpack.c.h.b16 %v1641
      %v1724 = vunpack.c.l.b16 %v1642
      %v1725 = vunpack.c.h.b16 %v1642
      %v1726 = vunpack.c.l.b16 %v1643
      %v1727 = vunpack.c.h.b16 %v1643
      %v1728 = vunpack.c.l.b16 %v1644
      %v1729 = vunpack.c.h.b16 %v1644
      %v1730 = vunpack.c.l.b16 %v1645
      %v1731 = vunpack.c.h.b16 %v1645
      %v1732 = vunpack.c.l.b16 %v1646
      %v1733 = vunpack.c.h.b16 %v1646
      %v1734 = vunpack.c.l.b16 %v1647
      %v1735 = vunpack.c.h.b16 %v1647
      %v1736 = vunpack.c.l.b16 %v1648
      %v1737 = vunpack.c.h.b16 %v1648
      %v1738 = vunpack.c.l.b16 %v1649
      %v1739 = vunpack.c.h.b16 %v1649
      %v1740 = vunpack.c.l.b16 %v1650
      %v1741 = vunpack.c.h.b16 %v1650
      %v1742 = vunpack.c.l.b16 %v1651
      %v1743 = vunpack.c.h.b16 %v1651
      %v1744 = vunpack.c.l.b16 %v1652
      %v1745 = vunpack.c.h.b16 %v1652
      %v1746 = vunpack.c.l.b16 %v1653
      %v1747 = vunpack.c.h.b16 %v1653
      %v1748 = vunpack.c.l.b16 %v1654
      %v1749 = vunpack.c.h.b16 %v1654
      %v1750 = vunpack.c.l.b16 %v1655
      %v1751 = vunpack.c.h.b16 %v1655
      %v1752 = vpack.c.b16 %v1688, %v1688
      %v1753 = vpack.c.b16 %v1689, %v1689
      %v1754 = vpack.c.b16 %v1690, %v1690
      %v1755 = vpack.c.b16 %v1691, %v1691
      %v1756 = vpack.c.b16 %v1692, %v1692
      %v1757 = vpack.c.b16 %v1693, %v1693
      %v1758 = vpack.c.b16 %v1694, %v1694
      %v1759 = vpack.c.b16 %v1695, %v1695
      %v1760 = vpack.c.b16 %v1696, %v1696
      %v1761 = vpack.c.b16 %v1697, %v1697
      %v1762 = vpack.c.b16 %v1698, %v1698
      %v1763 = vpack.c.b16 %v1699, %v1699
      %v1764 = vpack.c.b16 %v1700, %v1700
      %v1765 = vpack.c.b16 %v1701, %v1701
      %v1766 = vpack.c.b16 %v1702, %v1702
      %v1767 = vpack.c.b16 %v1703, %v1703
      %v1768 = vpack.c.b16 %v1704, %v1704
      %v1769 = vpack.c.b16 %v1705, %v1705
      %v1770 = vpack.c.b16 %v1706, %v1706
      %v1771 = vpack.c.b16 %v1707, %v1707
      %v1772 = vpack.c.b16 %v1708, %v1708
      %v1773 = vpack.c.b16 %v1709, %v1709
      %v1774 = vpack.c.b16 %v1710, %v1710
      %v1775 = vpack.c.b16 %v1711, %v1711
      %v1776 = vpack.c.b16 %v1712, %v1712
      %v1777 = vpack.c.b16 %v1713, %v1713
      %v1778 = vpack.c.b16 %v1714, %v1714
      %v1779 = vpack.c.b16 %v1715, %v1715
      %v1780 = vpack.c.b16 %v1716, %v1716
      %v1781 = vpack.c.b16 %v1717, %v1717
      %v1782 = vpack.c.b16 %v1718, %v1718
      %v1783 = vpack.c.b16 %v1719, %v1719
      %v1784 = vpack.c.b16 %v1720, %v1720
      %v1785 = vpack.c.b16 %v1721, %v1721
      %v1786 = vpack.c.b16 %v1722, %v1722
      %v1787 = vpack.c.b16 %v1723, %v1723
      %v1788 = vpack.c.b16 %v1724, %v1724
      %v1789 = vpack.c.b16 %v1725, %v1725
      %v1790 = vpack.c.b16 %v1726, %v1726
      %v1791 = vpack.c.b16 %v1727, %v1727
      %v1792 = vpack.c.b16 %v1728, %v1728
      %v1793 = vpack.c.b16 %v1729, %v1729
      %v1794 = vpack.c.b16 %v1730, %v1730
      %v1795 = vpack.c.b16 %v1731, %v1731
      %v1796 = vpack.c.b16 %v1732, %v1732
      %v1797 = vpack.c.b16 %v1733, %v1733
      %v1798 = vpack.c.b16 %v1734, %v1734
      %v1799 = vpack.c.b16 %v1735, %v1735
      %v1800 = vpack.c.b16 %v1736, %v1736
      %v1801 = vpack.c.b16 %v1737, %v1737
      %v1802 = vpack.c.b16 %v1738, %v1738
      %v1803 = vpack.c.b16 %v1739, %v1739
      %v1804 = vpack.c.b16 %v1740, %v1740
      %v1805 = vpack.c.b16 %v1741, %v1741
      %v1806 = vpack.c.b16 %v1742, %v1742
      %v1807 = vpack.c.b16 %v1743, %v1743
      %v1808 = vpack.c.b16 %v1744, %v1744
      %v1809 = vpack.c.b16 %v1745, %v1745
      %v1810 = vpack.c.b16 %v1746, %v1746
      %v1811 = vpack.c.b16 %v1747, %v1747
      %v1812 = vpack.c.b16 %v1748, %v1748
      %v1813 = vpack.c.b16 %v1749, %v1749
      %v1814 = vpack.c.b16 %v1750, %v1750
      %v1815 = vpack.c.b16 %v1751, %v1751
      %1880 = vst [vmem:[%s172] sm:$0xf] %v1752
      %1881 = vst [vmem:[%s172 + $0x4] sm:$0xf] %v1753
      %1882 = vst [vmem:[%s172 + $0x8] sm:$0xf] %v1754
      %1883 = vst [vmem:[%s172 + $0xc] sm:$0xf] %v1755
      %1884 = vst [vmem:[%s172 + $0x10] sm:$0xf] %v1756
      %1885 = vst [vmem:[%s172 + $0x14] sm:$0xf] %v1757
      %1886 = vst [vmem:[%s172 + $0x18] sm:$0xf] %v1758
      %1887 = vst [vmem:[%s172 + $0x1c] sm:$0xf] %v1759
      %1888 = vst [vmem:[%s172 + $0x20] sm:$0xf] %v1760
      %1889 = vst [vmem:[%s172 + $0x24] sm:$0xf] %v1761
      %1890 = vst [vmem:[%s172 + $0x28] sm:$0xf] %v1762
      %1891 = vst [vmem:[%s172 + $0x2c] sm:$0xf] %v1763
      %1892 = vst [vmem:[%s172 + $0x30] sm:$0xf] %v1764
      %1893 = vst [vmem:[%s172 + $0x34] sm:$0xf] %v1765
      %1894 = vst [vmem:[%s172 + $0x38] sm:$0xf] %v1766
      %1895 = vst [vmem:[%s172 + $0x3c] sm:$0xf] %v1767
      %1896 = vst [vmem:[%s172 + $0x40] sm:$0xf] %v1768
      %1897 = vst [vmem:[%s172 + $0x44] sm:$0xf] %v1769
      %1898 = vst [vmem:[%s172 + $0x48] sm:$0xf] %v1770
      %1899 = vst [vmem:[%s172 + $0x4c] sm:$0xf] %v1771
      %1900 = vst [vmem:[%s172 + $0x50] sm:$0xf] %v1772
      %1901 = vst [vmem:[%s172 + $0x54] sm:$0xf] %v1773
      %1902 = vst [vmem:[%s172 + $0x58] sm:$0xf] %v1774
      %1903 = vst [vmem:[%s172 + $0x5c] sm:$0xf] %v1775
      %1904 = vst [vmem:[%s172 + $0x60] sm:$0xf] %v1776
      %1905 = vst [vmem:[%s172 + $0x64] sm:$0xf] %v1777
      %1906 = vst [vmem:[%s172 + $0x68] sm:$0xf] %v1778
      %1907 = vst [vmem:[%s172 + $0x6c] sm:$0xf] %v1779
      %1908 = vst [vmem:[%s172 + $0x70] sm:$0xf] %v1780
      %1909 = vst [vmem:[%s172 + $0x74] sm:$0xf] %v1781
      %1910 = vst [vmem:[%s172 + $0x78] sm:$0xf] %v1782
      %1911 = vst [vmem:[%s172 + $0x7c] sm:$0xf] %v1783
      %1912 = vst [vmem:[%s172 + $0x80] sm:$0xf] %v1784
      %1913 = vst [vmem:[%s172 + $0x84] sm:$0xf] %v1785
      %1914 = vst [vmem:[%s172 + $0x88] sm:$0xf] %v1786
      %1915 = vst [vmem:[%s172 + $0x8c] sm:$0xf] %v1787
      %1916 = vst [vmem:[%s172 + $0x90] sm:$0xf] %v1788
      %1917 = vst [vmem:[%s172 + $0x94] sm:$0xf] %v1789
      %1918 = vst [vmem:[%s172 + $0x98] sm:$0xf] %v1790
      %1919 = vst [vmem:[%s172 + $0x9c] sm:$0xf] %v1791
      %1920 = vst [vmem:[%s172 + $0xa0] sm:$0xf] %v1792
      %1921 = vst [vmem:[%s172 + $0xa4] sm:$0xf] %v1793
      %1922 = vst [vmem:[%s172 + $0xa8] sm:$0xf] %v1794
      %1923 = vst [vmem:[%s172 + $0xac] sm:$0xf] %v1795
      %1924 = vst [vmem:[%s172 + $0xb0] sm:$0xf] %v1796
      %1925 = vst [vmem:[%s172 + $0xb4] sm:$0xf] %v1797
      %1926 = vst [vmem:[%s172 + $0xb8] sm:$0xf] %v1798
      %1927 = vst [vmem:[%s172 + $0xbc] sm:$0xf] %v1799
      %1928 = vst [vmem:[%s172 + $0xc0] sm:$0xf] %v1800
      %1929 = vst [vmem:[%s172 + $0xc4] sm:$0xf] %v1801
      %1930 = vst [vmem:[%s172 + $0xc8] sm:$0xf] %v1802
      %1931 = vst [vmem:[%s172 + $0xcc] sm:$0xf] %v1803
      %1932 = vst [vmem:[%s172 + $0xd0] sm:$0xf] %v1804
      %1933 = vst [vmem:[%s172 + $0xd4] sm:$0xf] %v1805
      %1934 = vst [vmem:[%s172 + $0xd8] sm:$0xf] %v1806
      %1935 = vst [vmem:[%s172 + $0xdc] sm:$0xf] %v1807
      %1936 = vst [vmem:[%s172 + $0xe0] sm:$0xf] %v1808
      %1937 = vst [vmem:[%s172 + $0xe4] sm:$0xf] %v1809
      %1938 = vst [vmem:[%s172 + $0xe8] sm:$0xf] %v1810
      %1939 = vst [vmem:[%s172 + $0xec] sm:$0xf] %v1811
      %1940 = vst [vmem:[%s172 + $0xf0] sm:$0xf] %v1812
      %1941 = vst [vmem:[%s172 + $0xf4] sm:$0xf] %v1813
      %1942 = vst [vmem:[%s172 + $0xf8] sm:$0xf] %v1814
      %1943 = vst [vmem:[%s172 + $0xfc] sm:$0xf] %v1815
      %s1944 = smul.u32 64, %s14
      %p1945 = scmp.lt.s32.totalorder %s1944, 127
      %s1946 = scalar_select %p1945, %s1944, 127
      %s1947 = smul.addr %s1946, 4
      %s1948 = scalar_lea.vmem %s3, %s1947
      // Predicated region
      $region33: #{_forward_impl.6} parent=31 // pred_check
        %p1949 = pneg %p100
      $region34: #{_forward_impl.6} parent=31 // pred_check_branch
        %1951 = sbr.rel (%p1949) target = $region36
      $region35: #{_forward_impl.6} parent=31 // pred_region
        %s1952 = smul.u32 64, %s14
      $region36: #{_forward_impl.6} parent=31 // pred_fallthru
        _
    $region32: #{_forward_impl.6} parent=5 // pred_fallthru
      _
    %p1953 = scmp.le.s32.totalorder 2, %s9
    // Predicated region
    $region37: #{_forward_impl.6} parent=5 // pred_check
      %p1954 = pneg %p1953
    $region38: #{_forward_impl.6} parent=5 // pred_check_branch
      %1956 = sbr.rel (%p1954) target = $region40
    $region39: #{_forward_impl.6} parent=5 // pred_region
      %s1957 = ssub.s32 %s9, 2
      // Predicated region
      $region41: #{_forward_impl.6} parent=39 // pred_check
        %p1958 = pneg %p106
      $region42: #{_forward_impl.6} parent=39 // pred_check_branch
        %1960 = sbr.rel (%p1958) target = $region44
      $region43: #{_forward_impl.6} parent=39 // pred_region
        %s1961 = smul.u32 64, %s15
        %p1962 = scmp.lt.s32.totalorder %s1961, 127
        %s1963 = scalar_select %p1962, %s1961, 127
        %s1964 = smul.addr %s1963, 4
        %s1965 = scalar_lea.vmem %s3, %s1964
      $region44: #{_forward_impl.6} parent=39 // pred_fallthru
        _
    $region40: #{_forward_impl.6} parent=5 // pred_fallthru
      _
  $region6: #{_forward_impl.6} parent=0 // loop_footer
    %s13 = sadd.s32 1, %s9
  $region7: #{_forward_impl.6} parent=0 // loop_footer_branch
    %8 = sbr.rel target = $region3
  $region8: #{_forward_impl.6} parent=0 // loop_exit
    _

// kernel: _forward_impl.7
$region0: #{_forward_impl.7}
  #allocation0 [shape = 'u32[]', space=smem, size = 0x4, offset = 0x4, fixed_abs, tag = 'smem constant byte address 0x4 - core index']
  #allocation1 [shape = 'u32[144,128]{1,0:T(1,128)}', space=vmem, size = 0x12000, scoped, tag = 'internal scratch']
  %s0 = inlined_call_operand.vmem [shape: bf16[2,512,128], index: 0, kind: input, shape index: {}, may-alias: {0,1,2}]
  %s1 = inlined_call_operand.vmem [shape: bf16[2,512,128], index: 1, kind: input, shape index: {}, may-alias: {0,1,2}]
  %s2 = inlined_call_operand.vmem [shape: bf16[2,512,128], index: 2, kind: input, shape index: {}, may-alias: {0,1,2}]
  %s3 = inlined_call_operand.vmem [shape: bf16[9,128,128], index: 3, kind: input, shape index: {}]
  %s4 = inlined_call_operand.vmem [shape: f32[1,128], index: 4, kind: input, shape index: {}]
  %s5 = inlined_call_operand.vmem [shape: f32[1,128], index: 5, kind: input, shape index: {}]
  %s6 = inlined_call_operand.vmem [shape: bf16[2,512,128], index: 6, kind: output, shape index: {0}]
  %s7 = inlined_call_operand.vmem [shape: f32[2,2,2,128], index: 7, kind: output, shape index: {1}]
  %8 = xla_tuple %s6, %s7
  %s9 = sld [smem:[#allocation0]]
  $region65: #{_forward_impl.7} parent=0
    _
  %s11 = ssub.s32 1, %s9
  %s12 = scalar_select 0, %s11, %s9
  loop: start=0, step=1, limit=6
  $region2: #{_forward_impl.7} parent=0 // loop_pre_header
    _
  $region3: #{_forward_impl.7} parent=0 // loop_header
    %s14 = sphi 0, %s18
    %p15 = scmp.ge.s32.totalorder %s14, 6
    %s21 = sphi 0, %s33
    %s22 = sphi 0, %s29
    %s23 = sphi 0, %s21
    %s24 = sphi 0, %s22
    %s25 = sphi 0, %s23
    %s26 = sphi 0, %s24
    %s46 = sphi 0, %s48
    %s49 = sphi 0, %s46
    %s50 = sphi 0, %s49
    %s66 = sphi 0, %s50
    %s74 = sphi 0, %s76
    %s77 = sphi 0, %s74
    %s78 = sphi 0, %s77
    %s94 = sphi 0, %s78
    %s110 = sphi 0, %s112
    %s113 = sphi 0, %s110
    %s114 = sphi 0, %s113
    %s130 = sphi 0, %s114
    %s134 = sphi 0, %s134
    %s136 = sphi 0, %s134
    %s137 = sphi 0, %s136
    %s151 = sphi 0, %s137
    %s155 = sphi 0, %s155
    %s157 = sphi 0, %s155
    %s158 = sphi 0, %s157
    %s172 = sphi 0, %s158
    %s176 = sphi 0, %s176
    %s178 = sphi 0, %s176
    %s179 = sphi 0, %s178
    %s193 = sphi 0, %s179
    %s201 = sphi 0, %s203
    %s204 = sphi 0, %s201
    %s205 = sphi 0, %s204
    %s221 = sphi 0, %s205
    %s229 = sphi 0, %s231
    %s232 = sphi 0, %s229
    %s233 = sphi 0, %s232
    %s249 = sphi 0, %s233
  $region4: #{_forward_impl.7} parent=0 // loop_header_branch
    %17 = sbr.rel (%p15) target = $region8
  $region5: #{_forward_impl.7} parent=0 // loop_body
    %s19 = ssub.s32 %s14, 1
    %s20 = ssub.s32 %s14, 2
    %s27 = sadd.s32 1, %s22
    %p28 = scmp.ge.s32.totalorder %s27, 2
    %s29 = scalar_select %p28, 0, %s27
    %s30 = sadd.s32 1, %s21
    %s31 = scalar_select %p28, %s30, %s21
    %p32 = scmp.ge.s32.totalorder %s31, 2
    %s33 = scalar_select %p32, 0, %s31
    %s34 = smul.u32 %s22, 4
    %s35 = ssub.s32 %s34, 1
    %p36 = scmp.gt.s32.totalorder %s35, 0
    %s37 = scalar_select %p36, %s35, 0
    %s38 = smul.u32 %s29, 4
    %s39 = ssub.s32 %s38, 1
    %p40 = scmp.gt.s32.totalorder %s39, 0
    %s41 = scalar_select %p40, %s39, 0
    %s42 = ssub.s32 %s21, %s33
    %s43 = ssub.s32 %s37, %s41
    %s44 = sor.u32 %s42, %s43
    %p45 = scmp.eq.s32.totalorder %s44, 0
    %s47 = sadd.s32 %s46, 1
    %s48 = scalar_select %p45, %s46, %s47
    %p51 = pneg %p45
    %p52 = scmp.eq.s32.totalorder %s14, 3
    %p53 = por %p51, %p52
    %p54 = scmp.ne.s32.totalorder %s46, %s49
    %p55 = scmp.eq.s32.totalorder %s14, 0
    %p56 = por %p54, %p55
    %p57 = scmp.ne.s32.totalorder %s46, %s49
    %p58 = scmp.eq.s32.totalorder %s19, 3
    %p59 = por %p57, %p58
    %p60 = scmp.ne.s32.totalorder %s49, %s50
    %p61 = scmp.eq.s32.totalorder %s19, 0
    %p62 = por %p60, %p61
    %p63 = scmp.ne.s32.totalorder %s49, %s50
    %p64 = scmp.eq.s32.totalorder %s20, 3
    %p65 = por %p63, %p64
    %p67 = scmp.ne.s32.totalorder %s50, %s66
    %p68 = scmp.eq.s32.totalorder %s20, 0
    %p69 = por %p67, %p68
    %s70 = ssub.s32 %s21, %s33
    %s71 = ssub.s32 %s22, %s29
    %s72 = sor.u32 %s70, %s71
    %p73 = scmp.eq.s32.totalorder %s72, 0
    %s75 = sadd.s32 %s74, 1
    %s76 = scalar_select %p73, %s74, %s75
    %p79 = pneg %p73
    %p80 = scmp.eq.s32.totalorder %s14, 3
    %p81 = por %p79, %p80
    %p82 = scmp.ne.s32.totalorder %s74, %s77
    %p83 = scmp.eq.s32.totalorder %s14, 0
    %p84 = por %p82, %p83
    %p85 = scmp.ne.s32.totalorder %s74, %s77
    %p86 = scmp.eq.s32.totalorder %s19, 3
    %p87 = por %p85, %p86
    %p88 = scmp.ne.s32.totalorder %s77, %s78
    %p89 = scmp.eq.s32.totalorder %s19, 0
    %p90 = por %p88, %p89
    %p91 = scmp.ne.s32.totalorder %s77, %s78
    %p92 = scmp.eq.s32.totalorder %s20, 3
    %p93 = por %p91, %p92
    %p95 = scmp.ne.s32.totalorder %s78, %s94
    %p96 = scmp.eq.s32.totalorder %s20, 0
    %p97 = por %p95, %p96
    %s98 = sadd.s32 %s22, 1
    %s99 = smul.u32 %s98, 4
    %p100 = scmp.lt.s32.totalorder %s99, 7
    %s101 = scalar_select %p100, %s99, 7
    %s102 = sadd.s32 %s29, 1
    %s103 = smul.u32 %s102, 4
    %p104 = scmp.lt.s32.totalorder %s103, 7
    %s105 = scalar_select %p104, %s103, 7
    %s106 = ssub.s32 %s21, %s33
    %s107 = ssub.s32 %s101, %s105
    %s108 = sor.u32 %s106, %s107
    %p109 = scmp.eq.s32.totalorder %s108, 0
    %s111 = sadd.s32 %s110, 1
    %s112 = scalar_select %p109, %s110, %s111
    %p115 = pneg %p109
    %p116 = scmp.eq.s32.totalorder %s14, 3
    %p117 = por %p115, %p116
    %p118 = scmp.ne.s32.totalorder %s110, %s113
    %p119 = scmp.eq.s32.totalorder %s14, 0
    %p120 = por %p118, %p119
    %p121 = scmp.ne.s32.totalorder %s110, %s113
    %p122 = scmp.eq.s32.totalorder %s19, 3
    %p123 = por %p121, %p122
    %p124 = scmp.ne.s32.totalorder %s113, %s114
    %p125 = scmp.eq.s32.totalorder %s19, 0
    %p126 = por %p124, %p125
    %p127 = scmp.ne.s32.totalorder %s113, %s114
    %p128 = scmp.eq.s32.totalorder %s20, 3
    %p129 = por %p127, %p128
    %p131 = scmp.ne.s32.totalorder %s114, %s130
    %p132 = scmp.eq.s32.totalorder %s20, 0
    %p133 = por %p131, %p132
    %s135 = sadd.s32 %s134, 1
    %p138 = scmp.eq.s32.totalorder %s14, 3
    %p139 = scmp.ne.s32.totalorder %s134, %s136
    %p140 = scmp.eq.s32.totalorder %s14, 0
    %p141 = por %p139, %p140
    %p142 = scmp.ne.s32.totalorder %s134, %s136
    %p143 = scmp.eq.s32.totalorder %s19, 3
    %p144 = por %p142, %p143
    %p145 = scmp.ne.s32.totalorder %s136, %s137
    %p146 = scmp.eq.s32.totalorder %s19, 0
    %p147 = por %p145, %p146
    %p148 = scmp.ne.s32.totalorder %s136, %s137
    %p149 = scmp.eq.s32.totalorder %s20, 3
    %p150 = por %p148, %p149
    %p152 = scmp.ne.s32.totalorder %s137, %s151
    %p153 = scmp.eq.s32.totalorder %s20, 0
    %p154 = por %p152, %p153
    %s156 = sadd.s32 %s155, 1
    %p159 = scmp.eq.s32.totalorder %s14, 3
    %p160 = scmp.ne.s32.totalorder %s155, %s157
    %p161 = scmp.eq.s32.totalorder %s14, 0
    %p162 = por %p160, %p161
    %p163 = scmp.ne.s32.totalorder %s155, %s157
    %p164 = scmp.eq.s32.totalorder %s19, 3
    %p165 = por %p163, %p164
    %p166 = scmp.ne.s32.totalorder %s157, %s158
    %p167 = scmp.eq.s32.totalorder %s19, 0
    %p168 = por %p166, %p167
    %p169 = scmp.ne.s32.totalorder %s157, %s158
    %p170 = scmp.eq.s32.totalorder %s20, 3
    %p171 = por %p169, %p170
    %p173 = scmp.ne.s32.totalorder %s158, %s172
    %p174 = scmp.eq.s32.totalorder %s20, 0
    %p175 = por %p173, %p174
    %s177 = sadd.s32 %s176, 1
    %p180 = scmp.eq.s32.totalorder %s14, 3
    %p181 = scmp.ne.s32.totalorder %s176, %s178
    %p182 = scmp.eq.s32.totalorder %s14, 0
    %p183 = por %p181, %p182
    %p184 = scmp.ne.s32.totalorder %s176, %s178
    %p185 = scmp.eq.s32.totalorder %s19, 3
    %p186 = por %p184, %p185
    %p187 = scmp.ne.s32.totalorder %s178, %s179
    %p188 = scmp.eq.s32.totalorder %s19, 0
    %p189 = por %p187, %p188
    %p190 = scmp.ne.s32.totalorder %s178, %s179
    %p191 = scmp.eq.s32.totalorder %s20, 3
    %p192 = por %p190, %p191
    %p194 = scmp.ne.s32.totalorder %s179, %s193
    %p195 = scmp.eq.s32.totalorder %s20, 0
    %p196 = por %p194, %p195
    %s197 = ssub.s32 %s21, %s33
    %s198 = ssub.s32 %s22, %s29
    %s199 = sor.u32 %s197, %s198
    %p200 = scmp.eq.s32.totalorder %s199, 0
    %s202 = sadd.s32 %s201, 1
    %s203 = scalar_select %p200, %s201, %s202
    %p206 = pneg %p200
    %p207 = scmp.eq.s32.totalorder %s14, 3
    %p208 = por %p206, %p207
    %p209 = scmp.ne.s32.totalorder %s201, %s204
    %p210 = scmp.eq.s32.totalorder %s14, 0
    %p211 = por %p209, %p210
    %p212 = scmp.ne.s32.totalorder %s201, %s204
    %p213 = scmp.eq.s32.totalorder %s19, 3
    %p214 = por %p212, %p213
    %p215 = scmp.ne.s32.totalorder %s204, %s205
    %p216 = scmp.eq.s32.totalorder %s19, 0
    %p217 = por %p215, %p216
    %p218 = scmp.ne.s32.totalorder %s204, %s205
    %p219 = scmp.eq.s32.totalorder %s20, 3
    %p220 = por %p218, %p219
    %p222 = scmp.ne.s32.totalorder %s205, %s221
    %p223 = scmp.eq.s32.totalorder %s20, 0
    %p224 = por %p222, %p223
    %s225 = ssub.s32 %s21, %s33
    %s226 = ssub.s32 %s22, %s29
    %s227 = sor.u32 %s225, %s226
    %p228 = scmp.eq.s32.totalorder %s227, 0
    %s230 = sadd.s32 %s229, 1
    %s231 = scalar_select %p228, %s229, %s230
    %p234 = pneg %p228
    %p235 = scmp.eq.s32.totalorder %s14, 3
    %p236 = por %p234, %p235
    %p237 = scmp.ne.s32.totalorder %s229, %s232
    %p238 = scmp.eq.s32.totalorder %s14, 0
    %p239 = por %p237, %p238
    %p240 = scmp.ne.s32.totalorder %s229, %s232
    %p241 = scmp.eq.s32.totalorder %s19, 3
    %p242 = por %p240, %p241
    %p243 = scmp.ne.s32.totalorder %s232, %s233
    %p244 = scmp.eq.s32.totalorder %s19, 0
    %p245 = por %p243, %p244
    %p246 = scmp.ne.s32.totalorder %s232, %s233
    %p247 = scmp.eq.s32.totalorder %s20, 3
    %p248 = por %p246, %p247
    %p250 = scmp.ne.s32.totalorder %s233, %s249
    %p251 = scmp.eq.s32.totalorder %s20, 0
    %p252 = por %p250, %p251
    %p253 = scmp.le.s32.totalorder 1, %s14
    %p254 = scmp.lt.s32.totalorder %s14, 5
    %p255 = pnand %p253, %p254
    %p256 = pneg %p255
    // Predicated region
    $region9: #{_forward_impl.7} parent=5 // pred_check
      _
    $region10: #{_forward_impl.7} parent=5 // pred_check_branch
      %258 = sbr.rel (%p255) target = $region12
    $region11: #{_forward_impl.7} parent=5 // pred_region
      %s259 = ssub.s32 %s14, 1
      // Predicated region
      $region13: #{_forward_impl.7} parent=11 // pred_check
        %p260 = pneg %p147
      $region14: #{_forward_impl.7} parent=11 // pred_check_branch
        %262 = sbr.rel (%p260) target = $region16
      $region15: #{_forward_impl.7} parent=11 // pred_region
        _
      $region16: #{_forward_impl.7} parent=11 // pred_fallthru
        _
      // Predicated region
      $region17: #{_forward_impl.7} parent=11 // pred_check
        %p263 = pneg %p168
      $region18: #{_forward_impl.7} parent=11 // pred_check_branch
        %265 = sbr.rel (%p263) target = $region20
      $region19: #{_forward_impl.7} parent=11 // pred_region
        _
      $region20: #{_forward_impl.7} parent=11 // pred_fallthru
        _
      // Predicated region
      $region21: #{_forward_impl.7} parent=11 // pred_check
        %p266 = pneg %p189
      $region22: #{_forward_impl.7} parent=11 // pred_check_branch
        %268 = sbr.rel (%p266) target = $region24
      $region23: #{_forward_impl.7} parent=11 // pred_region
        _
      $region24: #{_forward_impl.7} parent=11 // pred_fallthru
        _
    $region12: #{_forward_impl.7} parent=5 // pred_fallthru
      _
    %p269 = scmp.lt.s32.totalorder %s14, 4
    // Predicated region
    $region25: #{_forward_impl.7} parent=5 // pred_check
      %p270 = pneg %p269
    $region26: #{_forward_impl.7} parent=5 // pred_check_branch
      %272 = sbr.rel (%p270) target = $region28
    $region27: #{_forward_impl.7} parent=5 // pred_region
      // Predicated region
      $region29: #{_forward_impl.7} parent=27 // pred_check
        %p273 = pneg %p56
      $region30: #{_forward_impl.7} parent=27 // pred_check_branch
        %275 = sbr.rel (%p273) target = $region32
      $region31: #{_forward_impl.7} parent=27 // pred_region
        %s276 = smul.u32 %s22, 4
        %s277 = ssub.s32 %s276, 1
        %p278 = scmp.gt.s32.totalorder %s277, 0
        %s279 = scalar_select %p278, %s277, 0
        %s280 = smul.u32 8, %s279
        %p281 = scmp.lt.s32.totalorder %s21, 1
        %s282 = scalar_select %p281, %s21, 1
        %p283 = scmp.lt.s32.totalorder %s280, 63
        %s284 = scalar_select %p283, %s280, 63
        %s285 = smul.addr %s282, 64
        %s286 = sadd.s32 %s284, %s285
        %s287 = smul.addr %s286, 4
        %s288 = scalar_lea.vmem %s0, %s287
        %s289 = smul.u32 %s22, 4
        %s290 = ssub.s32 %s289, 1
        %p291 = scmp.gt.s32.totalorder %s290, 0
        %s292 = scalar_select %p291, %s290, 0
        %s293 = smul.u32 8, %s292
      $region32: #{_forward_impl.7} parent=27 // pred_fallthru
        _
      // Predicated region
      $region33: #{_forward_impl.7} parent=27 // pred_check
        %p294 = pneg %p84
      $region34: #{_forward_impl.7} parent=27 // pred_check_branch
        %296 = sbr.rel (%p294) target = $region36
      $region35: #{_forward_impl.7} parent=27 // pred_region
        %s297 = smul.u32 32, %s22
        %p298 = scmp.lt.s32.totalorder %s21, 1
        %s299 = scalar_select %p298, %s21, 1
        %p300 = scmp.lt.s32.totalorder %s297, 63
        %s301 = scalar_select %p300, %s297, 63
        %s302 = smul.addr %s299, 64
        %s303 = sadd.s32 %s301, %s302
        %s304 = smul.addr %s303, 4
        %s305 = scalar_lea.vmem %s1, %s304
        %s306 = smul.u32 32, %s22
      $region36: #{_forward_impl.7} parent=27 // pred_fallthru
        _
      // Predicated region
      $region37: #{_forward_impl.7} parent=27 // pred_check
        %p307 = pneg %p120
      $region38: #{_forward_impl.7} parent=27 // pred_check_branch
        %309 = sbr.rel (%p307) target = $region40
      $region39: #{_forward_impl.7} parent=27 // pred_region
        %s310 = sadd.s32 %s22, 1
        %s311 = smul.u32 %s310, 4
        %p312 = scmp.lt.s32.totalorder %s311, 7
        %s313 = scalar_select %p312, %s311, 7
        %s314 = smul.u32 8, %s313
        %p315 = scmp.lt.s32.totalorder %s21, 1
        %s316 = scalar_select %p315, %s21, 1
        %p317 = scmp.lt.s32.totalorder %s314, 63
        %s318 = scalar_select %p317, %s314, 63
        %s319 = smul.addr %s316, 64
        %s320 = sadd.s32 %s318, %s319
        %s321 = smul.addr %s320, 4
        %s322 = scalar_lea.vmem %s2, %s321
        %s323 = sadd.s32 %s22, 1
        %s324 = smul.u32 %s323, 4
        %p325 = scmp.lt.s32.totalorder %s324, 7
        %s326 = scalar_select %p325, %s324, 7
        %s327 = smul.u32 8, %s326
      $region40: #{_forward_impl.7} parent=27 // pred_fallthru
        _
    $region28: #{_forward_impl.7} parent=5 // pred_fallthru
      _
    %p328 = scmp.le.s32.totalorder 1, %s14
    %p329 = scmp.lt.s32.totalorder %s14, 5
    %p330 = pnand %p328, %p329
    %p331 = pneg %p330
    // Predicated region
    $region41: #{_forward_impl.7} parent=5 // pred_check
      _
    $region42: #{_forward_impl.7} parent=5 // pred_check_branch
      %333 = sbr.rel (%p330) target = $region44
    $region43: #{_forward_impl.7} parent=5 // pred_region
      %s334 = ssub.s32 %s14, 1
      %s335 = smul.u32 %s24, 4
      %s336 = ssub.s32 %s335, 1
      %p337 = scmp.gt.s32.totalorder %s336, 0
      %s338 = scalar_select %p337, %s336, 0
      %s339 = smul.u32 8, %s338
      %p340 = scmp.lt.s32.totalorder %s23, 1
      %s341 = scalar_select %p340, %s23, 1
      %p342 = scmp.lt.s32.totalorder %s339, 63
      %s343 = scalar_select %p342, %s339, 63
      %s344 = smul.addr %s341, 64
      %s345 = sadd.s32 %s343, %s344
      %s346 = smul.addr %s345, 4
      %s347 = scalar_lea.vmem %s0, %s346
      %p348 = pneg %p62
      %p349 = pneg %p59
      %s350 = smul.u32 32, %s24
      %p351 = scmp.lt.s32.totalorder %s23, 1
      %s352 = scalar_select %p351, %s23, 1
      %p353 = scmp.lt.s32.totalorder %s350, 63
      %s354 = scalar_select %p353, %s350, 63
      %s355 = smul.addr %s352, 64
      %s356 = sadd.s32 %s354, %s355
      %s357 = smul.addr %s356, 4
      %s358 = scalar_lea.vmem %s1, %s357
      %p359 = pneg %p90
      %p360 = pneg %p87
      %s361 = sadd.s32 %s24, 1
      %s362 = smul.u32 %s361, 4
      %p363 = scmp.lt.s32.totalorder %s362, 7
      %s364 = scalar_select %p363, %s362, 7
      %s365 = smul.u32 8, %s364
      %p366 = scmp.lt.s32.totalorder %s23, 1
      %s367 = scalar_select %p366, %s23, 1
      %p368 = scmp.lt.s32.totalorder %s365, 63
      %s369 = scalar_select %p368, %s365, 63
      %s370 = smul.addr %s367, 64
      %s371 = sadd.s32 %s369, %s370
      %s372 = smul.addr %s371, 4
      %s373 = scalar_lea.vmem %s2, %s372
      %p374 = pneg %p126
      %p375 = pneg %p123
      %p376 = pneg %p147
      %p377 = pneg %p144
      %p378 = pneg %p168
      %p379 = pneg %p165
      %p380 = pneg %p189
      %p381 = pneg %p186
      %p382 = pneg %p217
      %p383 = pneg %p214
      %s384 = smul.u32 32, %s24
      %p385 = scmp.lt.s32.totalorder %s23, 1
      %s386 = scalar_select %p385, %s23, 1
      %p387 = scmp.lt.s32.totalorder %s384, 63
      %s388 = scalar_select %p387, %s384, 63
      %s389 = smul.addr %s386, 64
      %s390 = sadd.s32 %s388, %s389
      %s391 = smul.addr %s390, 4
      %s392 = scalar_lea.vmem %s6, %s391
      %p393 = pneg %p245
      %p394 = pneg %p242
      %p395 = scmp.lt.s32.totalorder %s23, 1
      %s396 = scalar_select %p395, %s23, 1
      %p397 = scmp.lt.s32.totalorder %s24, 1
      %s398 = scalar_select %p397, %s24, 1
      %s399 = smul.addr %s396, 2
      %s400 = sadd.s32 %s398, %s399
      %s401 = smul.addr %s400, 2
      %s402 = scalar_lea.vmem %s7, %s401
      %s403 = smul.u32 %s24, 4
      %s404 = ssub.s32 %s403, 1
      %p405 = scmp.gt.s32.totalorder %s404, 0
      %s406 = scalar_select %p405, %s404, 0
      %s407 = smul.u32 8, %s406
      %p408 = scmp.lt.s32.totalorder %s23, 1
      %s409 = scalar_select %p408, %s23, 1
      %p410 = scmp.lt.s32.totalorder %s407, 63
      %s411 = scalar_select %p410, %s407, 63
      %s412 = smul.addr %s409, 64
      %s413 = sadd.s32 %s411, %s412
      %s414 = smul.addr %s413, 4
      %s415 = scalar_lea.vmem %s0, %s414
      %s416 = smul.u32 %s24, 4
      %s417 = ssub.s32 %s416, 1
      %p418 = scmp.gt.s32.totalorder %s417, 0
      %s419 = scalar_select %p418, %s417, 0
      %s420 = smul.u32 8, %s419
      %s421 = smul.u32 32, %s24
      %p422 = scmp.lt.s32.totalorder %s23, 1
      %s423 = scalar_select %p422, %s23, 1
      %p424 = scmp.lt.s32.totalorder %s421, 63
      %s425 = scalar_select %p424, %s421, 63
      %s426 = smul.addr %s423, 64
      %s427 = sadd.s32 %s425, %s426
      %s428 = smul.addr %s427, 4
      %s429 = scalar_lea.vmem %s1, %s428
      %s430 = smul.u32 32, %s24
      %s431 = sadd.s32 %s24, 1
      %s432 = smul.u32 %s431, 4
      %p433 = scmp.lt.s32.totalorder %s432, 7
      %s434 = scalar_select %p433, %s432, 7
      %s435 = smul.u32 8, %s434
      %p436 = scmp.lt.s32.totalorder %s23, 1
      %s437 = scalar_select %p436, %s23, 1
      %p438 = scmp.lt.s32.totalorder %s435, 63
      %s439 = scalar_select %p438, %s435, 63
      %s440 = smul.addr %s437, 64
      %s441 = sadd.s32 %s439, %s440
      %s442 = smul.addr %s441, 4
      %s443 = scalar_lea.vmem %s2, %s442
      %s444 = sadd.s32 %s24, 1
      %s445 = smul.u32 %s444, 4
      %p446 = scmp.lt.s32.totalorder %s445, 7
      %s447 = scalar_select %p446, %s445, 7
      %s448 = smul.u32 8, %s447
      %s449 = smul.u32 32, %s24
      %p450 = scmp.lt.s32.totalorder %s23, 1
      %s451 = scalar_select %p450, %s23, 1
      %p452 = scmp.lt.s32.totalorder %s449, 63
      %s453 = scalar_select %p452, %s449, 63
      %s454 = smul.addr %s451, 64
      %s455 = sadd.s32 %s453, %s454
      %s456 = smul.addr %s455, 4
      %s457 = scalar_lea.vmem %s6, %s456
      %s458 = smul.u32 32, %s24
      %p459 = scmp.lt.s32.totalorder %s23, 1
      %s460 = scalar_select %p459, %s23, 1
      %p461 = scmp.lt.s32.totalorder %s24, 1
      %s462 = scalar_select %p461, %s24, 1
      %s463 = smul.addr %s460, 2
      %s464 = sadd.s32 %s462, %s463
      %s465 = smul.addr %s464, 2
      %s466 = scalar_lea.vmem %s7, %s465
      %v468 = vld [vmem:[%s415 + $0x8] sm:$0xf]
      %v469 = vld [vmem:[%s415 + $0xc] sm:$0xf]
      %v470 = vld [vmem:[%s415 + $0x10] sm:$0xf]
      %v471 = vld [vmem:[%s415 + $0x14] sm:$0xf]
      %v472 = vld [vmem:[%s415 + $0x18] sm:$0xf]
      %v473 = vld [vmem:[%s415 + $0x1c] sm:$0xf]
      %v474 = vunpack.c.l.bf16 %v468
      %v475 = vunpack.c.l.bf16 %v469
      %v476 = vunpack.c.l.bf16 %v470
      %v477 = vunpack.c.l.bf16 %v471
      %v478 = vunpack.c.l.bf16 %v472
      %v479 = vunpack.c.l.bf16 %v473
      %p480 = scmp.gt.s32.totalorder %s24, 0
      %s481 = scalar_select %p480, 1.0, 0.0
      %v482 = vstv %s481
      %v483 = vmul.f32 %v474, %v482
      %v484 = vmul.f32 %v475, %v482
      %v485 = vmul.f32 %v476, %v482
      %v486 = vmul.f32 %v477, %v482
      %v487 = vmul.f32 %v478, %v482
      %v488 = vmul.f32 %v479, %v482
      %v489 = vld [vmem:[%s429] sm:$0xf]
      %v490 = vld [vmem:[%s429 + $0x4] sm:$0xf]
      %v491 = vld [vmem:[%s429 + $0x8] sm:$0xf]
      %v492 = vld [vmem:[%s429 + $0xc] sm:$0xf]
      %v493 = vld [vmem:[%s429 + $0x10] sm:$0xf]
      %v494 = vld [vmem:[%s429 + $0x14] sm:$0xf]
      %v495 = vld [vmem:[%s429 + $0x18] sm:$0xf]
      %v496 = vld [vmem:[%s429 + $0x1c] sm:$0xf]
      %v497 = vld [vmem:[%s429 + $0x20] sm:$0xf]
      %v498 = vld [vmem:[%s429 + $0x24] sm:$0xf]
      %v499 = vld [vmem:[%s429 + $0x28] sm:$0xf]
      %v500 = vld [vmem:[%s429 + $0x2c] sm:$0xf]
      %v501 = vld [vmem:[%s429 + $0x30] sm:$0xf]
      %v502 = vld [vmem:[%s429 + $0x34] sm:$0xf]
      %v503 = vld [vmem:[%s429 + $0x38] sm:$0xf]
      %v504 = vld [vmem:[%s429 + $0x3c] sm:$0xf]
      %v505 = vld [vmem:[%s429 + $0x40] sm:$0xf]
      %v506 = vld [vmem:[%s429 + $0x44] sm:$0xf]
      %v507 = vld [vmem:[%s429 + $0x48] sm:$0xf]
      %v508 = vld [vmem:[%s429 + $0x4c] sm:$0xf]
      %v509 = vld [vmem:[%s429 + $0x50] sm:$0xf]
      %v510 = vld [vmem:[%s429 + $0x54] sm:$0xf]
      %v511 = vld [vmem:[%s429 + $0x58] sm:$0xf]
      %v512 = vld [vmem:[%s429 + $0x5c] sm:$0xf]
      %v513 = vld [vmem:[%s429 + $0x60] sm:$0xf]
      %v514 = vld [vmem:[%s429 + $0x64] sm:$0xf]
      %v515 = vld [vmem:[%s429 + $0x68] sm:$0xf]
      %v516 = vld [vmem:[%s429 + $0x6c] sm:$0xf]
      %v517 = vld [vmem:[%s429 + $0x70] sm:$0xf]
      %v518 = vld [vmem:[%s429 + $0x74] sm:$0xf]
      %v519 = vld [vmem:[%s429 + $0x78] sm:$0xf]
      %v520 = vld [vmem:[%s429 + $0x7c] sm:$0xf]
      %v521 = vunpack.c.l.bf16 %v489
      %v522 = vunpack.c.l.bf16 %v490
      %v523 = vunpack.c.l.bf16 %v491
      %v524 = vunpack.c.l.bf16 %v492
      %v525 = vunpack.c.l.bf16 %v493
      %v526 = vunpack.c.l.bf16 %v494
      %v527 = vunpack.c.l.bf16 %v495
      %v528 = vunpack.c.l.bf16 %v496
      %v529 = vunpack.c.l.bf16 %v497
      %v530 = vunpack.c.l.bf16 %v498
      %v531 = vunpack.c.l.bf16 %v499
      %v532 = vunpack.c.l.bf16 %v500
      %v533 = vunpack.c.l.bf16 %v501
      %v534 = vunpack.c.l.bf16 %v502
      %v535 = vunpack.c.l.bf16 %v503
      %v536 = vunpack.c.l.bf16 %v504
      %v537 = vunpack.c.l.bf16 %v505
      %v538 = vunpack.c.l.bf16 %v506
      %v539 = vunpack.c.l.bf16 %v507
      %v540 = vunpack.c.l.bf16 %v508
      %v541 = vunpack.c.l.bf16 %v509
      %v542 = vunpack.c.l.bf16 %v510
      %v543 = vunpack.c.l.bf16 %v511
      %v544 = vunpack.c.l.bf16 %v512
      %v545 = vunpack.c.l.bf16 %v513
      %v546 = vunpack.c.l.bf16 %v514
      %v547 = vunpack.c.l.bf16 %v515
      %v548 = vunpack.c.l.bf16 %v516
      %v549 = vunpack.c.l.bf16 %v517
      %v550 = vunpack.c.l.bf16 %v518
      %v551 = vunpack.c.l.bf16 %v519
      %v552 = vunpack.c.l.bf16 %v520
      %v553 = vld [vmem:[%s443] sm:$0xf]
      %v554 = vld [vmem:[%s443 + $0x4] sm:$0xf]
      %v555 = vld [vmem:[%s443 + $0x8] sm:$0xf]
      %v556 = vld [vmem:[%s443 + $0xc] sm:$0xf]
      %v557 = vld [vmem:[%s443 + $0x10] sm:$0xf]
      %v558 = vld [vmem:[%s443 + $0x14] sm:$0xf]
      %v559 = vunpack.c.l.bf16 %v553
      %v560 = vunpack.c.l.bf16 %v554
      %v561 = vunpack.c.l.bf16 %v555
      %v562 = vunpack.c.l.bf16 %v556
      %v563 = vunpack.c.l.bf16 %v557
      %v564 = vunpack.c.l.bf16 %v558
      %p565 = scmp.lt.s32.totalorder %s24, 1
      %s566 = scalar_select %p565, 1.0, 0.0
      %v567 = vstv %s566
      %v568 = vmul.f32 %v559, %v567
      %v569 = vmul.f32 %v560, %v567
      %v570 = vmul.f32 %v561, %v567
      %v571 = vmul.f32 %v562, %v567
      %v572 = vmul.f32 %v563, %v567
      %v573 = vmul.f32 %v564, %v567
      %v574 = vlaneseq
      %v575 = vshrl.u32 %v574, 7
      %v576 = vadd.s32 %v575, 64
      %v577 = vadd.s32 %v575, 72
      %v578 = vadd.s32 %v575, 80
      %v579 = vadd.s32 %v575, 88
      %v580 = vadd.s32 %v575, 96
      %v581 = vadd.s32 %v575, 104
      %v582 = vadd.s32 %v575, 112
      %v583 = vadd.s32 %v575, 120
      %v584 = vadd.s32 %v575, 128
      %v585 = vadd.s32 %v575, 136
      %v586 = vadd.s32 %v575, 144
      %v587 = vadd.s32 %v575, 152
      %v588 = vadd.s32 %v575, 160
      %v589 = vadd.s32 %v575, 168
      %v590 = vadd.s32 %v575, 176
      %v591 = vadd.s32 %v575, 184
      %v592 = vadd.s32 %v575, 192
      %v593 = vadd.s32 %v575, 200
      %v594 = vadd.s32 %v575, 208
      %v595 = vadd.s32 %v575, 216
      %v596 = vadd.s32 %v575, 224
      %v597 = vadd.s32 %v575, 232
      %v598 = vadd.s32 %v575, 240
      %v599 = vadd.s32 %v575, 248
      %v600 = vadd.s32 %v575, 256
      %v601 = vadd.s32 %v575, 264
      %v602 = vadd.s32 %v575, 272
      %v603 = vadd.s32 %v575, 280
      %v604 = vadd.s32 %v575, 288
      %v605 = vadd.s32 %v575, 296
      %v606 = vadd.s32 %v575, 304
      %v607 = vadd.s32 %v575, 312
      %v608 = vcvt.s32.f32 %v576
      %v609 = vcvt.s32.f32 %v577
      %v610 = vcvt.s32.f32 %v578
      %v611 = vcvt.s32.f32 %v579
      %v612 = vcvt.s32.f32 %v580
      %v613 = vcvt.s32.f32 %v581
      %v614 = vcvt.s32.f32 %v582
      %v615 = vcvt.s32.f32 %v583
      %v616 = vcvt.s32.f32 %v584
      %v617 = vcvt.s32.f32 %v585
      %v618 = vcvt.s32.f32 %v586
      %v619 = vcvt.s32.f32 %v587
      %v620 = vcvt.s32.f32 %v588
      %v621 = vcvt.s32.f32 %v589
      %v622 = vcvt.s32.f32 %v590
      %v623 = vcvt.s32.f32 %v591
      %v624 = vcvt.s32.f32 %v592
      %v625 = vcvt.s32.f32 %v593
      %v626 = vcvt.s32.f32 %v594
      %v627 = vcvt.s32.f32 %v595
      %v628 = vcvt.s32.f32 %v596
      %v629 = vcvt.s32.f32 %v597
      %v630 = vcvt.s32.f32 %v598
      %v631 = vcvt.s32.f32 %v599
      %v632 = vcvt.s32.f32 %v600
      %v633 = vcvt.s32.f32 %v601
      %v634 = vcvt.s32.f32 %v602
      %v635 = vcvt.s32.f32 %v603
      %v636 = vcvt.s32.f32 %v604
      %v637 = vcvt.s32.f32 %v605
      %v638 = vcvt.s32.f32 %v606
      %v639 = vcvt.s32.f32 %v607
      %v640 = vadd.f32 %v608, 0.5
      %v641 = vadd.f32 %v609, 0.5
      %v642 = vadd.f32 %v610, 0.5
      %v643 = vadd.f32 %v611, 0.5
      %v644 = vadd.f32 %v612, 0.5
      %v645 = vadd.f32 %v613, 0.5
      %v646 = vadd.f32 %v614, 0.5
      %v647 = vadd.f32 %v615, 0.5
      %v648 = vadd.f32 %v616, 0.5
      %v649 = vadd.f32 %v617, 0.5
      %v650 = vadd.f32 %v618, 0.5
      %v651 = vadd.f32 %v619, 0.5
      %v652 = vadd.f32 %v620, 0.5
      %v653 = vadd.f32 %v621, 0.5
      %v654 = vadd.f32 %v622, 0.5
      %v655 = vadd.f32 %v623, 0.5
      %v656 = vadd.f32 %v624, 0.5
      %v657 = vadd.f32 %v625, 0.5
      %v658 = vadd.f32 %v626, 0.5
      %v659 = vadd.f32 %v627, 0.5
      %v660 = vadd.f32 %v628, 0.5
      %v661 = vadd.f32 %v629, 0.5
      %v662 = vadd.f32 %v630, 0.5
      %v663 = vadd.f32 %v631, 0.5
      %v664 = vadd.f32 %v632, 0.5
      %v665 = vadd.f32 %v633, 0.5
      %v666 = vadd.f32 %v634, 0.5
      %v667 = vadd.f32 %v635, 0.5
      %v668 = vadd.f32 %v636, 0.5
      %v669 = vadd.f32 %v637, 0.5
      %v670 = vadd.f32 %v638, 0.5
      %v671 = vadd.f32 %v639, 0.5
      %v672 = vmul.f32 %v640, 0.03125
      %v673 = vmul.f32 %v641, 0.03125
      %v674 = vmul.f32 %v642, 0.03125
      %v675 = vmul.f32 %v643, 0.03125
      %v676 = vmul.f32 %v644, 0.03125
      %v677 = vmul.f32 %v645, 0.03125
      %v678 = vmul.f32 %v646, 0.03125
      %v679 = vmul.f32 %v647, 0.03125
      %v680 = vmul.f32 %v648, 0.03125
      %v681 = vmul.f32 %v649, 0.03125
      %v682 = vmul.f32 %v650, 0.03125
      %v683 = vmul.f32 %v651, 0.03125
      %v684 = vmul.f32 %v652, 0.03125
      %v685 = vmul.f32 %v653, 0.03125
      %v686 = vmul.f32 %v654, 0.03125
      %v687 = vmul.f32 %v655, 0.03125
      %v688 = vmul.f32 %v656, 0.03125
      %v689 = vmul.f32 %v657, 0.03125
      %v690 = vmul.f32 %v658, 0.03125
      %v691 = vmul.f32 %v659, 0.03125
      %v692 = vmul.f32 %v660, 0.03125
      %v693 = vmul.f32 %v661, 0.03125
      %v694 = vmul.f32 %v662, 0.03125
      %v695 = vmul.f32 %v663, 0.03125
      %v696 = vmul.f32 %v664, 0.03125
      %v697 = vmul.f32 %v665, 0.03125
      %v698 = vmul.f32 %v666, 0.03125
      %v699 = vmul.f32 %v667, 0.03125
      %v700 = vmul.f32 %v668, 0.03125
      %v701 = vmul.f32 %v669, 0.03125
      %v702 = vmul.f32 %v670, 0.03125
      %v703 = vmul.f32 %v671, 0.03125
      %v704 = vfloor.f32 %v672
      %v705 = vfloor.f32 %v673
      %v706 = vfloor.f32 %v674
      %v707 = vfloor.f32 %v675
      %v708 = vfloor.f32 %v676
      %v709 = vfloor.f32 %v677
      %v710 = vfloor.f32 %v678
      %v711 = vfloor.f32 %v679
      %v712 = vfloor.f32 %v680
      %v713 = vfloor.f32 %v681
      %v714 = vfloor.f32 %v682
      %v715 = vfloor.f32 %v683
      %v716 = vfloor.f32 %v684
      %v717 = vfloor.f32 %v685
      %v718 = vfloor.f32 %v686
      %v719 = vfloor.f32 %v687
      %v720 = vfloor.f32 %v688
      %v721 = vfloor.f32 %v689
      %v722 = vfloor.f32 %v690
      %v723 = vfloor.f32 %v691
      %v724 = vfloor.f32 %v692
      %v725 = vfloor.f32 %v693
      %v726 = vfloor.f32 %v694
      %v727 = vfloor.f32 %v695
      %v728 = vfloor.f32 %v696
      %v729 = vfloor.f32 %v697
      %v730 = vfloor.f32 %v698
      %v731 = vfloor.f32 %v699
      %v732 = vfloor.f32 %v700
      %v733 = vfloor.f32 %v701
      %v734 = vfloor.f32 %v702
      %v735 = vfloor.f32 %v703
      %v736 = vmul.f32 %v704, 32.0
      %v737 = vmul.f32 %v705, 32.0
      %v738 = vmul.f32 %v706, 32.0
      %v739 = vmul.f32 %v707, 32.0
      %v740 = vmul.f32 %v708, 32.0
      %v741 = vmul.f32 %v709, 32.0
      %v742 = vmul.f32 %v710, 32.0
      %v743 = vmul.f32 %v711, 32.0
      %v744 = vmul.f32 %v712, 32.0
      %v745 = vmul.f32 %v713, 32.0
      %v746 = vmul.f32 %v714, 32.0
      %v747 = vmul.f32 %v715, 32.0
      %v748 = vmul.f32 %v716, 32.0
      %v749 = vmul.f32 %v717, 32.0
      %v750 = vmul.f32 %v718, 32.0
      %v751 = vmul.f32 %v719, 32.0
      %v752 = vmul.f32 %v720, 32.0
      %v753 = vmul.f32 %v721, 32.0
      %v754 = vmul.f32 %v722, 32.0
      %v755 = vmul.f32 %v723, 32.0
      %v756 = vmul.f32 %v724, 32.0
      %v757 = vmul.f32 %v725, 32.0
      %v758 = vmul.f32 %v726, 32.0
      %v759 = vmul.f32 %v727, 32.0
      %v760 = vmul.f32 %v728, 32.0
      %v761 = vmul.f32 %v729, 32.0
      %v762 = vmul.f32 %v730, 32.0
      %v763 = vmul.f32 %v731, 32.0
      %v764 = vmul.f32 %v732, 32.0
      %v765 = vmul.f32 %v733, 32.0
      %v766 = vmul.f32 %v734, 32.0
      %v767 = vmul.f32 %v735, 32.0
      %v768 = vsub.f32 %v608, %v736
      %v769 = vsub.f32 %v609, %v737
      %v770 = vsub.f32 %v610, %v738
      %v771 = vsub.f32 %v611, %v739
      %v772 = vsub.f32 %v612, %v740
      %v773 = vsub.f32 %v613, %v741
      %v774 = vsub.f32 %v614, %v742
      %v775 = vsub.f32 %v615, %v743
      %v776 = vsub.f32 %v616, %v744
      %v777 = vsub.f32 %v617, %v745
      %v778 = vsub.f32 %v618, %v746
      %v779 = vsub.f32 %v619, %v747
      %v780 = vsub.f32 %v620, %v748
      %v781 = vsub.f32 %v621, %v749
      %v782 = vsub.f32 %v622, %v750
      %v783 = vsub.f32 %v623, %v751
      %v784 = vsub.f32 %v624, %v752
      %v785 = vsub.f32 %v625, %v753
      %v786 = vsub.f32 %v626, %v754
      %v787 = vsub.f32 %v627, %v755
      %v788 = vsub.f32 %v628, %v756
      %v789 = vsub.f32 %v629, %v757
      %v790 = vsub.f32 %v630, %v758
      %v791 = vsub.f32 %v631, %v759
      %v792 = vsub.f32 %v632, %v760
      %v793 = vsub.f32 %v633, %v761
      %v794 = vsub.f32 %v634, %v762
      %v795 = vsub.f32 %v635, %v763
      %v796 = vsub.f32 %v636, %v764
      %v797 = vsub.f32 %v637, %v765
      %v798 = vsub.f32 %v638, %v766
      %v799 = vsub.f32 %v639, %v767
      %vm800 = vcmp.ge.f32.partialorder %v768, 0.5
      %vm801 = vcmp.ge.f32.partialorder %v769, 0.5
      %vm802 = vcmp.ge.f32.partialorder %v770, 0.5
      %vm803 = vcmp.ge.f32.partialorder %v771, 0.5
      %vm804 = vcmp.ge.f32.partialorder %v772, 0.5
      %vm805 = vcmp.ge.f32.partialorder %v773, 0.5
      %vm806 = vcmp.ge.f32.partialorder %v774, 0.5
      %vm807 = vcmp.ge.f32.partialorder %v775, 0.5
      %vm808 = vcmp.ge.f32.partialorder %v776, 0.5
      %vm809 = vcmp.ge.f32.partialorder %v777, 0.5
      %vm810 = vcmp.ge.f32.partialorder %v778, 0.5
      %vm811 = vcmp.ge.f32.partialorder %v779, 0.5
      %vm812 = vcmp.ge.f32.partialorder %v780, 0.5
      %vm813 = vcmp.ge.f32.partialorder %v781, 0.5
      %vm814 = vcmp.ge.f32.partialorder %v782, 0.5
      %vm815 = vcmp.ge.f32.partialorder %v783, 0.5
      %vm816 = vcmp.ge.f32.partialorder %v784, 0.5
      %vm817 = vcmp.ge.f32.partialorder %v785, 0.5
      %vm818 = vcmp.ge.f32.partialorder %v786, 0.5
      %vm819 = vcmp.ge.f32.partialorder %v787, 0.5
      %vm820 = vcmp.ge.f32.partialorder %v788, 0.5
      %vm821 = vcmp.ge.f32.partialorder %v789, 0.5
      %vm822 = vcmp.ge.f32.partialorder %v790, 0.5
      %vm823 = vcmp.ge.f32.partialorder %v791, 0.5
      %vm824 = vcmp.ge.f32.partialorder %v792, 0.5
      %vm825 = vcmp.ge.f32.partialorder %v793, 0.5
      %vm826 = vcmp.ge.f32.partialorder %v794, 0.5
      %vm827 = vcmp.ge.f32.partialorder %v795, 0.5
      %vm828 = vcmp.ge.f32.partialorder %v796, 0.5
      %vm829 = vcmp.ge.f32.partialorder %v797, 0.5
      %vm830 = vcmp.ge.f32.partialorder %v798, 0.5
      %vm831 = vcmp.ge.f32.partialorder %v799, 0.5
      %vm832 = vcmp.le.f32.partialorder %v768, 16.5
      %vm833 = vcmp.le.f32.partialorder %v769, 16.5
      %vm834 = vcmp.le.f32.partialorder %v770, 16.5
      %vm835 = vcmp.le.f32.partialorder %v771, 16.5
      %vm836 = vcmp.le.f32.partialorder %v772, 16.5
      %vm837 = vcmp.le.f32.partialorder %v773, 16.5
      %vm838 = vcmp.le.f32.partialorder %v774, 16.5
      %vm839 = vcmp.le.f32.partialorder %v775, 16.5
      %vm840 = vcmp.le.f32.partialorder %v776, 16.5
      %vm841 = vcmp.le.f32.partialorder %v777, 16.5
      %vm842 = vcmp.le.f32.partialorder %v778, 16.5
      %vm843 = vcmp.le.f32.partialorder %v779, 16.5
      %vm844 = vcmp.le.f32.partialorder %v780, 16.5
      %vm845 = vcmp.le.f32.partialorder %v781, 16.5
      %vm846 = vcmp.le.f32.partialorder %v782, 16.5
      %vm847 = vcmp.le.f32.partialorder %v783, 16.5
      %vm848 = vcmp.le.f32.partialorder %v784, 16.5
      %vm849 = vcmp.le.f32.partialorder %v785, 16.5
      %vm850 = vcmp.le.f32.partialorder %v786, 16.5
      %vm851 = vcmp.le.f32.partialorder %v787, 16.5
      %vm852 = vcmp.le.f32.partialorder %v788, 16.5
      %vm853 = vcmp.le.f32.partialorder %v789, 16.5
      %vm854 = vcmp.le.f32.partialorder %v790, 16.5
      %vm855 = vcmp.le.f32.partialorder %v791, 16.5
      %vm856 = vcmp.le.f32.partialorder %v792, 16.5
      %vm857 = vcmp.le.f32.partialorder %v793, 16.5
      %vm858 = vcmp.le.f32.partialorder %v794, 16.5
      %vm859 = vcmp.le.f32.partialorder %v795, 16.5
      %vm860 = vcmp.le.f32.partialorder %v796, 16.5
      %vm861 = vcmp.le.f32.partialorder %v797, 16.5
      %vm862 = vcmp.le.f32.partialorder %v798, 16.5
      %vm863 = vcmp.le.f32.partialorder %v799, 16.5
      %vm864 = vmand %vm800, %vm832
      %vm865 = vmand %vm801, %vm833
      %vm866 = vmand %vm802, %vm834
      %vm867 = vmand %vm803, %vm835
      %vm868 = vmand %vm804, %vm836
      %vm869 = vmand %vm805, %vm837
      %vm870 = vmand %vm806, %vm838
      %vm871 = vmand %vm807, %vm839
      %vm872 = vmand %vm808, %vm840
      %vm873 = vmand %vm809, %vm841
      %vm874 = vmand %vm810, %vm842
      %vm875 = vmand %vm811, %vm843
      %vm876 = vmand %vm812, %vm844
      %vm877 = vmand %vm813, %vm845
      %vm878 = vmand %vm814, %vm846
      %vm879 = vmand %vm815, %vm847
      %vm880 = vmand %vm816, %vm848
      %vm881 = vmand %vm817, %vm849
      %vm882 = vmand %vm818, %vm850
      %vm883 = vmand %vm819, %vm851
      %vm884 = vmand %vm820, %vm852
      %vm885 = vmand %vm821, %vm853
      %vm886 = vmand %vm822, %vm854
      %vm887 = vmand %vm823, %vm855
      %vm888 = vmand %vm824, %vm856
      %vm889 = vmand %vm825, %vm857
      %vm890 = vmand %vm826, %vm858
      %vm891 = vmand %vm827, %vm859
      %vm892 = vmand %vm828, %vm860
      %vm893 = vmand %vm829, %vm861
      %vm894 = vmand %vm830, %vm862
      %vm895 = vmand %vm831, %vm863
      %v896 = vsel %vm864, 1, 0
      %v897 = vsel %vm865, 1, 0
      %v898 = vsel %vm866, 1, 0
      %v899 = vsel %vm867, 1, 0
      %v900 = vsel %vm868, 1, 0
      %v901 = vsel %vm869, 1, 0
      %v902 = vsel %vm870, 1, 0
      %v903 = vsel %vm871, 1, 0
      %v904 = vsel %vm872, 1, 0
      %v905 = vsel %vm873, 1, 0
      %v906 = vsel %vm874, 1, 0
      %v907 = vsel %vm875, 1, 0
      %v908 = vsel %vm876, 1, 0
      %v909 = vsel %vm877, 1, 0
      %v910 = vsel %vm878, 1, 0
      %v911 = vsel %vm879, 1, 0
      %v912 = vsel %vm880, 1, 0
      %v913 = vsel %vm881, 1, 0
      %v914 = vsel %vm882, 1, 0
      %v915 = vsel %vm883, 1, 0
      %v916 = vsel %vm884, 1, 0
      %v917 = vsel %vm885, 1, 0
      %v918 = vsel %vm886, 1, 0
      %v919 = vsel %vm887, 1, 0
      %v920 = vsel %vm888, 1, 0
      %v921 = vsel %vm889, 1, 0
      %v922 = vsel %vm890, 1, 0
      %v923 = vsel %vm891, 1, 0
      %v924 = vsel %vm892, 1, 0
      %v925 = vsel %vm893, 1, 0
      %v926 = vsel %vm894, 1, 0
      %v927 = vsel %vm895, 1, 0
      %v928 = vcvt.s32.f32 %v896
      %v929 = vcvt.s32.f32 %v897
      %v930 = vcvt.s32.f32 %v898
      %v931 = vcvt.s32.f32 %v899
      %v932 = vcvt.s32.f32 %v900
      %v933 = vcvt.s32.f32 %v901
      %v934 = vcvt.s32.f32 %v902
      %v935 = vcvt.s32.f32 %v903
      %v936 = vcvt.s32.f32 %v904
      %v937 = vcvt.s32.f32 %v905
      %v938 = vcvt.s32.f32 %v906
      %v939 = vcvt.s32.f32 %v907
      %v940 = vcvt.s32.f32 %v908
      %v941 = vcvt.s32.f32 %v909
      %v942 = vcvt.s32.f32 %v910
      %v943 = vcvt.s32.f32 %v911
      %v944 = vcvt.s32.f32 %v912
      %v945 = vcvt.s32.f32 %v913
      %v946 = vcvt.s32.f32 %v914
      %v947 = vcvt.s32.f32 %v915
      %v948 = vcvt.s32.f32 %v916
      %v949 = vcvt.s32.f32 %v917
      %v950 = vcvt.s32.f32 %v918
      %v951 = vcvt.s32.f32 %v919
      %v952 = vcvt.s32.f32 %v920
      %v953 = vcvt.s32.f32 %v921
      %v954 = vcvt.s32.f32 %v922
      %v955 = vcvt.s32.f32 %v923
      %v956 = vcvt.s32.f32 %v924
      %v957 = vcvt.s32.f32 %v925
      %v958 = vcvt.s32.f32 %v926
      %v959 = vcvt.s32.f32 %v927
      %v960 = vpack.c.bf16 %v484, %v483
      %v961 = vpack.c.bf16 %v486, %v485
      %v962 = vpack.c.bf16 %v488, %v487
      %v963 = vpack.c.bf16 %v522, %v521
      %v964 = vpack.c.bf16 %v524, %v523
      %v965 = vpack.c.bf16 %v526, %v525
      %v966 = vpack.c.bf16 %v528, %v527
      %v967 = vpack.c.bf16 %v530, %v529
      %v968 = vpack.c.bf16 %v532, %v531
      %v969 = vpack.c.bf16 %v534, %v533
      %v970 = vpack.c.bf16 %v536, %v535
      %v971 = vpack.c.bf16 %v538, %v537
      %v972 = vpack.c.bf16 %v540, %v539
      %v973 = vpack.c.bf16 %v542, %v541
      %v974 = vpack.c.bf16 %v544, %v543
      %v975 = vpack.c.bf16 %v546, %v545
      %v976 = vpack.c.bf16 %v548, %v547
      %v977 = vpack.c.bf16 %v550, %v549
      %v978 = vpack.c.bf16 %v552, %v551
      %v979 = vpack.c.bf16 %v569, %v568
      %v980 = vpack.c.bf16 %v571, %v570
      %v981 = vpack.c.bf16 %v573, %v572
      %v982 = vld [vmem:[%s3] sm:$0xf]
      %v983 = vld [vmem:[%s3 + $0x4] sm:$0xf]
      %v984 = vld [vmem:[%s3 + $0x8] sm:$0xf]
      %v985 = vld [vmem:[%s3 + $0xc] sm:$0xf]
      %v986 = vld [vmem:[%s3 + $0x10] sm:$0xf]
      %v987 = vld [vmem:[%s3 + $0x14] sm:$0xf]
      %v988 = vld [vmem:[%s3 + $0x18] sm:$0xf]
      %v989 = vld [vmem:[%s3 + $0x1c] sm:$0xf]
      %v990 = vld [vmem:[%s3 + $0x20] sm:$0xf]
      %v991 = vld [vmem:[%s3 + $0x24] sm:$0xf]
      %v992 = vld [vmem:[%s3 + $0x28] sm:$0xf]
      %v993 = vld [vmem:[%s3 + $0x2c] sm:$0xf]
      %v994 = vld [vmem:[%s3 + $0x30] sm:$0xf]
      %v995 = vld [vmem:[%s3 + $0x34] sm:$0xf]
      %v996 = vld [vmem:[%s3 + $0x38] sm:$0xf]
      %v997 = vld [vmem:[%s3 + $0x3c] sm:$0xf]
      %s998 = scalar_lea.vmem %s3, 64
      %v999 = vld [vmem:[%s998] sm:$0xf]
      %v1000 = vld [vmem:[%s998 + $0x4] sm:$0xf]
      %v1001 = vld [vmem:[%s998 + $0x8] sm:$0xf]
      %v1002 = vld [vmem:[%s998 + $0xc] sm:$0xf]
      %v1003 = vld [vmem:[%s998 + $0x10] sm:$0xf]
      %v1004 = vld [vmem:[%s998 + $0x14] sm:$0xf]
      %v1005 = vld [vmem:[%s998 + $0x18] sm:$0xf]
      %v1006 = vld [vmem:[%s998 + $0x1c] sm:$0xf]
      %v1007 = vld [vmem:[%s998 + $0x20] sm:$0xf]
      %v1008 = vld [vmem:[%s998 + $0x24] sm:$0xf]
      %v1009 = vld [vmem:[%s998 + $0x28] sm:$0xf]
      %v1010 = vld [vmem:[%s998 + $0x2c] sm:$0xf]
      %v1011 = vld [vmem:[%s998 + $0x30] sm:$0xf]
      %v1012 = vld [vmem:[%s998 + $0x34] sm:$0xf]
      %v1013 = vld [vmem:[%s998 + $0x38] sm:$0xf]
      %v1014 = vld [vmem:[%s998 + $0x3c] sm:$0xf]
      %v1031 = vunpack.c.l.b16 %v999
      %v1032 = vunpack.c.l.b16 %v1000
      %v1033 = vunpack.c.l.b16 %v1001
      %v1034 = vunpack.c.l.b16 %v1002
      %v1035 = vunpack.c.l.b16 %v1003
      %v1036 = vunpack.c.l.b16 %v1004
      %v1037 = vunpack.c.l.b16 %v1005
      %v1038 = vunpack.c.l.b16 %v1006
      %v1039 = vunpack.c.l.b16 %v1007
      %v1040 = vunpack.c.l.b16 %v1008
      %v1041 = vunpack.c.l.b16 %v1009
      %v1042 = vunpack.c.l.b16 %v1010
      %v1043 = vunpack.c.l.b16 %v1011
      %v1044 = vunpack.c.l.b16 %v1012
      %v1045 = vunpack.c.l.b16 %v1013
      %v1046 = vunpack.c.l.b16 %v1014
      %v1047 = vpack.c.b16 %v1032, %v1031
      %v1048 = vpack.c.b16 %v1034, %v1033
      %v1049 = vpack.c.b16 %v1036, %v1035
      %v1050 = vpack.c.b16 %v1038, %v1037
      %v1051 = vpack.c.b16 %v1040, %v1039
      %v1052 = vpack.c.b16 %v1042, %v1041
      %v1053 = vpack.c.b16 %v1044, %v1043
      %v1054 = vpack.c.b16 %v1046, %v1045
      %1063 = vmatprep.subr.bf16.mxu0 0
      %1064 = vmatpush1.bf16.msra.mxu0 %v1047
      %1065 = vmatprep.subr.bf16.mxu0 0
      %1066 = vmatpush1.bf16.msra.mxu0 %v1048
      %1067 = vmatprep.subr.bf16.mxu0 0
      %1068 = vmatpush1.bf16.msra.mxu0 %v1049
      %1069 = vmatprep.subr.bf16.mxu0 0
      %1070 = vmatpush1.bf16.msra.mxu0 %v1050
      %1071 = vmatprep.subr.bf16.mxu0 0
      %1072 = vmatpush1.bf16.msra.mxu0 %v1051
      %1073 = vmatprep.subr.bf16.mxu0 0
      %1074 = vmatpush1.bf16.msra.mxu0 %v1052
      %1075 = vmatprep.subr.bf16.mxu0 0
      %1076 = vmatpush1.bf16.msra.mxu0 %v1053
      %1077 = vmatprep.subr.bf16.mxu0 0
      %1078 = vmatpush1.bf16.msra.mxu0 %v1054
      %1079 = vmatprep.subr.bf16.mxu0 0
      %1080 = vmatpush1.bf16.msra.mxu0 0
      %1081 = vmatprep.subr.bf16.mxu0 0
      %1082 = vmatpush1.bf16.msra.mxu0 0
      %1083 = vmatprep.subr.bf16.mxu0 0
      %1084 = vmatpush1.bf16.msra.mxu0 0
      %1085 = vmatprep.subr.bf16.mxu0 0
      %1086 = vmatpush1.bf16.msra.mxu0 0
      %1087 = vmatprep.subr.bf16.mxu0 0
      %1088 = vmatpush1.bf16.msra.mxu0 0
      %1089 = vmatprep.subr.bf16.mxu0 0
      %1090 = vmatpush1.bf16.msra.mxu0 0
      %1091 = vmatprep.subr.bf16.mxu0 0
      %1092 = vmatpush1.bf16.msra.mxu0 0
      %1093 = vmatprep.subr.bf16.mxu0 0
      %1094 = vmatpush1.bf16.msra.mxu0 0
      %1095 = vmatprep.mubr.bf16.mxu0 0
      %1096 = vmatmul.mubr.bf16.gmra.mrb[0].mxu0 %v961
      %v1097 = vpop.f32.mrb[0].mxu0
      %v1098 = vadd.f32 0.0, %v1097
      %v1099 = vpop.f32.mrb[0].mxu0
      %v1100 = vpop.f32.mrb[0].mxu0
      %v1101 = vadd.f32 0.0, %v1100
      %v1102 = vpop.f32.mrb[0].mxu0
      %1103 = vmatprep.mubr.bf16.mxu0 0
      %1104 = vmatmul.mubr.bf16.gmra.mrb[0].mxu0 %v962
      %v1105 = vpop.f32.mrb[0].mxu0
      %v1106 = vadd.f32 0.0, %v1105
      %v1107 = vpop.f32.mrb[0].mxu0
      %v1108 = vpop.f32.mrb[0].mxu0
      %v1109 = vadd.f32 0.0, %v1108
      %v1110 = vpop.f32.mrb[0].mxu0
      %1111 = vmatprep.mubr.bf16.mxu0 0
      %1112 = vmatmul.mubr.bf16.gmra.mrb[0].mxu0 %v963
      %v1113 = vpop.f32.mrb[0].mxu0
      %v1114 = vadd.f32 0.0, %v1113
      %v1115 = vpop.f32.mrb[0].mxu0
      %v1116 = vpop.f32.mrb[0].mxu0
      %v1117 = vadd.f32 0.0, %v1116
      %v1118 = vpop.f32.mrb[0].mxu0
      %1119 = vmatprep.mubr.bf16.mxu0 0
      %1120 = vmatmul.mubr.bf16.gmra.mrb[0].mxu0 %v964
      %v1121 = vpop.f32.mrb[0].mxu0
      %v1122 = vadd.f32 0.0, %v1121
      %v1123 = vpop.f32.mrb[0].mxu0
      %v1124 = vpop.f32.mrb[0].mxu0
      %v1125 = vadd.f32 0.0, %v1124
      %v1126 = vpop.f32.mrb[0].mxu0
      %1127 = vmatprep.mubr.bf16.mxu0 0
      %1128 = vmatmul.mubr.bf16.gmra.mrb[0].mxu0 %v965
      %v1129 = vpop.f32.mrb[0].mxu0
      %v1130 = vadd.f32 0.0, %v1129
      %v1131 = vpop.f32.mrb[0].mxu0
      %v1132 = vpop.f32.mrb[0].mxu0
      %v1133 = vadd.f32 0.0, %v1132
      %v1134 = vpop.f32.mrb[0].mxu0
      %1135 = vmatprep.mubr.bf16.mxu0 0
      %1136 = vmatmul.mubr.bf16.gmra.mrb[0].mxu0 %v966
      %v1137 = vpop.f32.mrb[0].mxu0
      %v1138 = vadd.f32 0.0, %v1137
      %v1139 = vpop.f32.mrb[0].mxu0
      %v1140 = vpop.f32.mrb[0].mxu0
      %v1141 = vadd.f32 0.0, %v1140
      %v1142 = vpop.f32.mrb[0].mxu0
      %1143 = vmatprep.mubr.bf16.mxu0 0
      %1144 = vmatmul.mubr.bf16.gmra.mrb[0].mxu0 %v967
      %v1145 = vpop.f32.mrb[0].mxu0
      %v1146 = vadd.f32 0.0, %v1145
      %v1147 = vpop.f32.mrb[0].mxu0
      %v1148 = vpop.f32.mrb[0].mxu0
      %v1149 = vadd.f32 0.0, %v1148
      %v1150 = vpop.f32.mrb[0].mxu0
      %1151 = vmatprep.mubr.bf16.mxu0 0
      %1152 = vmatmul.mubr.bf16.gmra.mrb[0].mxu0 %v968
      %v1153 = vpop.f32.mrb[0].mxu0
      %v1154 = vadd.f32 0.0, %v1153
      %v1155 = vpop.f32.mrb[0].mxu0
      %v1156 = vpop.f32.mrb[0].mxu0
      %v1157 = vadd.f32 0.0, %v1156
      %v1158 = vpop.f32.mrb[0].mxu0
      %1159 = vmatprep.mubr.bf16.mxu0 0
      %1160 = vmatmul.mubr.bf16.gmra.mrb[0].mxu0 %v969
      %v1161 = vpop.f32.mrb[0].mxu0
      %v1162 = vadd.f32 0.0, %v1161
      %v1163 = vpop.f32.mrb[0].mxu0
      %v1164 = vpop.f32.mrb[0].mxu0
      %v1165 = vadd.f32 0.0, %v1164
      %v1166 = vpop.f32.mrb[0].mxu0
      %1167 = vmatprep.mubr.bf16.mxu0 0
      %1168 = vmatmul.mubr.bf16.gmra.mrb[0].mxu0 %v970
      %v1169 = vpop.f32.mrb[0].mxu0
      %v1170 = vadd.f32 0.0, %v1169
      %v1171 = vpop.f32.mrb[0].mxu0
      %v1172 = vpop.f32.mrb[0].mxu0
      %v1173 = vadd.f32 0.0, %v1172
      %v1174 = vpop.f32.mrb[0].mxu0
      %1175 = vmatprep.mubr.bf16.mxu0 0
      %1176 = vmatmul.mubr.bf16.gmra.mrb[0].mxu0 %v971
      %v1177 = vpop.f32.mrb[0].mxu0
      %v1178 = vadd.f32 0.0, %v1177
      %v1179 = vpop.f32.mrb[0].mxu0
      %v1180 = vpop.f32.mrb[0].mxu0
      %v1181 = vadd.f32 0.0, %v1180
      %v1182 = vpop.f32.mrb[0].mxu0
      %1183 = vmatprep.mubr.bf16.mxu0 0
      %1184 = vmatmul.mubr.bf16.gmra.mrb[0].mxu0 %v972
      %v1185 = vpop.f32.mrb[0].mxu0
      %v1186 = vadd.f32 0.0, %v1185
      %v1187 = vpop.f32.mrb[0].mxu0
      %v1188 = vpop.f32.mrb[0].mxu0
      %v1189 = vadd.f32 0.0, %v1188
      %v1190 = vpop.f32.mrb[0].mxu0
      %1191 = vmatprep.mubr.bf16.mxu0 0
      %1192 = vmatmul.mubr.bf16.gmra.mrb[0].mxu0 %v973
      %v1193 = vpop.f32.mrb[0].mxu0
      %v1194 = vadd.f32 0.0, %v1193
      %v1195 = vpop.f32.mrb[0].mxu0
      %v1196 = vpop.f32.mrb[0].mxu0
      %v1197 = vadd.f32 0.0, %v1196
      %v1198 = vpop.f32.mrb[0].mxu0
      %1199 = vmatprep.mubr.bf16.mxu0 0
      %1200 = vmatmul.mubr.bf16.gmra.mrb[0].mxu0 %v974
      %v1201 = vpop.f32.mrb[0].mxu0
      %v1202 = vadd.f32 0.0, %v1201
      %v1203 = vpop.f32.mrb[0].mxu0
      %v1204 = vpop.f32.mrb[0].mxu0
      %v1205 = vadd.f32 0.0, %v1204
      %v1206 = vpop.f32.mrb[0].mxu0
      %1207 = vmatprep.mubr.bf16.mxu0 0
      %1208 = vmatmul.mubr.bf16.gmra.mrb[0].mxu0 %v975
      %v1209 = vpop.f32.mrb[0].mxu0
      %v1210 = vadd.f32 0.0, %v1209
      %v1211 = vpop.f32.mrb[0].mxu0
      %v1212 = vpop.f32.mrb[0].mxu0
      %v1213 = vadd.f32 0.0, %v1212
      %v1214 = vpop.f32.mrb[0].mxu0
      %1215 = vmatprep.mubr.bf16.mxu0 0
      %1216 = vmatmul.mubr.bf16.gmra.mrb[0].mxu0 %v976
      %v1217 = vpop.f32.mrb[0].mxu0
      %v1218 = vadd.f32 0.0, %v1217
      %v1219 = vpop.f32.mrb[0].mxu0
      %v1220 = vpop.f32.mrb[0].mxu0
      %v1221 = vadd.f32 0.0, %v1220
      %v1222 = vpop.f32.mrb[0].mxu0
      %1223 = vdwg.mxu0
      %vm1224 = vsmask.f32 256
      %v1226 = vshrl.u32 %v960, 16
      %v1228 = vrot.slane %v1226, 7
      %v1230 = vshrl.u32 %v961, 16
      %v1232 = vrot.slane %v1230, 7
      %v1233 = vshll.u32 %v961, 16
      %v1235 = vor.u32 %v1232, %v1233
      %v1236 = vsel %vm1224, %v1228, %v1235
      %v1238 = vshrl.u32 %v962, 16
      %v1240 = vrot.slane %v1238, 7
      %v1241 = vshll.u32 %v962, 16
      %v1243 = vor.u32 %v1240, %v1241
      %v1244 = vsel %vm1224, %v1232, %v1243
      %v1246 = vshrl.u32 %v963, 16
      %v1248 = vrot.slane %v1246, 7
      %v1249 = vshll.u32 %v963, 16
      %v1251 = vor.u32 %v1248, %v1249
      %v1252 = vsel %vm1224, %v1240, %v1251
      %v1254 = vshrl.u32 %v964, 16
      %v1256 = vrot.slane %v1254, 7
      %v1257 = vshll.u32 %v964, 16
      %v1259 = vor.u32 %v1256, %v1257
      %v1260 = vsel %vm1224, %v1248, %v1259
      %v1262 = vshrl.u32 %v965, 16
      %v1264 = vrot.slane %v1262, 7
      %v1265 = vshll.u32 %v965, 16
      %v1267 = vor.u32 %v1264, %v1265
      %v1268 = vsel %vm1224, %v1256, %v1267
      %v1270 = vshrl.u32 %v966, 16
      %v1272 = vrot.slane %v1270, 7
      %v1273 = vshll.u32 %v966, 16
      %v1275 = vor.u32 %v1272, %v1273
      %v1276 = vsel %vm1224, %v1264, %v1275
      %v1278 = vshrl.u32 %v967, 16
      %v1280 = vrot.slane %v1278, 7
      %v1281 = vshll.u32 %v967, 16
      %v1283 = vor.u32 %v1280, %v1281
      %v1284 = vsel %vm1224, %v1272, %v1283
      %v1286 = vshrl.u32 %v968, 16
      %v1288 = vrot.slane %v1286, 7
      %v1289 = vshll.u32 %v968, 16
      %v1291 = vor.u32 %v1288, %v1289
      %v1292 = vsel %vm1224, %v1280, %v1291
      %v1294 = vshrl.u32 %v969, 16
      %v1296 = vrot.slane %v1294, 7
      %v1297 = vshll.u32 %v969, 16
      %v1299 = vor.u32 %v1296, %v1297
      %v1300 = vsel %vm1224, %v1288, %v1299
      %v1302 = vshrl.u32 %v970, 16
      %v1304 = vrot.slane %v1302, 7
      %v1305 = vshll.u32 %v970, 16
      %v1307 = vor.u32 %v1304, %v1305
      %v1308 = vsel %vm1224, %v1296, %v1307
      %v1310 = vshrl.u32 %v971, 16
      %v1312 = vrot.slane %v1310, 7
      %v1313 = vshll.u32 %v971, 16
      %v1315 = vor.u32 %v1312, %v1313
      %v1316 = vsel %vm1224, %v1304, %v1315
      %v1318 = vshrl.u32 %v972, 16
      %v1320 = vrot.slane %v1318, 7
      %v1321 = vshll.u32 %v972, 16
      %v1323 = vor.u32 %v1320, %v1321
      %v1324 = vsel %vm1224, %v1312, %v1323
      %v1326 = vshrl.u32 %v973, 16
      %v1328 = vrot.slane %v1326, 7
      %v1329 = vshll.u32 %v973, 16
      %v1331 = vor.u32 %v1328, %v1329
      %v1332 = vsel %vm1224, %v1320, %v1331
      %v1334 = vshrl.u32 %v974, 16
      %v1336 = vrot.slane %v1334, 7
      %v1337 = vshll.u32 %v974, 16
      %v1339 = vor.u32 %v1336, %v1337
      %v1340 = vsel %vm1224, %v1328, %v1339
      %v1342 = vshrl.u32 %v975, 16
      %v1344 = vrot.slane %v1342, 7
      %v1345 = vshll.u32 %v975, 16
      %v1347 = vor.u32 %v1344, %v1345
      %v1348 = vsel %vm1224, %v1336, %v1347
      %v1350 = vshrl.u32 %v976, 16
      %v1352 = vrot.slane %v1350, 7
      %v1353 = vshll.u32 %v976, 16
      %v1355 = vor.u32 %v1352, %v1353
      %v1356 = vsel %vm1224, %v1344, %v1355
      %v1389 = vunpack.c.l.b16 %v982
      %v1390 = vunpack.c.l.b16 %v983
      %v1391 = vunpack.c.l.b16 %v984
      %v1392 = vunpack.c.l.b16 %v985
      %v1393 = vunpack.c.l.b16 %v986
      %v1394 = vunpack.c.l.b16 %v987
      %v1395 = vunpack.c.l.b16 %v988
      %v1396 = vunpack.c.l.b16 %v989
      %v1397 = vunpack.c.l.b16 %v990
      %v1398 = vunpack.c.l.b16 %v991
      %v1399 = vunpack.c.l.b16 %v992
      %v1400 = vunpack.c.l.b16 %v993
      %v1401 = vunpack.c.l.b16 %v994
      %v1402 = vunpack.c.l.b16 %v995
      %v1403 = vunpack.c.l.b16 %v996
      %v1404 = vunpack.c.l.b16 %v997
      %v1405 = vpack.c.b16 %v1390, %v1389
      %v1406 = vpack.c.b16 %v1392, %v1391
      %v1407 = vpack.c.b16 %v1394, %v1393
      %v1408 = vpack.c.b16 %v1396, %v1395
      %v1409 = vpack.c.b16 %v1398, %v1397
      %v1410 = vpack.c.b16 %v1400, %v1399
      %v1411 = vpack.c.b16 %v1402, %v1401
      %v1412 = vpack.c.b16 %v1404, %v1403
      %1421 = vmatprep.subr.bf16.mxu0 0
      %1422 = vmatpush1.bf16.msra.mxu0 %v1405
      %1423 = vmatprep.subr.bf16.mxu0 0
      %1424 = vmatpush1.bf16.msra.mxu0 %v1406
      %1425 = vmatprep.subr.bf16.mxu0 0
      %1426 = vmatpush1.bf16.msra.mxu0 %v1407
      %1427 = vmatprep.subr.bf16.mxu0 0
      %1428 = vmatpush1.bf16.msra.mxu0 %v1408
      %1429 = vmatprep.subr.bf16.mxu0 0
      %1430 = vmatpush1.bf16.msra.mxu0 %v1409
      %1431 = vmatprep.subr.bf16.mxu0 0
      %1432 = vmatpush1.bf16.msra.mxu0 %v1410
      %1433 = vmatprep.subr.bf16.mxu0 0
      %1434 = vmatpush1.bf16.msra.mxu0 %v1411
      %1435 = vmatprep.subr.bf16.mxu0 0
      %1436 = vmatpush1.bf16.msra.mxu0 %v1412
      %1437 = vmatprep.subr.bf16.mxu0 0
      %1438 = vmatpush1.bf16.msra.mxu0 0
      %1439 = vmatprep.subr.bf16.mxu0 0
      %1440 = vmatpush1.bf16.msra.mxu0 0
      %1441 = vmatprep.subr.bf16.mxu0 0
      %1442 = vmatpush1.bf16.msra.mxu0 0
      %1443 = vmatprep.subr.bf16.mxu0 0
      %1444 = vmatpush1.bf16.msra.mxu0 0
      %1445 = vmatprep.subr.bf16.mxu0 0
      %1446 = vmatpush1.bf16.msra.mxu0 0
      %1447 = vmatprep.subr.bf16.mxu0 0
      %1448 = vmatpush1.bf16.msra.mxu0 0
      %1449 = vmatprep.subr.bf16.mxu0 0
      %1450 = vmatpush1.bf16.msra.mxu0 0
      %1451 = vmatprep.subr.bf16.mxu0 0
      %1452 = vmatpush1.bf16.msra.mxu0 0
      %1453 = vmatprep.mubr.bf16.mxu0 0
      %1454 = vmatmul.mubr.bf16.gmra.mrb[0].mxu0 %v1236
      %v1455 = vpop.f32.mrb[0].mxu0
      %v1456 = vadd.f32 %v1098, %v1455
      %v1457 = vpop.f32.mrb[0].mxu0
      %v1458 = vpop.f32.mrb[0].mxu0
      %v1459 = vadd.f32 %v1101, %v1458
      %v1460 = vpop.f32.mrb[0].mxu0
      %1461 = vmatprep.mubr.bf16.mxu0 0
      %1462 = vmatmul.mubr.bf16.gmra.mrb[0].mxu0 %v1244
      %v1463 = vpop.f32.mrb[0].mxu0
      %v1464 = vadd.f32 %v1106, %v1463
      %v1465 = vpop.f32.mrb[0].mxu0
      %v1466 = vpop.f32.mrb[0].mxu0
      %v1467 = vadd.f32 %v1109, %v1466
      %v1468 = vpop.f32.mrb[0].mxu0
      %1469 = vmatprep.mubr.bf16.mxu0 0
      %1470 = vmatmul.mubr.bf16.gmra.mrb[0].mxu0 %v1252
      %v1471 = vpop.f32.mrb[0].mxu0
      %v1472 = vadd.f32 %v1114, %v1471
      %v1473 = vpop.f32.mrb[0].mxu0
      %v1474 = vpop.f32.mrb[0].mxu0
      %v1475 = vadd.f32 %v1117, %v1474
      %v1476 = vpop.f32.mrb[0].mxu0
      %1477 = vmatprep.mubr.bf16.mxu0 0
      %1478 = vmatmul.mubr.bf16.gmra.mrb[0].mxu0 %v1260
      %v1479 = vpop.f32.mrb[0].mxu0
      %v1480 = vadd.f32 %v1122, %v1479
      %v1481 = vpop.f32.mrb[0].mxu0
      %v1482 = vpop.f32.mrb[0].mxu0
      %v1483 = vadd.f32 %v1125, %v1482
      %v1484 = vpop.f32.mrb[0].mxu0
      %1485 = vmatprep.mubr.bf16.mxu0 0
      %1486 = vmatmul.mubr.bf16.gmra.mrb[0].mxu0 %v1268
      %v1487 = vpop.f32.mrb[0].mxu0
      %v1488 = vadd.f32 %v1130, %v1487
      %v1489 = vpop.f32.mrb[0].mxu0
      %v1490 = vpop.f32.mrb[0].mxu0
      %v1491 = vadd.f32 %v1133, %v1490
      %v1492 = vpop.f32.mrb[0].mxu0
      %1493 = vmatprep.mubr.bf16.mxu0 0
      %1494 = vmatmul.mubr.bf16.gmra.mrb[0].mxu0 %v1276
      %v1495 = vpop.f32.mrb[0].mxu0
      %v1496 = vadd.f32 %v1138, %v1495
      %v1497 = vpop.f32.mrb[0].mxu0
      %v1498 = vpop.f32.mrb[0].mxu0
      %v1499 = vadd.f32 %v1141, %v1498
      %v1500 = vpop.f32.mrb[0].mxu0
      %1501 = vmatprep.mubr.bf16.mxu0 0
      %1502 = vmatmul.mubr.bf16.gmra.mrb[0].mxu0 %v1284
      %v1503 = vpop.f32.mrb[0].mxu0
      %v1504 = vadd.f32 %v1146, %v1503
      %v1505 = vpop.f32.mrb[0].mxu0
      %v1506 = vpop.f32.mrb[0].mxu0
      %v1507 = vadd.f32 %v1149, %v1506
      %v1508 = vpop.f32.mrb[0].mxu0
      %1509 = vmatprep.mubr.bf16.mxu0 0
      %1510 = vmatmul.mubr.bf16.gmra.mrb[0].mxu0 %v1292
      %v1511 = vpop.f32.mrb[0].mxu0
      %v1512 = vadd.f32 %v1154, %v1511
      %v1513 = vpop.f32.mrb[0].mxu0
      %v1514 = vpop.f32.mrb[0].mxu0
      %v1515 = vadd.f32 %v1157, %v1514
      %v1516 = vpop.f32.mrb[0].mxu0
      %1517 = vmatprep.mubr.bf16.mxu0 0
      %1518 = vmatmul.mubr.bf16.gmra.mrb[0].mxu0 %v1300
      %v1519 = vpop.f32.mrb[0].mxu0
      %v1520 = vadd.f32 %v1162, %v1519
      %v1521 = vpop.f32.mrb[0].mxu0
      %v1522 = vpop.f32.mrb[0].mxu0
      %v1523 = vadd.f32 %v1165, %v1522
      %v1524 = vpop.f32.mrb[0].mxu0
      %1525 = vmatprep.mubr.bf16.mxu0 0
      %1526 = vmatmul.mubr.bf16.gmra.mrb[0].mxu0 %v1308
      %v1527 = vpop.f32.mrb[0].mxu0
      %v1528 = vadd.f32 %v1170, %v1527
      %v1529 = vpop.f32.mrb[0].mxu0
      %v1530 = vpop.f32.mrb[0].mxu0
      %v1531 = vadd.f32 %v1173, %v1530
      %v1532 = vpop.f32.mrb[0].mxu0
      %1533 = vmatprep.mubr.bf16.mxu0 0
      %1534 = vmatmul.mubr.bf16.gmra.mrb[0].mxu0 %v1316
      %v1535 = vpop.f32.mrb[0].mxu0
      %v1536 = vadd.f32 %v1178, %v1535
      %v1537 = vpop.f32.mrb[0].mxu0
      %v1538 = vpop.f32.mrb[0].mxu0
      %v1539 = vadd.f32 %v1181, %v1538
      %v1540 = vpop.f32.mrb[0].mxu0
      %1541 = vmatprep.mubr.bf16.mxu0 0
      %1542 = vmatmul.mubr.bf16.gmra.mrb[0].mxu0 %v1324
      %v1543 = vpop.f32.mrb[0].mxu0
      %v1544 = vadd.f32 %v1186, %v1543
      %v1545 = vpop.f32.mrb[0].mxu0
      %v1546 = vpop.f32.mrb[0].mxu0
      %v1547 = vadd.f32 %v1189, %v1546
      %v1548 = vpop.f32.mrb[0].mxu0
      %1549 = vmatprep.mubr.bf16.mxu0 0
      %1550 = vmatmul.mubr.bf16.gmra.mrb[0].mxu0 %v1332
      %v1551 = vpop.f32.mrb[0].mxu0
      %v1552 = vadd.f32 %v1194, %v1551
      %v1553 = vpop.f32.mrb[0].mxu0
      %v1554 = vpop.f32.mrb[0].mxu0
      %v1555 = vadd.f32 %v1197, %v1554
      %v1556 = vpop.f32.mrb[0].mxu0
      %1557 = vmatprep.mubr.bf16.mxu0 0
      %1558 = vmatmul.mubr.bf16.gmra.mrb[0].mxu0 %v1340
      %v1559 = vpop.f32.mrb[0].mxu0
      %v1560 = vadd.f32 %v1202, %v1559
      %v1561 = vpop.f32.mrb[0].mxu0
      %v1562 = vpop.f32.mrb[0].mxu0
      %v1563 = vadd.f32 %v1205, %v1562
      %v1564 = vpop.f32.mrb[0].mxu0
      %1565 = vmatprep.mubr.bf16.mxu0 0
      %1566 = vmatmul.mubr.bf16.gmra.mrb[0].mxu0 %v1348
      %v1567 = vpop.f32.mrb[0].mxu0
      %v1568 = vadd.f32 %v1210, %v1567
      %v1569 = vpop.f32.mrb[0].mxu0
      %v1570 = vpop.f32.mrb[0].mxu0
      %v1571 = vadd.f32 %v1213, %v1570
      %v1572 = vpop.f32.mrb[0].mxu0
      %1573 = vmatprep.mubr.bf16.mxu0 0
      %1574 = vmatmul.mubr.bf16.gmra.mrb[0].mxu0 %v1356
      %v1575 = vpop.f32.mrb[0].mxu0
      %v1576 = vadd.f32 %v1218, %v1575
      %v1577 = vpop.f32.mrb[0].mxu0
      %v1578 = vpop.f32.mrb[0].mxu0
      %v1579 = vadd.f32 %v1221, %v1578
      %v1580 = vpop.f32.mrb[0].mxu0
      %1581 = vdwg.mxu0
      %s1582 = scalar_lea.vmem %s3, 128
      %v1583 = vld [vmem:[%s1582] sm:$0xf]
      %v1584 = vld [vmem:[%s1582 + $0x4] sm:$0xf]
      %v1585 = vld [vmem:[%s1582 + $0x8] sm:$0xf]
      %v1586 = vld [vmem:[%s1582 + $0xc] sm:$0xf]
      %v1587 = vld [vmem:[%s1582 + $0x10] sm:$0xf]
      %v1588 = vld [vmem:[%s1582 + $0x14] sm:$0xf]
      %v1589 = vld [vmem:[%s1582 + $0x18] sm:$0xf]
      %v1590 = vld [vmem:[%s1582 + $0x1c] sm:$0xf]
      %v1591 = vld [vmem:[%s1582 + $0x20] sm:$0xf]
      %v1592 = vld [vmem:[%s1582 + $0x24] sm:$0xf]
      %v1593 = vld [vmem:[%s1582 + $0x28] sm:$0xf]
      %v1594 = vld [vmem:[%s1582 + $0x2c] sm:$0xf]
      %v1595 = vld [vmem:[%s1582 + $0x30] sm:$0xf]
      %v1596 = vld [vmem:[%s1582 + $0x34] sm:$0xf]
      %v1597 = vld [vmem:[%s1582 + $0x38] sm:$0xf]
      %v1598 = vld [vmem:[%s1582 + $0x3c] sm:$0xf]
      %vm1599 = vsmask.f32 7424
      %v1600 = vrot.slane %v1233, 1
      %v1601 = vor.u32 %v1230, %v1600
      %v1602 = vrot.slane %v1241, 1
      %v1603 = vsel %vm1599, %v1601, %v1602
      %v1604 = vor.u32 %v1238, %v1602
      %v1605 = vrot.slane %v1249, 1
      %v1606 = vsel %vm1599, %v1604, %v1605
      %v1607 = vor.u32 %v1246, %v1605
      %v1608 = vrot.slane %v1257, 1
      %v1609 = vsel %vm1599, %v1607, %v1608
      %v1610 = vor.u32 %v1254, %v1608
      %v1611 = vrot.slane %v1265, 1
      %v1612 = vsel %vm1599, %v1610, %v1611
      %v1613 = vor.u32 %v1262, %v1611
      %v1614 = vrot.slane %v1273, 1
      %v1615 = vsel %vm1599, %v1613, %v1614
      %v1616 = vor.u32 %v1270, %v1614
      %v1617 = vrot.slane %v1281, 1
      %v1618 = vsel %vm1599, %v1616, %v1617
      %v1619 = vor.u32 %v1278, %v1617
      %v1620 = vrot.slane %v1289, 1
      %v1621 = vsel %vm1599, %v1619, %v1620
      %v1622 = vor.u32 %v1286, %v1620
      %v1623 = vrot.slane %v1297, 1
      %v1624 = vsel %vm1599, %v1622, %v1623
      %v1625 = vor.u32 %v1294, %v1623
      %v1626 = vrot.slane %v1305, 1
      %v1627 = vsel %vm1599, %v1625, %v1626
      %v1628 = vor.u32 %v1302, %v1626
      %v1629 = vrot.slane %v1313, 1
      %v1630 = vsel %vm1599, %v1628, %v1629
      %v1631 = vor.u32 %v1310, %v1629
      %v1632 = vrot.slane %v1321, 1
      %v1633 = vsel %vm1599, %v1631, %v1632
      %v1634 = vor.u32 %v1318, %v1632
      %v1635 = vrot.slane %v1329, 1
      %v1636 = vsel %vm1599, %v1634, %v1635
      %v1637 = vor.u32 %v1326, %v1635
      %v1638 = vrot.slane %v1337, 1
      %v1639 = vsel %vm1599, %v1637, %v1638
      %v1640 = vor.u32 %v1334, %v1638
      %v1641 = vrot.slane %v1345, 1
      %v1642 = vsel %vm1599, %v1640, %v1641
      %v1643 = vor.u32 %v1342, %v1641
      %v1644 = vrot.slane %v1353, 1
      %v1645 = vsel %vm1599, %v1643, %v1644
      %v1646 = vor.u32 %v1350, %v1644
      %v1648 = vshll.u32 %v977, 16
      %v1650 = vrot.slane %v1648, 1
      %v1651 = vsel %vm1599, %v1646, %v1650
      %v1684 = vunpack.c.l.b16 %v1583
      %v1685 = vunpack.c.l.b16 %v1584
      %v1686 = vunpack.c.l.b16 %v1585
      %v1687 = vunpack.c.l.b16 %v1586
      %v1688 = vunpack.c.l.b16 %v1587
      %v1689 = vunpack.c.l.b16 %v1588
      %v1690 = vunpack.c.l.b16 %v1589
      %v1691 = vunpack.c.l.b16 %v1590
      %v1692 = vunpack.c.l.b16 %v1591
      %v1693 = vunpack.c.l.b16 %v1592
      %v1694 = vunpack.c.l.b16 %v1593
      %v1695 = vunpack.c.l.b16 %v1594
      %v1696 = vunpack.c.l.b16 %v1595
      %v1697 = vunpack.c.l.b16 %v1596
      %v1698 = vunpack.c.l.b16 %v1597
      %v1699 = vunpack.c.l.b16 %v1598
      %v1700 = vpack.c.b16 %v1685, %v1684
      %v1701 = vpack.c.b16 %v1687, %v1686
      %v1702 = vpack.c.b16 %v1689, %v1688
      %v1703 = vpack.c.b16 %v1691, %v1690
      %v1704 = vpack.c.b16 %v1693, %v1692
      %v1705 = vpack.c.b16 %v1695, %v1694
      %v1706 = vpack.c.b16 %v1697, %v1696
      %v1707 = vpack.c.b16 %v1699, %v1698
      %1716 = vmatprep.subr.bf16.mxu0 0
      %1717 = vmatpush1.bf16.msra.mxu0 %v1700
      %1718 = vmatprep.subr.bf16.mxu0 0
      %1719 = vmatpush1.bf16.msra.mxu0 %v1701
      %1720 = vmatprep.subr.bf16.mxu0 0
      %1721 = vmatpush1.bf16.msra.mxu0 %v1702
      %1722 = vmatprep.subr.bf16.mxu0 0
      %1723 = vmatpush1.bf16.msra.mxu0 %v1703
      %1724 = vmatprep.subr.bf16.mxu0 0
      %1725 = vmatpush1.bf16.msra.mxu0 %v1704
      %1726 = vmatprep.subr.bf16.mxu0 0
      %1727 = vmatpush1.bf16.msra.mxu0 %v1705
      %1728 = vmatprep.subr.bf16.mxu0 0
      %1729 = vmatpush1.bf16.msra.mxu0 %v1706
      %1730 = vmatprep.subr.bf16.mxu0 0
      %1731 = vmatpush1.bf16.msra.mxu0 %v1707
      %1732 = vmatprep.subr.bf16.mxu0 0
      %1733 = vmatpush1.bf16.msra.mxu0 0
      %1734 = vmatprep.subr.bf16.mxu0 0
      %1735 = vmatpush1.bf16.msra.mxu0 0
      %1736 = vmatprep.subr.bf16.mxu0 0
      %1737 = vmatpush1.bf16.msra.mxu0 0
      %1738 = vmatprep.subr.bf16.mxu0 0
      %1739 = vmatpush1.bf16.msra.mxu0 0
      %1740 = vmatprep.subr.bf16.mxu0 0
      %1741 = vmatpush1.bf16.msra.mxu0 0
      %1742 = vmatprep.subr.bf16.mxu0 0
      %1743 = vmatpush1.bf16.msra.mxu0 0
      %1744 = vmatprep.subr.bf16.mxu0 0
      %1745 = vmatpush1.bf16.msra.mxu0 0
      %1746 = vmatprep.subr.bf16.mxu0 0
      %1747 = vmatpush1.bf16.msra.mxu0 0
      %1748 = vmatprep.mubr.bf16.mxu0 0
      %1749 = vmatmul.mubr.bf16.gmra.mrb[0].mxu0 %v1603
      %v1750 = vpop.f32.mrb[0].mxu0
      %v1751 = vadd.f32 0.0, %v1750
      %v1752 = vpop.f32.mrb[0].mxu0
      %v1753 = vpop.f32.mrb[0].mxu0
      %v1754 = vadd.f32 0.0, %v1753
      %v1755 = vpop.f32.mrb[0].mxu0
      %1756 = vmatprep.mubr.bf16.mxu0 0
      %1757 = vmatmul.mubr.bf16.gmra.mrb[0].mxu0 %v1606
      %v1758 = vpop.f32.mrb[0].mxu0
      %v1759 = vadd.f32 0.0, %v1758
      %v1760 = vpop.f32.mrb[0].mxu0
      %v1761 = vpop.f32.mrb[0].mxu0
      %v1762 = vadd.f32 0.0, %v1761
      %v1763 = vpop.f32.mrb[0].mxu0
      %1764 = vmatprep.mubr.bf16.mxu0 0
      %1765 = vmatmul.mubr.bf16.gmra.mrb[0].mxu0 %v1609
      %v1766 = vpop.f32.mrb[0].mxu0
      %v1767 = vadd.f32 0.0, %v1766
      %v1768 = vpop.f32.mrb[0].mxu0
      %v1769 = vpop.f32.mrb[0].mxu0
      %v1770 = vadd.f32 0.0, %v1769
      %v1771 = vpop.f32.mrb[0].mxu0
      %1772 = vmatprep.mubr.bf16.mxu0 0
      %1773 = vmatmul.mubr.bf16.gmra.mrb[0].mxu0 %v1612
      %v1774 = vpop.f32.mrb[0].mxu0
      %v1775 = vadd.f32 0.0, %v1774
      %v1776 = vpop.f32.mrb[0].mxu0
      %v1777 = vpop.f32.mrb[0].mxu0
      %v1778 = vadd.f32 0.0, %v1777
      %v1779 = vpop.f32.mrb[0].mxu0
      %1780 = vmatprep.mubr.bf16.mxu0 0
      %1781 = vmatmul.mubr.bf16.gmra.mrb[0].mxu0 %v1615
      %v1782 = vpop.f32.mrb[0].mxu0
      %v1783 = vadd.f32 0.0, %v1782
      %v1784 = vpop.f32.mrb[0].mxu0
      %v1785 = vpop.f32.mrb[0].mxu0
      %v1786 = vadd.f32 0.0, %v1785
      %v1787 = vpop.f32.mrb[0].mxu0
      %1788 = vmatprep.mubr.bf16.mxu0 0
      %1789 = vmatmul.mubr.bf16.gmra.mrb[0].mxu0 %v1618
      %v1790 = vpop.f32.mrb[0].mxu0
      %v1791 = vadd.f32 0.0, %v1790
      %v1792 = vpop.f32.mrb[0].mxu0
      %v1793 = vpop.f32.mrb[0].mxu0
      %v1794 = vadd.f32 0.0, %v1793
      %v1795 = vpop.f32.mrb[0].mxu0
      %1796 = vmatprep.mubr.bf16.mxu0 0
      %1797 = vmatmul.mubr.bf16.gmra.mrb[0].mxu0 %v1621
      %v1798 = vpop.f32.mrb[0].mxu0
      %v1799 = vadd.f32 0.0, %v1798
      %v1800 = vpop.f32.mrb[0].mxu0
      %v1801 = vpop.f32.mrb[0].mxu0
      %v1802 = vadd.f32 0.0, %v1801
      %v1803 = vpop.f32.mrb[0].mxu0
      %1804 = vmatprep.mubr.bf16.mxu0 0
      %1805 = vmatmul.mubr.bf16.gmra.mrb[0].mxu0 %v1624
      %v1806 = vpop.f32.mrb[0].mxu0
      %v1807 = vadd.f32 0.0, %v1806
      %v1808 = vpop.f32.mrb[0].mxu0
      %v1809 = vpop.f32.mrb[0].mxu0
      %v1810 = vadd.f32 0.0, %v1809
      %v1811 = vpop.f32.mrb[0].mxu0
      %1812 = vmatprep.mubr.bf16.mxu0 0
      %1813 = vmatmul.mubr.bf16.gmra.mrb[0].mxu0 %v1627
      %v1814 = vpop.f32.mrb[0].mxu0
      %v1815 = vadd.f32 0.0, %v1814
      %v1816 = vpop.f32.mrb[0].mxu0
      %v1817 = vpop.f32.mrb[0].mxu0
      %v1818 = vadd.f32 0.0, %v1817
      %v1819 = vpop.f32.mrb[0].mxu0
      %1820 = vmatprep.mubr.bf16.mxu0 0
      %1821 = vmatmul.mubr.bf16.gmra.mrb[0].mxu0 %v1630
      %v1822 = vpop.f32.mrb[0].mxu0
      %v1823 = vadd.f32 0.0, %v1822
      %v1824 = vpop.f32.mrb[0].mxu0
      %v1825 = vpop.f32.mrb[0].mxu0
      %v1826 = vadd.f32 0.0, %v1825
      %v1827 = vpop.f32.mrb[0].mxu0
      %1828 = vmatprep.mubr.bf16.mxu0 0
      %1829 = vmatmul.mubr.bf16.gmra.mrb[0].mxu0 %v1633
      %v1830 = vpop.f32.mrb[0].mxu0
      %v1831 = vadd.f32 0.0, %v1830
      %v1832 = vpop.f32.mrb[0].mxu0
      %v1833 = vpop.f32.mrb[0].mxu0
      %v1834 = vadd.f32 0.0, %v1833
      %v1835 = vpop.f32.mrb[0].mxu0
      %1836 = vmatprep.mubr.bf16.mxu0 0
      %1837 = vmatmul.mubr.bf16.gmra.mrb[0].mxu0 %v1636
      %v1838 = vpop.f32.mrb[0].mxu0
      %v1839 = vadd.f32 0.0, %v1838
      %v1840 = vpop.f32.mrb[0].mxu0
      %v1841 = vpop.f32.mrb[0].mxu0
      %v1842 = vadd.f32 0.0, %v1841
      %v1843 = vpop.f32.mrb[0].mxu0
      %1844 = vmatprep.mubr.bf16.mxu0 0
      %1845 = vmatmul.mubr.bf16.gmra.mrb[0].mxu0 %v1639
      %v1846 = vpop.f32.mrb[0].mxu0
      %v1847 = vadd.f32 0.0, %v1846
      %v1848 = vpop.f32.mrb[0].mxu0
      %v1849 = vpop.f32.mrb[0].mxu0
      %v1850 = vadd.f32 0.0, %v1849
      %v1851 = vpop.f32.mrb[0].mxu0
      %1852 = vmatprep.mubr.bf16.mxu0 0
      %1853 = vmatmul.mubr.bf16.gmra.mrb[0].mxu0 %v1642
      %v1854 = vpop.f32.mrb[0].mxu0
      %v1855 = vadd.f32 0.0, %v1854
      %v1856 = vpop.f32.mrb[0].mxu0
      %v1857 = vpop.f32.mrb[0].mxu0
      %v1858 = vadd.f32 0.0, %v1857
      %v1859 = vpop.f32.mrb[0].mxu0
      %1860 = vmatprep.mubr.bf16.mxu0 0
      %1861 = vmatmul.mubr.bf16.gmra.mrb[0].mxu0 %v1645
      %v1862 = vpop.f32.mrb[0].mxu0
      %v1863 = vadd.f32 0.0, %v1862
      %v1864 = vpop.f32.mrb[0].mxu0
      %v1865 = vpop.f32.mrb[0].mxu0
      %v1866 = vadd.f32 0.0, %v1865
      %v1867 = vpop.f32.mrb[0].mxu0
      %1868 = vmatprep.mubr.bf16.mxu0 0
      %1869 = vmatmul.mubr.bf16.gmra.mrb[0].mxu0 %v1651
      %v1870 = vpop.f32.mrb[0].mxu0
      %v1871 = vadd.f32 0.0, %v1870
      %v1872 = vpop.f32.mrb[0].mxu0
      %v1873 = vpop.f32.mrb[0].mxu0
      %v1874 = vadd.f32 0.0, %v1873
      %v1875 = vpop.f32.mrb[0].mxu0
      %1876 = vdwg.mxu0
      %v1877 = vadd.f32 %v1456, %v1751
      %v1878 = vadd.f32 %v1459, %v1754
      %v1879 = vadd.f32 %v1464, %v1759
      %v1880 = vadd.f32 %v1467, %v1762
      %v1881 = vadd.f32 %v1472, %v1767
      %v1882 = vadd.f32 %v1475, %v1770
      %v1883 = vadd.f32 %v1480, %v1775
      %v1884 = vadd.f32 %v1483, %v1778
      %v1885 = vadd.f32 %v1488, %v1783
      %v1886 = vadd.f32 %v1491, %v1786
      %v1887 = vadd.f32 %v1496, %v1791
      %v1888 = vadd.f32 %v1499, %v1794
      %v1889 = vadd.f32 %v1504, %v1799
      %v1890 = vadd.f32 %v1507, %v1802
      %v1891 = vadd.f32 %v1512, %v1807
      %v1892 = vadd.f32 %v1515, %v1810
      %v1893 = vadd.f32 %v1520, %v1815
      %v1894 = vadd.f32 %v1523, %v1818
      %v1895 = vadd.f32 %v1528, %v1823
      %v1896 = vadd.f32 %v1531, %v1826
      %v1897 = vadd.f32 %v1536, %v1831
      %v1898 = vadd.f32 %v1539, %v1834
      %v1899 = vadd.f32 %v1544, %v1839
      %v1900 = vadd.f32 %v1547, %v1842
      %v1901 = vadd.f32 %v1552, %v1847
      %v1902 = vadd.f32 %v1555, %v1850
      %v1903 = vadd.f32 %v1560, %v1855
      %v1904 = vadd.f32 %v1563, %v1858
      %v1905 = vadd.f32 %v1568, %v1863
      %v1906 = vadd.f32 %v1571, %v1866
      %v1907 = vadd.f32 %v1576, %v1871
      %v1908 = vadd.f32 %v1579, %v1874
      %s1909 = scalar_lea.vmem %s3, 192
      %v1910 = vld [vmem:[%s1909] sm:$0xf]
      %v1911 = vld [vmem:[%s1909 + $0x4] sm:$0xf]
      %v1912 = vld [vmem:[%s1909 + $0x8] sm:$0xf]
      %v1913 = vld [vmem:[%s1909 + $0xc] sm:$0xf]
      %v1914 = vld [vmem:[%s1909 + $0x10] sm:$0xf]
      %v1915 = vld [vmem:[%s1909 + $0x14] sm:$0xf]
      %v1916 = vld [vmem:[%s1909 + $0x18] sm:$0xf]
      %v1917 = vld [vmem:[%s1909 + $0x1c] sm:$0xf]
      %v1918 = vld [vmem:[%s1909 + $0x20] sm:$0xf]
      %v1919 = vld [vmem:[%s1909 + $0x24] sm:$0xf]
      %v1920 = vld [vmem:[%s1909 + $0x28] sm:$0xf]
      %v1921 = vld [vmem:[%s1909 + $0x2c] sm:$0xf]
      %v1922 = vld [vmem:[%s1909 + $0x30] sm:$0xf]
      %v1923 = vld [vmem:[%s1909 + $0x34] sm:$0xf]
      %v1924 = vld [vmem:[%s1909 + $0x38] sm:$0xf]
      %v1925 = vld [vmem:[%s1909 + $0x3c] sm:$0xf]
      %v1926 = vshrl.u32 %v977, 16
      %v1928 = vrot.slane %v1926, 7
      %v1929 = vor.u32 %v1928, %v1648
      %v1930 = vsel %vm1224, %v1352, %v1929
      %v1932 = vshrl.u32 %v978, 16
      %v1934 = vrot.slane %v1932, 7
      %v1935 = vshll.u32 %v978, 16
      %v1937 = vor.u32 %v1934, %v1935
      %v1938 = vsel %vm1224, %v1928, %v1937
      %v1957 = vunpack.c.l.b16 %v1910
      %v1958 = vunpack.c.l.b16 %v1911
      %v1959 = vunpack.c.l.b16 %v1912
      %v1960 = vunpack.c.l.b16 %v1913
      %v1961 = vunpack.c.l.b16 %v1914
      %v1962 = vunpack.c.l.b16 %v1915
      %v1963 = vunpack.c.l.b16 %v1916
      %v1964 = vunpack.c.l.b16 %v1917
      %v1965 = vunpack.c.l.b16 %v1918
      %v1966 = vunpack.c.l.b16 %v1919
      %v1967 = vunpack.c.l.b16 %v1920
      %v1968 = vunpack.c.l.b16 %v1921
      %v1969 = vunpack.c.l.b16 %v1922
      %v1970 = vunpack.c.l.b16 %v1923
      %v1971 = vunpack.c.l.b16 %v1924
      %v1972 = vunpack.c.l.b16 %v1925
      %v1973 = vpack.c.b16 %v1958, %v1957
      %v1974 = vpack.c.b16 %v1960, %v1959
      %v1975 = vpack.c.b16 %v1962, %v1961
      %v1976 = vpack.c.b16 %v1964, %v1963
      %v1977 = vpack.c.b16 %v1966, %v1965
      %v1978 = vpack.c.b16 %v1968, %v1967
      %v1979 = vpack.c.b16 %v1970, %v1969
      %v1980 = vpack.c.b16 %v1972, %v1971
      %1989 = vmatprep.subr.bf16.mxu0 0
      %1990 = vmatpush1.bf16.msra.mxu0 %v1973
      %1991 = vmatprep.subr.bf16.mxu0 0
      %1992 = vmatpush1.bf16.msra.mxu0 %v1974
      %1993 = vmatprep.subr.bf16.mxu0 0
      %1994 = vmatpush1.bf16.msra.mxu0 %v1975
      %1995 = vmatprep.subr.bf16.mxu0 0
      %1996 = vmatpush1.bf16.msra.mxu0 %v1976
      %1997 = vmatprep.subr.bf16.mxu0 0
      %1998 = vmatpush1.bf16.msra.mxu0 %v1977
      %1999 = vmatprep.subr.bf16.mxu0 0
      %2000 = vmatpush1.bf16.msra.mxu0 %v1978
      %2001 = vmatprep.subr.bf16.mxu0 0
      %2002 = vmatpush1.bf16.msra.mxu0 %v1979
      %2003 = vmatprep.subr.bf16.mxu0 0
      %2004 = vmatpush1.bf16.msra.mxu0 %v1980
      %2005 = vmatprep.subr.bf16.mxu0 0
      %2006 = vmatpush1.bf16.msra.mxu0 0
      %2007 = vmatprep.subr.bf16.mxu0 0
      %2008 = vmatpush1.bf16.msra.mxu0 0
      %2009 = vmatprep.subr.bf16.mxu0 0
      %2010 = vmatpush1.bf16.msra.mxu0 0
      %2011 = vmatprep.subr.bf16.mxu0 0
      %2012 = vmatpush1.bf16.msra.mxu0 0
      %2013 = vmatprep.subr.bf16.mxu0 0
      %2014 = vmatpush1.bf16.msra.mxu0 0
      %2015 = vmatprep.subr.bf16.mxu0 0
      %2016 = vmatpush1.bf16.msra.mxu0 0
      %2017 = vmatprep.subr.bf16.mxu0 0
      %2018 = vmatpush1.bf16.msra.mxu0 0
      %2019 = vmatprep.subr.bf16.mxu0 0
      %2020 = vmatpush1.bf16.msra.mxu0 0
      %2021 = vmatprep.mubr.bf16.mxu0 0
      %2022 = vmatmul.mubr.bf16.gmra.mrb[0].mxu0 %v1252
      %v2023 = vpop.f32.mrb[0].mxu0
      %v2024 = vadd.f32 0.0, %v2023
      %v2025 = vpop.f32.mrb[0].mxu0
      %v2026 = vpop.f32.mrb[0].mxu0
      %v2027 = vadd.f32 0.0, %v2026
      %v2028 = vpop.f32.mrb[0].mxu0
      %2029 = vmatprep.mubr.bf16.mxu0 0
      %2030 = vmatmul.mubr.bf16.gmra.mrb[0].mxu0 %v1260
      %v2031 = vpop.f32.mrb[0].mxu0
      %v2032 = vadd.f32 0.0, %v2031
      %v2033 = vpop.f32.mrb[0].mxu0
      %v2034 = vpop.f32.mrb[0].mxu0
      %v2035 = vadd.f32 0.0, %v2034
      %v2036 = vpop.f32.mrb[0].mxu0
      %2037 = vmatprep.mubr.bf16.mxu0 0
      %2038 = vmatmul.mubr.bf16.gmra.mrb[0].mxu0 %v1268
      %v2039 = vpop.f32.mrb[0].mxu0
      %v2040 = vadd.f32 0.0, %v2039
      %v2041 = vpop.f32.mrb[0].mxu0
      %v2042 = vpop.f32.mrb[0].mxu0
      %v2043 = vadd.f32 0.0, %v2042
      %v2044 = vpop.f32.mrb[0].mxu0
      %2045 = vmatprep.mubr.bf16.mxu0 0
      %2046 = vmatmul.mubr.bf16.gmra.mrb[0].mxu0 %v1276
      %v2047 = vpop.f32.mrb[0].mxu0
      %v2048 = vadd.f32 0.0, %v2047
      %v2049 = vpop.f32.mrb[0].mxu0
      %v2050 = vpop.f32.mrb[0].mxu0
      %v2051 = vadd.f32 0.0, %v2050
      %v2052 = vpop.f32.mrb[0].mxu0
      %2053 = vmatprep.mubr.bf16.mxu0 0
      %2054 = vmatmul.mubr.bf16.gmra.mrb[0].mxu0 %v1284
      %v2055 = vpop.f32.mrb[0].mxu0
      %v2056 = vadd.f32 0.0, %v2055
      %v2057 = vpop.f32.mrb[0].mxu0
      %v2058 = vpop.f32.mrb[0].mxu0
      %v2059 = vadd.f32 0.0, %v2058
      %v2060 = vpop.f32.mrb[0].mxu0
      %2061 = vmatprep.mubr.bf16.mxu0 0
      %2062 = vmatmul.mubr.bf16.gmra.mrb[0].mxu0 %v1292
      %v2063 = vpop.f32.mrb[0].mxu0
      %v2064 = vadd.f32 0.0, %v2063
      %v2065 = vpop.f32.mrb[0].mxu0
      %v2066 = vpop.f32.mrb[0].mxu0
      %v2067 = vadd.f32 0.0, %v2066
      %v2068 = vpop.f32.mrb[0].mxu0
      %2069 = vmatprep.mubr.bf16.mxu0 0
      %2070 = vmatmul.mubr.bf16.gmra.mrb[0].mxu0 %v1300
      %v2071 = vpop.f32.mrb[0].mxu0
      %v2072 = vadd.f32 0.0, %v2071
      %v2073 = vpop.f32.mrb[0].mxu0
      %v2074 = vpop.f32.mrb[0].mxu0
      %v2075 = vadd.f32 0.0, %v2074
      %v2076 = vpop.f32.mrb[0].mxu0
      %2077 = vmatprep.mubr.bf16.mxu0 0
      %2078 = vmatmul.mubr.bf16.gmra.mrb[0].mxu0 %v1308
      %v2079 = vpop.f32.mrb[0].mxu0
      %v2080 = vadd.f32 0.0, %v2079
      %v2081 = vpop.f32.mrb[0].mxu0
      %v2082 = vpop.f32.mrb[0].mxu0
      %v2083 = vadd.f32 0.0, %v2082
      %v2084 = vpop.f32.mrb[0].mxu0
      %2085 = vmatprep.mubr.bf16.mxu0 0
      %2086 = vmatmul.mubr.bf16.gmra.mrb[0].mxu0 %v1316
      %v2087 = vpop.f32.mrb[0].mxu0
      %v2088 = vadd.f32 0.0, %v2087
      %v2089 = vpop.f32.mrb[0].mxu0
      %v2090 = vpop.f32.mrb[0].mxu0
      %v2091 = vadd.f32 0.0, %v2090
      %v2092 = vpop.f32.mrb[0].mxu0
      %2093 = vmatprep.mubr.bf16.mxu0 0
      %2094 = vmatmul.mubr.bf16.gmra.mrb[0].mxu0 %v1324
      %v2095 = vpop.f32.mrb[0].mxu0
      %v2096 = vadd.f32 0.0, %v2095
      %v2097 = vpop.f32.mrb[0].mxu0
      %v2098 = vpop.f32.mrb[0].mxu0
      %v2099 = vadd.f32 0.0, %v2098
      %v2100 = vpop.f32.mrb[0].mxu0
      %2101 = vmatprep.mubr.bf16.mxu0 0
      %2102 = vmatmul.mubr.bf16.gmra.mrb[0].mxu0 %v1332
      %v2103 = vpop.f32.mrb[0].mxu0
      %v2104 = vadd.f32 0.0, %v2103
      %v2105 = vpop.f32.mrb[0].mxu0
      %v2106 = vpop.f32.mrb[0].mxu0
      %v2107 = vadd.f32 0.0, %v2106
      %v2108 = vpop.f32.mrb[0].mxu0
      %2109 = vmatprep.mubr.bf16.mxu0 0
      %2110 = vmatmul.mubr.bf16.gmra.mrb[0].mxu0 %v1340
      %v2111 = vpop.f32.mrb[0].mxu0
      %v2112 = vadd.f32 0.0, %v2111
      %v2113 = vpop.f32.mrb[0].mxu0
      %v2114 = vpop.f32.mrb[0].mxu0
      %v2115 = vadd.f32 0.0, %v2114
      %v2116 = vpop.f32.mrb[0].mxu0
      %2117 = vmatprep.mubr.bf16.mxu0 0
      %2118 = vmatmul.mubr.bf16.gmra.mrb[0].mxu0 %v1348
      %v2119 = vpop.f32.mrb[0].mxu0
      %v2120 = vadd.f32 0.0, %v2119
      %v2121 = vpop.f32.mrb[0].mxu0
      %v2122 = vpop.f32.mrb[0].mxu0
      %v2123 = vadd.f32 0.0, %v2122
      %v2124 = vpop.f32.mrb[0].mxu0
      %2125 = vmatprep.mubr.bf16.mxu0 0
      %2126 = vmatmul.mubr.bf16.gmra.mrb[0].mxu0 %v1356
      %v2127 = vpop.f32.mrb[0].mxu0
      %v2128 = vadd.f32 0.0, %v2127
      %v2129 = vpop.f32.mrb[0].mxu0
      %v2130 = vpop.f32.mrb[0].mxu0
      %v2131 = vadd.f32 0.0, %v2130
      %v2132 = vpop.f32.mrb[0].mxu0
      %2133 = vmatprep.mubr.bf16.mxu0 0
      %2134 = vmatmul.mubr.bf16.gmra.mrb[0].mxu0 %v1930
      %v2135 = vpop.f32.mrb[0].mxu0
      %v2136 = vadd.f32 0.0, %v2135
      %v2137 = vpop.f32.mrb[0].mxu0
      %v2138 = vpop.f32.mrb[0].mxu0
      %v2139 = vadd.f32 0.0, %v2138
      %v2140 = vpop.f32.mrb[0].mxu0
      %2141 = vmatprep.mubr.bf16.mxu0 0
      %2142 = vmatmul.mubr.bf16.gmra.mrb[0].mxu0 %v1938
      %v2143 = vpop.f32.mrb[0].mxu0
      %v2144 = vadd.f32 0.0, %v2143
      %v2145 = vpop.f32.mrb[0].mxu0
      %v2146 = vpop.f32.mrb[0].mxu0
      %v2147 = vadd.f32 0.0, %v2146
      %v2148 = vpop.f32.mrb[0].mxu0
      %2149 = vdwg.mxu0
      %v2150 = vadd.f32 %v1877, %v2024
      %v2151 = vadd.f32 %v1878, %v2027
      %v2152 = vadd.f32 %v1879, %v2032
      %v2153 = vadd.f32 %v1880, %v2035
      %v2154 = vadd.f32 %v1881, %v2040
      %v2155 = vadd.f32 %v1882, %v2043
      %v2156 = vadd.f32 %v1883, %v2048
      %v2157 = vadd.f32 %v1884, %v2051
      %v2158 = vadd.f32 %v1885, %v2056
      %v2159 = vadd.f32 %v1886, %v2059
      %v2160 = vadd.f32 %v1887, %v2064
      %v2161 = vadd.f32 %v1888, %v2067
      %v2162 = vadd.f32 %v1889, %v2072
      %v2163 = vadd.f32 %v1890, %v2075
      %v2164 = vadd.f32 %v1891, %v2080
      %v2165 = vadd.f32 %v1892, %v2083
      %v2166 = vadd.f32 %v1893, %v2088
      %v2167 = vadd.f32 %v1894, %v2091
      %v2168 = vadd.f32 %v1895, %v2096
      %v2169 = vadd.f32 %v1896, %v2099
      %v2170 = vadd.f32 %v1897, %v2104
      %v2171 = vadd.f32 %v1898, %v2107
      %v2172 = vadd.f32 %v1899, %v2112
      %v2173 = vadd.f32 %v1900, %v2115
      %v2174 = vadd.f32 %v1901, %v2120
      %v2175 = vadd.f32 %v1902, %v2123
      %v2176 = vadd.f32 %v1903, %v2128
      %v2177 = vadd.f32 %v1904, %v2131
      %v2178 = vadd.f32 %v1905, %v2136
      %v2179 = vadd.f32 %v1906, %v2139
      %v2180 = vadd.f32 %v1907, %v2144
      %v2181 = vadd.f32 %v1908, %v2147
      %s2182 = scalar_lea.vmem %s3, 256
      %v2183 = vld [vmem:[%s2182] sm:$0xf]
      %v2184 = vld [vmem:[%s2182 + $0x4] sm:$0xf]
      %v2185 = vld [vmem:[%s2182 + $0x8] sm:$0xf]
      %v2186 = vld [vmem:[%s2182 + $0xc] sm:$0xf]
      %v2187 = vld [vmem:[%s2182 + $0x10] sm:$0xf]
      %v2188 = vld [vmem:[%s2182 + $0x14] sm:$0xf]
      %v2189 = vld [vmem:[%s2182 + $0x18] sm:$0xf]
      %v2190 = vld [vmem:[%s2182 + $0x1c] sm:$0xf]
      %v2191 = vld [vmem:[%s2182 + $0x20] sm:$0xf]
      %v2192 = vld [vmem:[%s2182 + $0x24] sm:$0xf]
      %v2193 = vld [vmem:[%s2182 + $0x28] sm:$0xf]
      %v2194 = vld [vmem:[%s2182 + $0x2c] sm:$0xf]
      %v2195 = vld [vmem:[%s2182 + $0x30] sm:$0xf]
      %v2196 = vld [vmem:[%s2182 + $0x34] sm:$0xf]
      %v2197 = vld [vmem:[%s2182 + $0x38] sm:$0xf]
      %v2198 = vld [vmem:[%s2182 + $0x3c] sm:$0xf]
      %v2215 = vunpack.c.l.b16 %v2183
      %v2216 = vunpack.c.l.b16 %v2184
      %v2217 = vunpack.c.l.b16 %v2185
      %v2218 = vunpack.c.l.b16 %v2186
      %v2219 = vunpack.c.l.b16 %v2187
      %v2220 = vunpack.c.l.b16 %v2188
      %v2221 = vunpack.c.l.b16 %v2189
      %v2222 = vunpack.c.l.b16 %v2190
      %v2223 = vunpack.c.l.b16 %v2191
      %v2224 = vunpack.c.l.b16 %v2192
      %v2225 = vunpack.c.l.b16 %v2193
      %v2226 = vunpack.c.l.b16 %v2194
      %v2227 = vunpack.c.l.b16 %v2195
      %v2228 = vunpack.c.l.b16 %v2196
      %v2229 = vunpack.c.l.b16 %v2197
      %v2230 = vunpack.c.l.b16 %v2198
      %v2231 = vpack.c.b16 %v2216, %v2215
      %v2232 = vpack.c.b16 %v2218, %v2217
      %v2233 = vpack.c.b16 %v2220, %v2219
      %v2234 = vpack.c.b16 %v2222, %v2221
      %v2235 = vpack.c.b16 %v2224, %v2223
      %v2236 = vpack.c.b16 %v2226, %v2225
      %v2237 = vpack.c.b16 %v2228, %v2227
      %v2238 = vpack.c.b16 %v2230, %v2229
      %2247 = vmatprep.subr.bf16.mxu0 0
      %2248 = vmatpush1.bf16.msra.mxu0 %v2231
      %2249 = vmatprep.subr.bf16.mxu0 0
      %2250 = vmatpush1.bf16.msra.mxu0 %v2232
      %2251 = vmatprep.subr.bf16.mxu0 0
      %2252 = vmatpush1.bf16.msra.mxu0 %v2233
      %2253 = vmatprep.subr.bf16.mxu0 0
      %2254 = vmatpush1.bf16.msra.mxu0 %v2234
      %2255 = vmatprep.subr.bf16.mxu0 0
      %2256 = vmatpush1.bf16.msra.mxu0 %v2235
      %2257 = vmatprep.subr.bf16.mxu0 0
      %2258 = vmatpush1.bf16.msra.mxu0 %v2236
      %2259 = vmatprep.subr.bf16.mxu0 0
      %2260 = vmatpush1.bf16.msra.mxu0 %v2237
      %2261 = vmatprep.subr.bf16.mxu0 0
      %2262 = vmatpush1.bf16.msra.mxu0 %v2238
      %2263 = vmatprep.subr.bf16.mxu0 0
      %2264 = vmatpush1.bf16.msra.mxu0 0
      %2265 = vmatprep.subr.bf16.mxu0 0
      %2266 = vmatpush1.bf16.msra.mxu0 0
      %2267 = vmatprep.subr.bf16.mxu0 0
      %2268 = vmatpush1.bf16.msra.mxu0 0
      %2269 = vmatprep.subr.bf16.mxu0 0
      %2270 = vmatpush1.bf16.msra.mxu0 0
      %2271 = vmatprep.subr.bf16.mxu0 0
      %2272 = vmatpush1.bf16.msra.mxu0 0
      %2273 = vmatprep.subr.bf16.mxu0 0
      %2274 = vmatpush1.bf16.msra.mxu0 0
      %2275 = vmatprep.subr.bf16.mxu0 0
      %2276 = vmatpush1.bf16.msra.mxu0 0
      %2277 = vmatprep.subr.bf16.mxu0 0
      %2278 = vmatpush1.bf16.msra.mxu0 0
      %2279 = vmatprep.mubr.bf16.mxu0 0
      %2280 = vmatmul.mubr.bf16.gmra.mrb[0].mxu0 %v963
      %v2281 = vpop.f32.mrb[0].mxu0
      %v2282 = vadd.f32 0.0, %v2281
      %v2283 = vpop.f32.mrb[0].mxu0
      %v2284 = vpop.f32.mrb[0].mxu0
      %v2285 = vadd.f32 0.0, %v2284
      %v2286 = vpop.f32.mrb[0].mxu0
      %2287 = vmatprep.mubr.bf16.mxu0 0
      %2288 = vmatmul.mubr.bf16.gmra.mrb[0].mxu0 %v964
      %v2289 = vpop.f32.mrb[0].mxu0
      %v2290 = vadd.f32 0.0, %v2289
      %v2291 = vpop.f32.mrb[0].mxu0
      %v2292 = vpop.f32.mrb[0].mxu0
      %v2293 = vadd.f32 0.0, %v2292
      %v2294 = vpop.f32.mrb[0].mxu0
      %2295 = vmatprep.mubr.bf16.mxu0 0
      %2296 = vmatmul.mubr.bf16.gmra.mrb[0].mxu0 %v965
      %v2297 = vpop.f32.mrb[0].mxu0
      %v2298 = vadd.f32 0.0, %v2297
      %v2299 = vpop.f32.mrb[0].mxu0
      %v2300 = vpop.f32.mrb[0].mxu0
      %v2301 = vadd.f32 0.0, %v2300
      %v2302 = vpop.f32.mrb[0].mxu0
      %2303 = vmatprep.mubr.bf16.mxu0 0
      %2304 = vmatmul.mubr.bf16.gmra.mrb[0].mxu0 %v966
      %v2305 = vpop.f32.mrb[0].mxu0
      %v2306 = vadd.f32 0.0, %v2305
      %v2307 = vpop.f32.mrb[0].mxu0
      %v2308 = vpop.f32.mrb[0].mxu0
      %v2309 = vadd.f32 0.0, %v2308
      %v2310 = vpop.f32.mrb[0].mxu0
      %2311 = vmatprep.mubr.bf16.mxu0 0
      %2312 = vmatmul.mubr.bf16.gmra.mrb[0].mxu0 %v967
      %v2313 = vpop.f32.mrb[0].mxu0
      %v2314 = vadd.f32 0.0, %v2313
      %v2315 = vpop.f32.mrb[0].mxu0
      %v2316 = vpop.f32.mrb[0].mxu0
      %v2317 = vadd.f32 0.0, %v2316
      %v2318 = vpop.f32.mrb[0].mxu0
      %2319 = vmatprep.mubr.bf16.mxu0 0
      %2320 = vmatmul.mubr.bf16.gmra.mrb[0].mxu0 %v968
      %v2321 = vpop.f32.mrb[0].mxu0
      %v2322 = vadd.f32 0.0, %v2321
      %v2323 = vpop.f32.mrb[0].mxu0
      %v2324 = vpop.f32.mrb[0].mxu0
      %v2325 = vadd.f32 0.0, %v2324
      %v2326 = vpop.f32.mrb[0].mxu0
      %2327 = vmatprep.mubr.bf16.mxu0 0
      %2328 = vmatmul.mubr.bf16.gmra.mrb[0].mxu0 %v969
      %v2329 = vpop.f32.mrb[0].mxu0
      %v2330 = vadd.f32 0.0, %v2329
      %v2331 = vpop.f32.mrb[0].mxu0
      %v2332 = vpop.f32.mrb[0].mxu0
      %v2333 = vadd.f32 0.0, %v2332
      %v2334 = vpop.f32.mrb[0].mxu0
      %2335 = vmatprep.mubr.bf16.mxu0 0
      %2336 = vmatmul.mubr.bf16.gmra.mrb[0].mxu0 %v970
      %v2337 = vpop.f32.mrb[0].mxu0
      %v2338 = vadd.f32 0.0, %v2337
      %v2339 = vpop.f32.mrb[0].mxu0
      %v2340 = vpop.f32.mrb[0].mxu0
      %v2341 = vadd.f32 0.0, %v2340
      %v2342 = vpop.f32.mrb[0].mxu0
      %2343 = vmatprep.mubr.bf16.mxu0 0
      %2344 = vmatmul.mubr.bf16.gmra.mrb[0].mxu0 %v971
      %v2345 = vpop.f32.mrb[0].mxu0
      %v2346 = vadd.f32 0.0, %v2345
      %v2347 = vpop.f32.mrb[0].mxu0
      %v2348 = vpop.f32.mrb[0].mxu0
      %v2349 = vadd.f32 0.0, %v2348
      %v2350 = vpop.f32.mrb[0].mxu0
      %2351 = vmatprep.mubr.bf16.mxu0 0
      %2352 = vmatmul.mubr.bf16.gmra.mrb[0].mxu0 %v972
      %v2353 = vpop.f32.mrb[0].mxu0
      %v2354 = vadd.f32 0.0, %v2353
      %v2355 = vpop.f32.mrb[0].mxu0
      %v2356 = vpop.f32.mrb[0].mxu0
      %v2357 = vadd.f32 0.0, %v2356
      %v2358 = vpop.f32.mrb[0].mxu0
      %2359 = vmatprep.mubr.bf16.mxu0 0
      %2360 = vmatmul.mubr.bf16.gmra.mrb[0].mxu0 %v973
      %v2361 = vpop.f32.mrb[0].mxu0
      %v2362 = vadd.f32 0.0, %v2361
      %v2363 = vpop.f32.mrb[0].mxu0
      %v2364 = vpop.f32.mrb[0].mxu0
      %v2365 = vadd.f32 0.0, %v2364
      %v2366 = vpop.f32.mrb[0].mxu0
      %2367 = vmatprep.mubr.bf16.mxu0 0
      %2368 = vmatmul.mubr.bf16.gmra.mrb[0].mxu0 %v974
      %v2369 = vpop.f32.mrb[0].mxu0
      %v2370 = vadd.f32 0.0, %v2369
      %v2371 = vpop.f32.mrb[0].mxu0
      %v2372 = vpop.f32.mrb[0].mxu0
      %v2373 = vadd.f32 0.0, %v2372
      %v2374 = vpop.f32.mrb[0].mxu0
      %2375 = vmatprep.mubr.bf16.mxu0 0
      %2376 = vmatmul.mubr.bf16.gmra.mrb[0].mxu0 %v975
      %v2377 = vpop.f32.mrb[0].mxu0
      %v2378 = vadd.f32 0.0, %v2377
      %v2379 = vpop.f32.mrb[0].mxu0
      %v2380 = vpop.f32.mrb[0].mxu0
      %v2381 = vadd.f32 0.0, %v2380
      %v2382 = vpop.f32.mrb[0].mxu0
      %2383 = vmatprep.mubr.bf16.mxu0 0
      %2384 = vmatmul.mubr.bf16.gmra.mrb[0].mxu0 %v976
      %v2385 = vpop.f32.mrb[0].mxu0
      %v2386 = vadd.f32 0.0, %v2385
      %v2387 = vpop.f32.mrb[0].mxu0
      %v2388 = vpop.f32.mrb[0].mxu0
      %v2389 = vadd.f32 0.0, %v2388
      %v2390 = vpop.f32.mrb[0].mxu0
      %2391 = vmatprep.mubr.bf16.mxu0 0
      %2392 = vmatmul.mubr.bf16.gmra.mrb[0].mxu0 %v977
      %v2393 = vpop.f32.mrb[0].mxu0
      %v2394 = vadd.f32 0.0, %v2393
      %v2395 = vpop.f32.mrb[0].mxu0
      %v2396 = vpop.f32.mrb[0].mxu0
      %v2397 = vadd.f32 0.0, %v2396
      %v2398 = vpop.f32.mrb[0].mxu0
      %2399 = vmatprep.mubr.bf16.mxu0 0
      %2400 = vmatmul.mubr.bf16.gmra.mrb[0].mxu0 %v978
      %v2401 = vpop.f32.mrb[0].mxu0
      %v2402 = vadd.f32 0.0, %v2401
      %v2403 = vpop.f32.mrb[0].mxu0
      %v2404 = vpop.f32.mrb[0].mxu0
      %v2405 = vadd.f32 0.0, %v2404
      %v2406 = vpop.f32.mrb[0].mxu0
      %2407 = vdwg.mxu0
      %v2408 = vadd.f32 %v2150, %v2282
      %v2409 = vadd.f32 %v2151, %v2285
      %v2410 = vadd.f32 %v2152, %v2290
      %v2411 = vadd.f32 %v2153, %v2293
      %v2412 = vadd.f32 %v2154, %v2298
      %v2413 = vadd.f32 %v2155, %v2301
      %v2414 = vadd.f32 %v2156, %v2306
      %v2415 = vadd.f32 %v2157, %v2309
      %v2416 = vadd.f32 %v2158, %v2314
      %v2417 = vadd.f32 %v2159, %v2317
      %v2418 = vadd.f32 %v2160, %v2322
      %v2419 = vadd.f32 %v2161, %v2325
      %v2420 = vadd.f32 %v2162, %v2330
      %v2421 = vadd.f32 %v2163, %v2333
      %v2422 = vadd.f32 %v2164, %v2338
      %v2423 = vadd.f32 %v2165, %v2341
      %v2424 = vadd.f32 %v2166, %v2346
      %v2425 = vadd.f32 %v2167, %v2349
      %v2426 = vadd.f32 %v2168, %v2354
      %v2427 = vadd.f32 %v2169, %v2357
      %v2428 = vadd.f32 %v2170, %v2362
      %v2429 = vadd.f32 %v2171, %v2365
      %v2430 = vadd.f32 %v2172, %v2370
      %v2431 = vadd.f32 %v2173, %v2373
      %v2432 = vadd.f32 %v2174, %v2378
      %v2433 = vadd.f32 %v2175, %v2381
      %v2434 = vadd.f32 %v2176, %v2386
      %v2435 = vadd.f32 %v2177, %v2389
      %v2436 = vadd.f32 %v2178, %v2394
      %v2437 = vadd.f32 %v2179, %v2397
      %v2438 = vadd.f32 %v2180, %v2402
      %v2439 = vadd.f32 %v2181, %v2405
      %s2440 = scalar_lea.vmem %s3, 320
      %v2441 = vld [vmem:[%s2440] sm:$0xf]
      %v2442 = vld [vmem:[%s2440 + $0x4] sm:$0xf]
      %v2443 = vld [vmem:[%s2440 + $0x8] sm:$0xf]
      %v2444 = vld [vmem:[%s2440 + $0xc] sm:$0xf]
      %v2445 = vld [vmem:[%s2440 + $0x10] sm:$0xf]
      %v2446 = vld [vmem:[%s2440 + $0x14] sm:$0xf]
      %v2447 = vld [vmem:[%s2440 + $0x18] sm:$0xf]
      %v2448 = vld [vmem:[%s2440 + $0x1c] sm:$0xf]
      %v2449 = vld [vmem:[%s2440 + $0x20] sm:$0xf]
      %v2450 = vld [vmem:[%s2440 + $0x24] sm:$0xf]
      %v2451 = vld [vmem:[%s2440 + $0x28] sm:$0xf]
      %v2452 = vld [vmem:[%s2440 + $0x2c] sm:$0xf]
      %v2453 = vld [vmem:[%s2440 + $0x30] sm:$0xf]
      %v2454 = vld [vmem:[%s2440 + $0x34] sm:$0xf]
      %v2455 = vld [vmem:[%s2440 + $0x38] sm:$0xf]
      %v2456 = vld [vmem:[%s2440 + $0x3c] sm:$0xf]
      %v2457 = vor.u32 %v1926, %v1650
      %v2458 = vrot.slane %v1935, 1
      %v2459 = vsel %vm1599, %v2457, %v2458
      %v2460 = vor.u32 %v1932, %v2458
      %v2462 = vshll.u32 %v979, 16
      %v2464 = vrot.slane %v2462, 1
      %v2465 = vsel %vm1599, %v2460, %v2464
      %v2484 = vunpack.c.l.b16 %v2441
      %v2485 = vunpack.c.l.b16 %v2442
      %v2486 = vunpack.c.l.b16 %v2443
      %v2487 = vunpack.c.l.b16 %v2444
      %v2488 = vunpack.c.l.b16 %v2445
      %v2489 = vunpack.c.l.b16 %v2446
      %v2490 = vunpack.c.l.b16 %v2447
      %v2491 = vunpack.c.l.b16 %v2448
      %v2492 = vunpack.c.l.b16 %v2449
      %v2493 = vunpack.c.l.b16 %v2450
      %v2494 = vunpack.c.l.b16 %v2451
      %v2495 = vunpack.c.l.b16 %v2452
      %v2496 = vunpack.c.l.b16 %v2453
      %v2497 = vunpack.c.l.b16 %v2454
      %v2498 = vunpack.c.l.b16 %v2455
      %v2499 = vunpack.c.l.b16 %v2456
      %v2500 = vpack.c.b16 %v2485, %v2484
      %v2501 = vpack.c.b16 %v2487, %v2486
      %v2502 = vpack.c.b16 %v2489, %v2488
      %v2503 = vpack.c.b16 %v2491, %v2490
      %v2504 = vpack.c.b16 %v2493, %v2492
      %v2505 = vpack.c.b16 %v2495, %v2494
      %v2506 = vpack.c.b16 %v2497, %v2496
      %v2507 = vpack.c.b16 %v2499, %v2498
      %2516 = vmatprep.subr.bf16.mxu0 0
      %2517 = vmatpush1.bf16.msra.mxu0 %v2500
      %2518 = vmatprep.subr.bf16.mxu0 0
      %2519 = vmatpush1.bf16.msra.mxu0 %v2501
      %2520 = vmatprep.subr.bf16.mxu0 0
      %2521 = vmatpush1.bf16.msra.mxu0 %v2502
      %2522 = vmatprep.subr.bf16.mxu0 0
      %2523 = vmatpush1.bf16.msra.mxu0 %v2503
      %2524 = vmatprep.subr.bf16.mxu0 0
      %2525 = vmatpush1.bf16.msra.mxu0 %v2504
      %2526 = vmatprep.subr.bf16.mxu0 0
      %2527 = vmatpush1.bf16.msra.mxu0 %v2505
      %2528 = vmatprep.subr.bf16.mxu0 0
      %2529 = vmatpush1.bf16.msra.mxu0 %v2506
      %2530 = vmatprep.subr.bf16.mxu0 0
      %2531 = vmatpush1.bf16.msra.mxu0 %v2507
      %2532 = vmatprep.subr.bf16.mxu0 0
      %2533 = vmatpush1.bf16.msra.mxu0 0
      %2534 = vmatprep.subr.bf16.mxu0 0
      %2535 = vmatpush1.bf16.msra.mxu0 0
      %2536 = vmatprep.subr.bf16.mxu0 0
      %2537 = vmatpush1.bf16.msra.mxu0 0
      %2538 = vmatprep.subr.bf16.mxu0 0
      %2539 = vmatpush1.bf16.msra.mxu0 0
      %2540 = vmatprep.subr.bf16.mxu0 0
      %2541 = vmatpush1.bf16.msra.mxu0 0
      %2542 = vmatprep.subr.bf16.mxu0 0
      %2543 = vmatpush1.bf16.msra.mxu0 0
      %2544 = vmatprep.subr.bf16.mxu0 0
      %2545 = vmatpush1.bf16.msra.mxu0 0
      %2546 = vmatprep.subr.bf16.mxu0 0
      %2547 = vmatpush1.bf16.msra.mxu0 0
      %2548 = vmatprep.mubr.bf16.mxu0 0
      %2549 = vmatmul.mubr.bf16.gmra.mrb[0].mxu0 %v1609
      %v2550 = vpop.f32.mrb[0].mxu0
      %v2551 = vadd.f32 0.0, %v2550
      %v2552 = vpop.f32.mrb[0].mxu0
      %v2553 = vpop.f32.mrb[0].mxu0
      %v2554 = vadd.f32 0.0, %v2553
      %v2555 = vpop.f32.mrb[0].mxu0
      %2556 = vmatprep.mubr.bf16.mxu0 0
      %2557 = vmatmul.mubr.bf16.gmra.mrb[0].mxu0 %v1612
      %v2558 = vpop.f32.mrb[0].mxu0
      %v2559 = vadd.f32 0.0, %v2558
      %v2560 = vpop.f32.mrb[0].mxu0
      %v2561 = vpop.f32.mrb[0].mxu0
      %v2562 = vadd.f32 0.0, %v2561
      %v2563 = vpop.f32.mrb[0].mxu0
      %2564 = vmatprep.mubr.bf16.mxu0 0
      %2565 = vmatmul.mubr.bf16.gmra.mrb[0].mxu0 %v1615
      %v2566 = vpop.f32.mrb[0].mxu0
      %v2567 = vadd.f32 0.0, %v2566
      %v2568 = vpop.f32.mrb[0].mxu0
      %v2569 = vpop.f32.mrb[0].mxu0
      %v2570 = vadd.f32 0.0, %v2569
      %v2571 = vpop.f32.mrb[0].mxu0
      %2572 = vmatprep.mubr.bf16.mxu0 0
      %2573 = vmatmul.mubr.bf16.gmra.mrb[0].mxu0 %v1618
      %v2574 = vpop.f32.mrb[0].mxu0
      %v2575 = vadd.f32 0.0, %v2574
      %v2576 = vpop.f32.mrb[0].mxu0
      %v2577 = vpop.f32.mrb[0].mxu0
      %v2578 = vadd.f32 0.0, %v2577
      %v2579 = vpop.f32.mrb[0].mxu0
      %2580 = vmatprep.mubr.bf16.mxu0 0
      %2581 = vmatmul.mubr.bf16.gmra.mrb[0].mxu0 %v1621
      %v2582 = vpop.f32.mrb[0].mxu0
      %v2583 = vadd.f32 0.0, %v2582
      %v2584 = vpop.f32.mrb[0].mxu0
      %v2585 = vpop.f32.mrb[0].mxu0
      %v2586 = vadd.f32 0.0, %v2585
      %v2587 = vpop.f32.mrb[0].mxu0
      %2588 = vmatprep.mubr.bf16.mxu0 0
      %2589 = vmatmul.mubr.bf16.gmra.mrb[0].mxu0 %v1624
      %v2590 = vpop.f32.mrb[0].mxu0
      %v2591 = vadd.f32 0.0, %v2590
      %v2592 = vpop.f32.mrb[0].mxu0
      %v2593 = vpop.f32.mrb[0].mxu0
      %v2594 = vadd.f32 0.0, %v2593
      %v2595 = vpop.f32.mrb[0].mxu0
      %2596 = vmatprep.mubr.bf16.mxu0 0
      %2597 = vmatmul.mubr.bf16.gmra.mrb[0].mxu0 %v1627
      %v2598 = vpop.f32.mrb[0].mxu0
      %v2599 = vadd.f32 0.0, %v2598
      %v2600 = vpop.f32.mrb[0].mxu0
      %v2601 = vpop.f32.mrb[0].mxu0
      %v2602 = vadd.f32 0.0, %v2601
      %v2603 = vpop.f32.mrb[0].mxu0
      %2604 = vmatprep.mubr.bf16.mxu0 0
      %2605 = vmatmul.mubr.bf16.gmra.mrb[0].mxu0 %v1630
      %v2606 = vpop.f32.mrb[0].mxu0
      %v2607 = vadd.f32 0.0, %v2606
      %v2608 = vpop.f32.mrb[0].mxu0
      %v2609 = vpop.f32.mrb[0].mxu0
      %v2610 = vadd.f32 0.0, %v2609
      %v2611 = vpop.f32.mrb[0].mxu0
      %2612 = vmatprep.mubr.bf16.mxu0 0
      %2613 = vmatmul.mubr.bf16.gmra.mrb[0].mxu0 %v1633
      %v2614 = vpop.f32.mrb[0].mxu0
      %v2615 = vadd.f32 0.0, %v2614
      %v2616 = vpop.f32.mrb[0].mxu0
      %v2617 = vpop.f32.mrb[0].mxu0
      %v2618 = vadd.f32 0.0, %v2617
      %v2619 = vpop.f32.mrb[0].mxu0
      %2620 = vmatprep.mubr.bf16.mxu0 0
      %2621 = vmatmul.mubr.bf16.gmra.mrb[0].mxu0 %v1636
      %v2622 = vpop.f32.mrb[0].mxu0
      %v2623 = vadd.f32 0.0, %v2622
      %v2624 = vpop.f32.mrb[0].mxu0
      %v2625 = vpop.f32.mrb[0].mxu0
      %v2626 = vadd.f32 0.0, %v2625
      %v2627 = vpop.f32.mrb[0].mxu0
      %2628 = vmatprep.mubr.bf16.mxu0 0
      %2629 = vmatmul.mubr.bf16.gmra.mrb[0].mxu0 %v1639
      %v2630 = vpop.f32.mrb[0].mxu0
      %v2631 = vadd.f32 0.0, %v2630
      %v2632 = vpop.f32.mrb[0].mxu0
      %v2633 = vpop.f32.mrb[0].mxu0
      %v2634 = vadd.f32 0.0, %v2633
      %v2635 = vpop.f32.mrb[0].mxu0
      %2636 = vmatprep.mubr.bf16.mxu0 0
      %2637 = vmatmul.mubr.bf16.gmra.mrb[0].mxu0 %v1642
      %v2638 = vpop.f32.mrb[0].mxu0
      %v2639 = vadd.f32 0.0, %v2638
      %v2640 = vpop.f32.mrb[0].mxu0
      %v2641 = vpop.f32.mrb[0].mxu0
      %v2642 = vadd.f32 0.0, %v2641
      %v2643 = vpop.f32.mrb[0].mxu0
      %2644 = vmatprep.mubr.bf16.mxu0 0
      %2645 = vmatmul.mubr.bf16.gmra.mrb[0].mxu0 %v1645
      %v2646 = vpop.f32.mrb[0].mxu0
      %v2647 = vadd.f32 0.0, %v2646
      %v2648 = vpop.f32.mrb[0].mxu0
      %v2649 = vpop.f32.mrb[0].mxu0
      %v2650 = vadd.f32 0.0, %v2649
      %v2651 = vpop.f32.mrb[0].mxu0
      %2652 = vmatprep.mubr.bf16.mxu0 0
      %2653 = vmatmul.mubr.bf16.gmra.mrb[0].mxu0 %v1651
      %v2654 = vpop.f32.mrb[0].mxu0
      %v2655 = vadd.f32 0.0, %v2654
      %v2656 = vpop.f32.mrb[0].mxu0
      %v2657 = vpop.f32.mrb[0].mxu0
      %v2658 = vadd.f32 0.0, %v2657
      %v2659 = vpop.f32.mrb[0].mxu0
      %2660 = vmatprep.mubr.bf16.mxu0 0
      %2661 = vmatmul.mubr.bf16.gmra.mrb[0].mxu0 %v2459
      %v2662 = vpop.f32.mrb[0].mxu0
      %v2663 = vadd.f32 0.0, %v2662
      %v2664 = vpop.f32.mrb[0].mxu0
      %v2665 = vpop.f32.mrb[0].mxu0
      %v2666 = vadd.f32 0.0, %v2665
      %v2667 = vpop.f32.mrb[0].mxu0
      %2668 = vmatprep.mubr.bf16.mxu0 0
      %2669 = vmatmul.mubr.bf16.gmra.mrb[0].mxu0 %v2465
      %v2670 = vpop.f32.mrb[0].mxu0
      %v2671 = vadd.f32 0.0, %v2670
      %v2672 = vpop.f32.mrb[0].mxu0
      %v2673 = vpop.f32.mrb[0].mxu0
      %v2674 = vadd.f32 0.0, %v2673
      %v2675 = vpop.f32.mrb[0].mxu0
      %2676 = vdwg.mxu0
      %v2677 = vadd.f32 %v2408, %v2551
      %v2678 = vadd.f32 %v2409, %v2554
      %v2679 = vadd.f32 %v2410, %v2559
      %v2680 = vadd.f32 %v2411, %v2562
      %v2681 = vadd.f32 %v2412, %v2567
      %v2682 = vadd.f32 %v2413, %v2570
      %v2683 = vadd.f32 %v2414, %v2575
      %v2684 = vadd.f32 %v2415, %v2578
      %v2685 = vadd.f32 %v2416, %v2583
      %v2686 = vadd.f32 %v2417, %v2586
      %v2687 = vadd.f32 %v2418, %v2591
      %v2688 = vadd.f32 %v2419, %v2594
      %v2689 = vadd.f32 %v2420, %v2599
      %v2690 = vadd.f32 %v2421, %v2602
      %v2691 = vadd.f32 %v2422, %v2607
      %v2692 = vadd.f32 %v2423, %v2610
      %v2693 = vadd.f32 %v2424, %v2615
      %v2694 = vadd.f32 %v2425, %v2618
      %v2695 = vadd.f32 %v2426, %v2623
      %v2696 = vadd.f32 %v2427, %v2626
      %v2697 = vadd.f32 %v2428, %v2631
      %v2698 = vadd.f32 %v2429, %v2634
      %v2699 = vadd.f32 %v2430, %v2639
      %v2700 = vadd.f32 %v2431, %v2642
      %v2701 = vadd.f32 %v2432, %v2647
      %v2702 = vadd.f32 %v2433, %v2650
      %v2703 = vadd.f32 %v2434, %v2655
      %v2704 = vadd.f32 %v2435, %v2658
      %v2705 = vadd.f32 %v2436, %v2663
      %v2706 = vadd.f32 %v2437, %v2666
      %v2707 = vadd.f32 %v2438, %v2671
      %v2708 = vadd.f32 %v2439, %v2674
      %s2709 = scalar_lea.vmem %s3, 384
      %v2710 = vld [vmem:[%s2709] sm:$0xf]
      %v2711 = vld [vmem:[%s2709 + $0x4] sm:$0xf]
      %v2712 = vld [vmem:[%s2709 + $0x8] sm:$0xf]
      %v2713 = vld [vmem:[%s2709 + $0xc] sm:$0xf]
      %v2714 = vld [vmem:[%s2709 + $0x10] sm:$0xf]
      %v2715 = vld [vmem:[%s2709 + $0x14] sm:$0xf]
      %v2716 = vld [vmem:[%s2709 + $0x18] sm:$0xf]
      %v2717 = vld [vmem:[%s2709 + $0x1c] sm:$0xf]
      %v2718 = vld [vmem:[%s2709 + $0x20] sm:$0xf]
      %v2719 = vld [vmem:[%s2709 + $0x24] sm:$0xf]
      %v2720 = vld [vmem:[%s2709 + $0x28] sm:$0xf]
      %v2721 = vld [vmem:[%s2709 + $0x2c] sm:$0xf]
      %v2722 = vld [vmem:[%s2709 + $0x30] sm:$0xf]
      %v2723 = vld [vmem:[%s2709 + $0x34] sm:$0xf]
      %v2724 = vld [vmem:[%s2709 + $0x38] sm:$0xf]
      %v2725 = vld [vmem:[%s2709 + $0x3c] sm:$0xf]
      %v2726 = vshrl.u32 %v979, 16
      %v2728 = vrot.slane %v2726, 7
      %v2729 = vor.u32 %v2728, %v2462
      %v2730 = vsel %vm1224, %v1934, %v2729
      %v2732 = vshrl.u32 %v980, 16
      %v2734 = vrot.slane %v2732, 7
      %v2735 = vshll.u32 %v980, 16
      %v2737 = vor.u32 %v2734, %v2735
      %v2738 = vsel %vm1224, %v2728, %v2737
      %v2757 = vunpack.c.l.b16 %v2710
      %v2758 = vunpack.c.l.b16 %v2711
      %v2759 = vunpack.c.l.b16 %v2712
      %v2760 = vunpack.c.l.b16 %v2713
      %v2761 = vunpack.c.l.b16 %v2714
      %v2762 = vunpack.c.l.b16 %v2715
      %v2763 = vunpack.c.l.b16 %v2716
      %v2764 = vunpack.c.l.b16 %v2717
      %v2765 = vunpack.c.l.b16 %v2718
      %v2766 = vunpack.c.l.b16 %v2719
      %v2767 = vunpack.c.l.b16 %v2720
      %v2768 = vunpack.c.l.b16 %v2721
      %v2769 = vunpack.c.l.b16 %v2722
      %v2770 = vunpack.c.l.b16 %v2723
      %v2771 = vunpack.c.l.b16 %v2724
      %v2772 = vunpack.c.l.b16 %v2725
      %v2773 = vpack.c.b16 %v2758, %v2757
      %v2774 = vpack.c.b16 %v2760, %v2759
      %v2775 = vpack.c.b16 %v2762, %v2761
      %v2776 = vpack.c.b16 %v2764, %v2763
      %v2777 = vpack.c.b16 %v2766, %v2765
      %v2778 = vpack.c.b16 %v2768, %v2767
      %v2779 = vpack.c.b16 %v2770, %v2769
      %v2780 = vpack.c.b16 %v2772, %v2771
      %2789 = vmatprep.subr.bf16.mxu0 0
      %2790 = vmatpush1.bf16.msra.mxu0 %v2773
      %2791 = vmatprep.subr.bf16.mxu0 0
      %2792 = vmatpush1.bf16.msra.mxu0 %v2774
      %2793 = vmatprep.subr.bf16.mxu0 0
      %2794 = vmatpush1.bf16.msra.mxu0 %v2775
      %2795 = vmatprep.subr.bf16.mxu0 0
      %2796 = vmatpush1.bf16.msra.mxu0 %v2776
      %2797 = vmatprep.subr.bf16.mxu0 0
      %2798 = vmatpush1.bf16.msra.mxu0 %v2777
      %2799 = vmatprep.subr.bf16.mxu0 0
      %2800 = vmatpush1.bf16.msra.mxu0 %v2778
      %2801 = vmatprep.subr.bf16.mxu0 0
      %2802 = vmatpush1.bf16.msra.mxu0 %v2779
      %2803 = vmatprep.subr.bf16.mxu0 0
      %2804 = vmatpush1.bf16.msra.mxu0 %v2780
      %2805 = vmatprep.subr.bf16.mxu0 0
      %2806 = vmatpush1.bf16.msra.mxu0 0
      %2807 = vmatprep.subr.bf16.mxu0 0
      %2808 = vmatpush1.bf16.msra.mxu0 0
      %2809 = vmatprep.subr.bf16.mxu0 0
      %2810 = vmatpush1.bf16.msra.mxu0 0
      %2811 = vmatprep.subr.bf16.mxu0 0
      %2812 = vmatpush1.bf16.msra.mxu0 0
      %2813 = vmatprep.subr.bf16.mxu0 0
      %2814 = vmatpush1.bf16.msra.mxu0 0
      %2815 = vmatprep.subr.bf16.mxu0 0
      %2816 = vmatpush1.bf16.msra.mxu0 0
      %2817 = vmatprep.subr.bf16.mxu0 0
      %2818 = vmatpush1.bf16.msra.mxu0 0
      %2819 = vmatprep.subr.bf16.mxu0 0
      %2820 = vmatpush1.bf16.msra.mxu0 0
      %2821 = vmatprep.mubr.bf16.mxu0 0
      %2822 = vmatmul.mubr.bf16.gmra.mrb[0].mxu0 %v1268
      %v2823 = vpop.f32.mrb[0].mxu0
      %v2824 = vadd.f32 0.0, %v2823
      %v2825 = vpop.f32.mrb[0].mxu0
      %v2826 = vpop.f32.mrb[0].mxu0
      %v2827 = vadd.f32 0.0, %v2826
      %v2828 = vpop.f32.mrb[0].mxu0
      %2829 = vmatprep.mubr.bf16.mxu0 0
      %2830 = vmatmul.mubr.bf16.gmra.mrb[0].mxu0 %v1276
      %v2831 = vpop.f32.mrb[0].mxu0
      %v2832 = vadd.f32 0.0, %v2831
      %v2833 = vpop.f32.mrb[0].mxu0
      %v2834 = vpop.f32.mrb[0].mxu0
      %v2835 = vadd.f32 0.0, %v2834
      %v2836 = vpop.f32.mrb[0].mxu0
      %2837 = vmatprep.mubr.bf16.mxu0 0
      %2838 = vmatmul.mubr.bf16.gmra.mrb[0].mxu0 %v1284
      %v2839 = vpop.f32.mrb[0].mxu0
      %v2840 = vadd.f32 0.0, %v2839
      %v2841 = vpop.f32.mrb[0].mxu0
      %v2842 = vpop.f32.mrb[0].mxu0
      %v2843 = vadd.f32 0.0, %v2842
      %v2844 = vpop.f32.mrb[0].mxu0
      %2845 = vmatprep.mubr.bf16.mxu0 0
      %2846 = vmatmul.mubr.bf16.gmra.mrb[0].mxu0 %v1292
      %v2847 = vpop.f32.mrb[0].mxu0
      %v2848 = vadd.f32 0.0, %v2847
      %v2849 = vpop.f32.mrb[0].mxu0
      %v2850 = vpop.f32.mrb[0].mxu0
      %v2851 = vadd.f32 0.0, %v2850
      %v2852 = vpop.f32.mrb[0].mxu0
      %2853 = vmatprep.mubr.bf16.mxu0 0
      %2854 = vmatmul.mubr.bf16.gmra.mrb[0].mxu0 %v1300
      %v2855 = vpop.f32.mrb[0].mxu0
      %v2856 = vadd.f32 0.0, %v2855
      %v2857 = vpop.f32.mrb[0].mxu0
      %v2858 = vpop.f32.mrb[0].mxu0
      %v2859 = vadd.f32 0.0, %v2858
      %v2860 = vpop.f32.mrb[0].mxu0
      %2861 = vmatprep.mubr.bf16.mxu0 0
      %2862 = vmatmul.mubr.bf16.gmra.mrb[0].mxu0 %v1308
      %v2863 = vpop.f32.mrb[0].mxu0
      %v2864 = vadd.f32 0.0, %v2863
      %v2865 = vpop.f32.mrb[0].mxu0
      %v2866 = vpop.f32.mrb[0].mxu0
      %v2867 = vadd.f32 0.0, %v2866
      %v2868 = vpop.f32.mrb[0].mxu0
      %2869 = vmatprep.mubr.bf16.mxu0 0
      %2870 = vmatmul.mubr.bf16.gmra.mrb[0].mxu0 %v1316
      %v2871 = vpop.f32.mrb[0].mxu0
      %v2872 = vadd.f32 0.0, %v2871
      %v2873 = vpop.f32.mrb[0].mxu0
      %v2874 = vpop.f32.mrb[0].mxu0
      %v2875 = vadd.f32 0.0, %v2874
      %v2876 = vpop.f32.mrb[0].mxu0
      %2877 = vmatprep.mubr.bf16.mxu0 0
      %2878 = vmatmul.mubr.bf16.gmra.mrb[0].mxu0 %v1324
      %v2879 = vpop.f32.mrb[0].mxu0
      %v2880 = vadd.f32 0.0, %v2879
      %v2881 = vpop.f32.mrb[0].mxu0
      %v2882 = vpop.f32.mrb[0].mxu0
      %v2883 = vadd.f32 0.0, %v2882
      %v2884 = vpop.f32.mrb[0].mxu0
      %2885 = vmatprep.mubr.bf16.mxu0 0
      %2886 = vmatmul.mubr.bf16.gmra.mrb[0].mxu0 %v1332
      %v2887 = vpop.f32.mrb[0].mxu0
      %v2888 = vadd.f32 0.0, %v2887
      %v2889 = vpop.f32.mrb[0].mxu0
      %v2890 = vpop.f32.mrb[0].mxu0
      %v2891 = vadd.f32 0.0, %v2890
      %v2892 = vpop.f32.mrb[0].mxu0
      %2893 = vmatprep.mubr.bf16.mxu0 0
      %2894 = vmatmul.mubr.bf16.gmra.mrb[0].mxu0 %v1340
      %v2895 = vpop.f32.mrb[0].mxu0
      %v2896 = vadd.f32 0.0, %v2895
      %v2897 = vpop.f32.mrb[0].mxu0
      %v2898 = vpop.f32.mrb[0].mxu0
      %v2899 = vadd.f32 0.0, %v2898
      %v2900 = vpop.f32.mrb[0].mxu0
      %2901 = vmatprep.mubr.bf16.mxu0 0
      %2902 = vmatmul.mubr.bf16.gmra.mrb[0].mxu0 %v1348
      %v2903 = vpop.f32.mrb[0].mxu0
      %v2904 = vadd.f32 0.0, %v2903
      %v2905 = vpop.f32.mrb[0].mxu0
      %v2906 = vpop.f32.mrb[0].mxu0
      %v2907 = vadd.f32 0.0, %v2906
      %v2908 = vpop.f32.mrb[0].mxu0
      %2909 = vmatprep.mubr.bf16.mxu0 0
      %2910 = vmatmul.mubr.bf16.gmra.mrb[0].mxu0 %v1356
      %v2911 = vpop.f32.mrb[0].mxu0
      %v2912 = vadd.f32 0.0, %v2911
      %v2913 = vpop.f32.mrb[0].mxu0
      %v2914 = vpop.f32.mrb[0].mxu0
      %v2915 = vadd.f32 0.0, %v2914
      %v2916 = vpop.f32.mrb[0].mxu0
      %2917 = vmatprep.mubr.bf16.mxu0 0
      %2918 = vmatmul.mubr.bf16.gmra.mrb[0].mxu0 %v1930
      %v2919 = vpop.f32.mrb[0].mxu0
      %v2920 = vadd.f32 0.0, %v2919
      %v2921 = vpop.f32.mrb[0].mxu0
      %v2922 = vpop.f32.mrb[0].mxu0
      %v2923 = vadd.f32 0.0, %v2922
      %v2924 = vpop.f32.mrb[0].mxu0
      %2925 = vmatprep.mubr.bf16.mxu0 0
      %2926 = vmatmul.mubr.bf16.gmra.mrb[0].mxu0 %v1938
      %v2927 = vpop.f32.mrb[0].mxu0
      %v2928 = vadd.f32 0.0, %v2927
      %v2929 = vpop.f32.mrb[0].mxu0
      %v2930 = vpop.f32.mrb[0].mxu0
      %v2931 = vadd.f32 0.0, %v2930
      %v2932 = vpop.f32.mrb[0].mxu0
      %2933 = vmatprep.mubr.bf16.mxu0 0
      %2934 = vmatmul.mubr.bf16.gmra.mrb[0].mxu0 %v2730
      %v2935 = vpop.f32.mrb[0].mxu0
      %v2936 = vadd.f32 0.0, %v2935
      %v2937 = vpop.f32.mrb[0].mxu0
      %v2938 = vpop.f32.mrb[0].mxu0
      %v2939 = vadd.f32 0.0, %v2938
      %v2940 = vpop.f32.mrb[0].mxu0
      %2941 = vmatprep.mubr.bf16.mxu0 0
      %2942 = vmatmul.mubr.bf16.gmra.mrb[0].mxu0 %v2738
      %v2943 = vpop.f32.mrb[0].mxu0
      %v2944 = vadd.f32 0.0, %v2943
      %v2945 = vpop.f32.mrb[0].mxu0
      %v2946 = vpop.f32.mrb[0].mxu0
      %v2947 = vadd.f32 0.0, %v2946
      %v2948 = vpop.f32.mrb[0].mxu0
      %2949 = vdwg.mxu0
      %v2950 = vadd.f32 %v2677, %v2824
      %v2951 = vadd.f32 %v2678, %v2827
      %v2952 = vadd.f32 %v2679, %v2832
      %v2953 = vadd.f32 %v2680, %v2835
      %v2954 = vadd.f32 %v2681, %v2840
      %v2955 = vadd.f32 %v2682, %v2843
      %v2956 = vadd.f32 %v2683, %v2848
      %v2957 = vadd.f32 %v2684, %v2851
      %v2958 = vadd.f32 %v2685, %v2856
      %v2959 = vadd.f32 %v2686, %v2859
      %v2960 = vadd.f32 %v2687, %v2864
      %v2961 = vadd.f32 %v2688, %v2867
      %v2962 = vadd.f32 %v2689, %v2872
      %v2963 = vadd.f32 %v2690, %v2875
      %v2964 = vadd.f32 %v2691, %v2880
      %v2965 = vadd.f32 %v2692, %v2883
      %v2966 = vadd.f32 %v2693, %v2888
      %v2967 = vadd.f32 %v2694, %v2891
      %v2968 = vadd.f32 %v2695, %v2896
      %v2969 = vadd.f32 %v2696, %v2899
      %v2970 = vadd.f32 %v2697, %v2904
      %v2971 = vadd.f32 %v2698, %v2907
      %v2972 = vadd.f32 %v2699, %v2912
      %v2973 = vadd.f32 %v2700, %v2915
      %v2974 = vadd.f32 %v2701, %v2920
      %v2975 = vadd.f32 %v2702, %v2923
      %v2976 = vadd.f32 %v2703, %v2928
      %v2977 = vadd.f32 %v2704, %v2931
      %v2978 = vadd.f32 %v2705, %v2936
      %v2979 = vadd.f32 %v2706, %v2939
      %v2980 = vadd.f32 %v2707, %v2944
      %v2981 = vadd.f32 %v2708, %v2947
      %s2982 = scalar_lea.vmem %s3, 448
      %v2983 = vld [vmem:[%s2982] sm:$0xf]
      %v2984 = vld [vmem:[%s2982 + $0x4] sm:$0xf]
      %v2985 = vld [vmem:[%s2982 + $0x8] sm:$0xf]
      %v2986 = vld [vmem:[%s2982 + $0xc] sm:$0xf]
      %v2987 = vld [vmem:[%s2982 + $0x10] sm:$0xf]
      %v2988 = vld [vmem:[%s2982 + $0x14] sm:$0xf]
      %v2989 = vld [vmem:[%s2982 + $0x18] sm:$0xf]
      %v2990 = vld [vmem:[%s2982 + $0x1c] sm:$0xf]
      %v2991 = vld [vmem:[%s2982 + $0x20] sm:$0xf]
      %v2992 = vld [vmem:[%s2982 + $0x24] sm:$0xf]
      %v2993 = vld [vmem:[%s2982 + $0x28] sm:$0xf]
      %v2994 = vld [vmem:[%s2982 + $0x2c] sm:$0xf]
      %v2995 = vld [vmem:[%s2982 + $0x30] sm:$0xf]
      %v2996 = vld [vmem:[%s2982 + $0x34] sm:$0xf]
      %v2997 = vld [vmem:[%s2982 + $0x38] sm:$0xf]
      %v2998 = vld [vmem:[%s2982 + $0x3c] sm:$0xf]
      %v3015 = vunpack.c.l.b16 %v2983
      %v3016 = vunpack.c.l.b16 %v2984
      %v3017 = vunpack.c.l.b16 %v2985
      %v3018 = vunpack.c.l.b16 %v2986
      %v3019 = vunpack.c.l.b16 %v2987
      %v3020 = vunpack.c.l.b16 %v2988
      %v3021 = vunpack.c.l.b16 %v2989
      %v3022 = vunpack.c.l.b16 %v2990
      %v3023 = vunpack.c.l.b16 %v2991
      %v3024 = vunpack.c.l.b16 %v2992
      %v3025 = vunpack.c.l.b16 %v2993
      %v3026 = vunpack.c.l.b16 %v2994
      %v3027 = vunpack.c.l.b16 %v2995
      %v3028 = vunpack.c.l.b16 %v2996
      %v3029 = vunpack.c.l.b16 %v2997
      %v3030 = vunpack.c.l.b16 %v2998
      %v3031 = vpack.c.b16 %v3016, %v3015
      %v3032 = vpack.c.b16 %v3018, %v3017
      %v3033 = vpack.c.b16 %v3020, %v3019
      %v3034 = vpack.c.b16 %v3022, %v3021
      %v3035 = vpack.c.b16 %v3024, %v3023
      %v3036 = vpack.c.b16 %v3026, %v3025
      %v3037 = vpack.c.b16 %v3028, %v3027
      %v3038 = vpack.c.b16 %v3030, %v3029
      %3047 = vmatprep.subr.bf16.mxu0 0
      %3048 = vmatpush1.bf16.msra.mxu0 %v3031
      %3049 = vmatprep.subr.bf16.mxu0 0
      %3050 = vmatpush1.bf16.msra.mxu0 %v3032
      %3051 = vmatprep.subr.bf16.mxu0 0
      %3052 = vmatpush1.bf16.msra.mxu0 %v3033
      %3053 = vmatprep.subr.bf16.mxu0 0
      %3054 = vmatpush1.bf16.msra.mxu0 %v3034
      %3055 = vmatprep.subr.bf16.mxu0 0
      %3056 = vmatpush1.bf16.msra.mxu0 %v3035
      %3057 = vmatprep.subr.bf16.mxu0 0
      %3058 = vmatpush1.bf16.msra.mxu0 %v3036
      %3059 = vmatprep.subr.bf16.mxu0 0
      %3060 = vmatpush1.bf16.msra.mxu0 %v3037
      %3061 = vmatprep.subr.bf16.mxu0 0
      %3062 = vmatpush1.bf16.msra.mxu0 %v3038
      %3063 = vmatprep.subr.bf16.mxu0 0
      %3064 = vmatpush1.bf16.msra.mxu0 0
      %3065 = vmatprep.subr.bf16.mxu0 0
      %3066 = vmatpush1.bf16.msra.mxu0 0
      %3067 = vmatprep.subr.bf16.mxu0 0
      %3068 = vmatpush1.bf16.msra.mxu0 0
      %3069 = vmatprep.subr.bf16.mxu0 0
      %3070 = vmatpush1.bf16.msra.mxu0 0
      %3071 = vmatprep.subr.bf16.mxu0 0
      %3072 = vmatpush1.bf16.msra.mxu0 0
      %3073 = vmatprep.subr.bf16.mxu0 0
      %3074 = vmatpush1.bf16.msra.mxu0 0
      %3075 = vmatprep.subr.bf16.mxu0 0
      %3076 = vmatpush1.bf16.msra.mxu0 0
      %3077 = vmatprep.subr.bf16.mxu0 0
      %3078 = vmatpush1.bf16.msra.mxu0 0
      %3079 = vmatprep.mubr.bf16.mxu0 0
      %3080 = vmatmul.mubr.bf16.gmra.mrb[0].mxu0 %v965
      %v3081 = vpop.f32.mrb[0].mxu0
      %v3082 = vadd.f32 0.0, %v3081
      %v3083 = vpop.f32.mrb[0].mxu0
      %v3084 = vpop.f32.mrb[0].mxu0
      %v3085 = vadd.f32 0.0, %v3084
      %v3086 = vpop.f32.mrb[0].mxu0
      %3087 = vmatprep.mubr.bf16.mxu0 0
      %3088 = vmatmul.mubr.bf16.gmra.mrb[0].mxu0 %v966
      %v3089 = vpop.f32.mrb[0].mxu0
      %v3090 = vadd.f32 0.0, %v3089
      %v3091 = vpop.f32.mrb[0].mxu0
      %v3092 = vpop.f32.mrb[0].mxu0
      %v3093 = vadd.f32 0.0, %v3092
      %v3094 = vpop.f32.mrb[0].mxu0
      %3095 = vmatprep.mubr.bf16.mxu0 0
      %3096 = vmatmul.mubr.bf16.gmra.mrb[0].mxu0 %v967
      %v3097 = vpop.f32.mrb[0].mxu0
      %v3098 = vadd.f32 0.0, %v3097
      %v3099 = vpop.f32.mrb[0].mxu0
      %v3100 = vpop.f32.mrb[0].mxu0
      %v3101 = vadd.f32 0.0, %v3100
      %v3102 = vpop.f32.mrb[0].mxu0
      %3103 = vmatprep.mubr.bf16.mxu0 0
      %3104 = vmatmul.mubr.bf16.gmra.mrb[0].mxu0 %v968
      %v3105 = vpop.f32.mrb[0].mxu0
      %v3106 = vadd.f32 0.0, %v3105
      %v3107 = vpop.f32.mrb[0].mxu0
      %v3108 = vpop.f32.mrb[0].mxu0
      %v3109 = vadd.f32 0.0, %v3108
      %v3110 = vpop.f32.mrb[0].mxu0
      %3111 = vmatprep.mubr.bf16.mxu0 0
      %3112 = vmatmul.mubr.bf16.gmra.mrb[0].mxu0 %v969
      %v3113 = vpop.f32.mrb[0].mxu0
      %v3114 = vadd.f32 0.0, %v3113
      %v3115 = vpop.f32.mrb[0].mxu0
      %v3116 = vpop.f32.mrb[0].mxu0
      %v3117 = vadd.f32 0.0, %v3116
      %v3118 = vpop.f32.mrb[0].mxu0
      %3119 = vmatprep.mubr.bf16.mxu0 0
      %3120 = vmatmul.mubr.bf16.gmra.mrb[0].mxu0 %v970
      %v3121 = vpop.f32.mrb[0].mxu0
      %v3122 = vadd.f32 0.0, %v3121
      %v3123 = vpop.f32.mrb[0].mxu0
      %v3124 = vpop.f32.mrb[0].mxu0
      %v3125 = vadd.f32 0.0, %v3124
      %v3126 = vpop.f32.mrb[0].mxu0
      %3127 = vmatprep.mubr.bf16.mxu0 0
      %3128 = vmatmul.mubr.bf16.gmra.mrb[0].mxu0 %v971
      %v3129 = vpop.f32.mrb[0].mxu0
      %v3130 = vadd.f32 0.0, %v3129
      %v3131 = vpop.f32.mrb[0].mxu0
      %v3132 = vpop.f32.mrb[0].mxu0
      %v3133 = vadd.f32 0.0, %v3132
      %v3134 = vpop.f32.mrb[0].mxu0
      %3135 = vmatprep.mubr.bf16.mxu0 0
      %3136 = vmatmul.mubr.bf16.gmra.mrb[0].mxu0 %v972
      %v3137 = vpop.f32.mrb[0].mxu0
      %v3138 = vadd.f32 0.0, %v3137
      %v3139 = vpop.f32.mrb[0].mxu0
      %v3140 = vpop.f32.mrb[0].mxu0
      %v3141 = vadd.f32 0.0, %v3140
      %v3142 = vpop.f32.mrb[0].mxu0
      %3143 = vmatprep.mubr.bf16.mxu0 0
      %3144 = vmatmul.mubr.bf16.gmra.mrb[0].mxu0 %v973
      %v3145 = vpop.f32.mrb[0].mxu0
      %v3146 = vadd.f32 0.0, %v3145
      %v3147 = vpop.f32.mrb[0].mxu0
      %v3148 = vpop.f32.mrb[0].mxu0
      %v3149 = vadd.f32 0.0, %v3148
      %v3150 = vpop.f32.mrb[0].mxu0
      %3151 = vmatprep.mubr.bf16.mxu0 0
      %3152 = vmatmul.mubr.bf16.gmra.mrb[0].mxu0 %v974
      %v3153 = vpop.f32.mrb[0].mxu0
      %v3154 = vadd.f32 0.0, %v3153
      %v3155 = vpop.f32.mrb[0].mxu0
      %v3156 = vpop.f32.mrb[0].mxu0
      %v3157 = vadd.f32 0.0, %v3156
      %v3158 = vpop.f32.mrb[0].mxu0
      %3159 = vmatprep.mubr.bf16.mxu0 0
      %3160 = vmatmul.mubr.bf16.gmra.mrb[0].mxu0 %v975
      %v3161 = vpop.f32.mrb[0].mxu0
      %v3162 = vadd.f32 0.0, %v3161
      %v3163 = vpop.f32.mrb[0].mxu0
      %v3164 = vpop.f32.mrb[0].mxu0
      %v3165 = vadd.f32 0.0, %v3164
      %v3166 = vpop.f32.mrb[0].mxu0
      %3167 = vmatprep.mubr.bf16.mxu0 0
      %3168 = vmatmul.mubr.bf16.gmra.mrb[0].mxu0 %v976
      %v3169 = vpop.f32.mrb[0].mxu0
      %v3170 = vadd.f32 0.0, %v3169
      %v3171 = vpop.f32.mrb[0].mxu0
      %v3172 = vpop.f32.mrb[0].mxu0
      %v3173 = vadd.f32 0.0, %v3172
      %v3174 = vpop.f32.mrb[0].mxu0
      %3175 = vmatprep.mubr.bf16.mxu0 0
      %3176 = vmatmul.mubr.bf16.gmra.mrb[0].mxu0 %v977
      %v3177 = vpop.f32.mrb[0].mxu0
      %v3178 = vadd.f32 0.0, %v3177
      %v3179 = vpop.f32.mrb[0].mxu0
      %v3180 = vpop.f32.mrb[0].mxu0
      %v3181 = vadd.f32 0.0, %v3180
      %v3182 = vpop.f32.mrb[0].mxu0
      %3183 = vmatprep.mubr.bf16.mxu0 0
      %3184 = vmatmul.mubr.bf16.gmra.mrb[0].mxu0 %v978
      %v3185 = vpop.f32.mrb[0].mxu0
      %v3186 = vadd.f32 0.0, %v3185
      %v3187 = vpop.f32.mrb[0].mxu0
      %v3188 = vpop.f32.mrb[0].mxu0
      %v3189 = vadd.f32 0.0, %v3188
      %v3190 = vpop.f32.mrb[0].mxu0
      %3191 = vmatprep.mubr.bf16.mxu0 0
      %3192 = vmatmul.mubr.bf16.gmra.mrb[0].mxu0 %v979
      %v3193 = vpop.f32.mrb[0].mxu0
      %v3194 = vadd.f32 0.0, %v3193
      %v3195 = vpop.f32.mrb[0].mxu0
      %v3196 = vpop.f32.mrb[0].mxu0
      %v3197 = vadd.f32 0.0, %v3196
      %v3198 = vpop.f32.mrb[0].mxu0
      %3199 = vmatprep.mubr.bf16.mxu0 0
      %3200 = vmatmul.mubr.bf16.gmra.mrb[0].mxu0 %v980
      %v3201 = vpop.f32.mrb[0].mxu0
      %v3202 = vadd.f32 0.0, %v3201
      %v3203 = vpop.f32.mrb[0].mxu0
      %v3204 = vpop.f32.mrb[0].mxu0
      %v3205 = vadd.f32 0.0, %v3204
      %v3206 = vpop.f32.mrb[0].mxu0
      %3207 = vdwg.mxu0
      %v3208 = vadd.f32 %v2950, %v3082
      %v3209 = vadd.f32 %v2951, %v3085
      %v3210 = vadd.f32 %v2952, %v3090
      %v3211 = vadd.f32 %v2953, %v3093
      %v3212 = vadd.f32 %v2954, %v3098
      %v3213 = vadd.f32 %v2955, %v3101
      %v3214 = vadd.f32 %v2956, %v3106
      %v3215 = vadd.f32 %v2957, %v3109
      %v3216 = vadd.f32 %v2958, %v3114
      %v3217 = vadd.f32 %v2959, %v3117
      %v3218 = vadd.f32 %v2960, %v3122
      %v3219 = vadd.f32 %v2961, %v3125
      %v3220 = vadd.f32 %v2962, %v3130
      %v3221 = vadd.f32 %v2963, %v3133
      %v3222 = vadd.f32 %v2964, %v3138
      %v3223 = vadd.f32 %v2965, %v3141
      %v3224 = vadd.f32 %v2966, %v3146
      %v3225 = vadd.f32 %v2967, %v3149
      %v3226 = vadd.f32 %v2968, %v3154
      %v3227 = vadd.f32 %v2969, %v3157
      %v3228 = vadd.f32 %v2970, %v3162
      %v3229 = vadd.f32 %v2971, %v3165
      %v3230 = vadd.f32 %v2972, %v3170
      %v3231 = vadd.f32 %v2973, %v3173
      %v3232 = vadd.f32 %v2974, %v3178
      %v3233 = vadd.f32 %v2975, %v3181
      %v3234 = vadd.f32 %v2976, %v3186
      %v3235 = vadd.f32 %v2977, %v3189
      %v3236 = vadd.f32 %v2978, %v3194
      %v3237 = vadd.f32 %v2979, %v3197
      %v3238 = vadd.f32 %v2980, %v3202
      %v3239 = vadd.f32 %v2981, %v3205
      %s3240 = scalar_lea.vmem %s3, 512
      %v3241 = vld [vmem:[%s3240] sm:$0xf]
      %v3242 = vld [vmem:[%s3240 + $0x4] sm:$0xf]
      %v3243 = vld [vmem:[%s3240 + $0x8] sm:$0xf]
      %v3244 = vld [vmem:[%s3240 + $0xc] sm:$0xf]
      %v3245 = vld [vmem:[%s3240 + $0x10] sm:$0xf]
      %v3246 = vld [vmem:[%s3240 + $0x14] sm:$0xf]
      %v3247 = vld [vmem:[%s3240 + $0x18] sm:$0xf]
      %v3248 = vld [vmem:[%s3240 + $0x1c] sm:$0xf]
      %v3249 = vld [vmem:[%s3240 + $0x20] sm:$0xf]
      %v3250 = vld [vmem:[%s3240 + $0x24] sm:$0xf]
      %v3251 = vld [vmem:[%s3240 + $0x28] sm:$0xf]
      %v3252 = vld [vmem:[%s3240 + $0x2c] sm:$0xf]
      %v3253 = vld [vmem:[%s3240 + $0x30] sm:$0xf]
      %v3254 = vld [vmem:[%s3240 + $0x34] sm:$0xf]
      %v3255 = vld [vmem:[%s3240 + $0x38] sm:$0xf]
      %v3256 = vld [vmem:[%s3240 + $0x3c] sm:$0xf]
      %v3257 = vor.u32 %v2726, %v2464
      %v3258 = vrot.slane %v2735, 1
      %v3259 = vsel %vm1599, %v3257, %v3258
      %v3260 = vor.u32 %v2732, %v3258
      %v3262 = vshll.u32 %v981, 16
      %v3264 = vrot.slane %v3262, 1
      %v3265 = vsel %vm1599, %v3260, %v3264
      %v3284 = vunpack.c.l.b16 %v3241
      %v3285 = vunpack.c.l.b16 %v3242
      %v3286 = vunpack.c.l.b16 %v3243
      %v3287 = vunpack.c.l.b16 %v3244
      %v3288 = vunpack.c.l.b16 %v3245
      %v3289 = vunpack.c.l.b16 %v3246
      %v3290 = vunpack.c.l.b16 %v3247
      %v3291 = vunpack.c.l.b16 %v3248
      %v3292 = vunpack.c.l.b16 %v3249
      %v3293 = vunpack.c.l.b16 %v3250
      %v3294 = vunpack.c.l.b16 %v3251
      %v3295 = vunpack.c.l.b16 %v3252
      %v3296 = vunpack.c.l.b16 %v3253
      %v3297 = vunpack.c.l.b16 %v3254
      %v3298 = vunpack.c.l.b16 %v3255
      %v3299 = vunpack.c.l.b16 %v3256
      %v3300 = vpack.c.b16 %v3285, %v3284
      %v3301 = vpack.c.b16 %v3287, %v3286
      %v3302 = vpack.c.b16 %v3289, %v3288
      %v3303 = vpack.c.b16 %v3291, %v3290
      %v3304 = vpack.c.b16 %v3293, %v3292
      %v3305 = vpack.c.b16 %v3295, %v3294
      %v3306 = vpack.c.b16 %v3297, %v3296
      %v3307 = vpack.c.b16 %v3299, %v3298
      %3316 = vmatprep.subr.bf16.mxu0 0
      %3317 = vmatpush1.bf16.msra.mxu0 %v3300
      %3318 = vmatprep.subr.bf16.mxu0 0
      %3319 = vmatpush1.bf16.msra.mxu0 %v3301
      %3320 = vmatprep.subr.bf16.mxu0 0
      %3321 = vmatpush1.bf16.msra.mxu0 %v3302
      %3322 = vmatprep.subr.bf16.mxu0 0
      %3323 = vmatpush1.bf16.msra.mxu0 %v3303
      %3324 = vmatprep.subr.bf16.mxu0 0
      %3325 = vmatpush1.bf16.msra.mxu0 %v3304
      %3326 = vmatprep.subr.bf16.mxu0 0
      %3327 = vmatpush1.bf16.msra.mxu0 %v3305
      %3328 = vmatprep.subr.bf16.mxu0 0
      %3329 = vmatpush1.bf16.msra.mxu0 %v3306
      %3330 = vmatprep.subr.bf16.mxu0 0
      %3331 = vmatpush1.bf16.msra.mxu0 %v3307
      %3332 = vmatprep.subr.bf16.mxu0 0
      %3333 = vmatpush1.bf16.msra.mxu0 0
      %3334 = vmatprep.subr.bf16.mxu0 0
      %3335 = vmatpush1.bf16.msra.mxu0 0
      %3336 = vmatprep.subr.bf16.mxu0 0
      %3337 = vmatpush1.bf16.msra.mxu0 0
      %3338 = vmatprep.subr.bf16.mxu0 0
      %3339 = vmatpush1.bf16.msra.mxu0 0
      %3340 = vmatprep.subr.bf16.mxu0 0
      %3341 = vmatpush1.bf16.msra.mxu0 0
      %3342 = vmatprep.subr.bf16.mxu0 0
      %3343 = vmatpush1.bf16.msra.mxu0 0
      %3344 = vmatprep.subr.bf16.mxu0 0
      %3345 = vmatpush1.bf16.msra.mxu0 0
      %3346 = vmatprep.subr.bf16.mxu0 0
      %3347 = vmatpush1.bf16.msra.mxu0 0
      %3348 = vmatprep.mubr.bf16.mxu0 0
      %3349 = vmatmul.mubr.bf16.gmra.mrb[0].mxu0 %v1615
      %v3350 = vpop.f32.mrb[0].mxu0
      %v3351 = vadd.f32 0.0, %v3350
      %v3352 = vpop.f32.mrb[0].mxu0
      %v3353 = vpop.f32.mrb[0].mxu0
      %v3354 = vadd.f32 0.0, %v3353
      %v3355 = vpop.f32.mrb[0].mxu0
      %3356 = vmatprep.mubr.bf16.mxu0 0
      %3357 = vmatmul.mubr.bf16.gmra.mrb[0].mxu0 %v1618
      %v3358 = vpop.f32.mrb[0].mxu0
      %v3359 = vadd.f32 0.0, %v3358
      %v3360 = vpop.f32.mrb[0].mxu0
      %v3361 = vpop.f32.mrb[0].mxu0
      %v3362 = vadd.f32 0.0, %v3361
      %v3363 = vpop.f32.mrb[0].mxu0
      %3364 = vmatprep.mubr.bf16.mxu0 0
      %3365 = vmatmul.mubr.bf16.gmra.mrb[0].mxu0 %v1621
      %v3366 = vpop.f32.mrb[0].mxu0
      %v3367 = vadd.f32 0.0, %v3366
      %v3368 = vpop.f32.mrb[0].mxu0
      %v3369 = vpop.f32.mrb[0].mxu0
      %v3370 = vadd.f32 0.0, %v3369
      %v3371 = vpop.f32.mrb[0].mxu0
      %3372 = vmatprep.mubr.bf16.mxu0 0
      %3373 = vmatmul.mubr.bf16.gmra.mrb[0].mxu0 %v1624
      %v3374 = vpop.f32.mrb[0].mxu0
      %v3375 = vadd.f32 0.0, %v3374
      %v3376 = vpop.f32.mrb[0].mxu0
      %v3377 = vpop.f32.mrb[0].mxu0
      %v3378 = vadd.f32 0.0, %v3377
      %v3379 = vpop.f32.mrb[0].mxu0
      %3380 = vmatprep.mubr.bf16.mxu0 0
      %3381 = vmatmul.mubr.bf16.gmra.mrb[0].mxu0 %v1627
      %v3382 = vpop.f32.mrb[0].mxu0
      %v3383 = vadd.f32 0.0, %v3382
      %v3384 = vpop.f32.mrb[0].mxu0
      %v3385 = vpop.f32.mrb[0].mxu0
      %v3386 = vadd.f32 0.0, %v3385
      %v3387 = vpop.f32.mrb[0].mxu0
      %3388 = vmatprep.mubr.bf16.mxu0 0
      %3389 = vmatmul.mubr.bf16.gmra.mrb[0].mxu0 %v1630
      %v3390 = vpop.f32.mrb[0].mxu0
      %v3391 = vadd.f32 0.0, %v3390
      %v3392 = vpop.f32.mrb[0].mxu0
      %v3393 = vpop.f32.mrb[0].mxu0
      %v3394 = vadd.f32 0.0, %v3393
      %v3395 = vpop.f32.mrb[0].mxu0
      %3396 = vmatprep.mubr.bf16.mxu0 0
      %3397 = vmatmul.mubr.bf16.gmra.mrb[0].mxu0 %v1633
      %v3398 = vpop.f32.mrb[0].mxu0
      %v3399 = vadd.f32 0.0, %v3398
      %v3400 = vpop.f32.mrb[0].mxu0
      %v3401 = vpop.f32.mrb[0].mxu0
      %v3402 = vadd.f32 0.0, %v3401
      %v3403 = vpop.f32.mrb[0].mxu0
      %3404 = vmatprep.mubr.bf16.mxu0 0
      %3405 = vmatmul.mubr.bf16.gmra.mrb[0].mxu0 %v1636
      %v3406 = vpop.f32.mrb[0].mxu0
      %v3407 = vadd.f32 0.0, %v3406
      %v3408 = vpop.f32.mrb[0].mxu0
      %v3409 = vpop.f32.mrb[0].mxu0
      %v3410 = vadd.f32 0.0, %v3409
      %v3411 = vpop.f32.mrb[0].mxu0
      %3412 = vmatprep.mubr.bf16.mxu0 0
      %3413 = vmatmul.mubr.bf16.gmra.mrb[0].mxu0 %v1639
      %v3414 = vpop.f32.mrb[0].mxu0
      %v3415 = vadd.f32 0.0, %v3414
      %v3416 = vpop.f32.mrb[0].mxu0
      %v3417 = vpop.f32.mrb[0].mxu0
      %v3418 = vadd.f32 0.0, %v3417
      %v3419 = vpop.f32.mrb[0].mxu0
      %3420 = vmatprep.mubr.bf16.mxu0 0
      %3421 = vmatmul.mubr.bf16.gmra.mrb[0].mxu0 %v1642
      %v3422 = vpop.f32.mrb[0].mxu0
      %v3423 = vadd.f32 0.0, %v3422
      %v3424 = vpop.f32.mrb[0].mxu0
      %v3425 = vpop.f32.mrb[0].mxu0
      %v3426 = vadd.f32 0.0, %v3425
      %v3427 = vpop.f32.mrb[0].mxu0
      %3428 = vmatprep.mubr.bf16.mxu0 0
      %3429 = vmatmul.mubr.bf16.gmra.mrb[0].mxu0 %v1645
      %v3430 = vpop.f32.mrb[0].mxu0
      %v3431 = vadd.f32 0.0, %v3430
      %v3432 = vpop.f32.mrb[0].mxu0
      %v3433 = vpop.f32.mrb[0].mxu0
      %v3434 = vadd.f32 0.0, %v3433
      %v3435 = vpop.f32.mrb[0].mxu0
      %3436 = vmatprep.mubr.bf16.mxu0 0
      %3437 = vmatmul.mubr.bf16.gmra.mrb[0].mxu0 %v1651
      %v3438 = vpop.f32.mrb[0].mxu0
      %v3439 = vadd.f32 0.0, %v3438
      %v3440 = vpop.f32.mrb[0].mxu0
      %v3441 = vpop.f32.mrb[0].mxu0
      %v3442 = vadd.f32 0.0, %v3441
      %v3443 = vpop.f32.mrb[0].mxu0
      %3444 = vmatprep.mubr.bf16.mxu0 0
      %3445 = vmatmul.mubr.bf16.gmra.mrb[0].mxu0 %v2459
      %v3446 = vpop.f32.mrb[0].mxu0
      %v3447 = vadd.f32 0.0, %v3446
      %v3448 = vpop.f32.mrb[0].mxu0
      %v3449 = vpop.f32.mrb[0].mxu0
      %v3450 = vadd.f32 0.0, %v3449
      %v3451 = vpop.f32.mrb[0].mxu0
      %3452 = vmatprep.mubr.bf16.mxu0 0
      %3453 = vmatmul.mubr.bf16.gmra.mrb[0].mxu0 %v2465
      %v3454 = vpop.f32.mrb[0].mxu0
      %v3455 = vadd.f32 0.0, %v3454
      %v3456 = vpop.f32.mrb[0].mxu0
      %v3457 = vpop.f32.mrb[0].mxu0
      %v3458 = vadd.f32 0.0, %v3457
      %v3459 = vpop.f32.mrb[0].mxu0
      %3460 = vmatprep.mubr.bf16.mxu0 0
      %3461 = vmatmul.mubr.bf16.gmra.mrb[0].mxu0 %v3259
      %v3462 = vpop.f32.mrb[0].mxu0
      %v3463 = vadd.f32 0.0, %v3462
      %v3464 = vpop.f32.mrb[0].mxu0
      %v3465 = vpop.f32.mrb[0].mxu0
      %v3466 = vadd.f32 0.0, %v3465
      %v3467 = vpop.f32.mrb[0].mxu0
      %3468 = vmatprep.mubr.bf16.mxu0 0
      %3469 = vmatmul.mubr.bf16.gmra.mrb[0].mxu0 %v3265
      %v3470 = vpop.f32.mrb[0].mxu0
      %v3471 = vadd.f32 0.0, %v3470
      %v3472 = vpop.f32.mrb[0].mxu0
      %v3473 = vpop.f32.mrb[0].mxu0
      %v3474 = vadd.f32 0.0, %v3473
      %v3475 = vpop.f32.mrb[0].mxu0
      %3476 = vdwg.mxu0
      %v3477 = vadd.f32 %v3208, %v3351
      %v3478 = vadd.f32 %v3209, %v3354
      %v3479 = vadd.f32 %v3210, %v3359
      %v3480 = vadd.f32 %v3211, %v3362
      %v3481 = vadd.f32 %v3212, %v3367
      %v3482 = vadd.f32 %v3213, %v3370
      %v3483 = vadd.f32 %v3214, %v3375
      %v3484 = vadd.f32 %v3215, %v3378
      %v3485 = vadd.f32 %v3216, %v3383
      %v3486 = vadd.f32 %v3217, %v3386
      %v3487 = vadd.f32 %v3218, %v3391
      %v3488 = vadd.f32 %v3219, %v3394
      %v3489 = vadd.f32 %v3220, %v3399
      %v3490 = vadd.f32 %v3221, %v3402
      %v3491 = vadd.f32 %v3222, %v3407
      %v3492 = vadd.f32 %v3223, %v3410
      %v3493 = vadd.f32 %v3224, %v3415
      %v3494 = vadd.f32 %v3225, %v3418
      %v3495 = vadd.f32 %v3226, %v3423
      %v3496 = vadd.f32 %v3227, %v3426
      %v3497 = vadd.f32 %v3228, %v3431
      %v3498 = vadd.f32 %v3229, %v3434
      %v3499 = vadd.f32 %v3230, %v3439
      %v3500 = vadd.f32 %v3231, %v3442
      %v3501 = vadd.f32 %v3232, %v3447
      %v3502 = vadd.f32 %v3233, %v3450
      %v3503 = vadd.f32 %v3234, %v3455
      %v3504 = vadd.f32 %v3235, %v3458
      %v3505 = vadd.f32 %v3236, %v3463
      %v3506 = vadd.f32 %v3237, %v3466
      %v3507 = vadd.f32 %v3238, %v3471
      %v3508 = vadd.f32 %v3239, %v3474
      %v3509 = vpack.c.bf16 %v3478, %v3477
      %v3510 = vpack.c.bf16 %v3480, %v3479
      %v3511 = vpack.c.bf16 %v3482, %v3481
      %v3512 = vpack.c.bf16 %v3484, %v3483
      %v3513 = vpack.c.bf16 %v3486, %v3485
      %v3514 = vpack.c.bf16 %v3488, %v3487
      %v3515 = vpack.c.bf16 %v3490, %v3489
      %v3516 = vpack.c.bf16 %v3492, %v3491
      %v3517 = vpack.c.bf16 %v3494, %v3493
      %v3518 = vpack.c.bf16 %v3496, %v3495
      %v3519 = vpack.c.bf16 %v3498, %v3497
      %v3520 = vpack.c.bf16 %v3500, %v3499
      %v3521 = vpack.c.bf16 %v3502, %v3501
      %v3522 = vpack.c.bf16 %v3504, %v3503
      %v3523 = vpack.c.bf16 %v3506, %v3505
      %v3524 = vpack.c.bf16 %v3508, %v3507
      %v3541 = vunpack.c.l.b16 %v3509
      %v3542 = vunpack.c.h.b16 %v3509
      %v3543 = vunpack.c.l.b16 %v3510
      %v3544 = vunpack.c.h.b16 %v3510
      %v3545 = vunpack.c.l.b16 %v3511
      %v3546 = vunpack.c.h.b16 %v3511
      %v3547 = vunpack.c.l.b16 %v3512
      %v3548 = vunpack.c.h.b16 %v3512
      %v3549 = vunpack.c.l.b16 %v3513
      %v3550 = vunpack.c.h.b16 %v3513
      %v3551 = vunpack.c.l.b16 %v3514
      %v3552 = vunpack.c.h.b16 %v3514
      %v3553 = vunpack.c.l.b16 %v3515
      %v3554 = vunpack.c.h.b16 %v3515
      %v3555 = vunpack.c.l.b16 %v3516
      %v3556 = vunpack.c.h.b16 %v3516
      %v3557 = vunpack.c.l.b16 %v3517
      %v3558 = vunpack.c.h.b16 %v3517
      %v3559 = vunpack.c.l.b16 %v3518
      %v3560 = vunpack.c.h.b16 %v3518
      %v3561 = vunpack.c.l.b16 %v3519
      %v3562 = vunpack.c.h.b16 %v3519
      %v3563 = vunpack.c.l.b16 %v3520
      %v3564 = vunpack.c.h.b16 %v3520
      %v3565 = vunpack.c.l.b16 %v3521
      %v3566 = vunpack.c.h.b16 %v3521
      %v3567 = vunpack.c.l.b16 %v3522
      %v3568 = vunpack.c.h.b16 %v3522
      %v3569 = vunpack.c.l.b16 %v3523
      %v3570 = vunpack.c.h.b16 %v3523
      %v3571 = vunpack.c.l.b16 %v3524
      %v3572 = vunpack.c.h.b16 %v3524
      %v3573 = vpack.c.b16 %v3541, %v3541
      %v3574 = vpack.c.b16 %v3542, %v3542
      %v3575 = vpack.c.b16 %v3543, %v3543
      %v3576 = vpack.c.b16 %v3544, %v3544
      %v3577 = vpack.c.b16 %v3545, %v3545
      %v3578 = vpack.c.b16 %v3546, %v3546
      %v3579 = vpack.c.b16 %v3547, %v3547
      %v3580 = vpack.c.b16 %v3548, %v3548
      %v3581 = vpack.c.b16 %v3549, %v3549
      %v3582 = vpack.c.b16 %v3550, %v3550
      %v3583 = vpack.c.b16 %v3551, %v3551
      %v3584 = vpack.c.b16 %v3552, %v3552
      %v3585 = vpack.c.b16 %v3553, %v3553
      %v3586 = vpack.c.b16 %v3554, %v3554
      %v3587 = vpack.c.b16 %v3555, %v3555
      %v3588 = vpack.c.b16 %v3556, %v3556
      %v3589 = vpack.c.b16 %v3557, %v3557
      %v3590 = vpack.c.b16 %v3558, %v3558
      %v3591 = vpack.c.b16 %v3559, %v3559
      %v3592 = vpack.c.b16 %v3560, %v3560
      %v3593 = vpack.c.b16 %v3561, %v3561
      %v3594 = vpack.c.b16 %v3562, %v3562
      %v3595 = vpack.c.b16 %v3563, %v3563
      %v3596 = vpack.c.b16 %v3564, %v3564
      %v3597 = vpack.c.b16 %v3565, %v3565
      %v3598 = vpack.c.b16 %v3566, %v3566
      %v3599 = vpack.c.b16 %v3567, %v3567
      %v3600 = vpack.c.b16 %v3568, %v3568
      %v3601 = vpack.c.b16 %v3569, %v3569
      %v3602 = vpack.c.b16 %v3570, %v3570
      %v3603 = vpack.c.b16 %v3571, %v3571
      %v3604 = vpack.c.b16 %v3572, %v3572
      %3637 = vst [vmem:[%s457] sm:$0xf] %v3573
      %3638 = vst [vmem:[%s457 + $0x4] sm:$0xf] %v3574
      %3639 = vst [vmem:[%s457 + $0x8] sm:$0xf] %v3575
      %3640 = vst [vmem:[%s457 + $0xc] sm:$0xf] %v3576
      %3641 = vst [vmem:[%s457 + $0x10] sm:$0xf] %v3577
      %3642 = vst [vmem:[%s457 + $0x14] sm:$0xf] %v3578
      %3643 = vst [vmem:[%s457 + $0x18] sm:$0xf] %v3579
      %3644 = vst [vmem:[%s457 + $0x1c] sm:$0xf] %v3580
      %3645 = vst [vmem:[%s457 + $0x20] sm:$0xf] %v3581
      %3646 = vst [vmem:[%s457 + $0x24] sm:$0xf] %v3582
      %3647 = vst [vmem:[%s457 + $0x28] sm:$0xf] %v3583
      %3648 = vst [vmem:[%s457 + $0x2c] sm:$0xf] %v3584
      %3649 = vst [vmem:[%s457 + $0x30] sm:$0xf] %v3585
      %3650 = vst [vmem:[%s457 + $0x34] sm:$0xf] %v3586
      %3651 = vst [vmem:[%s457 + $0x38] sm:$0xf] %v3587
      %3652 = vst [vmem:[%s457 + $0x3c] sm:$0xf] %v3588
      %3653 = vst [vmem:[%s457 + $0x40] sm:$0xf] %v3589
      %3654 = vst [vmem:[%s457 + $0x44] sm:$0xf] %v3590
      %3655 = vst [vmem:[%s457 + $0x48] sm:$0xf] %v3591
      %3656 = vst [vmem:[%s457 + $0x4c] sm:$0xf] %v3592
      %3657 = vst [vmem:[%s457 + $0x50] sm:$0xf] %v3593
      %3658 = vst [vmem:[%s457 + $0x54] sm:$0xf] %v3594
      %3659 = vst [vmem:[%s457 + $0x58] sm:$0xf] %v3595
      %3660 = vst [vmem:[%s457 + $0x5c] sm:$0xf] %v3596
      %3661 = vst [vmem:[%s457 + $0x60] sm:$0xf] %v3597
      %3662 = vst [vmem:[%s457 + $0x64] sm:$0xf] %v3598
      %3663 = vst [vmem:[%s457 + $0x68] sm:$0xf] %v3599
      %3664 = vst [vmem:[%s457 + $0x6c] sm:$0xf] %v3600
      %3665 = vst [vmem:[%s457 + $0x70] sm:$0xf] %v3601
      %3666 = vst [vmem:[%s457 + $0x74] sm:$0xf] %v3602
      %3667 = vst [vmem:[%s457 + $0x78] sm:$0xf] %v3603
      %3668 = vst [vmem:[%s457 + $0x7c] sm:$0xf] %v3604
      %v3669 = vmul.f32 %v3477, %v928
      %v3670 = vmul.f32 %v3478, %v929
      %v3671 = vmul.f32 %v3479, %v930
      %v3672 = vmul.f32 %v3480, %v931
      %v3673 = vmul.f32 %v3481, %v932
      %v3674 = vmul.f32 %v3482, %v933
      %v3675 = vmul.f32 %v3483, %v934
      %v3676 = vmul.f32 %v3484, %v935
      %v3677 = vmul.f32 %v3485, %v936
      %v3678 = vmul.f32 %v3486, %v937
      %v3679 = vmul.f32 %v3487, %v938
      %v3680 = vmul.f32 %v3488, %v939
      %v3681 = vmul.f32 %v3489, %v940
      %v3682 = vmul.f32 %v3490, %v941
      %v3683 = vmul.f32 %v3491, %v942
      %v3684 = vmul.f32 %v3492, %v943
      %v3685 = vmul.f32 %v3493, %v944
      %v3686 = vmul.f32 %v3494, %v945
      %v3687 = vmul.f32 %v3495, %v946
      %v3688 = vmul.f32 %v3496, %v947
      %v3689 = vmul.f32 %v3497, %v948
      %v3690 = vmul.f32 %v3498, %v949
      %v3691 = vmul.f32 %v3499, %v950
      %v3692 = vmul.f32 %v3500, %v951
      %v3693 = vmul.f32 %v3501, %v952
      %v3694 = vmul.f32 %v3502, %v953
      %v3695 = vmul.f32 %v3503, %v954
      %v3696 = vmul.f32 %v3504, %v955
      %v3697 = vmul.f32 %v3505, %v956
      %v3698 = vmul.f32 %v3506, %v957
      %v3699 = vmul.f32 %v3507, %v958
      %v3700 = vmul.f32 %v3508, %v959
      %v3701 = vadd.f32 %v3669, %v3670
      %v3702 = vadd.f32 %v3701, %v3671
      %v3703 = vadd.f32 %v3702, %v3672
      %v3704 = vadd.f32 %v3703, %v3673
      %v3705 = vadd.f32 %v3704, %v3674
      %v3706 = vadd.f32 %v3705, %v3675
      %v3707 = vadd.f32 %v3706, %v3676
      %v3708 = vadd.f32 %v3707, %v3677
      %v3709 = vadd.f32 %v3708, %v3678
      %v3710 = vadd.f32 %v3709, %v3679
      %v3711 = vadd.f32 %v3710, %v3680
      %v3712 = vadd.f32 %v3711, %v3681
      %v3713 = vadd.f32 %v3712, %v3682
      %v3714 = vadd.f32 %v3713, %v3683
      %v3715 = vadd.f32 %v3714, %v3684
      %v3716 = vadd.f32 %v3715, %v3685
      %v3717 = vadd.f32 %v3716, %v3686
      %v3718 = vadd.f32 %v3717, %v3687
      %v3719 = vadd.f32 %v3718, %v3688
      %v3720 = vadd.f32 %v3719, %v3689
      %v3721 = vadd.f32 %v3720, %v3690
      %v3722 = vadd.f32 %v3721, %v3691
      %v3723 = vadd.f32 %v3722, %v3692
      %v3724 = vadd.f32 %v3723, %v3693
      %v3725 = vadd.f32 %v3724, %v3694
      %v3726 = vadd.f32 %v3725, %v3695
      %v3727 = vadd.f32 %v3726, %v3696
      %v3728 = vadd.f32 %v3727, %v3697
      %v3729 = vadd.f32 %v3728, %v3698
      %v3730 = vadd.f32 %v3729, %v3699
      %v3731 = vadd.f32 %v3730, %v3700
      %v3732 = vrot.slane %v3731, 4
      %v3733 = vadd.f32 %v3731, %v3732
      %v3734 = vrot.slane %v3733, 2
      %v3735 = vadd.f32 %v3733, %v3734
      %v3736 = vrot.slane %v3735, 1
      %v3737 = vadd.f32 %v3735, %v3736
      %v3738 = vmul.f32 %v3669, %v3477
      %v3739 = vmul.f32 %v3670, %v3478
      %v3740 = vmul.f32 %v3671, %v3479
      %v3741 = vmul.f32 %v3672, %v3480
      %v3742 = vmul.f32 %v3673, %v3481
      %v3743 = vmul.f32 %v3674, %v3482
      %v3744 = vmul.f32 %v3675, %v3483
      %v3745 = vmul.f32 %v3676, %v3484
      %v3746 = vmul.f32 %v3677, %v3485
      %v3747 = vmul.f32 %v3678, %v3486
      %v3748 = vmul.f32 %v3679, %v3487
      %v3749 = vmul.f32 %v3680, %v3488
      %v3750 = vmul.f32 %v3681, %v3489
      %v3751 = vmul.f32 %v3682, %v3490
      %v3752 = vmul.f32 %v3683, %v3491
      %v3753 = vmul.f32 %v3684, %v3492
      %v3754 = vmul.f32 %v3685, %v3493
      %v3755 = vmul.f32 %v3686, %v3494
      %v3756 = vmul.f32 %v3687, %v3495
      %v3757 = vmul.f32 %v3688, %v3496
      %v3758 = vmul.f32 %v3689, %v3497
      %v3759 = vmul.f32 %v3690, %v3498
      %v3760 = vmul.f32 %v3691, %v3499
      %v3761 = vmul.f32 %v3692, %v3500
      %v3762 = vmul.f32 %v3693, %v3501
      %v3763 = vmul.f32 %v3694, %v3502
      %v3764 = vmul.f32 %v3695, %v3503
      %v3765 = vmul.f32 %v3696, %v3504
      %v3766 = vmul.f32 %v3697, %v3505
      %v3767 = vmul.f32 %v3698, %v3506
      %v3768 = vmul.f32 %v3699, %v3507
      %v3769 = vmul.f32 %v3700, %v3508
      %v3770 = vadd.f32 %v3738, %v3739
      %v3771 = vadd.f32 %v3770, %v3740
      %v3772 = vadd.f32 %v3771, %v3741
      %v3773 = vadd.f32 %v3772, %v3742
      %v3774 = vadd.f32 %v3773, %v3743
      %v3775 = vadd.f32 %v3774, %v3744
      %v3776 = vadd.f32 %v3775, %v3745
      %v3777 = vadd.f32 %v3776, %v3746
      %v3778 = vadd.f32 %v3777, %v3747
      %v3779 = vadd.f32 %v3778, %v3748
      %v3780 = vadd.f32 %v3779, %v3749
      %v3781 = vadd.f32 %v3780, %v3750
      %v3782 = vadd.f32 %v3781, %v3751
      %v3783 = vadd.f32 %v3782, %v3752
      %v3784 = vadd.f32 %v3783, %v3753
      %v3785 = vadd.f32 %v3784, %v3754
      %v3786 = vadd.f32 %v3785, %v3755
      %v3787 = vadd.f32 %v3786, %v3756
      %v3788 = vadd.f32 %v3787, %v3757
      %v3789 = vadd.f32 %v3788, %v3758
      %v3790 = vadd.f32 %v3789, %v3759
      %v3791 = vadd.f32 %v3790, %v3760
      %v3792 = vadd.f32 %v3791, %v3761
      %v3793 = vadd.f32 %v3792, %v3762
      %v3794 = vadd.f32 %v3793, %v3763
      %v3795 = vadd.f32 %v3794, %v3764
      %v3796 = vadd.f32 %v3795, %v3765
      %v3797 = vadd.f32 %v3796, %v3766
      %v3798 = vadd.f32 %v3797, %v3767
      %v3799 = vadd.f32 %v3798, %v3768
      %v3800 = vadd.f32 %v3799, %v3769
      %v3801 = vrot.slane %v3800, 4
      %v3802 = vadd.f32 %v3800, %v3801
      %v3803 = vrot.slane %v3802, 2
      %v3804 = vadd.f32 %v3802, %v3803
      %v3805 = vrot.slane %v3804, 1
      %v3806 = vadd.f32 %v3804, %v3805
      %vm3807 = vcmask 1040384
      %v3808 = vsel %vm3807, %v3737, %v3806
      %3809 = vst [vmem:[%s466] sm:$0x3] %v3808
      %s3810 = smul.u32 32, %s24
      %p3811 = scmp.lt.s32.totalorder %s23, 1
      %s3812 = scalar_select %p3811, %s23, 1
      %p3813 = scmp.lt.s32.totalorder %s3810, 63
      %s3814 = scalar_select %p3813, %s3810, 63
      %s3815 = smul.addr %s3812, 64
      %s3816 = sadd.s32 %s3814, %s3815
      %s3817 = smul.addr %s3816, 4
      %s3818 = scalar_lea.vmem %s6, %s3817
      %p3819 = scmp.lt.s32.totalorder %s23, 1
      %s3820 = scalar_select %p3819, %s23, 1
      %p3821 = scmp.lt.s32.totalorder %s24, 1
      %s3822 = scalar_select %p3821, %s24, 1
      %s3823 = smul.addr %s3820, 2
      %s3824 = sadd.s32 %s3822, %s3823
      %s3825 = smul.addr %s3824, 2
      %s3826 = scalar_lea.vmem %s7, %s3825
      // Predicated region
      $region45: #{_forward_impl.7} parent=43 // pred_check
        %p3827 = pneg %p214
      $region46: #{_forward_impl.7} parent=43 // pred_check_branch
        %3829 = sbr.rel (%p3827) target = $region48
      $region47: #{_forward_impl.7} parent=43 // pred_region
        %s3830 = smul.u32 32, %s24
      $region48: #{_forward_impl.7} parent=43 // pred_fallthru
        _
      // Predicated region
      $region49: #{_forward_impl.7} parent=43 // pred_check
        %p3831 = pneg %p242
      $region50: #{_forward_impl.7} parent=43 // pred_check_branch
        %3833 = sbr.rel (%p3831) target = $region52
      $region51: #{_forward_impl.7} parent=43 // pred_region
        _
      $region52: #{_forward_impl.7} parent=43 // pred_fallthru
        _
    $region44: #{_forward_impl.7} parent=5 // pred_fallthru
      _
    %p3834 = scmp.le.s32.totalorder 2, %s14
    // Predicated region
    $region53: #{_forward_impl.7} parent=5 // pred_check
      %p3835 = pneg %p3834
    $region54: #{_forward_impl.7} parent=5 // pred_check_branch
      %3837 = sbr.rel (%p3835) target = $region56
    $region55: #{_forward_impl.7} parent=5 // pred_region
      %s3838 = ssub.s32 %s14, 2
      // Predicated region
      $region57: #{_forward_impl.7} parent=55 // pred_check
        %p3839 = pneg %p220
      $region58: #{_forward_impl.7} parent=55 // pred_check_branch
        %3841 = sbr.rel (%p3839) target = $region60
      $region59: #{_forward_impl.7} parent=55 // pred_region
        %s3842 = smul.u32 32, %s26
        %p3843 = scmp.lt.s32.totalorder %s25, 1
        %s3844 = scalar_select %p3843, %s25, 1
        %p3845 = scmp.lt.s32.totalorder %s3842, 63
        %s3846 = scalar_select %p3845, %s3842, 63
        %s3847 = smul.addr %s3844, 64
        %s3848 = sadd.s32 %s3846, %s3847
        %s3849 = smul.addr %s3848, 4
        %s3850 = scalar_lea.vmem %s6, %s3849
      $region60: #{_forward_impl.7} parent=55 // pred_fallthru
        _
      // Predicated region
      $region61: #{_forward_impl.7} parent=55 // pred_check
        %p3851 = pneg %p248
      $region62: #{_forward_impl.7} parent=55 // pred_check_branch
        %3853 = sbr.rel (%p3851) target = $region64
      $region63: #{_forward_impl.7} parent=55 // pred_region
        %p3854 = scmp.lt.s32.totalorder %s25, 1
        %s3855 = scalar_select %p3854, %s25, 1
        %p3856 = scmp.lt.s32.totalorder %s26, 1
        %s3857 = scalar_select %p3856, %s26, 1
        %s3858 = smul.addr %s3855, 2
        %s3859 = sadd.s32 %s3857, %s3858
        %s3860 = smul.addr %s3859, 2
        %s3861 = scalar_lea.vmem %s7, %s3860
      $region64: #{_forward_impl.7} parent=55 // pred_fallthru
        _
    $region56: #{_forward_impl.7} parent=5 // pred_fallthru
      _
  $region6: #{_forward_impl.7} parent=0 // loop_footer
    %s18 = sadd.s32 1, %s14
  $region7: #{_forward_impl.7} parent=0 // loop_footer_branch
    %13 = sbr.rel target = $region3
  $region8: #{_forward_impl.7} parent=0 // loop_exit
    _

// kernel: _forward_impl.8
$region0: #{_forward_impl.8}
  #allocation0 [shape = 'u32[]', space=smem, size = 0x4, offset = 0x4, fixed_abs, tag = 'smem constant byte address 0x4 - core index']
  #allocation1 [shape = 'u32[144,128]{1,0:T(1,128)}', space=vmem, size = 0x12000, scoped, tag = 'internal scratch']
  %s0 = inlined_call_operand.vmem [shape: bf16[2,512,128], index: 0, kind: input, shape index: {}, may-alias: {0,1,2}]
  %s1 = inlined_call_operand.vmem [shape: bf16[2,512,128], index: 1, kind: input, shape index: {}, may-alias: {0,1,2}]
  %s2 = inlined_call_operand.vmem [shape: bf16[2,512,128], index: 2, kind: input, shape index: {}, may-alias: {0,1,2}]
  %s3 = inlined_call_operand.vmem [shape: bf16[9,128,128], index: 3, kind: input, shape index: {}]
  %s4 = inlined_call_operand.vmem [shape: f32[1,128], index: 4, kind: input, shape index: {}]
  %s5 = inlined_call_operand.vmem [shape: f32[1,128], index: 5, kind: input, shape index: {}]
  %s6 = inlined_call_operand.vmem [shape: bf16[2,512,128], index: 6, kind: output, shape index: {0}]
  %s7 = inlined_call_operand.vmem [shape: f32[2,2,2,128], index: 7, kind: output, shape index: {1}]
  %8 = xla_tuple %s6, %s7
  %s9 = sld [smem:[#allocation0]]
  $region65: #{_forward_impl.8} parent=0
    _
  %s11 = ssub.s32 1, %s9
  %s12 = scalar_select 0, %s11, %s9
  loop: start=0, step=1, limit=6
  $region2: #{_forward_impl.8} parent=0 // loop_pre_header
    _
  $region3: #{_forward_impl.8} parent=0 // loop_header
    %s14 = sphi 0, %s18
    %p15 = scmp.ge.s32.totalorder %s14, 6
    %s21 = sphi 0, %s33
    %s22 = sphi 0, %s29
    %s23 = sphi 0, %s21
    %s24 = sphi 0, %s22
    %s25 = sphi 0, %s23
    %s26 = sphi 0, %s24
    %s46 = sphi 0, %s48
    %s49 = sphi 0, %s46
    %s50 = sphi 0, %s49
    %s66 = sphi 0, %s50
    %s74 = sphi 0, %s76
    %s77 = sphi 0, %s74
    %s78 = sphi 0, %s77
    %s94 = sphi 0, %s78
    %s110 = sphi 0, %s112
    %s113 = sphi 0, %s110
    %s114 = sphi 0, %s113
    %s130 = sphi 0, %s114
    %s134 = sphi 0, %s134
    %s136 = sphi 0, %s134
    %s137 = sphi 0, %s136
    %s151 = sphi 0, %s137
    %s155 = sphi 0, %s155
    %s157 = sphi 0, %s155
    %s158 = sphi 0, %s157
    %s172 = sphi 0, %s158
    %s176 = sphi 0, %s176
    %s178 = sphi 0, %s176
    %s179 = sphi 0, %s178
    %s193 = sphi 0, %s179
    %s201 = sphi 0, %s203
    %s204 = sphi 0, %s201
    %s205 = sphi 0, %s204
    %s221 = sphi 0, %s205
    %s229 = sphi 0, %s231
    %s232 = sphi 0, %s229
    %s233 = sphi 0, %s232
    %s249 = sphi 0, %s233
  $region4: #{_forward_impl.8} parent=0 // loop_header_branch
    %17 = sbr.rel (%p15) target = $region8
  $region5: #{_forward_impl.8} parent=0 // loop_body
    %s19 = ssub.s32 %s14, 1
    %s20 = ssub.s32 %s14, 2
    %s27 = sadd.s32 1, %s22
    %p28 = scmp.ge.s32.totalorder %s27, 2
    %s29 = scalar_select %p28, 0, %s27
    %s30 = sadd.s32 1, %s21
    %s31 = scalar_select %p28, %s30, %s21
    %p32 = scmp.ge.s32.totalorder %s31, 2
    %s33 = scalar_select %p32, 0, %s31
    %s34 = smul.u32 %s22, 4
    %s35 = ssub.s32 %s34, 1
    %p36 = scmp.gt.s32.totalorder %s35, 0
    %s37 = scalar_select %p36, %s35, 0
    %s38 = smul.u32 %s29, 4
    %s39 = ssub.s32 %s38, 1
    %p40 = scmp.gt.s32.totalorder %s39, 0
    %s41 = scalar_select %p40, %s39, 0
    %s42 = ssub.s32 %s21, %s33
    %s43 = ssub.s32 %s37, %s41
    %s44 = sor.u32 %s42, %s43
    %p45 = scmp.eq.s32.totalorder %s44, 0
    %s47 = sadd.s32 %s46, 1
    %s48 = scalar_select %p45, %s46, %s47
    %p51 = pneg %p45
    %p52 = scmp.eq.s32.totalorder %s14, 3
    %p53 = por %p51, %p52
    %p54 = scmp.ne.s32.totalorder %s46, %s49
    %p55 = scmp.eq.s32.totalorder %s14, 0
    %p56 = por %p54, %p55
    %p57 = scmp.ne.s32.totalorder %s46, %s49
    %p58 = scmp.eq.s32.totalorder %s19, 3
    %p59 = por %p57, %p58
    %p60 = scmp.ne.s32.totalorder %s49, %s50
    %p61 = scmp.eq.s32.totalorder %s19, 0
    %p62 = por %p60, %p61
    %p63 = scmp.ne.s32.totalorder %s49, %s50
    %p64 = scmp.eq.s32.totalorder %s20, 3
    %p65 = por %p63, %p64
    %p67 = scmp.ne.s32.totalorder %s50, %s66
    %p68 = scmp.eq.s32.totalorder %s20, 0
    %p69 = por %p67, %p68
    %s70 = ssub.s32 %s21, %s33
    %s71 = ssub.s32 %s22, %s29
    %s72 = sor.u32 %s70, %s71
    %p73 = scmp.eq.s32.totalorder %s72, 0
    %s75 = sadd.s32 %s74, 1
    %s76 = scalar_select %p73, %s74, %s75
    %p79 = pneg %p73
    %p80 = scmp.eq.s32.totalorder %s14, 3
    %p81 = por %p79, %p80
    %p82 = scmp.ne.s32.totalorder %s74, %s77
    %p83 = scmp.eq.s32.totalorder %s14, 0
    %p84 = por %p82, %p83
    %p85 = scmp.ne.s32.totalorder %s74, %s77
    %p86 = scmp.eq.s32.totalorder %s19, 3
    %p87 = por %p85, %p86
    %p88 = scmp.ne.s32.totalorder %s77, %s78
    %p89 = scmp.eq.s32.totalorder %s19, 0
    %p90 = por %p88, %p89
    %p91 = scmp.ne.s32.totalorder %s77, %s78
    %p92 = scmp.eq.s32.totalorder %s20, 3
    %p93 = por %p91, %p92
    %p95 = scmp.ne.s32.totalorder %s78, %s94
    %p96 = scmp.eq.s32.totalorder %s20, 0
    %p97 = por %p95, %p96
    %s98 = sadd.s32 %s22, 1
    %s99 = smul.u32 %s98, 4
    %p100 = scmp.lt.s32.totalorder %s99, 7
    %s101 = scalar_select %p100, %s99, 7
    %s102 = sadd.s32 %s29, 1
    %s103 = smul.u32 %s102, 4
    %p104 = scmp.lt.s32.totalorder %s103, 7
    %s105 = scalar_select %p104, %s103, 7
    %s106 = ssub.s32 %s21, %s33
    %s107 = ssub.s32 %s101, %s105
    %s108 = sor.u32 %s106, %s107
    %p109 = scmp.eq.s32.totalorder %s108, 0
    %s111 = sadd.s32 %s110, 1
    %s112 = scalar_select %p109, %s110, %s111
    %p115 = pneg %p109
    %p116 = scmp.eq.s32.totalorder %s14, 3
    %p117 = por %p115, %p116
    %p118 = scmp.ne.s32.totalorder %s110, %s113
    %p119 = scmp.eq.s32.totalorder %s14, 0
    %p120 = por %p118, %p119
    %p121 = scmp.ne.s32.totalorder %s110, %s113
    %p122 = scmp.eq.s32.totalorder %s19, 3
    %p123 = por %p121, %p122
    %p124 = scmp.ne.s32.totalorder %s113, %s114
    %p125 = scmp.eq.s32.totalorder %s19, 0
    %p126 = por %p124, %p125
    %p127 = scmp.ne.s32.totalorder %s113, %s114
    %p128 = scmp.eq.s32.totalorder %s20, 3
    %p129 = por %p127, %p128
    %p131 = scmp.ne.s32.totalorder %s114, %s130
    %p132 = scmp.eq.s32.totalorder %s20, 0
    %p133 = por %p131, %p132
    %s135 = sadd.s32 %s134, 1
    %p138 = scmp.eq.s32.totalorder %s14, 3
    %p139 = scmp.ne.s32.totalorder %s134, %s136
    %p140 = scmp.eq.s32.totalorder %s14, 0
    %p141 = por %p139, %p140
    %p142 = scmp.ne.s32.totalorder %s134, %s136
    %p143 = scmp.eq.s32.totalorder %s19, 3
    %p144 = por %p142, %p143
    %p145 = scmp.ne.s32.totalorder %s136, %s137
    %p146 = scmp.eq.s32.totalorder %s19, 0
    %p147 = por %p145, %p146
    %p148 = scmp.ne.s32.totalorder %s136, %s137
    %p149 = scmp.eq.s32.totalorder %s20, 3
    %p150 = por %p148, %p149
    %p152 = scmp.ne.s32.totalorder %s137, %s151
    %p153 = scmp.eq.s32.totalorder %s20, 0
    %p154 = por %p152, %p153
    %s156 = sadd.s32 %s155, 1
    %p159 = scmp.eq.s32.totalorder %s14, 3
    %p160 = scmp.ne.s32.totalorder %s155, %s157
    %p161 = scmp.eq.s32.totalorder %s14, 0
    %p162 = por %p160, %p161
    %p163 = scmp.ne.s32.totalorder %s155, %s157
    %p164 = scmp.eq.s32.totalorder %s19, 3
    %p165 = por %p163, %p164
    %p166 = scmp.ne.s32.totalorder %s157, %s158
    %p167 = scmp.eq.s32.totalorder %s19, 0
    %p168 = por %p166, %p167
    %p169 = scmp.ne.s32.totalorder %s157, %s158
    %p170 = scmp.eq.s32.totalorder %s20, 3
    %p171 = por %p169, %p170
    %p173 = scmp.ne.s32.totalorder %s158, %s172
    %p174 = scmp.eq.s32.totalorder %s20, 0
    %p175 = por %p173, %p174
    %s177 = sadd.s32 %s176, 1
    %p180 = scmp.eq.s32.totalorder %s14, 3
    %p181 = scmp.ne.s32.totalorder %s176, %s178
    %p182 = scmp.eq.s32.totalorder %s14, 0
    %p183 = por %p181, %p182
    %p184 = scmp.ne.s32.totalorder %s176, %s178
    %p185 = scmp.eq.s32.totalorder %s19, 3
    %p186 = por %p184, %p185
    %p187 = scmp.ne.s32.totalorder %s178, %s179
    %p188 = scmp.eq.s32.totalorder %s19, 0
    %p189 = por %p187, %p188
    %p190 = scmp.ne.s32.totalorder %s178, %s179
    %p191 = scmp.eq.s32.totalorder %s20, 3
    %p192 = por %p190, %p191
    %p194 = scmp.ne.s32.totalorder %s179, %s193
    %p195 = scmp.eq.s32.totalorder %s20, 0
    %p196 = por %p194, %p195
    %s197 = ssub.s32 %s21, %s33
    %s198 = ssub.s32 %s22, %s29
    %s199 = sor.u32 %s197, %s198
    %p200 = scmp.eq.s32.totalorder %s199, 0
    %s202 = sadd.s32 %s201, 1
    %s203 = scalar_select %p200, %s201, %s202
    %p206 = pneg %p200
    %p207 = scmp.eq.s32.totalorder %s14, 3
    %p208 = por %p206, %p207
    %p209 = scmp.ne.s32.totalorder %s201, %s204
    %p210 = scmp.eq.s32.totalorder %s14, 0
    %p211 = por %p209, %p210
    %p212 = scmp.ne.s32.totalorder %s201, %s204
    %p213 = scmp.eq.s32.totalorder %s19, 3
    %p214 = por %p212, %p213
    %p215 = scmp.ne.s32.totalorder %s204, %s205
    %p216 = scmp.eq.s32.totalorder %s19, 0
    %p217 = por %p215, %p216
    %p218 = scmp.ne.s32.totalorder %s204, %s205
    %p219 = scmp.eq.s32.totalorder %s20, 3
    %p220 = por %p218, %p219
    %p222 = scmp.ne.s32.totalorder %s205, %s221
    %p223 = scmp.eq.s32.totalorder %s20, 0
    %p224 = por %p222, %p223
    %s225 = ssub.s32 %s21, %s33
    %s226 = ssub.s32 %s22, %s29
    %s227 = sor.u32 %s225, %s226
    %p228 = scmp.eq.s32.totalorder %s227, 0
    %s230 = sadd.s32 %s229, 1
    %s231 = scalar_select %p228, %s229, %s230
    %p234 = pneg %p228
    %p235 = scmp.eq.s32.totalorder %s14, 3
    %p236 = por %p234, %p235
    %p237 = scmp.ne.s32.totalorder %s229, %s232
    %p238 = scmp.eq.s32.totalorder %s14, 0
    %p239 = por %p237, %p238
    %p240 = scmp.ne.s32.totalorder %s229, %s232
    %p241 = scmp.eq.s32.totalorder %s19, 3
    %p242 = por %p240, %p241
    %p243 = scmp.ne.s32.totalorder %s232, %s233
    %p244 = scmp.eq.s32.totalorder %s19, 0
    %p245 = por %p243, %p244
    %p246 = scmp.ne.s32.totalorder %s232, %s233
    %p247 = scmp.eq.s32.totalorder %s20, 3
    %p248 = por %p246, %p247
    %p250 = scmp.ne.s32.totalorder %s233, %s249
    %p251 = scmp.eq.s32.totalorder %s20, 0
    %p252 = por %p250, %p251
    %p253 = scmp.le.s32.totalorder 1, %s14
    %p254 = scmp.lt.s32.totalorder %s14, 5
    %p255 = pnand %p253, %p254
    %p256 = pneg %p255
    // Predicated region
    $region9: #{_forward_impl.8} parent=5 // pred_check
      _
    $region10: #{_forward_impl.8} parent=5 // pred_check_branch
      %258 = sbr.rel (%p255) target = $region12
    $region11: #{_forward_impl.8} parent=5 // pred_region
      %s259 = ssub.s32 %s14, 1
      // Predicated region
      $region13: #{_forward_impl.8} parent=11 // pred_check
        %p260 = pneg %p147
      $region14: #{_forward_impl.8} parent=11 // pred_check_branch
        %262 = sbr.rel (%p260) target = $region16
      $region15: #{_forward_impl.8} parent=11 // pred_region
        _
      $region16: #{_forward_impl.8} parent=11 // pred_fallthru
        _
      // Predicated region
      $region17: #{_forward_impl.8} parent=11 // pred_check
        %p263 = pneg %p168
      $region18: #{_forward_impl.8} parent=11 // pred_check_branch
        %265 = sbr.rel (%p263) target = $region20
      $region19: #{_forward_impl.8} parent=11 // pred_region
        _
      $region20: #{_forward_impl.8} parent=11 // pred_fallthru
        _
      // Predicated region
      $region21: #{_forward_impl.8} parent=11 // pred_check
        %p266 = pneg %p189
      $region22: #{_forward_impl.8} parent=11 // pred_check_branch
        %268 = sbr.rel (%p266) target = $region24
      $region23: #{_forward_impl.8} parent=11 // pred_region
        _
      $region24: #{_forward_impl.8} parent=11 // pred_fallthru
        _
    $region12: #{_forward_impl.8} parent=5 // pred_fallthru
      _
    %p269 = scmp.lt.s32.totalorder %s14, 4
    // Predicated region
    $region25: #{_forward_impl.8} parent=5 // pred_check
      %p270 = pneg %p269
    $region26: #{_forward_impl.8} parent=5 // pred_check_branch
      %272 = sbr.rel (%p270) target = $region28
    $region27: #{_forward_impl.8} parent=5 // pred_region
      // Predicated region
      $region29: #{_forward_impl.8} parent=27 // pred_check
        %p273 = pneg %p56
      $region30: #{_forward_impl.8} parent=27 // pred_check_branch
        %275 = sbr.rel (%p273) target = $region32
      $region31: #{_forward_impl.8} parent=27 // pred_region
        %s276 = smul.u32 %s22, 4
        %s277 = ssub.s32 %s276, 1
        %p278 = scmp.gt.s32.totalorder %s277, 0
        %s279 = scalar_select %p278, %s277, 0
        %s280 = smul.u32 8, %s279
        %p281 = scmp.lt.s32.totalorder %s21, 1
        %s282 = scalar_select %p281, %s21, 1
        %p283 = scmp.lt.s32.totalorder %s280, 63
        %s284 = scalar_select %p283, %s280, 63
        %s285 = smul.addr %s282, 64
        %s286 = sadd.s32 %s284, %s285
        %s287 = smul.addr %s286, 4
        %s288 = scalar_lea.vmem %s0, %s287
        %s289 = smul.u32 %s22, 4
        %s290 = ssub.s32 %s289, 1
        %p291 = scmp.gt.s32.totalorder %s290, 0
        %s292 = scalar_select %p291, %s290, 0
        %s293 = smul.u32 8, %s292
      $region32: #{_forward_impl.8} parent=27 // pred_fallthru
        _
      // Predicated region
      $region33: #{_forward_impl.8} parent=27 // pred_check
        %p294 = pneg %p84
      $region34: #{_forward_impl.8} parent=27 // pred_check_branch
        %296 = sbr.rel (%p294) target = $region36
      $region35: #{_forward_impl.8} parent=27 // pred_region
        %s297 = smul.u32 32, %s22
        %p298 = scmp.lt.s32.totalorder %s21, 1
        %s299 = scalar_select %p298, %s21, 1
        %p300 = scmp.lt.s32.totalorder %s297, 63
        %s301 = scalar_select %p300, %s297, 63
        %s302 = smul.addr %s299, 64
        %s303 = sadd.s32 %s301, %s302
        %s304 = smul.addr %s303, 4
        %s305 = scalar_lea.vmem %s1, %s304
        %s306 = smul.u32 32, %s22
      $region36: #{_forward_impl.8} parent=27 // pred_fallthru
        _
      // Predicated region
      $region37: #{_forward_impl.8} parent=27 // pred_check
        %p307 = pneg %p120
      $region38: #{_forward_impl.8} parent=27 // pred_check_branch
        %309 = sbr.rel (%p307) target = $region40
      $region39: #{_forward_impl.8} parent=27 // pred_region
        %s310 = sadd.s32 %s22, 1
        %s311 = smul.u32 %s310, 4
        %p312 = scmp.lt.s32.totalorder %s311, 7
        %s313 = scalar_select %p312, %s311, 7
        %s314 = smul.u32 8, %s313
        %p315 = scmp.lt.s32.totalorder %s21, 1
        %s316 = scalar_select %p315, %s21, 1
        %p317 = scmp.lt.s32.totalorder %s314, 63
        %s318 = scalar_select %p317, %s314, 63
        %s319 = smul.addr %s316, 64
        %s320 = sadd.s32 %s318, %s319
        %s321 = smul.addr %s320, 4
        %s322 = scalar_lea.vmem %s2, %s321
        %s323 = sadd.s32 %s22, 1
        %s324 = smul.u32 %s323, 4
        %p325 = scmp.lt.s32.totalorder %s324, 7
        %s326 = scalar_select %p325, %s324, 7
        %s327 = smul.u32 8, %s326
      $region40: #{_forward_impl.8} parent=27 // pred_fallthru
        _
    $region28: #{_forward_impl.8} parent=5 // pred_fallthru
      _
    %p328 = scmp.le.s32.totalorder 1, %s14
    %p329 = scmp.lt.s32.totalorder %s14, 5
    %p330 = pnand %p328, %p329
    %p331 = pneg %p330
    // Predicated region
    $region41: #{_forward_impl.8} parent=5 // pred_check
      _
    $region42: #{_forward_impl.8} parent=5 // pred_check_branch
      %333 = sbr.rel (%p330) target = $region44
    $region43: #{_forward_impl.8} parent=5 // pred_region
      %s334 = ssub.s32 %s14, 1
      %s335 = smul.u32 %s24, 4
      %s336 = ssub.s32 %s335, 1
      %p337 = scmp.gt.s32.totalorder %s336, 0
      %s338 = scalar_select %p337, %s336, 0
      %s339 = smul.u32 8, %s338
      %p340 = scmp.lt.s32.totalorder %s23, 1
      %s341 = scalar_select %p340, %s23, 1
      %p342 = scmp.lt.s32.totalorder %s339, 63
      %s343 = scalar_select %p342, %s339, 63
      %s344 = smul.addr %s341, 64
      %s345 = sadd.s32 %s343, %s344
      %s346 = smul.addr %s345, 4
      %s347 = scalar_lea.vmem %s0, %s346
      %p348 = pneg %p62
      %p349 = pneg %p59
      %s350 = smul.u32 32, %s24
      %p351 = scmp.lt.s32.totalorder %s23, 1
      %s352 = scalar_select %p351, %s23, 1
      %p353 = scmp.lt.s32.totalorder %s350, 63
      %s354 = scalar_select %p353, %s350, 63
      %s355 = smul.addr %s352, 64
      %s356 = sadd.s32 %s354, %s355
      %s357 = smul.addr %s356, 4
      %s358 = scalar_lea.vmem %s1, %s357
      %p359 = pneg %p90
      %p360 = pneg %p87
      %s361 = sadd.s32 %s24, 1
      %s362 = smul.u32 %s361, 4
      %p363 = scmp.lt.s32.totalorder %s362, 7
      %s364 = scalar_select %p363, %s362, 7
      %s365 = smul.u32 8, %s364
      %p366 = scmp.lt.s32.totalorder %s23, 1
      %s367 = scalar_select %p366, %s23, 1
      %p368 = scmp.lt.s32.totalorder %s365, 63
      %s369 = scalar_select %p368, %s365, 63
      %s370 = smul.addr %s367, 64
      %s371 = sadd.s32 %s369, %s370
      %s372 = smul.addr %s371, 4
      %s373 = scalar_lea.vmem %s2, %s372
      %p374 = pneg %p126
      %p375 = pneg %p123
      %p376 = pneg %p147
      %p377 = pneg %p144
      %p378 = pneg %p168
      %p379 = pneg %p165
      %p380 = pneg %p189
      %p381 = pneg %p186
      %p382 = pneg %p217
      %p383 = pneg %p214
      %s384 = smul.u32 32, %s24
      %p385 = scmp.lt.s32.totalorder %s23, 1
      %s386 = scalar_select %p385, %s23, 1
      %p387 = scmp.lt.s32.totalorder %s384, 63
      %s388 = scalar_select %p387, %s384, 63
      %s389 = smul.addr %s386, 64
      %s390 = sadd.s32 %s388, %s389
      %s391 = smul.addr %s390, 4
      %s392 = scalar_lea.vmem %s6, %s391
      %p393 = pneg %p245
      %p394 = pneg %p242
      %p395 = scmp.lt.s32.totalorder %s23, 1
      %s396 = scalar_select %p395, %s23, 1
      %p397 = scmp.lt.s32.totalorder %s24, 1
      %s398 = scalar_select %p397, %s24, 1
      %s399 = smul.addr %s396, 2
      %s400 = sadd.s32 %s398, %s399
      %s401 = smul.addr %s400, 2
      %s402 = scalar_lea.vmem %s7, %s401
      %s403 = smul.u32 %s24, 4
      %s404 = ssub.s32 %s403, 1
      %p405 = scmp.gt.s32.totalorder %s404, 0
      %s406 = scalar_select %p405, %s404, 0
      %s407 = smul.u32 8, %s406
      %p408 = scmp.lt.s32.totalorder %s23, 1
      %s409 = scalar_select %p408, %s23, 1
      %p410 = scmp.lt.s32.totalorder %s407, 63
      %s411 = scalar_select %p410, %s407, 63
      %s412 = smul.addr %s409, 64
      %s413 = sadd.s32 %s411, %s412
      %s414 = smul.addr %s413, 4
      %s415 = scalar_lea.vmem %s0, %s414
      %s416 = smul.u32 %s24, 4
      %s417 = ssub.s32 %s416, 1
      %p418 = scmp.gt.s32.totalorder %s417, 0
      %s419 = scalar_select %p418, %s417, 0
      %s420 = smul.u32 8, %s419
      %s421 = smul.u32 32, %s24
      %p422 = scmp.lt.s32.totalorder %s23, 1
      %s423 = scalar_select %p422, %s23, 1
      %p424 = scmp.lt.s32.totalorder %s421, 63
      %s425 = scalar_select %p424, %s421, 63
      %s426 = smul.addr %s423, 64
      %s427 = sadd.s32 %s425, %s426
      %s428 = smul.addr %s427, 4
      %s429 = scalar_lea.vmem %s1, %s428
      %s430 = smul.u32 32, %s24
      %s431 = sadd.s32 %s24, 1
      %s432 = smul.u32 %s431, 4
      %p433 = scmp.lt.s32.totalorder %s432, 7
      %s434 = scalar_select %p433, %s432, 7
      %s435 = smul.u32 8, %s434
      %p436 = scmp.lt.s32.totalorder %s23, 1
      %s437 = scalar_select %p436, %s23, 1
      %p438 = scmp.lt.s32.totalorder %s435, 63
      %s439 = scalar_select %p438, %s435, 63
      %s440 = smul.addr %s437, 64
      %s441 = sadd.s32 %s439, %s440
      %s442 = smul.addr %s441, 4
      %s443 = scalar_lea.vmem %s2, %s442
      %s444 = sadd.s32 %s24, 1
      %s445 = smul.u32 %s444, 4
      %p446 = scmp.lt.s32.totalorder %s445, 7
      %s447 = scalar_select %p446, %s445, 7
      %s448 = smul.u32 8, %s447
      %s449 = smul.u32 32, %s24
      %p450 = scmp.lt.s32.totalorder %s23, 1
      %s451 = scalar_select %p450, %s23, 1
      %p452 = scmp.lt.s32.totalorder %s449, 63
      %s453 = scalar_select %p452, %s449, 63
      %s454 = smul.addr %s451, 64
      %s455 = sadd.s32 %s453, %s454
      %s456 = smul.addr %s455, 4
      %s457 = scalar_lea.vmem %s6, %s456
      %s458 = smul.u32 32, %s24
      %p459 = scmp.lt.s32.totalorder %s23, 1
      %s460 = scalar_select %p459, %s23, 1
      %p461 = scmp.lt.s32.totalorder %s24, 1
      %s462 = scalar_select %p461, %s24, 1
      %s463 = smul.addr %s460, 2
      %s464 = sadd.s32 %s462, %s463
      %s465 = smul.addr %s464, 2
      %s466 = scalar_lea.vmem %s7, %s465
      %v468 = vld [vmem:[%s415 + $0x8] sm:$0xf]
      %v469 = vld [vmem:[%s415 + $0xc] sm:$0xf]
      %v470 = vld [vmem:[%s415 + $0x10] sm:$0xf]
      %v471 = vld [vmem:[%s415 + $0x14] sm:$0xf]
      %v472 = vld [vmem:[%s415 + $0x18] sm:$0xf]
      %v473 = vld [vmem:[%s415 + $0x1c] sm:$0xf]
      %v474 = vunpack.c.l.bf16 %v468
      %v475 = vunpack.c.l.bf16 %v469
      %v476 = vunpack.c.l.bf16 %v470
      %v477 = vunpack.c.l.bf16 %v471
      %v478 = vunpack.c.l.bf16 %v472
      %v479 = vunpack.c.l.bf16 %v473
      %v480 = vld [vmem:[%s4] sm:$0x1]
      %v482 = vlaneseq
      %v483 = vshrl.u32 %v482, 7
      %v484 = vsub.s32 0, %v483
      %v485 = vrot.slane %v480, %v484
      %v487 = vmul.f32 %v474, %v485
      %v488 = vmul.f32 %v475, %v485
      %v489 = vmul.f32 %v476, %v485
      %v490 = vmul.f32 %v477, %v485
      %v491 = vmul.f32 %v478, %v485
      %v492 = vmul.f32 %v479, %v485
      %v493 = vld [vmem:[%s5] sm:$0x1]
      %v495 = vlaneseq
      %v496 = vshrl.u32 %v495, 7
      %v497 = vsub.s32 0, %v496
      %v498 = vrot.slane %v493, %v497
      %v500 = vadd.f32 %v487, %v498
      %v501 = vadd.f32 %v488, %v498
      %v502 = vadd.f32 %v489, %v498
      %v503 = vadd.f32 %v490, %v498
      %v504 = vadd.f32 %v491, %v498
      %v505 = vadd.f32 %v492, %v498
      %v506 = vmax.f32 %v500, 0.0
      %v507 = vmax.f32 %v501, 0.0
      %v508 = vmax.f32 %v502, 0.0
      %v509 = vmax.f32 %v503, 0.0
      %v510 = vmax.f32 %v504, 0.0
      %v511 = vmax.f32 %v505, 0.0
      %p512 = scmp.gt.s32.totalorder %s24, 0
      %s513 = scalar_select %p512, 1.0, 0.0
      %v514 = vstv %s513
      %v515 = vmul.f32 %v506, %v514
      %v516 = vmul.f32 %v507, %v514
      %v517 = vmul.f32 %v508, %v514
      %v518 = vmul.f32 %v509, %v514
      %v519 = vmul.f32 %v510, %v514
      %v520 = vmul.f32 %v511, %v514
      %v521 = vld [vmem:[%s429] sm:$0xf]
      %v522 = vld [vmem:[%s429 + $0x4] sm:$0xf]
      %v523 = vld [vmem:[%s429 + $0x8] sm:$0xf]
      %v524 = vld [vmem:[%s429 + $0xc] sm:$0xf]
      %v525 = vld [vmem:[%s429 + $0x10] sm:$0xf]
      %v526 = vld [vmem:[%s429 + $0x14] sm:$0xf]
      %v527 = vld [vmem:[%s429 + $0x18] sm:$0xf]
      %v528 = vld [vmem:[%s429 + $0x1c] sm:$0xf]
      %v529 = vld [vmem:[%s429 + $0x20] sm:$0xf]
      %v530 = vld [vmem:[%s429 + $0x24] sm:$0xf]
      %v531 = vld [vmem:[%s429 + $0x28] sm:$0xf]
      %v532 = vld [vmem:[%s429 + $0x2c] sm:$0xf]
      %v533 = vld [vmem:[%s429 + $0x30] sm:$0xf]
      %v534 = vld [vmem:[%s429 + $0x34] sm:$0xf]
      %v535 = vld [vmem:[%s429 + $0x38] sm:$0xf]
      %v536 = vld [vmem:[%s429 + $0x3c] sm:$0xf]
      %v537 = vld [vmem:[%s429 + $0x40] sm:$0xf]
      %v538 = vld [vmem:[%s429 + $0x44] sm:$0xf]
      %v539 = vld [vmem:[%s429 + $0x48] sm:$0xf]
      %v540 = vld [vmem:[%s429 + $0x4c] sm:$0xf]
      %v541 = vld [vmem:[%s429 + $0x50] sm:$0xf]
      %v542 = vld [vmem:[%s429 + $0x54] sm:$0xf]
      %v543 = vld [vmem:[%s429 + $0x58] sm:$0xf]
      %v544 = vld [vmem:[%s429 + $0x5c] sm:$0xf]
      %v545 = vld [vmem:[%s429 + $0x60] sm:$0xf]
      %v546 = vld [vmem:[%s429 + $0x64] sm:$0xf]
      %v547 = vld [vmem:[%s429 + $0x68] sm:$0xf]
      %v548 = vld [vmem:[%s429 + $0x6c] sm:$0xf]
      %v549 = vld [vmem:[%s429 + $0x70] sm:$0xf]
      %v550 = vld [vmem:[%s429 + $0x74] sm:$0xf]
      %v551 = vld [vmem:[%s429 + $0x78] sm:$0xf]
      %v552 = vld [vmem:[%s429 + $0x7c] sm:$0xf]
      %v553 = vunpack.c.l.bf16 %v521
      %v554 = vunpack.c.l.bf16 %v522
      %v555 = vunpack.c.l.bf16 %v523
      %v556 = vunpack.c.l.bf16 %v524
      %v557 = vunpack.c.l.bf16 %v525
      %v558 = vunpack.c.l.bf16 %v526
      %v559 = vunpack.c.l.bf16 %v527
      %v560 = vunpack.c.l.bf16 %v528
      %v561 = vunpack.c.l.bf16 %v529
      %v562 = vunpack.c.l.bf16 %v530
      %v563 = vunpack.c.l.bf16 %v531
      %v564 = vunpack.c.l.bf16 %v532
      %v565 = vunpack.c.l.bf16 %v533
      %v566 = vunpack.c.l.bf16 %v534
      %v567 = vunpack.c.l.bf16 %v535
      %v568 = vunpack.c.l.bf16 %v536
      %v569 = vunpack.c.l.bf16 %v537
      %v570 = vunpack.c.l.bf16 %v538
      %v571 = vunpack.c.l.bf16 %v539
      %v572 = vunpack.c.l.bf16 %v540
      %v573 = vunpack.c.l.bf16 %v541
      %v574 = vunpack.c.l.bf16 %v542
      %v575 = vunpack.c.l.bf16 %v543
      %v576 = vunpack.c.l.bf16 %v544
      %v577 = vunpack.c.l.bf16 %v545
      %v578 = vunpack.c.l.bf16 %v546
      %v579 = vunpack.c.l.bf16 %v547
      %v580 = vunpack.c.l.bf16 %v548
      %v581 = vunpack.c.l.bf16 %v549
      %v582 = vunpack.c.l.bf16 %v550
      %v583 = vunpack.c.l.bf16 %v551
      %v584 = vunpack.c.l.bf16 %v552
      %v585 = vmul.f32 %v553, %v485
      %v586 = vmul.f32 %v554, %v485
      %v587 = vmul.f32 %v555, %v485
      %v588 = vmul.f32 %v556, %v485
      %v589 = vmul.f32 %v557, %v485
      %v590 = vmul.f32 %v558, %v485
      %v591 = vmul.f32 %v559, %v485
      %v592 = vmul.f32 %v560, %v485
      %v593 = vmul.f32 %v561, %v485
      %v594 = vmul.f32 %v562, %v485
      %v595 = vmul.f32 %v563, %v485
      %v596 = vmul.f32 %v564, %v485
      %v597 = vmul.f32 %v565, %v485
      %v598 = vmul.f32 %v566, %v485
      %v599 = vmul.f32 %v567, %v485
      %v600 = vmul.f32 %v568, %v485
      %v601 = vmul.f32 %v569, %v485
      %v602 = vmul.f32 %v570, %v485
      %v603 = vmul.f32 %v571, %v485
      %v604 = vmul.f32 %v572, %v485
      %v605 = vmul.f32 %v573, %v485
      %v606 = vmul.f32 %v574, %v485
      %v607 = vmul.f32 %v575, %v485
      %v608 = vmul.f32 %v576, %v485
      %v609 = vmul.f32 %v577, %v485
      %v610 = vmul.f32 %v578, %v485
      %v611 = vmul.f32 %v579, %v485
      %v612 = vmul.f32 %v580, %v485
      %v613 = vmul.f32 %v581, %v485
      %v614 = vmul.f32 %v582, %v485
      %v615 = vmul.f32 %v583, %v485
      %v616 = vmul.f32 %v584, %v485
      %v617 = vadd.f32 %v585, %v498
      %v618 = vadd.f32 %v586, %v498
      %v619 = vadd.f32 %v587, %v498
      %v620 = vadd.f32 %v588, %v498
      %v621 = vadd.f32 %v589, %v498
      %v622 = vadd.f32 %v590, %v498
      %v623 = vadd.f32 %v591, %v498
      %v624 = vadd.f32 %v592, %v498
      %v625 = vadd.f32 %v593, %v498
      %v626 = vadd.f32 %v594, %v498
      %v627 = vadd.f32 %v595, %v498
      %v628 = vadd.f32 %v596, %v498
      %v629 = vadd.f32 %v597, %v498
      %v630 = vadd.f32 %v598, %v498
      %v631 = vadd.f32 %v599, %v498
      %v632 = vadd.f32 %v600, %v498
      %v633 = vadd.f32 %v601, %v498
      %v634 = vadd.f32 %v602, %v498
      %v635 = vadd.f32 %v603, %v498
      %v636 = vadd.f32 %v604, %v498
      %v637 = vadd.f32 %v605, %v498
      %v638 = vadd.f32 %v606, %v498
      %v639 = vadd.f32 %v607, %v498
      %v640 = vadd.f32 %v608, %v498
      %v641 = vadd.f32 %v609, %v498
      %v642 = vadd.f32 %v610, %v498
      %v643 = vadd.f32 %v611, %v498
      %v644 = vadd.f32 %v612, %v498
      %v645 = vadd.f32 %v613, %v498
      %v646 = vadd.f32 %v614, %v498
      %v647 = vadd.f32 %v615, %v498
      %v648 = vadd.f32 %v616, %v498
      %v649 = vmax.f32 %v617, 0.0
      %v650 = vmax.f32 %v618, 0.0
      %v651 = vmax.f32 %v619, 0.0
      %v652 = vmax.f32 %v620, 0.0
      %v653 = vmax.f32 %v621, 0.0
      %v654 = vmax.f32 %v622, 0.0
      %v655 = vmax.f32 %v623, 0.0
      %v656 = vmax.f32 %v624, 0.0
      %v657 = vmax.f32 %v625, 0.0
      %v658 = vmax.f32 %v626, 0.0
      %v659 = vmax.f32 %v627, 0.0
      %v660 = vmax.f32 %v628, 0.0
      %v661 = vmax.f32 %v629, 0.0
      %v662 = vmax.f32 %v630, 0.0
      %v663 = vmax.f32 %v631, 0.0
      %v664 = vmax.f32 %v632, 0.0
      %v665 = vmax.f32 %v633, 0.0
      %v666 = vmax.f32 %v634, 0.0
      %v667 = vmax.f32 %v635, 0.0
      %v668 = vmax.f32 %v636, 0.0
      %v669 = vmax.f32 %v637, 0.0
      %v670 = vmax.f32 %v638, 0.0
      %v671 = vmax.f32 %v639, 0.0
      %v672 = vmax.f32 %v640, 0.0
      %v673 = vmax.f32 %v641, 0.0
      %v674 = vmax.f32 %v642, 0.0
      %v675 = vmax.f32 %v643, 0.0
      %v676 = vmax.f32 %v644, 0.0
      %v677 = vmax.f32 %v645, 0.0
      %v678 = vmax.f32 %v646, 0.0
      %v679 = vmax.f32 %v647, 0.0
      %v680 = vmax.f32 %v648, 0.0
      %v681 = vld [vmem:[%s443] sm:$0xf]
      %v682 = vld [vmem:[%s443 + $0x4] sm:$0xf]
      %v683 = vld [vmem:[%s443 + $0x8] sm:$0xf]
      %v684 = vld [vmem:[%s443 + $0xc] sm:$0xf]
      %v685 = vld [vmem:[%s443 + $0x10] sm:$0xf]
      %v686 = vld [vmem:[%s443 + $0x14] sm:$0xf]
      %v687 = vunpack.c.l.bf16 %v681
      %v688 = vunpack.c.l.bf16 %v682
      %v689 = vunpack.c.l.bf16 %v683
      %v690 = vunpack.c.l.bf16 %v684
      %v691 = vunpack.c.l.bf16 %v685
      %v692 = vunpack.c.l.bf16 %v686
      %v693 = vmul.f32 %v687, %v485
      %v694 = vmul.f32 %v688, %v485
      %v695 = vmul.f32 %v689, %v485
      %v696 = vmul.f32 %v690, %v485
      %v697 = vmul.f32 %v691, %v485
      %v698 = vmul.f32 %v692, %v485
      %v699 = vadd.f32 %v693, %v498
      %v700 = vadd.f32 %v694, %v498
      %v701 = vadd.f32 %v695, %v498
      %v702 = vadd.f32 %v696, %v498
      %v703 = vadd.f32 %v697, %v498
      %v704 = vadd.f32 %v698, %v498
      %v705 = vmax.f32 %v699, 0.0
      %v706 = vmax.f32 %v700, 0.0
      %v707 = vmax.f32 %v701, 0.0
      %v708 = vmax.f32 %v702, 0.0
      %v709 = vmax.f32 %v703, 0.0
      %v710 = vmax.f32 %v704, 0.0
      %p711 = scmp.lt.s32.totalorder %s24, 1
      %s712 = scalar_select %p711, 1.0, 0.0
      %v713 = vstv %s712
      %v714 = vmul.f32 %v705, %v713
      %v715 = vmul.f32 %v706, %v713
      %v716 = vmul.f32 %v707, %v713
      %v717 = vmul.f32 %v708, %v713
      %v718 = vmul.f32 %v709, %v713
      %v719 = vmul.f32 %v710, %v713
      %v720 = vlaneseq
      %v721 = vshrl.u32 %v720, 7
      %v722 = vadd.s32 %v721, 16
      %v723 = vadd.s32 %v721, 24
      %v724 = vadd.s32 %v721, 32
      %v725 = vadd.s32 %v721, 40
      %v726 = vadd.s32 %v721, 48
      %v727 = vadd.s32 %v721, 56
      %v728 = vadd.s32 %v721, 64
      %v729 = vadd.s32 %v721, 72
      %v730 = vadd.s32 %v721, 80
      %v731 = vadd.s32 %v721, 88
      %v732 = vadd.s32 %v721, 96
      %v733 = vadd.s32 %v721, 104
      %v734 = vadd.s32 %v721, 112
      %v735 = vadd.s32 %v721, 120
      %v736 = vadd.s32 %v721, 128
      %v737 = vadd.s32 %v721, 136
      %v738 = vadd.s32 %v721, 144
      %v739 = vadd.s32 %v721, 152
      %v740 = vadd.s32 %v721, 160
      %v741 = vadd.s32 %v721, 168
      %v742 = vadd.s32 %v721, 176
      %v743 = vadd.s32 %v721, 184
      %v744 = vadd.s32 %v721, 192
      %v745 = vadd.s32 %v721, 200
      %v746 = vadd.s32 %v721, 208
      %v747 = vadd.s32 %v721, 216
      %v748 = vadd.s32 %v721, 224
      %v749 = vadd.s32 %v721, 232
      %v750 = vadd.s32 %v721, 240
      %v751 = vadd.s32 %v721, 248
      %v752 = vadd.s32 %v721, 256
      %v753 = vadd.s32 %v721, 264
      %v754 = vadd.s32 %v721, 272
      %v755 = vadd.s32 %v721, 280
      %v756 = vadd.s32 %v721, 288
      %v757 = vadd.s32 %v721, 296
      %v758 = vadd.s32 %v721, 304
      %v759 = vadd.s32 %v721, 312
      %v760 = vadd.s32 %v721, 320
      %v761 = vadd.s32 %v721, 328
      %v762 = vadd.s32 %v721, 336
      %v763 = vadd.s32 %v721, 344
      %v764 = vadd.s32 %v721, 352
      %v765 = vadd.s32 %v721, 360
      %v766 = vcvt.s32.f32 %v722
      %v767 = vcvt.s32.f32 %v723
      %v768 = vcvt.s32.f32 %v724
      %v769 = vcvt.s32.f32 %v725
      %v770 = vcvt.s32.f32 %v726
      %v771 = vcvt.s32.f32 %v727
      %v772 = vcvt.s32.f32 %v728
      %v773 = vcvt.s32.f32 %v729
      %v774 = vcvt.s32.f32 %v730
      %v775 = vcvt.s32.f32 %v731
      %v776 = vcvt.s32.f32 %v732
      %v777 = vcvt.s32.f32 %v733
      %v778 = vcvt.s32.f32 %v734
      %v779 = vcvt.s32.f32 %v735
      %v780 = vcvt.s32.f32 %v736
      %v781 = vcvt.s32.f32 %v737
      %v782 = vcvt.s32.f32 %v738
      %v783 = vcvt.s32.f32 %v739
      %v784 = vcvt.s32.f32 %v740
      %v785 = vcvt.s32.f32 %v741
      %v786 = vcvt.s32.f32 %v742
      %v787 = vcvt.s32.f32 %v743
      %v788 = vcvt.s32.f32 %v744
      %v789 = vcvt.s32.f32 %v745
      %v790 = vcvt.s32.f32 %v746
      %v791 = vcvt.s32.f32 %v747
      %v792 = vcvt.s32.f32 %v748
      %v793 = vcvt.s32.f32 %v749
      %v794 = vcvt.s32.f32 %v750
      %v795 = vcvt.s32.f32 %v751
      %v796 = vcvt.s32.f32 %v752
      %v797 = vcvt.s32.f32 %v753
      %v798 = vcvt.s32.f32 %v754
      %v799 = vcvt.s32.f32 %v755
      %v800 = vcvt.s32.f32 %v756
      %v801 = vcvt.s32.f32 %v757
      %v802 = vcvt.s32.f32 %v758
      %v803 = vcvt.s32.f32 %v759
      %v804 = vcvt.s32.f32 %v760
      %v805 = vcvt.s32.f32 %v761
      %v806 = vcvt.s32.f32 %v762
      %v807 = vcvt.s32.f32 %v763
      %v808 = vcvt.s32.f32 %v764
      %v809 = vcvt.s32.f32 %v765
      %v810 = vadd.f32 %v766, 0.5
      %v811 = vadd.f32 %v767, 0.5
      %v812 = vadd.f32 %v768, 0.5
      %v813 = vadd.f32 %v769, 0.5
      %v814 = vadd.f32 %v770, 0.5
      %v815 = vadd.f32 %v771, 0.5
      %v816 = vadd.f32 %v772, 0.5
      %v817 = vadd.f32 %v773, 0.5
      %v818 = vadd.f32 %v774, 0.5
      %v819 = vadd.f32 %v775, 0.5
      %v820 = vadd.f32 %v776, 0.5
      %v821 = vadd.f32 %v777, 0.5
      %v822 = vadd.f32 %v778, 0.5
      %v823 = vadd.f32 %v779, 0.5
      %v824 = vadd.f32 %v780, 0.5
      %v825 = vadd.f32 %v781, 0.5
      %v826 = vadd.f32 %v782, 0.5
      %v827 = vadd.f32 %v783, 0.5
      %v828 = vadd.f32 %v784, 0.5
      %v829 = vadd.f32 %v785, 0.5
      %v830 = vadd.f32 %v786, 0.5
      %v831 = vadd.f32 %v787, 0.5
      %v832 = vadd.f32 %v788, 0.5
      %v833 = vadd.f32 %v789, 0.5
      %v834 = vadd.f32 %v790, 0.5
      %v835 = vadd.f32 %v791, 0.5
      %v836 = vadd.f32 %v792, 0.5
      %v837 = vadd.f32 %v793, 0.5
      %v838 = vadd.f32 %v794, 0.5
      %v839 = vadd.f32 %v795, 0.5
      %v840 = vadd.f32 %v796, 0.5
      %v841 = vadd.f32 %v797, 0.5
      %v842 = vadd.f32 %v798, 0.5
      %v843 = vadd.f32 %v799, 0.5
      %v844 = vadd.f32 %v800, 0.5
      %v845 = vadd.f32 %v801, 0.5
      %v846 = vadd.f32 %v802, 0.5
      %v847 = vadd.f32 %v803, 0.5
      %v848 = vadd.f32 %v804, 0.5
      %v849 = vadd.f32 %v805, 0.5
      %v850 = vadd.f32 %v806, 0.5
      %v851 = vadd.f32 %v807, 0.5
      %v852 = vadd.f32 %v808, 0.5
      %v853 = vadd.f32 %v809, 0.5
      %v854 = vmul.f32 %v810, 0.03125
      %v855 = vmul.f32 %v811, 0.03125
      %v856 = vmul.f32 %v812, 0.03125
      %v857 = vmul.f32 %v813, 0.03125
      %v858 = vmul.f32 %v814, 0.03125
      %v859 = vmul.f32 %v815, 0.03125
      %v860 = vmul.f32 %v816, 0.03125
      %v861 = vmul.f32 %v817, 0.03125
      %v862 = vmul.f32 %v818, 0.03125
      %v863 = vmul.f32 %v819, 0.03125
      %v864 = vmul.f32 %v820, 0.03125
      %v865 = vmul.f32 %v821, 0.03125
      %v866 = vmul.f32 %v822, 0.03125
      %v867 = vmul.f32 %v823, 0.03125
      %v868 = vmul.f32 %v824, 0.03125
      %v869 = vmul.f32 %v825, 0.03125
      %v870 = vmul.f32 %v826, 0.03125
      %v871 = vmul.f32 %v827, 0.03125
      %v872 = vmul.f32 %v828, 0.03125
      %v873 = vmul.f32 %v829, 0.03125
      %v874 = vmul.f32 %v830, 0.03125
      %v875 = vmul.f32 %v831, 0.03125
      %v876 = vmul.f32 %v832, 0.03125
      %v877 = vmul.f32 %v833, 0.03125
      %v878 = vmul.f32 %v834, 0.03125
      %v879 = vmul.f32 %v835, 0.03125
      %v880 = vmul.f32 %v836, 0.03125
      %v881 = vmul.f32 %v837, 0.03125
      %v882 = vmul.f32 %v838, 0.03125
      %v883 = vmul.f32 %v839, 0.03125
      %v884 = vmul.f32 %v840, 0.03125
      %v885 = vmul.f32 %v841, 0.03125
      %v886 = vmul.f32 %v842, 0.03125
      %v887 = vmul.f32 %v843, 0.03125
      %v888 = vmul.f32 %v844, 0.03125
      %v889 = vmul.f32 %v845, 0.03125
      %v890 = vmul.f32 %v846, 0.03125
      %v891 = vmul.f32 %v847, 0.03125
      %v892 = vmul.f32 %v848, 0.03125
      %v893 = vmul.f32 %v849, 0.03125
      %v894 = vmul.f32 %v850, 0.03125
      %v895 = vmul.f32 %v851, 0.03125
      %v896 = vmul.f32 %v852, 0.03125
      %v897 = vmul.f32 %v853, 0.03125
      %v898 = vfloor.f32 %v854
      %v899 = vfloor.f32 %v855
      %v900 = vfloor.f32 %v856
      %v901 = vfloor.f32 %v857
      %v902 = vfloor.f32 %v858
      %v903 = vfloor.f32 %v859
      %v904 = vfloor.f32 %v860
      %v905 = vfloor.f32 %v861
      %v906 = vfloor.f32 %v862
      %v907 = vfloor.f32 %v863
      %v908 = vfloor.f32 %v864
      %v909 = vfloor.f32 %v865
      %v910 = vfloor.f32 %v866
      %v911 = vfloor.f32 %v867
      %v912 = vfloor.f32 %v868
      %v913 = vfloor.f32 %v869
      %v914 = vfloor.f32 %v870
      %v915 = vfloor.f32 %v871
      %v916 = vfloor.f32 %v872
      %v917 = vfloor.f32 %v873
      %v918 = vfloor.f32 %v874
      %v919 = vfloor.f32 %v875
      %v920 = vfloor.f32 %v876
      %v921 = vfloor.f32 %v877
      %v922 = vfloor.f32 %v878
      %v923 = vfloor.f32 %v879
      %v924 = vfloor.f32 %v880
      %v925 = vfloor.f32 %v881
      %v926 = vfloor.f32 %v882
      %v927 = vfloor.f32 %v883
      %v928 = vfloor.f32 %v884
      %v929 = vfloor.f32 %v885
      %v930 = vfloor.f32 %v886
      %v931 = vfloor.f32 %v887
      %v932 = vfloor.f32 %v888
      %v933 = vfloor.f32 %v889
      %v934 = vfloor.f32 %v890
      %v935 = vfloor.f32 %v891
      %v936 = vfloor.f32 %v892
      %v937 = vfloor.f32 %v893
      %v938 = vfloor.f32 %v894
      %v939 = vfloor.f32 %v895
      %v940 = vfloor.f32 %v896
      %v941 = vfloor.f32 %v897
      %v942 = vmul.f32 %v898, 32.0
      %v943 = vmul.f32 %v899, 32.0
      %v944 = vmul.f32 %v900, 32.0
      %v945 = vmul.f32 %v901, 32.0
      %v946 = vmul.f32 %v902, 32.0
      %v947 = vmul.f32 %v903, 32.0
      %v948 = vmul.f32 %v904, 32.0
      %v949 = vmul.f32 %v905, 32.0
      %v950 = vmul.f32 %v906, 32.0
      %v951 = vmul.f32 %v907, 32.0
      %v952 = vmul.f32 %v908, 32.0
      %v953 = vmul.f32 %v909, 32.0
      %v954 = vmul.f32 %v910, 32.0
      %v955 = vmul.f32 %v911, 32.0
      %v956 = vmul.f32 %v912, 32.0
      %v957 = vmul.f32 %v913, 32.0
      %v958 = vmul.f32 %v914, 32.0
      %v959 = vmul.f32 %v915, 32.0
      %v960 = vmul.f32 %v916, 32.0
      %v961 = vmul.f32 %v917, 32.0
      %v962 = vmul.f32 %v918, 32.0
      %v963 = vmul.f32 %v919, 32.0
      %v964 = vmul.f32 %v920, 32.0
      %v965 = vmul.f32 %v921, 32.0
      %v966 = vmul.f32 %v922, 32.0
      %v967 = vmul.f32 %v923, 32.0
      %v968 = vmul.f32 %v924, 32.0
      %v969 = vmul.f32 %v925, 32.0
      %v970 = vmul.f32 %v926, 32.0
      %v971 = vmul.f32 %v927, 32.0
      %v972 = vmul.f32 %v928, 32.0
      %v973 = vmul.f32 %v929, 32.0
      %v974 = vmul.f32 %v930, 32.0
      %v975 = vmul.f32 %v931, 32.0
      %v976 = vmul.f32 %v932, 32.0
      %v977 = vmul.f32 %v933, 32.0
      %v978 = vmul.f32 %v934, 32.0
      %v979 = vmul.f32 %v935, 32.0
      %v980 = vmul.f32 %v936, 32.0
      %v981 = vmul.f32 %v937, 32.0
      %v982 = vmul.f32 %v938, 32.0
      %v983 = vmul.f32 %v939, 32.0
      %v984 = vmul.f32 %v940, 32.0
      %v985 = vmul.f32 %v941, 32.0
      %v986 = vsub.f32 %v766, %v942
      %v987 = vsub.f32 %v767, %v943
      %v988 = vsub.f32 %v768, %v944
      %v989 = vsub.f32 %v769, %v945
      %v990 = vsub.f32 %v770, %v946
      %v991 = vsub.f32 %v771, %v947
      %v992 = vsub.f32 %v772, %v948
      %v993 = vsub.f32 %v773, %v949
      %v994 = vsub.f32 %v774, %v950
      %v995 = vsub.f32 %v775, %v951
      %v996 = vsub.f32 %v776, %v952
      %v997 = vsub.f32 %v777, %v953
      %v998 = vsub.f32 %v778, %v954
      %v999 = vsub.f32 %v779, %v955
      %v1000 = vsub.f32 %v780, %v956
      %v1001 = vsub.f32 %v781, %v957
      %v1002 = vsub.f32 %v782, %v958
      %v1003 = vsub.f32 %v783, %v959
      %v1004 = vsub.f32 %v784, %v960
      %v1005 = vsub.f32 %v785, %v961
      %v1006 = vsub.f32 %v786, %v962
      %v1007 = vsub.f32 %v787, %v963
      %v1008 = vsub.f32 %v788, %v964
      %v1009 = vsub.f32 %v789, %v965
      %v1010 = vsub.f32 %v790, %v966
      %v1011 = vsub.f32 %v791, %v967
      %v1012 = vsub.f32 %v792, %v968
      %v1013 = vsub.f32 %v793, %v969
      %v1014 = vsub.f32 %v794, %v970
      %v1015 = vsub.f32 %v795, %v971
      %v1016 = vsub.f32 %v796, %v972
      %v1017 = vsub.f32 %v797, %v973
      %v1018 = vsub.f32 %v798, %v974
      %v1019 = vsub.f32 %v799, %v975
      %v1020 = vsub.f32 %v800, %v976
      %v1021 = vsub.f32 %v801, %v977
      %v1022 = vsub.f32 %v802, %v978
      %v1023 = vsub.f32 %v803, %v979
      %v1024 = vsub.f32 %v804, %v980
      %v1025 = vsub.f32 %v805, %v981
      %v1026 = vsub.f32 %v806, %v982
      %v1027 = vsub.f32 %v807, %v983
      %v1028 = vsub.f32 %v808, %v984
      %v1029 = vsub.f32 %v809, %v985
      %vm1030 = vcmp.ge.f32.partialorder %v986, 0.5
      %vm1031 = vcmp.ge.f32.partialorder %v987, 0.5
      %vm1032 = vcmp.ge.f32.partialorder %v988, 0.5
      %vm1033 = vcmp.ge.f32.partialorder %v989, 0.5
      %vm1034 = vcmp.ge.f32.partialorder %v990, 0.5
      %vm1035 = vcmp.ge.f32.partialorder %v991, 0.5
      %vm1036 = vcmp.ge.f32.partialorder %v992, 0.5
      %vm1037 = vcmp.ge.f32.partialorder %v993, 0.5
      %vm1038 = vcmp.ge.f32.partialorder %v994, 0.5
      %vm1039 = vcmp.ge.f32.partialorder %v995, 0.5
      %vm1040 = vcmp.ge.f32.partialorder %v996, 0.5
      %vm1041 = vcmp.ge.f32.partialorder %v997, 0.5
      %vm1042 = vcmp.ge.f32.partialorder %v998, 0.5
      %vm1043 = vcmp.ge.f32.partialorder %v999, 0.5
      %vm1044 = vcmp.ge.f32.partialorder %v1000, 0.5
      %vm1045 = vcmp.ge.f32.partialorder %v1001, 0.5
      %vm1046 = vcmp.ge.f32.partialorder %v1002, 0.5
      %vm1047 = vcmp.ge.f32.partialorder %v1003, 0.5
      %vm1048 = vcmp.ge.f32.partialorder %v1004, 0.5
      %vm1049 = vcmp.ge.f32.partialorder %v1005, 0.5
      %vm1050 = vcmp.ge.f32.partialorder %v1006, 0.5
      %vm1051 = vcmp.ge.f32.partialorder %v1007, 0.5
      %vm1052 = vcmp.ge.f32.partialorder %v1008, 0.5
      %vm1053 = vcmp.ge.f32.partialorder %v1009, 0.5
      %vm1054 = vcmp.ge.f32.partialorder %v1010, 0.5
      %vm1055 = vcmp.ge.f32.partialorder %v1011, 0.5
      %vm1056 = vcmp.ge.f32.partialorder %v1012, 0.5
      %vm1057 = vcmp.ge.f32.partialorder %v1013, 0.5
      %vm1058 = vcmp.ge.f32.partialorder %v1014, 0.5
      %vm1059 = vcmp.ge.f32.partialorder %v1015, 0.5
      %vm1060 = vcmp.ge.f32.partialorder %v1016, 0.5
      %vm1061 = vcmp.ge.f32.partialorder %v1017, 0.5
      %vm1062 = vcmp.ge.f32.partialorder %v1018, 0.5
      %vm1063 = vcmp.ge.f32.partialorder %v1019, 0.5
      %vm1064 = vcmp.ge.f32.partialorder %v1020, 0.5
      %vm1065 = vcmp.ge.f32.partialorder %v1021, 0.5
      %vm1066 = vcmp.ge.f32.partialorder %v1022, 0.5
      %vm1067 = vcmp.ge.f32.partialorder %v1023, 0.5
      %vm1068 = vcmp.ge.f32.partialorder %v1024, 0.5
      %vm1069 = vcmp.ge.f32.partialorder %v1025, 0.5
      %vm1070 = vcmp.ge.f32.partialorder %v1026, 0.5
      %vm1071 = vcmp.ge.f32.partialorder %v1027, 0.5
      %vm1072 = vcmp.ge.f32.partialorder %v1028, 0.5
      %vm1073 = vcmp.ge.f32.partialorder %v1029, 0.5
      %vm1074 = vcmp.le.f32.partialorder %v986, 16.5
      %vm1075 = vcmp.le.f32.partialorder %v987, 16.5
      %vm1076 = vcmp.le.f32.partialorder %v988, 16.5
      %vm1077 = vcmp.le.f32.partialorder %v989, 16.5
      %vm1078 = vcmp.le.f32.partialorder %v990, 16.5
      %vm1079 = vcmp.le.f32.partialorder %v991, 16.5
      %vm1080 = vcmp.le.f32.partialorder %v992, 16.5
      %vm1081 = vcmp.le.f32.partialorder %v993, 16.5
      %vm1082 = vcmp.le.f32.partialorder %v994, 16.5
      %vm1083 = vcmp.le.f32.partialorder %v995, 16.5
      %vm1084 = vcmp.le.f32.partialorder %v996, 16.5
      %vm1085 = vcmp.le.f32.partialorder %v997, 16.5
      %vm1086 = vcmp.le.f32.partialorder %v998, 16.5
      %vm1087 = vcmp.le.f32.partialorder %v999, 16.5
      %vm1088 = vcmp.le.f32.partialorder %v1000, 16.5
      %vm1089 = vcmp.le.f32.partialorder %v1001, 16.5
      %vm1090 = vcmp.le.f32.partialorder %v1002, 16.5
      %vm1091 = vcmp.le.f32.partialorder %v1003, 16.5
      %vm1092 = vcmp.le.f32.partialorder %v1004, 16.5
      %vm1093 = vcmp.le.f32.partialorder %v1005, 16.5
      %vm1094 = vcmp.le.f32.partialorder %v1006, 16.5
      %vm1095 = vcmp.le.f32.partialorder %v1007, 16.5
      %vm1096 = vcmp.le.f32.partialorder %v1008, 16.5
      %vm1097 = vcmp.le.f32.partialorder %v1009, 16.5
      %vm1098 = vcmp.le.f32.partialorder %v1010, 16.5
      %vm1099 = vcmp.le.f32.partialorder %v1011, 16.5
      %vm1100 = vcmp.le.f32.partialorder %v1012, 16.5
      %vm1101 = vcmp.le.f32.partialorder %v1013, 16.5
      %vm1102 = vcmp.le.f32.partialorder %v1014, 16.5
      %vm1103 = vcmp.le.f32.partialorder %v1015, 16.5
      %vm1104 = vcmp.le.f32.partialorder %v1016, 16.5
      %vm1105 = vcmp.le.f32.partialorder %v1017, 16.5
      %vm1106 = vcmp.le.f32.partialorder %v1018, 16.5
      %vm1107 = vcmp.le.f32.partialorder %v1019, 16.5
      %vm1108 = vcmp.le.f32.partialorder %v1020, 16.5
      %vm1109 = vcmp.le.f32.partialorder %v1021, 16.5
      %vm1110 = vcmp.le.f32.partialorder %v1022, 16.5
      %vm1111 = vcmp.le.f32.partialorder %v1023, 16.5
      %vm1112 = vcmp.le.f32.partialorder %v1024, 16.5
      %vm1113 = vcmp.le.f32.partialorder %v1025, 16.5
      %vm1114 = vcmp.le.f32.partialorder %v1026, 16.5
      %vm1115 = vcmp.le.f32.partialorder %v1027, 16.5
      %vm1116 = vcmp.le.f32.partialorder %v1028, 16.5
      %vm1117 = vcmp.le.f32.partialorder %v1029, 16.5
      %vm1118 = vmand %vm1030, %vm1074
      %vm1119 = vmand %vm1031, %vm1075
      %vm1120 = vmand %vm1032, %vm1076
      %vm1121 = vmand %vm1033, %vm1077
      %vm1122 = vmand %vm1034, %vm1078
      %vm1123 = vmand %vm1035, %vm1079
      %vm1124 = vmand %vm1036, %vm1080
      %vm1125 = vmand %vm1037, %vm1081
      %vm1126 = vmand %vm1038, %vm1082
      %vm1127 = vmand %vm1039, %vm1083
      %vm1128 = vmand %vm1040, %vm1084
      %vm1129 = vmand %vm1041, %vm1085
      %vm1130 = vmand %vm1042, %vm1086
      %vm1131 = vmand %vm1043, %vm1087
      %vm1132 = vmand %vm1044, %vm1088
      %vm1133 = vmand %vm1045, %vm1089
      %vm1134 = vmand %vm1046, %vm1090
      %vm1135 = vmand %vm1047, %vm1091
      %vm1136 = vmand %vm1048, %vm1092
      %vm1137 = vmand %vm1049, %vm1093
      %vm1138 = vmand %vm1050, %vm1094
      %vm1139 = vmand %vm1051, %vm1095
      %vm1140 = vmand %vm1052, %vm1096
      %vm1141 = vmand %vm1053, %vm1097
      %vm1142 = vmand %vm1054, %vm1098
      %vm1143 = vmand %vm1055, %vm1099
      %vm1144 = vmand %vm1056, %vm1100
      %vm1145 = vmand %vm1057, %vm1101
      %vm1146 = vmand %vm1058, %vm1102
      %vm1147 = vmand %vm1059, %vm1103
      %vm1148 = vmand %vm1060, %vm1104
      %vm1149 = vmand %vm1061, %vm1105
      %vm1150 = vmand %vm1062, %vm1106
      %vm1151 = vmand %vm1063, %vm1107
      %vm1152 = vmand %vm1064, %vm1108
      %vm1153 = vmand %vm1065, %vm1109
      %vm1154 = vmand %vm1066, %vm1110
      %vm1155 = vmand %vm1067, %vm1111
      %vm1156 = vmand %vm1068, %vm1112
      %vm1157 = vmand %vm1069, %vm1113
      %vm1158 = vmand %vm1070, %vm1114
      %vm1159 = vmand %vm1071, %vm1115
      %vm1160 = vmand %vm1072, %vm1116
      %vm1161 = vmand %vm1073, %vm1117
      %v1162 = vsel %vm1118, 1, 0
      %v1163 = vsel %vm1119, 1, 0
      %v1164 = vsel %vm1120, 1, 0
      %v1165 = vsel %vm1121, 1, 0
      %v1166 = vsel %vm1122, 1, 0
      %v1167 = vsel %vm1123, 1, 0
      %v1168 = vsel %vm1124, 1, 0
      %v1169 = vsel %vm1125, 1, 0
      %v1170 = vsel %vm1126, 1, 0
      %v1171 = vsel %vm1127, 1, 0
      %v1172 = vsel %vm1128, 1, 0
      %v1173 = vsel %vm1129, 1, 0
      %v1174 = vsel %vm1130, 1, 0
      %v1175 = vsel %vm1131, 1, 0
      %v1176 = vsel %vm1132, 1, 0
      %v1177 = vsel %vm1133, 1, 0
      %v1178 = vsel %vm1134, 1, 0
      %v1179 = vsel %vm1135, 1, 0
      %v1180 = vsel %vm1136, 1, 0
      %v1181 = vsel %vm1137, 1, 0
      %v1182 = vsel %vm1138, 1, 0
      %v1183 = vsel %vm1139, 1, 0
      %v1184 = vsel %vm1140, 1, 0
      %v1185 = vsel %vm1141, 1, 0
      %v1186 = vsel %vm1142, 1, 0
      %v1187 = vsel %vm1143, 1, 0
      %v1188 = vsel %vm1144, 1, 0
      %v1189 = vsel %vm1145, 1, 0
      %v1190 = vsel %vm1146, 1, 0
      %v1191 = vsel %vm1147, 1, 0
      %v1192 = vsel %vm1148, 1, 0
      %v1193 = vsel %vm1149, 1, 0
      %v1194 = vsel %vm1150, 1, 0
      %v1195 = vsel %vm1151, 1, 0
      %v1196 = vsel %vm1152, 1, 0
      %v1197 = vsel %vm1153, 1, 0
      %v1198 = vsel %vm1154, 1, 0
      %v1199 = vsel %vm1155, 1, 0
      %v1200 = vsel %vm1156, 1, 0
      %v1201 = vsel %vm1157, 1, 0
      %v1202 = vsel %vm1158, 1, 0
      %v1203 = vsel %vm1159, 1, 0
      %v1204 = vsel %vm1160, 1, 0
      %v1205 = vsel %vm1161, 1, 0
      %v1206 = vcvt.s32.f32 %v1162
      %v1207 = vcvt.s32.f32 %v1163
      %v1208 = vcvt.s32.f32 %v1164
      %v1209 = vcvt.s32.f32 %v1165
      %v1210 = vcvt.s32.f32 %v1166
      %v1211 = vcvt.s32.f32 %v1167
      %v1212 = vcvt.s32.f32 %v1168
      %v1213 = vcvt.s32.f32 %v1169
      %v1214 = vcvt.s32.f32 %v1170
      %v1215 = vcvt.s32.f32 %v1171
      %v1216 = vcvt.s32.f32 %v1172
      %v1217 = vcvt.s32.f32 %v1173
      %v1218 = vcvt.s32.f32 %v1174
      %v1219 = vcvt.s32.f32 %v1175
      %v1220 = vcvt.s32.f32 %v1176
      %v1221 = vcvt.s32.f32 %v1177
      %v1222 = vcvt.s32.f32 %v1178
      %v1223 = vcvt.s32.f32 %v1179
      %v1224 = vcvt.s32.f32 %v1180
      %v1225 = vcvt.s32.f32 %v1181
      %v1226 = vcvt.s32.f32 %v1182
      %v1227 = vcvt.s32.f32 %v1183
      %v1228 = vcvt.s32.f32 %v1184
      %v1229 = vcvt.s32.f32 %v1185
      %v1230 = vcvt.s32.f32 %v1186
      %v1231 = vcvt.s32.f32 %v1187
      %v1232 = vcvt.s32.f32 %v1188
      %v1233 = vcvt.s32.f32 %v1189
      %v1234 = vcvt.s32.f32 %v1190
      %v1235 = vcvt.s32.f32 %v1191
      %v1236 = vcvt.s32.f32 %v1192
      %v1237 = vcvt.s32.f32 %v1193
      %v1238 = vcvt.s32.f32 %v1194
      %v1239 = vcvt.s32.f32 %v1195
      %v1240 = vcvt.s32.f32 %v1196
      %v1241 = vcvt.s32.f32 %v1197
      %v1242 = vcvt.s32.f32 %v1198
      %v1243 = vcvt.s32.f32 %v1199
      %v1244 = vcvt.s32.f32 %v1200
      %v1245 = vcvt.s32.f32 %v1201
      %v1246 = vcvt.s32.f32 %v1202
      %v1247 = vcvt.s32.f32 %v1203
      %v1248 = vcvt.s32.f32 %v1204
      %v1249 = vcvt.s32.f32 %v1205
      %v1250 = vmul.f32 %v515, %v1206
      %v1251 = vmul.f32 %v516, %v1207
      %v1252 = vmul.f32 %v517, %v1208
      %v1253 = vmul.f32 %v518, %v1209
      %v1254 = vmul.f32 %v519, %v1210
      %v1255 = vmul.f32 %v520, %v1211
      %v1256 = vmul.f32 %v649, %v1212
      %v1257 = vmul.f32 %v650, %v1213
      %v1258 = vmul.f32 %v651, %v1214
      %v1259 = vmul.f32 %v652, %v1215
      %v1260 = vmul.f32 %v653, %v1216
      %v1261 = vmul.f32 %v654, %v1217
      %v1262 = vmul.f32 %v655, %v1218
      %v1263 = vmul.f32 %v656, %v1219
      %v1264 = vmul.f32 %v657, %v1220
      %v1265 = vmul.f32 %v658, %v1221
      %v1266 = vmul.f32 %v659, %v1222
      %v1267 = vmul.f32 %v660, %v1223
      %v1268 = vmul.f32 %v661, %v1224
      %v1269 = vmul.f32 %v662, %v1225
      %v1270 = vmul.f32 %v663, %v1226
      %v1271 = vmul.f32 %v664, %v1227
      %v1272 = vmul.f32 %v665, %v1228
      %v1273 = vmul.f32 %v666, %v1229
      %v1274 = vmul.f32 %v667, %v1230
      %v1275 = vmul.f32 %v668, %v1231
      %v1276 = vmul.f32 %v669, %v1232
      %v1277 = vmul.f32 %v670, %v1233
      %v1278 = vmul.f32 %v671, %v1234
      %v1279 = vmul.f32 %v672, %v1235
      %v1280 = vmul.f32 %v673, %v1236
      %v1281 = vmul.f32 %v674, %v1237
      %v1282 = vmul.f32 %v675, %v1238
      %v1283 = vmul.f32 %v676, %v1239
      %v1284 = vmul.f32 %v677, %v1240
      %v1285 = vmul.f32 %v678, %v1241
      %v1286 = vmul.f32 %v679, %v1242
      %v1287 = vmul.f32 %v680, %v1243
      %v1288 = vmul.f32 %v714, %v1244
      %v1289 = vmul.f32 %v715, %v1245
      %v1290 = vmul.f32 %v716, %v1246
      %v1291 = vmul.f32 %v717, %v1247
      %v1292 = vmul.f32 %v718, %v1248
      %v1293 = vmul.f32 %v719, %v1249
      %v1294 = vpack.c.bf16 %v1251, %v1250
      %v1295 = vpack.c.bf16 %v1253, %v1252
      %v1296 = vpack.c.bf16 %v1255, %v1254
      %v1297 = vpack.c.bf16 %v1257, %v1256
      %v1298 = vpack.c.bf16 %v1259, %v1258
      %v1299 = vpack.c.bf16 %v1261, %v1260
      %v1300 = vpack.c.bf16 %v1263, %v1262
      %v1301 = vpack.c.bf16 %v1265, %v1264
      %v1302 = vpack.c.bf16 %v1267, %v1266
      %v1303 = vpack.c.bf16 %v1269, %v1268
      %v1304 = vpack.c.bf16 %v1271, %v1270
      %v1305 = vpack.c.bf16 %v1273, %v1272
      %v1306 = vpack.c.bf16 %v1275, %v1274
      %v1307 = vpack.c.bf16 %v1277, %v1276
      %v1308 = vpack.c.bf16 %v1279, %v1278
      %v1309 = vpack.c.bf16 %v1281, %v1280
      %v1310 = vpack.c.bf16 %v1283, %v1282
      %v1311 = vpack.c.bf16 %v1285, %v1284
      %v1312 = vpack.c.bf16 %v1287, %v1286
      %v1313 = vpack.c.bf16 %v1289, %v1288
      %v1314 = vpack.c.bf16 %v1291, %v1290
      %v1315 = vpack.c.bf16 %v1293, %v1292
      %v1316 = vld [vmem:[%s3] sm:$0xf]
      %v1317 = vld [vmem:[%s3 + $0x4] sm:$0xf]
      %v1318 = vld [vmem:[%s3 + $0x8] sm:$0xf]
      %v1319 = vld [vmem:[%s3 + $0xc] sm:$0xf]
      %v1320 = vld [vmem:[%s3 + $0x10] sm:$0xf]
      %v1321 = vld [vmem:[%s3 + $0x14] sm:$0xf]
      %v1322 = vld [vmem:[%s3 + $0x18] sm:$0xf]
      %v1323 = vld [vmem:[%s3 + $0x1c] sm:$0xf]
      %v1324 = vld [vmem:[%s3 + $0x20] sm:$0xf]
      %v1325 = vld [vmem:[%s3 + $0x24] sm:$0xf]
      %v1326 = vld [vmem:[%s3 + $0x28] sm:$0xf]
      %v1327 = vld [vmem:[%s3 + $0x2c] sm:$0xf]
      %v1328 = vld [vmem:[%s3 + $0x30] sm:$0xf]
      %v1329 = vld [vmem:[%s3 + $0x34] sm:$0xf]
      %v1330 = vld [vmem:[%s3 + $0x38] sm:$0xf]
      %v1331 = vld [vmem:[%s3 + $0x3c] sm:$0xf]
      %s1332 = scalar_lea.vmem %s3, 64
      %v1333 = vld [vmem:[%s1332] sm:$0xf]
      %v1334 = vld [vmem:[%s1332 + $0x4] sm:$0xf]
      %v1335 = vld [vmem:[%s1332 + $0x8] sm:$0xf]
      %v1336 = vld [vmem:[%s1332 + $0xc] sm:$0xf]
      %v1337 = vld [vmem:[%s1332 + $0x10] sm:$0xf]
      %v1338 = vld [vmem:[%s1332 + $0x14] sm:$0xf]
      %v1339 = vld [vmem:[%s1332 + $0x18] sm:$0xf]
      %v1340 = vld [vmem:[%s1332 + $0x1c] sm:$0xf]
      %v1341 = vld [vmem:[%s1332 + $0x20] sm:$0xf]
      %v1342 = vld [vmem:[%s1332 + $0x24] sm:$0xf]
      %v1343 = vld [vmem:[%s1332 + $0x28] sm:$0xf]
      %v1344 = vld [vmem:[%s1332 + $0x2c] sm:$0xf]
      %v1345 = vld [vmem:[%s1332 + $0x30] sm:$0xf]
      %v1346 = vld [vmem:[%s1332 + $0x34] sm:$0xf]
      %v1347 = vld [vmem:[%s1332 + $0x38] sm:$0xf]
      %v1348 = vld [vmem:[%s1332 + $0x3c] sm:$0xf]
      %v1365 = vunpack.c.l.b16 %v1333
      %v1366 = vunpack.c.l.b16 %v1334
      %v1367 = vunpack.c.l.b16 %v1335
      %v1368 = vunpack.c.l.b16 %v1336
      %v1369 = vunpack.c.l.b16 %v1337
      %v1370 = vunpack.c.l.b16 %v1338
      %v1371 = vunpack.c.l.b16 %v1339
      %v1372 = vunpack.c.l.b16 %v1340
      %v1373 = vunpack.c.l.b16 %v1341
      %v1374 = vunpack.c.l.b16 %v1342
      %v1375 = vunpack.c.l.b16 %v1343
      %v1376 = vunpack.c.l.b16 %v1344
      %v1377 = vunpack.c.l.b16 %v1345
      %v1378 = vunpack.c.l.b16 %v1346
      %v1379 = vunpack.c.l.b16 %v1347
      %v1380 = vunpack.c.l.b16 %v1348
      %v1381 = vpack.c.b16 %v1366, %v1365
      %v1382 = vpack.c.b16 %v1368, %v1367
      %v1383 = vpack.c.b16 %v1370, %v1369
      %v1384 = vpack.c.b16 %v1372, %v1371
      %v1385 = vpack.c.b16 %v1374, %v1373
      %v1386 = vpack.c.b16 %v1376, %v1375
      %v1387 = vpack.c.b16 %v1378, %v1377
      %v1388 = vpack.c.b16 %v1380, %v1379
      %1397 = vmatprep.subr.bf16.mxu0 0
      %1398 = vmatpush1.bf16.msra.mxu0 %v1381
      %1399 = vmatprep.subr.bf16.mxu0 0
      %1400 = vmatpush1.bf16.msra.mxu0 %v1382
      %1401 = vmatprep.subr.bf16.mxu0 0
      %1402 = vmatpush1.bf16.msra.mxu0 %v1383
      %1403 = vmatprep.subr.bf16.mxu0 0
      %1404 = vmatpush1.bf16.msra.mxu0 %v1384
      %1405 = vmatprep.subr.bf16.mxu0 0
      %1406 = vmatpush1.bf16.msra.mxu0 %v1385
      %1407 = vmatprep.subr.bf16.mxu0 0
      %1408 = vmatpush1.bf16.msra.mxu0 %v1386
      %1409 = vmatprep.subr.bf16.mxu0 0
      %1410 = vmatpush1.bf16.msra.mxu0 %v1387
      %1411 = vmatprep.subr.bf16.mxu0 0
      %1412 = vmatpush1.bf16.msra.mxu0 %v1388
      %1413 = vmatprep.subr.bf16.mxu0 0
      %1414 = vmatpush1.bf16.msra.mxu0 0
      %1415 = vmatprep.subr.bf16.mxu0 0
      %1416 = vmatpush1.bf16.msra.mxu0 0
      %1417 = vmatprep.subr.bf16.mxu0 0
      %1418 = vmatpush1.bf16.msra.mxu0 0
      %1419 = vmatprep.subr.bf16.mxu0 0
      %1420 = vmatpush1.bf16.msra.mxu0 0
      %1421 = vmatprep.subr.bf16.mxu0 0
      %1422 = vmatpush1.bf16.msra.mxu0 0
      %1423 = vmatprep.subr.bf16.mxu0 0
      %1424 = vmatpush1.bf16.msra.mxu0 0
      %1425 = vmatprep.subr.bf16.mxu0 0
      %1426 = vmatpush1.bf16.msra.mxu0 0
      %1427 = vmatprep.subr.bf16.mxu0 0
      %1428 = vmatpush1.bf16.msra.mxu0 0
      %1429 = vmatprep.mubr.bf16.mxu0 0
      %1430 = vmatmul.mubr.bf16.gmra.mrb[0].mxu0 %v1295
      %v1431 = vpop.f32.mrb[0].mxu0
      %v1432 = vadd.f32 0.0, %v1431
      %v1433 = vpop.f32.mrb[0].mxu0
      %v1434 = vpop.f32.mrb[0].mxu0
      %v1435 = vadd.f32 0.0, %v1434
      %v1436 = vpop.f32.mrb[0].mxu0
      %1437 = vmatprep.mubr.bf16.mxu0 0
      %1438 = vmatmul.mubr.bf16.gmra.mrb[0].mxu0 %v1296
      %v1439 = vpop.f32.mrb[0].mxu0
      %v1440 = vadd.f32 0.0, %v1439
      %v1441 = vpop.f32.mrb[0].mxu0
      %v1442 = vpop.f32.mrb[0].mxu0
      %v1443 = vadd.f32 0.0, %v1442
      %v1444 = vpop.f32.mrb[0].mxu0
      %1445 = vmatprep.mubr.bf16.mxu0 0
      %1446 = vmatmul.mubr.bf16.gmra.mrb[0].mxu0 %v1297
      %v1447 = vpop.f32.mrb[0].mxu0
      %v1448 = vadd.f32 0.0, %v1447
      %v1449 = vpop.f32.mrb[0].mxu0
      %v1450 = vpop.f32.mrb[0].mxu0
      %v1451 = vadd.f32 0.0, %v1450
      %v1452 = vpop.f32.mrb[0].mxu0
      %1453 = vmatprep.mubr.bf16.mxu0 0
      %1454 = vmatmul.mubr.bf16.gmra.mrb[0].mxu0 %v1298
      %v1455 = vpop.f32.mrb[0].mxu0
      %v1456 = vadd.f32 0.0, %v1455
      %v1457 = vpop.f32.mrb[0].mxu0
      %v1458 = vpop.f32.mrb[0].mxu0
      %v1459 = vadd.f32 0.0, %v1458
      %v1460 = vpop.f32.mrb[0].mxu0
      %1461 = vmatprep.mubr.bf16.mxu0 0
      %1462 = vmatmul.mubr.bf16.gmra.mrb[0].mxu0 %v1299
      %v1463 = vpop.f32.mrb[0].mxu0
      %v1464 = vadd.f32 0.0, %v1463
      %v1465 = vpop.f32.mrb[0].mxu0
      %v1466 = vpop.f32.mrb[0].mxu0
      %v1467 = vadd.f32 0.0, %v1466
      %v1468 = vpop.f32.mrb[0].mxu0
      %1469 = vmatprep.mubr.bf16.mxu0 0
      %1470 = vmatmul.mubr.bf16.gmra.mrb[0].mxu0 %v1300
      %v1471 = vpop.f32.mrb[0].mxu0
      %v1472 = vadd.f32 0.0, %v1471
      %v1473 = vpop.f32.mrb[0].mxu0
      %v1474 = vpop.f32.mrb[0].mxu0
      %v1475 = vadd.f32 0.0, %v1474
      %v1476 = vpop.f32.mrb[0].mxu0
      %1477 = vmatprep.mubr.bf16.mxu0 0
      %1478 = vmatmul.mubr.bf16.gmra.mrb[0].mxu0 %v1301
      %v1479 = vpop.f32.mrb[0].mxu0
      %v1480 = vadd.f32 0.0, %v1479
      %v1481 = vpop.f32.mrb[0].mxu0
      %v1482 = vpop.f32.mrb[0].mxu0
      %v1483 = vadd.f32 0.0, %v1482
      %v1484 = vpop.f32.mrb[0].mxu0
      %1485 = vmatprep.mubr.bf16.mxu0 0
      %1486 = vmatmul.mubr.bf16.gmra.mrb[0].mxu0 %v1302
      %v1487 = vpop.f32.mrb[0].mxu0
      %v1488 = vadd.f32 0.0, %v1487
      %v1489 = vpop.f32.mrb[0].mxu0
      %v1490 = vpop.f32.mrb[0].mxu0
      %v1491 = vadd.f32 0.0, %v1490
      %v1492 = vpop.f32.mrb[0].mxu0
      %1493 = vmatprep.mubr.bf16.mxu0 0
      %1494 = vmatmul.mubr.bf16.gmra.mrb[0].mxu0 %v1303
      %v1495 = vpop.f32.mrb[0].mxu0
      %v1496 = vadd.f32 0.0, %v1495
      %v1497 = vpop.f32.mrb[0].mxu0
      %v1498 = vpop.f32.mrb[0].mxu0
      %v1499 = vadd.f32 0.0, %v1498
      %v1500 = vpop.f32.mrb[0].mxu0
      %1501 = vmatprep.mubr.bf16.mxu0 0
      %1502 = vmatmul.mubr.bf16.gmra.mrb[0].mxu0 %v1304
      %v1503 = vpop.f32.mrb[0].mxu0
      %v1504 = vadd.f32 0.0, %v1503
      %v1505 = vpop.f32.mrb[0].mxu0
      %v1506 = vpop.f32.mrb[0].mxu0
      %v1507 = vadd.f32 0.0, %v1506
      %v1508 = vpop.f32.mrb[0].mxu0
      %1509 = vmatprep.mubr.bf16.mxu0 0
      %1510 = vmatmul.mubr.bf16.gmra.mrb[0].mxu0 %v1305
      %v1511 = vpop.f32.mrb[0].mxu0
      %v1512 = vadd.f32 0.0, %v1511
      %v1513 = vpop.f32.mrb[0].mxu0
      %v1514 = vpop.f32.mrb[0].mxu0
      %v1515 = vadd.f32 0.0, %v1514
      %v1516 = vpop.f32.mrb[0].mxu0
      %1517 = vmatprep.mubr.bf16.mxu0 0
      %1518 = vmatmul.mubr.bf16.gmra.mrb[0].mxu0 %v1306
      %v1519 = vpop.f32.mrb[0].mxu0
      %v1520 = vadd.f32 0.0, %v1519
      %v1521 = vpop.f32.mrb[0].mxu0
      %v1522 = vpop.f32.mrb[0].mxu0
      %v1523 = vadd.f32 0.0, %v1522
      %v1524 = vpop.f32.mrb[0].mxu0
      %1525 = vmatprep.mubr.bf16.mxu0 0
      %1526 = vmatmul.mubr.bf16.gmra.mrb[0].mxu0 %v1307
      %v1527 = vpop.f32.mrb[0].mxu0
      %v1528 = vadd.f32 0.0, %v1527
      %v1529 = vpop.f32.mrb[0].mxu0
      %v1530 = vpop.f32.mrb[0].mxu0
      %v1531 = vadd.f32 0.0, %v1530
      %v1532 = vpop.f32.mrb[0].mxu0
      %1533 = vmatprep.mubr.bf16.mxu0 0
      %1534 = vmatmul.mubr.bf16.gmra.mrb[0].mxu0 %v1308
      %v1535 = vpop.f32.mrb[0].mxu0
      %v1536 = vadd.f32 0.0, %v1535
      %v1537 = vpop.f32.mrb[0].mxu0
      %v1538 = vpop.f32.mrb[0].mxu0
      %v1539 = vadd.f32 0.0, %v1538
      %v1540 = vpop.f32.mrb[0].mxu0
      %1541 = vmatprep.mubr.bf16.mxu0 0
      %1542 = vmatmul.mubr.bf16.gmra.mrb[0].mxu0 %v1309
      %v1543 = vpop.f32.mrb[0].mxu0
      %v1544 = vadd.f32 0.0, %v1543
      %v1545 = vpop.f32.mrb[0].mxu0
      %v1546 = vpop.f32.mrb[0].mxu0
      %v1547 = vadd.f32 0.0, %v1546
      %v1548 = vpop.f32.mrb[0].mxu0
      %1549 = vmatprep.mubr.bf16.mxu0 0
      %1550 = vmatmul.mubr.bf16.gmra.mrb[0].mxu0 %v1310
      %v1551 = vpop.f32.mrb[0].mxu0
      %v1552 = vadd.f32 0.0, %v1551
      %v1553 = vpop.f32.mrb[0].mxu0
      %v1554 = vpop.f32.mrb[0].mxu0
      %v1555 = vadd.f32 0.0, %v1554
      %v1556 = vpop.f32.mrb[0].mxu0
      %1557 = vdwg.mxu0
      %vm1558 = vsmask.f32 256
      %v1560 = vshrl.u32 %v1294, 16
      %v1562 = vrot.slane %v1560, 7
      %v1564 = vshrl.u32 %v1295, 16
      %v1566 = vrot.slane %v1564, 7
      %v1567 = vshll.u32 %v1295, 16
      %v1569 = vor.u32 %v1566, %v1567
      %v1570 = vsel %vm1558, %v1562, %v1569
      %v1572 = vshrl.u32 %v1296, 16
      %v1574 = vrot.slane %v1572, 7
      %v1575 = vshll.u32 %v1296, 16
      %v1577 = vor.u32 %v1574, %v1575
      %v1578 = vsel %vm1558, %v1566, %v1577
      %v1580 = vshrl.u32 %v1297, 16
      %v1582 = vrot.slane %v1580, 7
      %v1583 = vshll.u32 %v1297, 16
      %v1585 = vor.u32 %v1582, %v1583
      %v1586 = vsel %vm1558, %v1574, %v1585
      %v1588 = vshrl.u32 %v1298, 16
      %v1590 = vrot.slane %v1588, 7
      %v1591 = vshll.u32 %v1298, 16
      %v1593 = vor.u32 %v1590, %v1591
      %v1594 = vsel %vm1558, %v1582, %v1593
      %v1596 = vshrl.u32 %v1299, 16
      %v1598 = vrot.slane %v1596, 7
      %v1599 = vshll.u32 %v1299, 16
      %v1601 = vor.u32 %v1598, %v1599
      %v1602 = vsel %vm1558, %v1590, %v1601
      %v1604 = vshrl.u32 %v1300, 16
      %v1606 = vrot.slane %v1604, 7
      %v1607 = vshll.u32 %v1300, 16
      %v1609 = vor.u32 %v1606, %v1607
      %v1610 = vsel %vm1558, %v1598, %v1609
      %v1612 = vshrl.u32 %v1301, 16
      %v1614 = vrot.slane %v1612, 7
      %v1615 = vshll.u32 %v1301, 16
      %v1617 = vor.u32 %v1614, %v1615
      %v1618 = vsel %vm1558, %v1606, %v1617
      %v1620 = vshrl.u32 %v1302, 16
      %v1622 = vrot.slane %v1620, 7
      %v1623 = vshll.u32 %v1302, 16
      %v1625 = vor.u32 %v1622, %v1623
      %v1626 = vsel %vm1558, %v1614, %v1625
      %v1628 = vshrl.u32 %v1303, 16
      %v1630 = vrot.slane %v1628, 7
      %v1631 = vshll.u32 %v1303, 16
      %v1633 = vor.u32 %v1630, %v1631
      %v1634 = vsel %vm1558, %v1622, %v1633
      %v1636 = vshrl.u32 %v1304, 16
      %v1638 = vrot.slane %v1636, 7
      %v1639 = vshll.u32 %v1304, 16
      %v1641 = vor.u32 %v1638, %v1639
      %v1642 = vsel %vm1558, %v1630, %v1641
      %v1644 = vshrl.u32 %v1305, 16
      %v1646 = vrot.slane %v1644, 7
      %v1647 = vshll.u32 %v1305, 16
      %v1649 = vor.u32 %v1646, %v1647
      %v1650 = vsel %vm1558, %v1638, %v1649
      %v1652 = vshrl.u32 %v1306, 16
      %v1654 = vrot.slane %v1652, 7
      %v1655 = vshll.u32 %v1306, 16
      %v1657 = vor.u32 %v1654, %v1655
      %v1658 = vsel %vm1558, %v1646, %v1657
      %v1660 = vshrl.u32 %v1307, 16
      %v1662 = vrot.slane %v1660, 7
      %v1663 = vshll.u32 %v1307, 16
      %v1665 = vor.u32 %v1662, %v1663
      %v1666 = vsel %vm1558, %v1654, %v1665
      %v1668 = vshrl.u32 %v1308, 16
      %v1670 = vrot.slane %v1668, 7
      %v1671 = vshll.u32 %v1308, 16
      %v1673 = vor.u32 %v1670, %v1671
      %v1674 = vsel %vm1558, %v1662, %v1673
      %v1676 = vshrl.u32 %v1309, 16
      %v1678 = vrot.slane %v1676, 7
      %v1679 = vshll.u32 %v1309, 16
      %v1681 = vor.u32 %v1678, %v1679
      %v1682 = vsel %vm1558, %v1670, %v1681
      %v1684 = vshrl.u32 %v1310, 16
      %v1686 = vrot.slane %v1684, 7
      %v1687 = vshll.u32 %v1310, 16
      %v1689 = vor.u32 %v1686, %v1687
      %v1690 = vsel %vm1558, %v1678, %v1689
      %v1723 = vunpack.c.l.b16 %v1316
      %v1724 = vunpack.c.l.b16 %v1317
      %v1725 = vunpack.c.l.b16 %v1318
      %v1726 = vunpack.c.l.b16 %v1319
      %v1727 = vunpack.c.l.b16 %v1320
      %v1728 = vunpack.c.l.b16 %v1321
      %v1729 = vunpack.c.l.b16 %v1322
      %v1730 = vunpack.c.l.b16 %v1323
      %v1731 = vunpack.c.l.b16 %v1324
      %v1732 = vunpack.c.l.b16 %v1325
      %v1733 = vunpack.c.l.b16 %v1326
      %v1734 = vunpack.c.l.b16 %v1327
      %v1735 = vunpack.c.l.b16 %v1328
      %v1736 = vunpack.c.l.b16 %v1329
      %v1737 = vunpack.c.l.b16 %v1330
      %v1738 = vunpack.c.l.b16 %v1331
      %v1739 = vpack.c.b16 %v1724, %v1723
      %v1740 = vpack.c.b16 %v1726, %v1725
      %v1741 = vpack.c.b16 %v1728, %v1727
      %v1742 = vpack.c.b16 %v1730, %v1729
      %v1743 = vpack.c.b16 %v1732, %v1731
      %v1744 = vpack.c.b16 %v1734, %v1733
      %v1745 = vpack.c.b16 %v1736, %v1735
      %v1746 = vpack.c.b16 %v1738, %v1737
      %1755 = vmatprep.subr.bf16.mxu0 0
      %1756 = vmatpush1.bf16.msra.mxu0 %v1739
      %1757 = vmatprep.subr.bf16.mxu0 0
      %1758 = vmatpush1.bf16.msra.mxu0 %v1740
      %1759 = vmatprep.subr.bf16.mxu0 0
      %1760 = vmatpush1.bf16.msra.mxu0 %v1741
      %1761 = vmatprep.subr.bf16.mxu0 0
      %1762 = vmatpush1.bf16.msra.mxu0 %v1742
      %1763 = vmatprep.subr.bf16.mxu0 0
      %1764 = vmatpush1.bf16.msra.mxu0 %v1743
      %1765 = vmatprep.subr.bf16.mxu0 0
      %1766 = vmatpush1.bf16.msra.mxu0 %v1744
      %1767 = vmatprep.subr.bf16.mxu0 0
      %1768 = vmatpush1.bf16.msra.mxu0 %v1745
      %1769 = vmatprep.subr.bf16.mxu0 0
      %1770 = vmatpush1.bf16.msra.mxu0 %v1746
      %1771 = vmatprep.subr.bf16.mxu0 0
      %1772 = vmatpush1.bf16.msra.mxu0 0
      %1773 = vmatprep.subr.bf16.mxu0 0
      %1774 = vmatpush1.bf16.msra.mxu0 0
      %1775 = vmatprep.subr.bf16.mxu0 0
      %1776 = vmatpush1.bf16.msra.mxu0 0
      %1777 = vmatprep.subr.bf16.mxu0 0
      %1778 = vmatpush1.bf16.msra.mxu0 0
      %1779 = vmatprep.subr.bf16.mxu0 0
      %1780 = vmatpush1.bf16.msra.mxu0 0
      %1781 = vmatprep.subr.bf16.mxu0 0
      %1782 = vmatpush1.bf16.msra.mxu0 0
      %1783 = vmatprep.subr.bf16.mxu0 0
      %1784 = vmatpush1.bf16.msra.mxu0 0
      %1785 = vmatprep.subr.bf16.mxu0 0
      %1786 = vmatpush1.bf16.msra.mxu0 0
      %1787 = vmatprep.mubr.bf16.mxu0 0
      %1788 = vmatmul.mubr.bf16.gmra.mrb[0].mxu0 %v1570
      %v1789 = vpop.f32.mrb[0].mxu0
      %v1790 = vadd.f32 %v1432, %v1789
      %v1791 = vpop.f32.mrb[0].mxu0
      %v1792 = vpop.f32.mrb[0].mxu0
      %v1793 = vadd.f32 %v1435, %v1792
      %v1794 = vpop.f32.mrb[0].mxu0
      %1795 = vmatprep.mubr.bf16.mxu0 0
      %1796 = vmatmul.mubr.bf16.gmra.mrb[0].mxu0 %v1578
      %v1797 = vpop.f32.mrb[0].mxu0
      %v1798 = vadd.f32 %v1440, %v1797
      %v1799 = vpop.f32.mrb[0].mxu0
      %v1800 = vpop.f32.mrb[0].mxu0
      %v1801 = vadd.f32 %v1443, %v1800
      %v1802 = vpop.f32.mrb[0].mxu0
      %1803 = vmatprep.mubr.bf16.mxu0 0
      %1804 = vmatmul.mubr.bf16.gmra.mrb[0].mxu0 %v1586
      %v1805 = vpop.f32.mrb[0].mxu0
      %v1806 = vadd.f32 %v1448, %v1805
      %v1807 = vpop.f32.mrb[0].mxu0
      %v1808 = vpop.f32.mrb[0].mxu0
      %v1809 = vadd.f32 %v1451, %v1808
      %v1810 = vpop.f32.mrb[0].mxu0
      %1811 = vmatprep.mubr.bf16.mxu0 0
      %1812 = vmatmul.mubr.bf16.gmra.mrb[0].mxu0 %v1594
      %v1813 = vpop.f32.mrb[0].mxu0
      %v1814 = vadd.f32 %v1456, %v1813
      %v1815 = vpop.f32.mrb[0].mxu0
      %v1816 = vpop.f32.mrb[0].mxu0
      %v1817 = vadd.f32 %v1459, %v1816
      %v1818 = vpop.f32.mrb[0].mxu0
      %1819 = vmatprep.mubr.bf16.mxu0 0
      %1820 = vmatmul.mubr.bf16.gmra.mrb[0].mxu0 %v1602
      %v1821 = vpop.f32.mrb[0].mxu0
      %v1822 = vadd.f32 %v1464, %v1821
      %v1823 = vpop.f32.mrb[0].mxu0
      %v1824 = vpop.f32.mrb[0].mxu0
      %v1825 = vadd.f32 %v1467, %v1824
      %v1826 = vpop.f32.mrb[0].mxu0
      %1827 = vmatprep.mubr.bf16.mxu0 0
      %1828 = vmatmul.mubr.bf16.gmra.mrb[0].mxu0 %v1610
      %v1829 = vpop.f32.mrb[0].mxu0
      %v1830 = vadd.f32 %v1472, %v1829
      %v1831 = vpop.f32.mrb[0].mxu0
      %v1832 = vpop.f32.mrb[0].mxu0
      %v1833 = vadd.f32 %v1475, %v1832
      %v1834 = vpop.f32.mrb[0].mxu0
      %1835 = vmatprep.mubr.bf16.mxu0 0
      %1836 = vmatmul.mubr.bf16.gmra.mrb[0].mxu0 %v1618
      %v1837 = vpop.f32.mrb[0].mxu0
      %v1838 = vadd.f32 %v1480, %v1837
      %v1839 = vpop.f32.mrb[0].mxu0
      %v1840 = vpop.f32.mrb[0].mxu0
      %v1841 = vadd.f32 %v1483, %v1840
      %v1842 = vpop.f32.mrb[0].mxu0
      %1843 = vmatprep.mubr.bf16.mxu0 0
      %1844 = vmatmul.mubr.bf16.gmra.mrb[0].mxu0 %v1626
      %v1845 = vpop.f32.mrb[0].mxu0
      %v1846 = vadd.f32 %v1488, %v1845
      %v1847 = vpop.f32.mrb[0].mxu0
      %v1848 = vpop.f32.mrb[0].mxu0
      %v1849 = vadd.f32 %v1491, %v1848
      %v1850 = vpop.f32.mrb[0].mxu0
      %1851 = vmatprep.mubr.bf16.mxu0 0
      %1852 = vmatmul.mubr.bf16.gmra.mrb[0].mxu0 %v1634
      %v1853 = vpop.f32.mrb[0].mxu0
      %v1854 = vadd.f32 %v1496, %v1853
      %v1855 = vpop.f32.mrb[0].mxu0
      %v1856 = vpop.f32.mrb[0].mxu0
      %v1857 = vadd.f32 %v1499, %v1856
      %v1858 = vpop.f32.mrb[0].mxu0
      %1859 = vmatprep.mubr.bf16.mxu0 0
      %1860 = vmatmul.mubr.bf16.gmra.mrb[0].mxu0 %v1642
      %v1861 = vpop.f32.mrb[0].mxu0
      %v1862 = vadd.f32 %v1504, %v1861
      %v1863 = vpop.f32.mrb[0].mxu0
      %v1864 = vpop.f32.mrb[0].mxu0
      %v1865 = vadd.f32 %v1507, %v1864
      %v1866 = vpop.f32.mrb[0].mxu0
      %1867 = vmatprep.mubr.bf16.mxu0 0
      %1868 = vmatmul.mubr.bf16.gmra.mrb[0].mxu0 %v1650
      %v1869 = vpop.f32.mrb[0].mxu0
      %v1870 = vadd.f32 %v1512, %v1869
      %v1871 = vpop.f32.mrb[0].mxu0
      %v1872 = vpop.f32.mrb[0].mxu0
      %v1873 = vadd.f32 %v1515, %v1872
      %v1874 = vpop.f32.mrb[0].mxu0
      %1875 = vmatprep.mubr.bf16.mxu0 0
      %1876 = vmatmul.mubr.bf16.gmra.mrb[0].mxu0 %v1658
      %v1877 = vpop.f32.mrb[0].mxu0
      %v1878 = vadd.f32 %v1520, %v1877
      %v1879 = vpop.f32.mrb[0].mxu0
      %v1880 = vpop.f32.mrb[0].mxu0
      %v1881 = vadd.f32 %v1523, %v1880
      %v1882 = vpop.f32.mrb[0].mxu0
      %1883 = vmatprep.mubr.bf16.mxu0 0
      %1884 = vmatmul.mubr.bf16.gmra.mrb[0].mxu0 %v1666
      %v1885 = vpop.f32.mrb[0].mxu0
      %v1886 = vadd.f32 %v1528, %v1885
      %v1887 = vpop.f32.mrb[0].mxu0
      %v1888 = vpop.f32.mrb[0].mxu0
      %v1889 = vadd.f32 %v1531, %v1888
      %v1890 = vpop.f32.mrb[0].mxu0
      %1891 = vmatprep.mubr.bf16.mxu0 0
      %1892 = vmatmul.mubr.bf16.gmra.mrb[0].mxu0 %v1674
      %v1893 = vpop.f32.mrb[0].mxu0
      %v1894 = vadd.f32 %v1536, %v1893
      %v1895 = vpop.f32.mrb[0].mxu0
      %v1896 = vpop.f32.mrb[0].mxu0
      %v1897 = vadd.f32 %v1539, %v1896
      %v1898 = vpop.f32.mrb[0].mxu0
      %1899 = vmatprep.mubr.bf16.mxu0 0
      %1900 = vmatmul.mubr.bf16.gmra.mrb[0].mxu0 %v1682
      %v1901 = vpop.f32.mrb[0].mxu0
      %v1902 = vadd.f32 %v1544, %v1901
      %v1903 = vpop.f32.mrb[0].mxu0
      %v1904 = vpop.f32.mrb[0].mxu0
      %v1905 = vadd.f32 %v1547, %v1904
      %v1906 = vpop.f32.mrb[0].mxu0
      %1907 = vmatprep.mubr.bf16.mxu0 0
      %1908 = vmatmul.mubr.bf16.gmra.mrb[0].mxu0 %v1690
      %v1909 = vpop.f32.mrb[0].mxu0
      %v1910 = vadd.f32 %v1552, %v1909
      %v1911 = vpop.f32.mrb[0].mxu0
      %v1912 = vpop.f32.mrb[0].mxu0
      %v1913 = vadd.f32 %v1555, %v1912
      %v1914 = vpop.f32.mrb[0].mxu0
      %1915 = vdwg.mxu0
      %s1916 = scalar_lea.vmem %s3, 128
      %v1917 = vld [vmem:[%s1916] sm:$0xf]
      %v1918 = vld [vmem:[%s1916 + $0x4] sm:$0xf]
      %v1919 = vld [vmem:[%s1916 + $0x8] sm:$0xf]
      %v1920 = vld [vmem:[%s1916 + $0xc] sm:$0xf]
      %v1921 = vld [vmem:[%s1916 + $0x10] sm:$0xf]
      %v1922 = vld [vmem:[%s1916 + $0x14] sm:$0xf]
      %v1923 = vld [vmem:[%s1916 + $0x18] sm:$0xf]
      %v1924 = vld [vmem:[%s1916 + $0x1c] sm:$0xf]
      %v1925 = vld [vmem:[%s1916 + $0x20] sm:$0xf]
      %v1926 = vld [vmem:[%s1916 + $0x24] sm:$0xf]
      %v1927 = vld [vmem:[%s1916 + $0x28] sm:$0xf]
      %v1928 = vld [vmem:[%s1916 + $0x2c] sm:$0xf]
      %v1929 = vld [vmem:[%s1916 + $0x30] sm:$0xf]
      %v1930 = vld [vmem:[%s1916 + $0x34] sm:$0xf]
      %v1931 = vld [vmem:[%s1916 + $0x38] sm:$0xf]
      %v1932 = vld [vmem:[%s1916 + $0x3c] sm:$0xf]
      %vm1933 = vsmask.f32 7424
      %v1934 = vrot.slane %v1567, 1
      %v1935 = vor.u32 %v1564, %v1934
      %v1936 = vrot.slane %v1575, 1
      %v1937 = vsel %vm1933, %v1935, %v1936
      %v1938 = vor.u32 %v1572, %v1936
      %v1939 = vrot.slane %v1583, 1
      %v1940 = vsel %vm1933, %v1938, %v1939
      %v1941 = vor.u32 %v1580, %v1939
      %v1942 = vrot.slane %v1591, 1
      %v1943 = vsel %vm1933, %v1941, %v1942
      %v1944 = vor.u32 %v1588, %v1942
      %v1945 = vrot.slane %v1599, 1
      %v1946 = vsel %vm1933, %v1944, %v1945
      %v1947 = vor.u32 %v1596, %v1945
      %v1948 = vrot.slane %v1607, 1
      %v1949 = vsel %vm1933, %v1947, %v1948
      %v1950 = vor.u32 %v1604, %v1948
      %v1951 = vrot.slane %v1615, 1
      %v1952 = vsel %vm1933, %v1950, %v1951
      %v1953 = vor.u32 %v1612, %v1951
      %v1954 = vrot.slane %v1623, 1
      %v1955 = vsel %vm1933, %v1953, %v1954
      %v1956 = vor.u32 %v1620, %v1954
      %v1957 = vrot.slane %v1631, 1
      %v1958 = vsel %vm1933, %v1956, %v1957
      %v1959 = vor.u32 %v1628, %v1957
      %v1960 = vrot.slane %v1639, 1
      %v1961 = vsel %vm1933, %v1959, %v1960
      %v1962 = vor.u32 %v1636, %v1960
      %v1963 = vrot.slane %v1647, 1
      %v1964 = vsel %vm1933, %v1962, %v1963
      %v1965 = vor.u32 %v1644, %v1963
      %v1966 = vrot.slane %v1655, 1
      %v1967 = vsel %vm1933, %v1965, %v1966
      %v1968 = vor.u32 %v1652, %v1966
      %v1969 = vrot.slane %v1663, 1
      %v1970 = vsel %vm1933, %v1968, %v1969
      %v1971 = vor.u32 %v1660, %v1969
      %v1972 = vrot.slane %v1671, 1
      %v1973 = vsel %vm1933, %v1971, %v1972
      %v1974 = vor.u32 %v1668, %v1972
      %v1975 = vrot.slane %v1679, 1
      %v1976 = vsel %vm1933, %v1974, %v1975
      %v1977 = vor.u32 %v1676, %v1975
      %v1978 = vrot.slane %v1687, 1
      %v1979 = vsel %vm1933, %v1977, %v1978
      %v1980 = vor.u32 %v1684, %v1978
      %v1982 = vshll.u32 %v1311, 16
      %v1984 = vrot.slane %v1982, 1
      %v1985 = vsel %vm1933, %v1980, %v1984
      %v2018 = vunpack.c.l.b16 %v1917
      %v2019 = vunpack.c.l.b16 %v1918
      %v2020 = vunpack.c.l.b16 %v1919
      %v2021 = vunpack.c.l.b16 %v1920
      %v2022 = vunpack.c.l.b16 %v1921
      %v2023 = vunpack.c.l.b16 %v1922
      %v2024 = vunpack.c.l.b16 %v1923
      %v2025 = vunpack.c.l.b16 %v1924
      %v2026 = vunpack.c.l.b16 %v1925
      %v2027 = vunpack.c.l.b16 %v1926
      %v2028 = vunpack.c.l.b16 %v1927
      %v2029 = vunpack.c.l.b16 %v1928
      %v2030 = vunpack.c.l.b16 %v1929
      %v2031 = vunpack.c.l.b16 %v1930
      %v2032 = vunpack.c.l.b16 %v1931
      %v2033 = vunpack.c.l.b16 %v1932
      %v2034 = vpack.c.b16 %v2019, %v2018
      %v2035 = vpack.c.b16 %v2021, %v2020
      %v2036 = vpack.c.b16 %v2023, %v2022
      %v2037 = vpack.c.b16 %v2025, %v2024
      %v2038 = vpack.c.b16 %v2027, %v2026
      %v2039 = vpack.c.b16 %v2029, %v2028
      %v2040 = vpack.c.b16 %v2031, %v2030
      %v2041 = vpack.c.b16 %v2033, %v2032
      %2050 = vmatprep.subr.bf16.mxu0 0
      %2051 = vmatpush1.bf16.msra.mxu0 %v2034
      %2052 = vmatprep.subr.bf16.mxu0 0
      %2053 = vmatpush1.bf16.msra.mxu0 %v2035
      %2054 = vmatprep.subr.bf16.mxu0 0
      %2055 = vmatpush1.bf16.msra.mxu0 %v2036
      %2056 = vmatprep.subr.bf16.mxu0 0
      %2057 = vmatpush1.bf16.msra.mxu0 %v2037
      %2058 = vmatprep.subr.bf16.mxu0 0
      %2059 = vmatpush1.bf16.msra.mxu0 %v2038
      %2060 = vmatprep.subr.bf16.mxu0 0
      %2061 = vmatpush1.bf16.msra.mxu0 %v2039
      %2062 = vmatprep.subr.bf16.mxu0 0
      %2063 = vmatpush1.bf16.msra.mxu0 %v2040
      %2064 = vmatprep.subr.bf16.mxu0 0
      %2065 = vmatpush1.bf16.msra.mxu0 %v2041
      %2066 = vmatprep.subr.bf16.mxu0 0
      %2067 = vmatpush1.bf16.msra.mxu0 0
      %2068 = vmatprep.subr.bf16.mxu0 0
      %2069 = vmatpush1.bf16.msra.mxu0 0
      %2070 = vmatprep.subr.bf16.mxu0 0
      %2071 = vmatpush1.bf16.msra.mxu0 0
      %2072 = vmatprep.subr.bf16.mxu0 0
      %2073 = vmatpush1.bf16.msra.mxu0 0
      %2074 = vmatprep.subr.bf16.mxu0 0
      %2075 = vmatpush1.bf16.msra.mxu0 0
      %2076 = vmatprep.subr.bf16.mxu0 0
      %2077 = vmatpush1.bf16.msra.mxu0 0
      %2078 = vmatprep.subr.bf16.mxu0 0
      %2079 = vmatpush1.bf16.msra.mxu0 0
      %2080 = vmatprep.subr.bf16.mxu0 0
      %2081 = vmatpush1.bf16.msra.mxu0 0
      %2082 = vmatprep.mubr.bf16.mxu0 0
      %2083 = vmatmul.mubr.bf16.gmra.mrb[0].mxu0 %v1937
      %v2084 = vpop.f32.mrb[0].mxu0
      %v2085 = vadd.f32 0.0, %v2084
      %v2086 = vpop.f32.mrb[0].mxu0
      %v2087 = vpop.f32.mrb[0].mxu0
      %v2088 = vadd.f32 0.0, %v2087
      %v2089 = vpop.f32.mrb[0].mxu0
      %2090 = vmatprep.mubr.bf16.mxu0 0
      %2091 = vmatmul.mubr.bf16.gmra.mrb[0].mxu0 %v1940
      %v2092 = vpop.f32.mrb[0].mxu0
      %v2093 = vadd.f32 0.0, %v2092
      %v2094 = vpop.f32.mrb[0].mxu0
      %v2095 = vpop.f32.mrb[0].mxu0
      %v2096 = vadd.f32 0.0, %v2095
      %v2097 = vpop.f32.mrb[0].mxu0
      %2098 = vmatprep.mubr.bf16.mxu0 0
      %2099 = vmatmul.mubr.bf16.gmra.mrb[0].mxu0 %v1943
      %v2100 = vpop.f32.mrb[0].mxu0
      %v2101 = vadd.f32 0.0, %v2100
      %v2102 = vpop.f32.mrb[0].mxu0
      %v2103 = vpop.f32.mrb[0].mxu0
      %v2104 = vadd.f32 0.0, %v2103
      %v2105 = vpop.f32.mrb[0].mxu0
      %2106 = vmatprep.mubr.bf16.mxu0 0
      %2107 = vmatmul.mubr.bf16.gmra.mrb[0].mxu0 %v1946
      %v2108 = vpop.f32.mrb[0].mxu0
      %v2109 = vadd.f32 0.0, %v2108
      %v2110 = vpop.f32.mrb[0].mxu0
      %v2111 = vpop.f32.mrb[0].mxu0
      %v2112 = vadd.f32 0.0, %v2111
      %v2113 = vpop.f32.mrb[0].mxu0
      %2114 = vmatprep.mubr.bf16.mxu0 0
      %2115 = vmatmul.mubr.bf16.gmra.mrb[0].mxu0 %v1949
      %v2116 = vpop.f32.mrb[0].mxu0
      %v2117 = vadd.f32 0.0, %v2116
      %v2118 = vpop.f32.mrb[0].mxu0
      %v2119 = vpop.f32.mrb[0].mxu0
      %v2120 = vadd.f32 0.0, %v2119
      %v2121 = vpop.f32.mrb[0].mxu0
      %2122 = vmatprep.mubr.bf16.mxu0 0
      %2123 = vmatmul.mubr.bf16.gmra.mrb[0].mxu0 %v1952
      %v2124 = vpop.f32.mrb[0].mxu0
      %v2125 = vadd.f32 0.0, %v2124
      %v2126 = vpop.f32.mrb[0].mxu0
      %v2127 = vpop.f32.mrb[0].mxu0
      %v2128 = vadd.f32 0.0, %v2127
      %v2129 = vpop.f32.mrb[0].mxu0
      %2130 = vmatprep.mubr.bf16.mxu0 0
      %2131 = vmatmul.mubr.bf16.gmra.mrb[0].mxu0 %v1955
      %v2132 = vpop.f32.mrb[0].mxu0
      %v2133 = vadd.f32 0.0, %v2132
      %v2134 = vpop.f32.mrb[0].mxu0
      %v2135 = vpop.f32.mrb[0].mxu0
      %v2136 = vadd.f32 0.0, %v2135
      %v2137 = vpop.f32.mrb[0].mxu0
      %2138 = vmatprep.mubr.bf16.mxu0 0
      %2139 = vmatmul.mubr.bf16.gmra.mrb[0].mxu0 %v1958
      %v2140 = vpop.f32.mrb[0].mxu0
      %v2141 = vadd.f32 0.0, %v2140
      %v2142 = vpop.f32.mrb[0].mxu0
      %v2143 = vpop.f32.mrb[0].mxu0
      %v2144 = vadd.f32 0.0, %v2143
      %v2145 = vpop.f32.mrb[0].mxu0
      %2146 = vmatprep.mubr.bf16.mxu0 0
      %2147 = vmatmul.mubr.bf16.gmra.mrb[0].mxu0 %v1961
      %v2148 = vpop.f32.mrb[0].mxu0
      %v2149 = vadd.f32 0.0, %v2148
      %v2150 = vpop.f32.mrb[0].mxu0
      %v2151 = vpop.f32.mrb[0].mxu0
      %v2152 = vadd.f32 0.0, %v2151
      %v2153 = vpop.f32.mrb[0].mxu0
      %2154 = vmatprep.mubr.bf16.mxu0 0
      %2155 = vmatmul.mubr.bf16.gmra.mrb[0].mxu0 %v1964
      %v2156 = vpop.f32.mrb[0].mxu0
      %v2157 = vadd.f32 0.0, %v2156
      %v2158 = vpop.f32.mrb[0].mxu0
      %v2159 = vpop.f32.mrb[0].mxu0
      %v2160 = vadd.f32 0.0, %v2159
      %v2161 = vpop.f32.mrb[0].mxu0
      %2162 = vmatprep.mubr.bf16.mxu0 0
      %2163 = vmatmul.mubr.bf16.gmra.mrb[0].mxu0 %v1967
      %v2164 = vpop.f32.mrb[0].mxu0
      %v2165 = vadd.f32 0.0, %v2164
      %v2166 = vpop.f32.mrb[0].mxu0
      %v2167 = vpop.f32.mrb[0].mxu0
      %v2168 = vadd.f32 0.0, %v2167
      %v2169 = vpop.f32.mrb[0].mxu0
      %2170 = vmatprep.mubr.bf16.mxu0 0
      %2171 = vmatmul.mubr.bf16.gmra.mrb[0].mxu0 %v1970
      %v2172 = vpop.f32.mrb[0].mxu0
      %v2173 = vadd.f32 0.0, %v2172
      %v2174 = vpop.f32.mrb[0].mxu0
      %v2175 = vpop.f32.mrb[0].mxu0
      %v2176 = vadd.f32 0.0, %v2175
      %v2177 = vpop.f32.mrb[0].mxu0
      %2178 = vmatprep.mubr.bf16.mxu0 0
      %2179 = vmatmul.mubr.bf16.gmra.mrb[0].mxu0 %v1973
      %v2180 = vpop.f32.mrb[0].mxu0
      %v2181 = vadd.f32 0.0, %v2180
      %v2182 = vpop.f32.mrb[0].mxu0
      %v2183 = vpop.f32.mrb[0].mxu0
      %v2184 = vadd.f32 0.0, %v2183
      %v2185 = vpop.f32.mrb[0].mxu0
      %2186 = vmatprep.mubr.bf16.mxu0 0
      %2187 = vmatmul.mubr.bf16.gmra.mrb[0].mxu0 %v1976
      %v2188 = vpop.f32.mrb[0].mxu0
      %v2189 = vadd.f32 0.0, %v2188
      %v2190 = vpop.f32.mrb[0].mxu0
      %v2191 = vpop.f32.mrb[0].mxu0
      %v2192 = vadd.f32 0.0, %v2191
      %v2193 = vpop.f32.mrb[0].mxu0
      %2194 = vmatprep.mubr.bf16.mxu0 0
      %2195 = vmatmul.mubr.bf16.gmra.mrb[0].mxu0 %v1979
      %v2196 = vpop.f32.mrb[0].mxu0
      %v2197 = vadd.f32 0.0, %v2196
      %v2198 = vpop.f32.mrb[0].mxu0
      %v2199 = vpop.f32.mrb[0].mxu0
      %v2200 = vadd.f32 0.0, %v2199
      %v2201 = vpop.f32.mrb[0].mxu0
      %2202 = vmatprep.mubr.bf16.mxu0 0
      %2203 = vmatmul.mubr.bf16.gmra.mrb[0].mxu0 %v1985
      %v2204 = vpop.f32.mrb[0].mxu0
      %v2205 = vadd.f32 0.0, %v2204
      %v2206 = vpop.f32.mrb[0].mxu0
      %v2207 = vpop.f32.mrb[0].mxu0
      %v2208 = vadd.f32 0.0, %v2207
      %v2209 = vpop.f32.mrb[0].mxu0
      %2210 = vdwg.mxu0
      %v2211 = vadd.f32 %v1790, %v2085
      %v2212 = vadd.f32 %v1793, %v2088
      %v2213 = vadd.f32 %v1798, %v2093
      %v2214 = vadd.f32 %v1801, %v2096
      %v2215 = vadd.f32 %v1806, %v2101
      %v2216 = vadd.f32 %v1809, %v2104
      %v2217 = vadd.f32 %v1814, %v2109
      %v2218 = vadd.f32 %v1817, %v2112
      %v2219 = vadd.f32 %v1822, %v2117
      %v2220 = vadd.f32 %v1825, %v2120
      %v2221 = vadd.f32 %v1830, %v2125
      %v2222 = vadd.f32 %v1833, %v2128
      %v2223 = vadd.f32 %v1838, %v2133
      %v2224 = vadd.f32 %v1841, %v2136
      %v2225 = vadd.f32 %v1846, %v2141
      %v2226 = vadd.f32 %v1849, %v2144
      %v2227 = vadd.f32 %v1854, %v2149
      %v2228 = vadd.f32 %v1857, %v2152
      %v2229 = vadd.f32 %v1862, %v2157
      %v2230 = vadd.f32 %v1865, %v2160
      %v2231 = vadd.f32 %v1870, %v2165
      %v2232 = vadd.f32 %v1873, %v2168
      %v2233 = vadd.f32 %v1878, %v2173
      %v2234 = vadd.f32 %v1881, %v2176
      %v2235 = vadd.f32 %v1886, %v2181
      %v2236 = vadd.f32 %v1889, %v2184
      %v2237 = vadd.f32 %v1894, %v2189
      %v2238 = vadd.f32 %v1897, %v2192
      %v2239 = vadd.f32 %v1902, %v2197
      %v2240 = vadd.f32 %v1905, %v2200
      %v2241 = vadd.f32 %v1910, %v2205
      %v2242 = vadd.f32 %v1913, %v2208
      %s2243 = scalar_lea.vmem %s3, 192
      %v2244 = vld [vmem:[%s2243] sm:$0xf]
      %v2245 = vld [vmem:[%s2243 + $0x4] sm:$0xf]
      %v2246 = vld [vmem:[%s2243 + $0x8] sm:$0xf]
      %v2247 = vld [vmem:[%s2243 + $0xc] sm:$0xf]
      %v2248 = vld [vmem:[%s2243 + $0x10] sm:$0xf]
      %v2249 = vld [vmem:[%s2243 + $0x14] sm:$0xf]
      %v2250 = vld [vmem:[%s2243 + $0x18] sm:$0xf]
      %v2251 = vld [vmem:[%s2243 + $0x1c] sm:$0xf]
      %v2252 = vld [vmem:[%s2243 + $0x20] sm:$0xf]
      %v2253 = vld [vmem:[%s2243 + $0x24] sm:$0xf]
      %v2254 = vld [vmem:[%s2243 + $0x28] sm:$0xf]
      %v2255 = vld [vmem:[%s2243 + $0x2c] sm:$0xf]
      %v2256 = vld [vmem:[%s2243 + $0x30] sm:$0xf]
      %v2257 = vld [vmem:[%s2243 + $0x34] sm:$0xf]
      %v2258 = vld [vmem:[%s2243 + $0x38] sm:$0xf]
      %v2259 = vld [vmem:[%s2243 + $0x3c] sm:$0xf]
      %v2260 = vshrl.u32 %v1311, 16
      %v2262 = vrot.slane %v2260, 7
      %v2263 = vor.u32 %v2262, %v1982
      %v2264 = vsel %vm1558, %v1686, %v2263
      %v2266 = vshrl.u32 %v1312, 16
      %v2268 = vrot.slane %v2266, 7
      %v2269 = vshll.u32 %v1312, 16
      %v2271 = vor.u32 %v2268, %v2269
      %v2272 = vsel %vm1558, %v2262, %v2271
      %v2291 = vunpack.c.l.b16 %v2244
      %v2292 = vunpack.c.l.b16 %v2245
      %v2293 = vunpack.c.l.b16 %v2246
      %v2294 = vunpack.c.l.b16 %v2247
      %v2295 = vunpack.c.l.b16 %v2248
      %v2296 = vunpack.c.l.b16 %v2249
      %v2297 = vunpack.c.l.b16 %v2250
      %v2298 = vunpack.c.l.b16 %v2251
      %v2299 = vunpack.c.l.b16 %v2252
      %v2300 = vunpack.c.l.b16 %v2253
      %v2301 = vunpack.c.l.b16 %v2254
      %v2302 = vunpack.c.l.b16 %v2255
      %v2303 = vunpack.c.l.b16 %v2256
      %v2304 = vunpack.c.l.b16 %v2257
      %v2305 = vunpack.c.l.b16 %v2258
      %v2306 = vunpack.c.l.b16 %v2259
      %v2307 = vpack.c.b16 %v2292, %v2291
      %v2308 = vpack.c.b16 %v2294, %v2293
      %v2309 = vpack.c.b16 %v2296, %v2295
      %v2310 = vpack.c.b16 %v2298, %v2297
      %v2311 = vpack.c.b16 %v2300, %v2299
      %v2312 = vpack.c.b16 %v2302, %v2301
      %v2313 = vpack.c.b16 %v2304, %v2303
      %v2314 = vpack.c.b16 %v2306, %v2305
      %2323 = vmatprep.subr.bf16.mxu0 0
      %2324 = vmatpush1.bf16.msra.mxu0 %v2307
      %2325 = vmatprep.subr.bf16.mxu0 0
      %2326 = vmatpush1.bf16.msra.mxu0 %v2308
      %2327 = vmatprep.subr.bf16.mxu0 0
      %2328 = vmatpush1.bf16.msra.mxu0 %v2309
      %2329 = vmatprep.subr.bf16.mxu0 0
      %2330 = vmatpush1.bf16.msra.mxu0 %v2310
      %2331 = vmatprep.subr.bf16.mxu0 0
      %2332 = vmatpush1.bf16.msra.mxu0 %v2311
      %2333 = vmatprep.subr.bf16.mxu0 0
      %2334 = vmatpush1.bf16.msra.mxu0 %v2312
      %2335 = vmatprep.subr.bf16.mxu0 0
      %2336 = vmatpush1.bf16.msra.mxu0 %v2313
      %2337 = vmatprep.subr.bf16.mxu0 0
      %2338 = vmatpush1.bf16.msra.mxu0 %v2314
      %2339 = vmatprep.subr.bf16.mxu0 0
      %2340 = vmatpush1.bf16.msra.mxu0 0
      %2341 = vmatprep.subr.bf16.mxu0 0
      %2342 = vmatpush1.bf16.msra.mxu0 0
      %2343 = vmatprep.subr.bf16.mxu0 0
      %2344 = vmatpush1.bf16.msra.mxu0 0
      %2345 = vmatprep.subr.bf16.mxu0 0
      %2346 = vmatpush1.bf16.msra.mxu0 0
      %2347 = vmatprep.subr.bf16.mxu0 0
      %2348 = vmatpush1.bf16.msra.mxu0 0
      %2349 = vmatprep.subr.bf16.mxu0 0
      %2350 = vmatpush1.bf16.msra.mxu0 0
      %2351 = vmatprep.subr.bf16.mxu0 0
      %2352 = vmatpush1.bf16.msra.mxu0 0
      %2353 = vmatprep.subr.bf16.mxu0 0
      %2354 = vmatpush1.bf16.msra.mxu0 0
      %2355 = vmatprep.mubr.bf16.mxu0 0
      %2356 = vmatmul.mubr.bf16.gmra.mrb[0].mxu0 %v1586
      %v2357 = vpop.f32.mrb[0].mxu0
      %v2358 = vadd.f32 0.0, %v2357
      %v2359 = vpop.f32.mrb[0].mxu0
      %v2360 = vpop.f32.mrb[0].mxu0
      %v2361 = vadd.f32 0.0, %v2360
      %v2362 = vpop.f32.mrb[0].mxu0
      %2363 = vmatprep.mubr.bf16.mxu0 0
      %2364 = vmatmul.mubr.bf16.gmra.mrb[0].mxu0 %v1594
      %v2365 = vpop.f32.mrb[0].mxu0
      %v2366 = vadd.f32 0.0, %v2365
      %v2367 = vpop.f32.mrb[0].mxu0
      %v2368 = vpop.f32.mrb[0].mxu0
      %v2369 = vadd.f32 0.0, %v2368
      %v2370 = vpop.f32.mrb[0].mxu0
      %2371 = vmatprep.mubr.bf16.mxu0 0
      %2372 = vmatmul.mubr.bf16.gmra.mrb[0].mxu0 %v1602
      %v2373 = vpop.f32.mrb[0].mxu0
      %v2374 = vadd.f32 0.0, %v2373
      %v2375 = vpop.f32.mrb[0].mxu0
      %v2376 = vpop.f32.mrb[0].mxu0
      %v2377 = vadd.f32 0.0, %v2376
      %v2378 = vpop.f32.mrb[0].mxu0
      %2379 = vmatprep.mubr.bf16.mxu0 0
      %2380 = vmatmul.mubr.bf16.gmra.mrb[0].mxu0 %v1610
      %v2381 = vpop.f32.mrb[0].mxu0
      %v2382 = vadd.f32 0.0, %v2381
      %v2383 = vpop.f32.mrb[0].mxu0
      %v2384 = vpop.f32.mrb[0].mxu0
      %v2385 = vadd.f32 0.0, %v2384
      %v2386 = vpop.f32.mrb[0].mxu0
      %2387 = vmatprep.mubr.bf16.mxu0 0
      %2388 = vmatmul.mubr.bf16.gmra.mrb[0].mxu0 %v1618
      %v2389 = vpop.f32.mrb[0].mxu0
      %v2390 = vadd.f32 0.0, %v2389
      %v2391 = vpop.f32.mrb[0].mxu0
      %v2392 = vpop.f32.mrb[0].mxu0
      %v2393 = vadd.f32 0.0, %v2392
      %v2394 = vpop.f32.mrb[0].mxu0
      %2395 = vmatprep.mubr.bf16.mxu0 0
      %2396 = vmatmul.mubr.bf16.gmra.mrb[0].mxu0 %v1626
      %v2397 = vpop.f32.mrb[0].mxu0
      %v2398 = vadd.f32 0.0, %v2397
      %v2399 = vpop.f32.mrb[0].mxu0
      %v2400 = vpop.f32.mrb[0].mxu0
      %v2401 = vadd.f32 0.0, %v2400
      %v2402 = vpop.f32.mrb[0].mxu0
      %2403 = vmatprep.mubr.bf16.mxu0 0
      %2404 = vmatmul.mubr.bf16.gmra.mrb[0].mxu0 %v1634
      %v2405 = vpop.f32.mrb[0].mxu0
      %v2406 = vadd.f32 0.0, %v2405
      %v2407 = vpop.f32.mrb[0].mxu0
      %v2408 = vpop.f32.mrb[0].mxu0
      %v2409 = vadd.f32 0.0, %v2408
      %v2410 = vpop.f32.mrb[0].mxu0
      %2411 = vmatprep.mubr.bf16.mxu0 0
      %2412 = vmatmul.mubr.bf16.gmra.mrb[0].mxu0 %v1642
      %v2413 = vpop.f32.mrb[0].mxu0
      %v2414 = vadd.f32 0.0, %v2413
      %v2415 = vpop.f32.mrb[0].mxu0
      %v2416 = vpop.f32.mrb[0].mxu0
      %v2417 = vadd.f32 0.0, %v2416
      %v2418 = vpop.f32.mrb[0].mxu0
      %2419 = vmatprep.mubr.bf16.mxu0 0
      %2420 = vmatmul.mubr.bf16.gmra.mrb[0].mxu0 %v1650
      %v2421 = vpop.f32.mrb[0].mxu0
      %v2422 = vadd.f32 0.0, %v2421
      %v2423 = vpop.f32.mrb[0].mxu0
      %v2424 = vpop.f32.mrb[0].mxu0
      %v2425 = vadd.f32 0.0, %v2424
      %v2426 = vpop.f32.mrb[0].mxu0
      %2427 = vmatprep.mubr.bf16.mxu0 0
      %2428 = vmatmul.mubr.bf16.gmra.mrb[0].mxu0 %v1658
      %v2429 = vpop.f32.mrb[0].mxu0
      %v2430 = vadd.f32 0.0, %v2429
      %v2431 = vpop.f32.mrb[0].mxu0
      %v2432 = vpop.f32.mrb[0].mxu0
      %v2433 = vadd.f32 0.0, %v2432
      %v2434 = vpop.f32.mrb[0].mxu0
      %2435 = vmatprep.mubr.bf16.mxu0 0
      %2436 = vmatmul.mubr.bf16.gmra.mrb[0].mxu0 %v1666
      %v2437 = vpop.f32.mrb[0].mxu0
      %v2438 = vadd.f32 0.0, %v2437
      %v2439 = vpop.f32.mrb[0].mxu0
      %v2440 = vpop.f32.mrb[0].mxu0
      %v2441 = vadd.f32 0.0, %v2440
      %v2442 = vpop.f32.mrb[0].mxu0
      %2443 = vmatprep.mubr.bf16.mxu0 0
      %2444 = vmatmul.mubr.bf16.gmra.mrb[0].mxu0 %v1674
      %v2445 = vpop.f32.mrb[0].mxu0
      %v2446 = vadd.f32 0.0, %v2445
      %v2447 = vpop.f32.mrb[0].mxu0
      %v2448 = vpop.f32.mrb[0].mxu0
      %v2449 = vadd.f32 0.0, %v2448
      %v2450 = vpop.f32.mrb[0].mxu0
      %2451 = vmatprep.mubr.bf16.mxu0 0
      %2452 = vmatmul.mubr.bf16.gmra.mrb[0].mxu0 %v1682
      %v2453 = vpop.f32.mrb[0].mxu0
      %v2454 = vadd.f32 0.0, %v2453
      %v2455 = vpop.f32.mrb[0].mxu0
      %v2456 = vpop.f32.mrb[0].mxu0
      %v2457 = vadd.f32 0.0, %v2456
      %v2458 = vpop.f32.mrb[0].mxu0
      %2459 = vmatprep.mubr.bf16.mxu0 0
      %2460 = vmatmul.mubr.bf16.gmra.mrb[0].mxu0 %v1690
      %v2461 = vpop.f32.mrb[0].mxu0
      %v2462 = vadd.f32 0.0, %v2461
      %v2463 = vpop.f32.mrb[0].mxu0
      %v2464 = vpop.f32.mrb[0].mxu0
      %v2465 = vadd.f32 0.0, %v2464
      %v2466 = vpop.f32.mrb[0].mxu0
      %2467 = vmatprep.mubr.bf16.mxu0 0
      %2468 = vmatmul.mubr.bf16.gmra.mrb[0].mxu0 %v2264
      %v2469 = vpop.f32.mrb[0].mxu0
      %v2470 = vadd.f32 0.0, %v2469
      %v2471 = vpop.f32.mrb[0].mxu0
      %v2472 = vpop.f32.mrb[0].mxu0
      %v2473 = vadd.f32 0.0, %v2472
      %v2474 = vpop.f32.mrb[0].mxu0
      %2475 = vmatprep.mubr.bf16.mxu0 0
      %2476 = vmatmul.mubr.bf16.gmra.mrb[0].mxu0 %v2272
      %v2477 = vpop.f32.mrb[0].mxu0
      %v2478 = vadd.f32 0.0, %v2477
      %v2479 = vpop.f32.mrb[0].mxu0
      %v2480 = vpop.f32.mrb[0].mxu0
      %v2481 = vadd.f32 0.0, %v2480
      %v2482 = vpop.f32.mrb[0].mxu0
      %2483 = vdwg.mxu0
      %v2484 = vadd.f32 %v2211, %v2358
      %v2485 = vadd.f32 %v2212, %v2361
      %v2486 = vadd.f32 %v2213, %v2366
      %v2487 = vadd.f32 %v2214, %v2369
      %v2488 = vadd.f32 %v2215, %v2374
      %v2489 = vadd.f32 %v2216, %v2377
      %v2490 = vadd.f32 %v2217, %v2382
      %v2491 = vadd.f32 %v2218, %v2385
      %v2492 = vadd.f32 %v2219, %v2390
      %v2493 = vadd.f32 %v2220, %v2393
      %v2494 = vadd.f32 %v2221, %v2398
      %v2495 = vadd.f32 %v2222, %v2401
      %v2496 = vadd.f32 %v2223, %v2406
      %v2497 = vadd.f32 %v2224, %v2409
      %v2498 = vadd.f32 %v2225, %v2414
      %v2499 = vadd.f32 %v2226, %v2417
      %v2500 = vadd.f32 %v2227, %v2422
      %v2501 = vadd.f32 %v2228, %v2425
      %v2502 = vadd.f32 %v2229, %v2430
      %v2503 = vadd.f32 %v2230, %v2433
      %v2504 = vadd.f32 %v2231, %v2438
      %v2505 = vadd.f32 %v2232, %v2441
      %v2506 = vadd.f32 %v2233, %v2446
      %v2507 = vadd.f32 %v2234, %v2449
      %v2508 = vadd.f32 %v2235, %v2454
      %v2509 = vadd.f32 %v2236, %v2457
      %v2510 = vadd.f32 %v2237, %v2462
      %v2511 = vadd.f32 %v2238, %v2465
      %v2512 = vadd.f32 %v2239, %v2470
      %v2513 = vadd.f32 %v2240, %v2473
      %v2514 = vadd.f32 %v2241, %v2478
      %v2515 = vadd.f32 %v2242, %v2481
      %s2516 = scalar_lea.vmem %s3, 256
      %v2517 = vld [vmem:[%s2516] sm:$0xf]
      %v2518 = vld [vmem:[%s2516 + $0x4] sm:$0xf]
      %v2519 = vld [vmem:[%s2516 + $0x8] sm:$0xf]
      %v2520 = vld [vmem:[%s2516 + $0xc] sm:$0xf]
      %v2521 = vld [vmem:[%s2516 + $0x10] sm:$0xf]
      %v2522 = vld [vmem:[%s2516 + $0x14] sm:$0xf]
      %v2523 = vld [vmem:[%s2516 + $0x18] sm:$0xf]
      %v2524 = vld [vmem:[%s2516 + $0x1c] sm:$0xf]
      %v2525 = vld [vmem:[%s2516 + $0x20] sm:$0xf]
      %v2526 = vld [vmem:[%s2516 + $0x24] sm:$0xf]
      %v2527 = vld [vmem:[%s2516 + $0x28] sm:$0xf]
      %v2528 = vld [vmem:[%s2516 + $0x2c] sm:$0xf]
      %v2529 = vld [vmem:[%s2516 + $0x30] sm:$0xf]
      %v2530 = vld [vmem:[%s2516 + $0x34] sm:$0xf]
      %v2531 = vld [vmem:[%s2516 + $0x38] sm:$0xf]
      %v2532 = vld [vmem:[%s2516 + $0x3c] sm:$0xf]
      %v2549 = vunpack.c.l.b16 %v2517
      %v2550 = vunpack.c.l.b16 %v2518
      %v2551 = vunpack.c.l.b16 %v2519
      %v2552 = vunpack.c.l.b16 %v2520
      %v2553 = vunpack.c.l.b16 %v2521
      %v2554 = vunpack.c.l.b16 %v2522
      %v2555 = vunpack.c.l.b16 %v2523
      %v2556 = vunpack.c.l.b16 %v2524
      %v2557 = vunpack.c.l.b16 %v2525
      %v2558 = vunpack.c.l.b16 %v2526
      %v2559 = vunpack.c.l.b16 %v2527
      %v2560 = vunpack.c.l.b16 %v2528
      %v2561 = vunpack.c.l.b16 %v2529
      %v2562 = vunpack.c.l.b16 %v2530
      %v2563 = vunpack.c.l.b16 %v2531
      %v2564 = vunpack.c.l.b16 %v2532
      %v2565 = vpack.c.b16 %v2550, %v2549
      %v2566 = vpack.c.b16 %v2552, %v2551
      %v2567 = vpack.c.b16 %v2554, %v2553
      %v2568 = vpack.c.b16 %v2556, %v2555
      %v2569 = vpack.c.b16 %v2558, %v2557
      %v2570 = vpack.c.b16 %v2560, %v2559
      %v2571 = vpack.c.b16 %v2562, %v2561
      %v2572 = vpack.c.b16 %v2564, %v2563
      %2581 = vmatprep.subr.bf16.mxu0 0
      %2582 = vmatpush1.bf16.msra.mxu0 %v2565
      %2583 = vmatprep.subr.bf16.mxu0 0
      %2584 = vmatpush1.bf16.msra.mxu0 %v2566
      %2585 = vmatprep.subr.bf16.mxu0 0
      %2586 = vmatpush1.bf16.msra.mxu0 %v2567
      %2587 = vmatprep.subr.bf16.mxu0 0
      %2588 = vmatpush1.bf16.msra.mxu0 %v2568
      %2589 = vmatprep.subr.bf16.mxu0 0
      %2590 = vmatpush1.bf16.msra.mxu0 %v2569
      %2591 = vmatprep.subr.bf16.mxu0 0
      %2592 = vmatpush1.bf16.msra.mxu0 %v2570
      %2593 = vmatprep.subr.bf16.mxu0 0
      %2594 = vmatpush1.bf16.msra.mxu0 %v2571
      %2595 = vmatprep.subr.bf16.mxu0 0
      %2596 = vmatpush1.bf16.msra.mxu0 %v2572
      %2597 = vmatprep.subr.bf16.mxu0 0
      %2598 = vmatpush1.bf16.msra.mxu0 0
      %2599 = vmatprep.subr.bf16.mxu0 0
      %2600 = vmatpush1.bf16.msra.mxu0 0
      %2601 = vmatprep.subr.bf16.mxu0 0
      %2602 = vmatpush1.bf16.msra.mxu0 0
      %2603 = vmatprep.subr.bf16.mxu0 0
      %2604 = vmatpush1.bf16.msra.mxu0 0
      %2605 = vmatprep.subr.bf16.mxu0 0
      %2606 = vmatpush1.bf16.msra.mxu0 0
      %2607 = vmatprep.subr.bf16.mxu0 0
      %2608 = vmatpush1.bf16.msra.mxu0 0
      %2609 = vmatprep.subr.bf16.mxu0 0
      %2610 = vmatpush1.bf16.msra.mxu0 0
      %2611 = vmatprep.subr.bf16.mxu0 0
      %2612 = vmatpush1.bf16.msra.mxu0 0
      %2613 = vmatprep.mubr.bf16.mxu0 0
      %2614 = vmatmul.mubr.bf16.gmra.mrb[0].mxu0 %v1297
      %v2615 = vpop.f32.mrb[0].mxu0
      %v2616 = vadd.f32 0.0, %v2615
      %v2617 = vpop.f32.mrb[0].mxu0
      %v2618 = vpop.f32.mrb[0].mxu0
      %v2619 = vadd.f32 0.0, %v2618
      %v2620 = vpop.f32.mrb[0].mxu0
      %2621 = vmatprep.mubr.bf16.mxu0 0
      %2622 = vmatmul.mubr.bf16.gmra.mrb[0].mxu0 %v1298
      %v2623 = vpop.f32.mrb[0].mxu0
      %v2624 = vadd.f32 0.0, %v2623
      %v2625 = vpop.f32.mrb[0].mxu0
      %v2626 = vpop.f32.mrb[0].mxu0
      %v2627 = vadd.f32 0.0, %v2626
      %v2628 = vpop.f32.mrb[0].mxu0
      %2629 = vmatprep.mubr.bf16.mxu0 0
      %2630 = vmatmul.mubr.bf16.gmra.mrb[0].mxu0 %v1299
      %v2631 = vpop.f32.mrb[0].mxu0
      %v2632 = vadd.f32 0.0, %v2631
      %v2633 = vpop.f32.mrb[0].mxu0
      %v2634 = vpop.f32.mrb[0].mxu0
      %v2635 = vadd.f32 0.0, %v2634
      %v2636 = vpop.f32.mrb[0].mxu0
      %2637 = vmatprep.mubr.bf16.mxu0 0
      %2638 = vmatmul.mubr.bf16.gmra.mrb[0].mxu0 %v1300
      %v2639 = vpop.f32.mrb[0].mxu0
      %v2640 = vadd.f32 0.0, %v2639
      %v2641 = vpop.f32.mrb[0].mxu0
      %v2642 = vpop.f32.mrb[0].mxu0
      %v2643 = vadd.f32 0.0, %v2642
      %v2644 = vpop.f32.mrb[0].mxu0
      %2645 = vmatprep.mubr.bf16.mxu0 0
      %2646 = vmatmul.mubr.bf16.gmra.mrb[0].mxu0 %v1301
      %v2647 = vpop.f32.mrb[0].mxu0
      %v2648 = vadd.f32 0.0, %v2647
      %v2649 = vpop.f32.mrb[0].mxu0
      %v2650 = vpop.f32.mrb[0].mxu0
      %v2651 = vadd.f32 0.0, %v2650
      %v2652 = vpop.f32.mrb[0].mxu0
      %2653 = vmatprep.mubr.bf16.mxu0 0
      %2654 = vmatmul.mubr.bf16.gmra.mrb[0].mxu0 %v1302
      %v2655 = vpop.f32.mrb[0].mxu0
      %v2656 = vadd.f32 0.0, %v2655
      %v2657 = vpop.f32.mrb[0].mxu0
      %v2658 = vpop.f32.mrb[0].mxu0
      %v2659 = vadd.f32 0.0, %v2658
      %v2660 = vpop.f32.mrb[0].mxu0
      %2661 = vmatprep.mubr.bf16.mxu0 0
      %2662 = vmatmul.mubr.bf16.gmra.mrb[0].mxu0 %v1303
      %v2663 = vpop.f32.mrb[0].mxu0
      %v2664 = vadd.f32 0.0, %v2663
      %v2665 = vpop.f32.mrb[0].mxu0
      %v2666 = vpop.f32.mrb[0].mxu0
      %v2667 = vadd.f32 0.0, %v2666
      %v2668 = vpop.f32.mrb[0].mxu0
      %2669 = vmatprep.mubr.bf16.mxu0 0
      %2670 = vmatmul.mubr.bf16.gmra.mrb[0].mxu0 %v1304
      %v2671 = vpop.f32.mrb[0].mxu0
      %v2672 = vadd.f32 0.0, %v2671
      %v2673 = vpop.f32.mrb[0].mxu0
      %v2674 = vpop.f32.mrb[0].mxu0
      %v2675 = vadd.f32 0.0, %v2674
      %v2676 = vpop.f32.mrb[0].mxu0
      %2677 = vmatprep.mubr.bf16.mxu0 0
      %2678 = vmatmul.mubr.bf16.gmra.mrb[0].mxu0 %v1305
      %v2679 = vpop.f32.mrb[0].mxu0
      %v2680 = vadd.f32 0.0, %v2679
      %v2681 = vpop.f32.mrb[0].mxu0
      %v2682 = vpop.f32.mrb[0].mxu0
      %v2683 = vadd.f32 0.0, %v2682
      %v2684 = vpop.f32.mrb[0].mxu0
      %2685 = vmatprep.mubr.bf16.mxu0 0
      %2686 = vmatmul.mubr.bf16.gmra.mrb[0].mxu0 %v1306
      %v2687 = vpop.f32.mrb[0].mxu0
      %v2688 = vadd.f32 0.0, %v2687
      %v2689 = vpop.f32.mrb[0].mxu0
      %v2690 = vpop.f32.mrb[0].mxu0
      %v2691 = vadd.f32 0.0, %v2690
      %v2692 = vpop.f32.mrb[0].mxu0
      %2693 = vmatprep.mubr.bf16.mxu0 0
      %2694 = vmatmul.mubr.bf16.gmra.mrb[0].mxu0 %v1307
      %v2695 = vpop.f32.mrb[0].mxu0
      %v2696 = vadd.f32 0.0, %v2695
      %v2697 = vpop.f32.mrb[0].mxu0
      %v2698 = vpop.f32.mrb[0].mxu0
      %v2699 = vadd.f32 0.0, %v2698
      %v2700 = vpop.f32.mrb[0].mxu0
      %2701 = vmatprep.mubr.bf16.mxu0 0
      %2702 = vmatmul.mubr.bf16.gmra.mrb[0].mxu0 %v1308
      %v2703 = vpop.f32.mrb[0].mxu0
      %v2704 = vadd.f32 0.0, %v2703
      %v2705 = vpop.f32.mrb[0].mxu0
      %v2706 = vpop.f32.mrb[0].mxu0
      %v2707 = vadd.f32 0.0, %v2706
      %v2708 = vpop.f32.mrb[0].mxu0
      %2709 = vmatprep.mubr.bf16.mxu0 0
      %2710 = vmatmul.mubr.bf16.gmra.mrb[0].mxu0 %v1309
      %v2711 = vpop.f32.mrb[0].mxu0
      %v2712 = vadd.f32 0.0, %v2711
      %v2713 = vpop.f32.mrb[0].mxu0
      %v2714 = vpop.f32.mrb[0].mxu0
      %v2715 = vadd.f32 0.0, %v2714
      %v2716 = vpop.f32.mrb[0].mxu0
      %2717 = vmatprep.mubr.bf16.mxu0 0
      %2718 = vmatmul.mubr.bf16.gmra.mrb[0].mxu0 %v1310
      %v2719 = vpop.f32.mrb[0].mxu0
      %v2720 = vadd.f32 0.0, %v2719
      %v2721 = vpop.f32.mrb[0].mxu0
      %v2722 = vpop.f32.mrb[0].mxu0
      %v2723 = vadd.f32 0.0, %v2722
      %v2724 = vpop.f32.mrb[0].mxu0
      %2725 = vmatprep.mubr.bf16.mxu0 0
      %2726 = vmatmul.mubr.bf16.gmra.mrb[0].mxu0 %v1311
      %v2727 = vpop.f32.mrb[0].mxu0
      %v2728 = vadd.f32 0.0, %v2727
      %v2729 = vpop.f32.mrb[0].mxu0
      %v2730 = vpop.f32.mrb[0].mxu0
      %v2731 = vadd.f32 0.0, %v2730
      %v2732 = vpop.f32.mrb[0].mxu0
      %2733 = vmatprep.mubr.bf16.mxu0 0
      %2734 = vmatmul.mubr.bf16.gmra.mrb[0].mxu0 %v1312
      %v2735 = vpop.f32.mrb[0].mxu0
      %v2736 = vadd.f32 0.0, %v2735
      %v2737 = vpop.f32.mrb[0].mxu0
      %v2738 = vpop.f32.mrb[0].mxu0
      %v2739 = vadd.f32 0.0, %v2738
      %v2740 = vpop.f32.mrb[0].mxu0
      %2741 = vdwg.mxu0
      %v2742 = vadd.f32 %v2484, %v2616
      %v2743 = vadd.f32 %v2485, %v2619
      %v2744 = vadd.f32 %v2486, %v2624
      %v2745 = vadd.f32 %v2487, %v2627
      %v2746 = vadd.f32 %v2488, %v2632
      %v2747 = vadd.f32 %v2489, %v2635
      %v2748 = vadd.f32 %v2490, %v2640
      %v2749 = vadd.f32 %v2491, %v2643
      %v2750 = vadd.f32 %v2492, %v2648
      %v2751 = vadd.f32 %v2493, %v2651
      %v2752 = vadd.f32 %v2494, %v2656
      %v2753 = vadd.f32 %v2495, %v2659
      %v2754 = vadd.f32 %v2496, %v2664
      %v2755 = vadd.f32 %v2497, %v2667
      %v2756 = vadd.f32 %v2498, %v2672
      %v2757 = vadd.f32 %v2499, %v2675
      %v2758 = vadd.f32 %v2500, %v2680
      %v2759 = vadd.f32 %v2501, %v2683
      %v2760 = vadd.f32 %v2502, %v2688
      %v2761 = vadd.f32 %v2503, %v2691
      %v2762 = vadd.f32 %v2504, %v2696
      %v2763 = vadd.f32 %v2505, %v2699
      %v2764 = vadd.f32 %v2506, %v2704
      %v2765 = vadd.f32 %v2507, %v2707
      %v2766 = vadd.f32 %v2508, %v2712
      %v2767 = vadd.f32 %v2509, %v2715
      %v2768 = vadd.f32 %v2510, %v2720
      %v2769 = vadd.f32 %v2511, %v2723
      %v2770 = vadd.f32 %v2512, %v2728
      %v2771 = vadd.f32 %v2513, %v2731
      %v2772 = vadd.f32 %v2514, %v2736
      %v2773 = vadd.f32 %v2515, %v2739
      %s2774 = scalar_lea.vmem %s3, 320
      %v2775 = vld [vmem:[%s2774] sm:$0xf]
      %v2776 = vld [vmem:[%s2774 + $0x4] sm:$0xf]
      %v2777 = vld [vmem:[%s2774 + $0x8] sm:$0xf]
      %v2778 = vld [vmem:[%s2774 + $0xc] sm:$0xf]
      %v2779 = vld [vmem:[%s2774 + $0x10] sm:$0xf]
      %v2780 = vld [vmem:[%s2774 + $0x14] sm:$0xf]
      %v2781 = vld [vmem:[%s2774 + $0x18] sm:$0xf]
      %v2782 = vld [vmem:[%s2774 + $0x1c] sm:$0xf]
      %v2783 = vld [vmem:[%s2774 + $0x20] sm:$0xf]
      %v2784 = vld [vmem:[%s2774 + $0x24] sm:$0xf]
      %v2785 = vld [vmem:[%s2774 + $0x28] sm:$0xf]
      %v2786 = vld [vmem:[%s2774 + $0x2c] sm:$0xf]
      %v2787 = vld [vmem:[%s2774 + $0x30] sm:$0xf]
      %v2788 = vld [vmem:[%s2774 + $0x34] sm:$0xf]
      %v2789 = vld [vmem:[%s2774 + $0x38] sm:$0xf]
      %v2790 = vld [vmem:[%s2774 + $0x3c] sm:$0xf]
      %v2791 = vor.u32 %v2260, %v1984
      %v2792 = vrot.slane %v2269, 1
      %v2793 = vsel %vm1933, %v2791, %v2792
      %v2794 = vor.u32 %v2266, %v2792
      %v2796 = vshll.u32 %v1313, 16
      %v2798 = vrot.slane %v2796, 1
      %v2799 = vsel %vm1933, %v2794, %v2798
      %v2818 = vunpack.c.l.b16 %v2775
      %v2819 = vunpack.c.l.b16 %v2776
      %v2820 = vunpack.c.l.b16 %v2777
      %v2821 = vunpack.c.l.b16 %v2778
      %v2822 = vunpack.c.l.b16 %v2779
      %v2823 = vunpack.c.l.b16 %v2780
      %v2824 = vunpack.c.l.b16 %v2781
      %v2825 = vunpack.c.l.b16 %v2782
      %v2826 = vunpack.c.l.b16 %v2783
      %v2827 = vunpack.c.l.b16 %v2784
      %v2828 = vunpack.c.l.b16 %v2785
      %v2829 = vunpack.c.l.b16 %v2786
      %v2830 = vunpack.c.l.b16 %v2787
      %v2831 = vunpack.c.l.b16 %v2788
      %v2832 = vunpack.c.l.b16 %v2789
      %v2833 = vunpack.c.l.b16 %v2790
      %v2834 = vpack.c.b16 %v2819, %v2818
      %v2835 = vpack.c.b16 %v2821, %v2820
      %v2836 = vpack.c.b16 %v2823, %v2822
      %v2837 = vpack.c.b16 %v2825, %v2824
      %v2838 = vpack.c.b16 %v2827, %v2826
      %v2839 = vpack.c.b16 %v2829, %v2828
      %v2840 = vpack.c.b16 %v2831, %v2830
      %v2841 = vpack.c.b16 %v2833, %v2832
      %2850 = vmatprep.subr.bf16.mxu0 0
      %2851 = vmatpush1.bf16.msra.mxu0 %v2834
      %2852 = vmatprep.subr.bf16.mxu0 0
      %2853 = vmatpush1.bf16.msra.mxu0 %v2835
      %2854 = vmatprep.subr.bf16.mxu0 0
      %2855 = vmatpush1.bf16.msra.mxu0 %v2836
      %2856 = vmatprep.subr.bf16.mxu0 0
      %2857 = vmatpush1.bf16.msra.mxu0 %v2837
      %2858 = vmatprep.subr.bf16.mxu0 0
      %2859 = vmatpush1.bf16.msra.mxu0 %v2838
      %2860 = vmatprep.subr.bf16.mxu0 0
      %2861 = vmatpush1.bf16.msra.mxu0 %v2839
      %2862 = vmatprep.subr.bf16.mxu0 0
      %2863 = vmatpush1.bf16.msra.mxu0 %v2840
      %2864 = vmatprep.subr.bf16.mxu0 0
      %2865 = vmatpush1.bf16.msra.mxu0 %v2841
      %2866 = vmatprep.subr.bf16.mxu0 0
      %2867 = vmatpush1.bf16.msra.mxu0 0
      %2868 = vmatprep.subr.bf16.mxu0 0
      %2869 = vmatpush1.bf16.msra.mxu0 0
      %2870 = vmatprep.subr.bf16.mxu0 0
      %2871 = vmatpush1.bf16.msra.mxu0 0
      %2872 = vmatprep.subr.bf16.mxu0 0
      %2873 = vmatpush1.bf16.msra.mxu0 0
      %2874 = vmatprep.subr.bf16.mxu0 0
      %2875 = vmatpush1.bf16.msra.mxu0 0
      %2876 = vmatprep.subr.bf16.mxu0 0
      %2877 = vmatpush1.bf16.msra.mxu0 0
      %2878 = vmatprep.subr.bf16.mxu0 0
      %2879 = vmatpush1.bf16.msra.mxu0 0
      %2880 = vmatprep.subr.bf16.mxu0 0
      %2881 = vmatpush1.bf16.msra.mxu0 0
      %2882 = vmatprep.mubr.bf16.mxu0 0
      %2883 = vmatmul.mubr.bf16.gmra.mrb[0].mxu0 %v1943
      %v2884 = vpop.f32.mrb[0].mxu0
      %v2885 = vadd.f32 0.0, %v2884
      %v2886 = vpop.f32.mrb[0].mxu0
      %v2887 = vpop.f32.mrb[0].mxu0
      %v2888 = vadd.f32 0.0, %v2887
      %v2889 = vpop.f32.mrb[0].mxu0
      %2890 = vmatprep.mubr.bf16.mxu0 0
      %2891 = vmatmul.mubr.bf16.gmra.mrb[0].mxu0 %v1946
      %v2892 = vpop.f32.mrb[0].mxu0
      %v2893 = vadd.f32 0.0, %v2892
      %v2894 = vpop.f32.mrb[0].mxu0
      %v2895 = vpop.f32.mrb[0].mxu0
      %v2896 = vadd.f32 0.0, %v2895
      %v2897 = vpop.f32.mrb[0].mxu0
      %2898 = vmatprep.mubr.bf16.mxu0 0
      %2899 = vmatmul.mubr.bf16.gmra.mrb[0].mxu0 %v1949
      %v2900 = vpop.f32.mrb[0].mxu0
      %v2901 = vadd.f32 0.0, %v2900
      %v2902 = vpop.f32.mrb[0].mxu0
      %v2903 = vpop.f32.mrb[0].mxu0
      %v2904 = vadd.f32 0.0, %v2903
      %v2905 = vpop.f32.mrb[0].mxu0
      %2906 = vmatprep.mubr.bf16.mxu0 0
      %2907 = vmatmul.mubr.bf16.gmra.mrb[0].mxu0 %v1952
      %v2908 = vpop.f32.mrb[0].mxu0
      %v2909 = vadd.f32 0.0, %v2908
      %v2910 = vpop.f32.mrb[0].mxu0
      %v2911 = vpop.f32.mrb[0].mxu0
      %v2912 = vadd.f32 0.0, %v2911
      %v2913 = vpop.f32.mrb[0].mxu0
      %2914 = vmatprep.mubr.bf16.mxu0 0
      %2915 = vmatmul.mubr.bf16.gmra.mrb[0].mxu0 %v1955
      %v2916 = vpop.f32.mrb[0].mxu0
      %v2917 = vadd.f32 0.0, %v2916
      %v2918 = vpop.f32.mrb[0].mxu0
      %v2919 = vpop.f32.mrb[0].mxu0
      %v2920 = vadd.f32 0.0, %v2919
      %v2921 = vpop.f32.mrb[0].mxu0
      %2922 = vmatprep.mubr.bf16.mxu0 0
      %2923 = vmatmul.mubr.bf16.gmra.mrb[0].mxu0 %v1958
      %v2924 = vpop.f32.mrb[0].mxu0
      %v2925 = vadd.f32 0.0, %v2924
      %v2926 = vpop.f32.mrb[0].mxu0
      %v2927 = vpop.f32.mrb[0].mxu0
      %v2928 = vadd.f32 0.0, %v2927
      %v2929 = vpop.f32.mrb[0].mxu0
      %2930 = vmatprep.mubr.bf16.mxu0 0
      %2931 = vmatmul.mubr.bf16.gmra.mrb[0].mxu0 %v1961
      %v2932 = vpop.f32.mrb[0].mxu0
      %v2933 = vadd.f32 0.0, %v2932
      %v2934 = vpop.f32.mrb[0].mxu0
      %v2935 = vpop.f32.mrb[0].mxu0
      %v2936 = vadd.f32 0.0, %v2935
      %v2937 = vpop.f32.mrb[0].mxu0
      %2938 = vmatprep.mubr.bf16.mxu0 0
      %2939 = vmatmul.mubr.bf16.gmra.mrb[0].mxu0 %v1964
      %v2940 = vpop.f32.mrb[0].mxu0
      %v2941 = vadd.f32 0.0, %v2940
      %v2942 = vpop.f32.mrb[0].mxu0
      %v2943 = vpop.f32.mrb[0].mxu0
      %v2944 = vadd.f32 0.0, %v2943
      %v2945 = vpop.f32.mrb[0].mxu0
      %2946 = vmatprep.mubr.bf16.mxu0 0
      %2947 = vmatmul.mubr.bf16.gmra.mrb[0].mxu0 %v1967
      %v2948 = vpop.f32.mrb[0].mxu0
      %v2949 = vadd.f32 0.0, %v2948
      %v2950 = vpop.f32.mrb[0].mxu0
      %v2951 = vpop.f32.mrb[0].mxu0
      %v2952 = vadd.f32 0.0, %v2951
      %v2953 = vpop.f32.mrb[0].mxu0
      %2954 = vmatprep.mubr.bf16.mxu0 0
      %2955 = vmatmul.mubr.bf16.gmra.mrb[0].mxu0 %v1970
      %v2956 = vpop.f32.mrb[0].mxu0
      %v2957 = vadd.f32 0.0, %v2956
      %v2958 = vpop.f32.mrb[0].mxu0
      %v2959 = vpop.f32.mrb[0].mxu0
      %v2960 = vadd.f32 0.0, %v2959
      %v2961 = vpop.f32.mrb[0].mxu0
      %2962 = vmatprep.mubr.bf16.mxu0 0
      %2963 = vmatmul.mubr.bf16.gmra.mrb[0].mxu0 %v1973
      %v2964 = vpop.f32.mrb[0].mxu0
      %v2965 = vadd.f32 0.0, %v2964
      %v2966 = vpop.f32.mrb[0].mxu0
      %v2967 = vpop.f32.mrb[0].mxu0
      %v2968 = vadd.f32 0.0, %v2967
      %v2969 = vpop.f32.mrb[0].mxu0
      %2970 = vmatprep.mubr.bf16.mxu0 0
      %2971 = vmatmul.mubr.bf16.gmra.mrb[0].mxu0 %v1976
      %v2972 = vpop.f32.mrb[0].mxu0
      %v2973 = vadd.f32 0.0, %v2972
      %v2974 = vpop.f32.mrb[0].mxu0
      %v2975 = vpop.f32.mrb[0].mxu0
      %v2976 = vadd.f32 0.0, %v2975
      %v2977 = vpop.f32.mrb[0].mxu0
      %2978 = vmatprep.mubr.bf16.mxu0 0
      %2979 = vmatmul.mubr.bf16.gmra.mrb[0].mxu0 %v1979
      %v2980 = vpop.f32.mrb[0].mxu0
      %v2981 = vadd.f32 0.0, %v2980
      %v2982 = vpop.f32.mrb[0].mxu0
      %v2983 = vpop.f32.mrb[0].mxu0
      %v2984 = vadd.f32 0.0, %v2983
      %v2985 = vpop.f32.mrb[0].mxu0
      %2986 = vmatprep.mubr.bf16.mxu0 0
      %2987 = vmatmul.mubr.bf16.gmra.mrb[0].mxu0 %v1985
      %v2988 = vpop.f32.mrb[0].mxu0
      %v2989 = vadd.f32 0.0, %v2988
      %v2990 = vpop.f32.mrb[0].mxu0
      %v2991 = vpop.f32.mrb[0].mxu0
      %v2992 = vadd.f32 0.0, %v2991
      %v2993 = vpop.f32.mrb[0].mxu0
      %2994 = vmatprep.mubr.bf16.mxu0 0
      %2995 = vmatmul.mubr.bf16.gmra.mrb[0].mxu0 %v2793
      %v2996 = vpop.f32.mrb[0].mxu0
      %v2997 = vadd.f32 0.0, %v2996
      %v2998 = vpop.f32.mrb[0].mxu0
      %v2999 = vpop.f32.mrb[0].mxu0
      %v3000 = vadd.f32 0.0, %v2999
      %v3001 = vpop.f32.mrb[0].mxu0
      %3002 = vmatprep.mubr.bf16.mxu0 0
      %3003 = vmatmul.mubr.bf16.gmra.mrb[0].mxu0 %v2799
      %v3004 = vpop.f32.mrb[0].mxu0
      %v3005 = vadd.f32 0.0, %v3004
      %v3006 = vpop.f32.mrb[0].mxu0
      %v3007 = vpop.f32.mrb[0].mxu0
      %v3008 = vadd.f32 0.0, %v3007
      %v3009 = vpop.f32.mrb[0].mxu0
      %3010 = vdwg.mxu0
      %v3011 = vadd.f32 %v2742, %v2885
      %v3012 = vadd.f32 %v2743, %v2888
      %v3013 = vadd.f32 %v2744, %v2893
      %v3014 = vadd.f32 %v2745, %v2896
      %v3015 = vadd.f32 %v2746, %v2901
      %v3016 = vadd.f32 %v2747, %v2904
      %v3017 = vadd.f32 %v2748, %v2909
      %v3018 = vadd.f32 %v2749, %v2912
      %v3019 = vadd.f32 %v2750, %v2917
      %v3020 = vadd.f32 %v2751, %v2920
      %v3021 = vadd.f32 %v2752, %v2925
      %v3022 = vadd.f32 %v2753, %v2928
      %v3023 = vadd.f32 %v2754, %v2933
      %v3024 = vadd.f32 %v2755, %v2936
      %v3025 = vadd.f32 %v2756, %v2941
      %v3026 = vadd.f32 %v2757, %v2944
      %v3027 = vadd.f32 %v2758, %v2949
      %v3028 = vadd.f32 %v2759, %v2952
      %v3029 = vadd.f32 %v2760, %v2957
      %v3030 = vadd.f32 %v2761, %v2960
      %v3031 = vadd.f32 %v2762, %v2965
      %v3032 = vadd.f32 %v2763, %v2968
      %v3033 = vadd.f32 %v2764, %v2973
      %v3034 = vadd.f32 %v2765, %v2976
      %v3035 = vadd.f32 %v2766, %v2981
      %v3036 = vadd.f32 %v2767, %v2984
      %v3037 = vadd.f32 %v2768, %v2989
      %v3038 = vadd.f32 %v2769, %v2992
      %v3039 = vadd.f32 %v2770, %v2997
      %v3040 = vadd.f32 %v2771, %v3000
      %v3041 = vadd.f32 %v2772, %v3005
      %v3042 = vadd.f32 %v2773, %v3008
      %s3043 = scalar_lea.vmem %s3, 384
      %v3044 = vld [vmem:[%s3043] sm:$0xf]
      %v3045 = vld [vmem:[%s3043 + $0x4] sm:$0xf]
      %v3046 = vld [vmem:[%s3043 + $0x8] sm:$0xf]
      %v3047 = vld [vmem:[%s3043 + $0xc] sm:$0xf]
      %v3048 = vld [vmem:[%s3043 + $0x10] sm:$0xf]
      %v3049 = vld [vmem:[%s3043 + $0x14] sm:$0xf]
      %v3050 = vld [vmem:[%s3043 + $0x18] sm:$0xf]
      %v3051 = vld [vmem:[%s3043 + $0x1c] sm:$0xf]
      %v3052 = vld [vmem:[%s3043 + $0x20] sm:$0xf]
      %v3053 = vld [vmem:[%s3043 + $0x24] sm:$0xf]
      %v3054 = vld [vmem:[%s3043 + $0x28] sm:$0xf]
      %v3055 = vld [vmem:[%s3043 + $0x2c] sm:$0xf]
      %v3056 = vld [vmem:[%s3043 + $0x30] sm:$0xf]
      %v3057 = vld [vmem:[%s3043 + $0x34] sm:$0xf]
      %v3058 = vld [vmem:[%s3043 + $0x38] sm:$0xf]
      %v3059 = vld [vmem:[%s3043 + $0x3c] sm:$0xf]
      %v3060 = vshrl.u32 %v1313, 16
      %v3062 = vrot.slane %v3060, 7
      %v3063 = vor.u32 %v3062, %v2796
      %v3064 = vsel %vm1558, %v2268, %v3063
      %v3066 = vshrl.u32 %v1314, 16
      %v3068 = vrot.slane %v3066, 7
      %v3069 = vshll.u32 %v1314, 16
      %v3071 = vor.u32 %v3068, %v3069
      %v3072 = vsel %vm1558, %v3062, %v3071
      %v3091 = vunpack.c.l.b16 %v3044
      %v3092 = vunpack.c.l.b16 %v3045
      %v3093 = vunpack.c.l.b16 %v3046
      %v3094 = vunpack.c.l.b16 %v3047
      %v3095 = vunpack.c.l.b16 %v3048
      %v3096 = vunpack.c.l.b16 %v3049
      %v3097 = vunpack.c.l.b16 %v3050
      %v3098 = vunpack.c.l.b16 %v3051
      %v3099 = vunpack.c.l.b16 %v3052
      %v3100 = vunpack.c.l.b16 %v3053
      %v3101 = vunpack.c.l.b16 %v3054
      %v3102 = vunpack.c.l.b16 %v3055
      %v3103 = vunpack.c.l.b16 %v3056
      %v3104 = vunpack.c.l.b16 %v3057
      %v3105 = vunpack.c.l.b16 %v3058
      %v3106 = vunpack.c.l.b16 %v3059
      %v3107 = vpack.c.b16 %v3092, %v3091
      %v3108 = vpack.c.b16 %v3094, %v3093
      %v3109 = vpack.c.b16 %v3096, %v3095
      %v3110 = vpack.c.b16 %v3098, %v3097
      %v3111 = vpack.c.b16 %v3100, %v3099
      %v3112 = vpack.c.b16 %v3102, %v3101
      %v3113 = vpack.c.b16 %v3104, %v3103
      %v3114 = vpack.c.b16 %v3106, %v3105
      %3123 = vmatprep.subr.bf16.mxu0 0
      %3124 = vmatpush1.bf16.msra.mxu0 %v3107
      %3125 = vmatprep.subr.bf16.mxu0 0
      %3126 = vmatpush1.bf16.msra.mxu0 %v3108
      %3127 = vmatprep.subr.bf16.mxu0 0
      %3128 = vmatpush1.bf16.msra.mxu0 %v3109
      %3129 = vmatprep.subr.bf16.mxu0 0
      %3130 = vmatpush1.bf16.msra.mxu0 %v3110
      %3131 = vmatprep.subr.bf16.mxu0 0
      %3132 = vmatpush1.bf16.msra.mxu0 %v3111
      %3133 = vmatprep.subr.bf16.mxu0 0
      %3134 = vmatpush1.bf16.msra.mxu0 %v3112
      %3135 = vmatprep.subr.bf16.mxu0 0
      %3136 = vmatpush1.bf16.msra.mxu0 %v3113
      %3137 = vmatprep.subr.bf16.mxu0 0
      %3138 = vmatpush1.bf16.msra.mxu0 %v3114
      %3139 = vmatprep.subr.bf16.mxu0 0
      %3140 = vmatpush1.bf16.msra.mxu0 0
      %3141 = vmatprep.subr.bf16.mxu0 0
      %3142 = vmatpush1.bf16.msra.mxu0 0
      %3143 = vmatprep.subr.bf16.mxu0 0
      %3144 = vmatpush1.bf16.msra.mxu0 0
      %3145 = vmatprep.subr.bf16.mxu0 0
      %3146 = vmatpush1.bf16.msra.mxu0 0
      %3147 = vmatprep.subr.bf16.mxu0 0
      %3148 = vmatpush1.bf16.msra.mxu0 0
      %3149 = vmatprep.subr.bf16.mxu0 0
      %3150 = vmatpush1.bf16.msra.mxu0 0
      %3151 = vmatprep.subr.bf16.mxu0 0
      %3152 = vmatpush1.bf16.msra.mxu0 0
      %3153 = vmatprep.subr.bf16.mxu0 0
      %3154 = vmatpush1.bf16.msra.mxu0 0
      %3155 = vmatprep.mubr.bf16.mxu0 0
      %3156 = vmatmul.mubr.bf16.gmra.mrb[0].mxu0 %v1602
      %v3157 = vpop.f32.mrb[0].mxu0
      %v3158 = vadd.f32 0.0, %v3157
      %v3159 = vpop.f32.mrb[0].mxu0
      %v3160 = vpop.f32.mrb[0].mxu0
      %v3161 = vadd.f32 0.0, %v3160
      %v3162 = vpop.f32.mrb[0].mxu0
      %3163 = vmatprep.mubr.bf16.mxu0 0
      %3164 = vmatmul.mubr.bf16.gmra.mrb[0].mxu0 %v1610
      %v3165 = vpop.f32.mrb[0].mxu0
      %v3166 = vadd.f32 0.0, %v3165
      %v3167 = vpop.f32.mrb[0].mxu0
      %v3168 = vpop.f32.mrb[0].mxu0
      %v3169 = vadd.f32 0.0, %v3168
      %v3170 = vpop.f32.mrb[0].mxu0
      %3171 = vmatprep.mubr.bf16.mxu0 0
      %3172 = vmatmul.mubr.bf16.gmra.mrb[0].mxu0 %v1618
      %v3173 = vpop.f32.mrb[0].mxu0
      %v3174 = vadd.f32 0.0, %v3173
      %v3175 = vpop.f32.mrb[0].mxu0
      %v3176 = vpop.f32.mrb[0].mxu0
      %v3177 = vadd.f32 0.0, %v3176
      %v3178 = vpop.f32.mrb[0].mxu0
      %3179 = vmatprep.mubr.bf16.mxu0 0
      %3180 = vmatmul.mubr.bf16.gmra.mrb[0].mxu0 %v1626
      %v3181 = vpop.f32.mrb[0].mxu0
      %v3182 = vadd.f32 0.0, %v3181
      %v3183 = vpop.f32.mrb[0].mxu0
      %v3184 = vpop.f32.mrb[0].mxu0
      %v3185 = vadd.f32 0.0, %v3184
      %v3186 = vpop.f32.mrb[0].mxu0
      %3187 = vmatprep.mubr.bf16.mxu0 0
      %3188 = vmatmul.mubr.bf16.gmra.mrb[0].mxu0 %v1634
      %v3189 = vpop.f32.mrb[0].mxu0
      %v3190 = vadd.f32 0.0, %v3189
      %v3191 = vpop.f32.mrb[0].mxu0
      %v3192 = vpop.f32.mrb[0].mxu0
      %v3193 = vadd.f32 0.0, %v3192
      %v3194 = vpop.f32.mrb[0].mxu0
      %3195 = vmatprep.mubr.bf16.mxu0 0
      %3196 = vmatmul.mubr.bf16.gmra.mrb[0].mxu0 %v1642
      %v3197 = vpop.f32.mrb[0].mxu0
      %v3198 = vadd.f32 0.0, %v3197
      %v3199 = vpop.f32.mrb[0].mxu0
      %v3200 = vpop.f32.mrb[0].mxu0
      %v3201 = vadd.f32 0.0, %v3200
      %v3202 = vpop.f32.mrb[0].mxu0
      %3203 = vmatprep.mubr.bf16.mxu0 0
      %3204 = vmatmul.mubr.bf16.gmra.mrb[0].mxu0 %v1650
      %v3205 = vpop.f32.mrb[0].mxu0
      %v3206 = vadd.f32 0.0, %v3205
      %v3207 = vpop.f32.mrb[0].mxu0
      %v3208 = vpop.f32.mrb[0].mxu0
      %v3209 = vadd.f32 0.0, %v3208
      %v3210 = vpop.f32.mrb[0].mxu0
      %3211 = vmatprep.mubr.bf16.mxu0 0
      %3212 = vmatmul.mubr.bf16.gmra.mrb[0].mxu0 %v1658
      %v3213 = vpop.f32.mrb[0].mxu0
      %v3214 = vadd.f32 0.0, %v3213
      %v3215 = vpop.f32.mrb[0].mxu0
      %v3216 = vpop.f32.mrb[0].mxu0
      %v3217 = vadd.f32 0.0, %v3216
      %v3218 = vpop.f32.mrb[0].mxu0
      %3219 = vmatprep.mubr.bf16.mxu0 0
      %3220 = vmatmul.mubr.bf16.gmra.mrb[0].mxu0 %v1666
      %v3221 = vpop.f32.mrb[0].mxu0
      %v3222 = vadd.f32 0.0, %v3221
      %v3223 = vpop.f32.mrb[0].mxu0
      %v3224 = vpop.f32.mrb[0].mxu0
      %v3225 = vadd.f32 0.0, %v3224
      %v3226 = vpop.f32.mrb[0].mxu0
      %3227 = vmatprep.mubr.bf16.mxu0 0
      %3228 = vmatmul.mubr.bf16.gmra.mrb[0].mxu0 %v1674
      %v3229 = vpop.f32.mrb[0].mxu0
      %v3230 = vadd.f32 0.0, %v3229
      %v3231 = vpop.f32.mrb[0].mxu0
      %v3232 = vpop.f32.mrb[0].mxu0
      %v3233 = vadd.f32 0.0, %v3232
      %v3234 = vpop.f32.mrb[0].mxu0
      %3235 = vmatprep.mubr.bf16.mxu0 0
      %3236 = vmatmul.mubr.bf16.gmra.mrb[0].mxu0 %v1682
      %v3237 = vpop.f32.mrb[0].mxu0
      %v3238 = vadd.f32 0.0, %v3237
      %v3239 = vpop.f32.mrb[0].mxu0
      %v3240 = vpop.f32.mrb[0].mxu0
      %v3241 = vadd.f32 0.0, %v3240
      %v3242 = vpop.f32.mrb[0].mxu0
      %3243 = vmatprep.mubr.bf16.mxu0 0
      %3244 = vmatmul.mubr.bf16.gmra.mrb[0].mxu0 %v1690
      %v3245 = vpop.f32.mrb[0].mxu0
      %v3246 = vadd.f32 0.0, %v3245
      %v3247 = vpop.f32.mrb[0].mxu0
      %v3248 = vpop.f32.mrb[0].mxu0
      %v3249 = vadd.f32 0.0, %v3248
      %v3250 = vpop.f32.mrb[0].mxu0
      %3251 = vmatprep.mubr.bf16.mxu0 0
      %3252 = vmatmul.mubr.bf16.gmra.mrb[0].mxu0 %v2264
      %v3253 = vpop.f32.mrb[0].mxu0
      %v3254 = vadd.f32 0.0, %v3253
      %v3255 = vpop.f32.mrb[0].mxu0
      %v3256 = vpop.f32.mrb[0].mxu0
      %v3257 = vadd.f32 0.0, %v3256
      %v3258 = vpop.f32.mrb[0].mxu0
      %3259 = vmatprep.mubr.bf16.mxu0 0
      %3260 = vmatmul.mubr.bf16.gmra.mrb[0].mxu0 %v2272
      %v3261 = vpop.f32.mrb[0].mxu0
      %v3262 = vadd.f32 0.0, %v3261
      %v3263 = vpop.f32.mrb[0].mxu0
      %v3264 = vpop.f32.mrb[0].mxu0
      %v3265 = vadd.f32 0.0, %v3264
      %v3266 = vpop.f32.mrb[0].mxu0
      %3267 = vmatprep.mubr.bf16.mxu0 0
      %3268 = vmatmul.mubr.bf16.gmra.mrb[0].mxu0 %v3064
      %v3269 = vpop.f32.mrb[0].mxu0
      %v3270 = vadd.f32 0.0, %v3269
      %v3271 = vpop.f32.mrb[0].mxu0
      %v3272 = vpop.f32.mrb[0].mxu0
      %v3273 = vadd.f32 0.0, %v3272
      %v3274 = vpop.f32.mrb[0].mxu0
      %3275 = vmatprep.mubr.bf16.mxu0 0
      %3276 = vmatmul.mubr.bf16.gmra.mrb[0].mxu0 %v3072
      %v3277 = vpop.f32.mrb[0].mxu0
      %v3278 = vadd.f32 0.0, %v3277
      %v3279 = vpop.f32.mrb[0].mxu0
      %v3280 = vpop.f32.mrb[0].mxu0
      %v3281 = vadd.f32 0.0, %v3280
      %v3282 = vpop.f32.mrb[0].mxu0
      %3283 = vdwg.mxu0
      %v3284 = vadd.f32 %v3011, %v3158
      %v3285 = vadd.f32 %v3012, %v3161
      %v3286 = vadd.f32 %v3013, %v3166
      %v3287 = vadd.f32 %v3014, %v3169
      %v3288 = vadd.f32 %v3015, %v3174
      %v3289 = vadd.f32 %v3016, %v3177
      %v3290 = vadd.f32 %v3017, %v3182
      %v3291 = vadd.f32 %v3018, %v3185
      %v3292 = vadd.f32 %v3019, %v3190
      %v3293 = vadd.f32 %v3020, %v3193
      %v3294 = vadd.f32 %v3021, %v3198
      %v3295 = vadd.f32 %v3022, %v3201
      %v3296 = vadd.f32 %v3023, %v3206
      %v3297 = vadd.f32 %v3024, %v3209
      %v3298 = vadd.f32 %v3025, %v3214
      %v3299 = vadd.f32 %v3026, %v3217
      %v3300 = vadd.f32 %v3027, %v3222
      %v3301 = vadd.f32 %v3028, %v3225
      %v3302 = vadd.f32 %v3029, %v3230
      %v3303 = vadd.f32 %v3030, %v3233
      %v3304 = vadd.f32 %v3031, %v3238
      %v3305 = vadd.f32 %v3032, %v3241
      %v3306 = vadd.f32 %v3033, %v3246
      %v3307 = vadd.f32 %v3034, %v3249
      %v3308 = vadd.f32 %v3035, %v3254
      %v3309 = vadd.f32 %v3036, %v3257
      %v3310 = vadd.f32 %v3037, %v3262
      %v3311 = vadd.f32 %v3038, %v3265
      %v3312 = vadd.f32 %v3039, %v3270
      %v3313 = vadd.f32 %v3040, %v3273
      %v3314 = vadd.f32 %v3041, %v3278
      %v3315 = vadd.f32 %v3042, %v3281
      %s3316 = scalar_lea.vmem %s3, 448
      %v3317 = vld [vmem:[%s3316] sm:$0xf]
      %v3318 = vld [vmem:[%s3316 + $0x4] sm:$0xf]
      %v3319 = vld [vmem:[%s3316 + $0x8] sm:$0xf]
      %v3320 = vld [vmem:[%s3316 + $0xc] sm:$0xf]
      %v3321 = vld [vmem:[%s3316 + $0x10] sm:$0xf]
      %v3322 = vld [vmem:[%s3316 + $0x14] sm:$0xf]
      %v3323 = vld [vmem:[%s3316 + $0x18] sm:$0xf]
      %v3324 = vld [vmem:[%s3316 + $0x1c] sm:$0xf]
      %v3325 = vld [vmem:[%s3316 + $0x20] sm:$0xf]
      %v3326 = vld [vmem:[%s3316 + $0x24] sm:$0xf]
      %v3327 = vld [vmem:[%s3316 + $0x28] sm:$0xf]
      %v3328 = vld [vmem:[%s3316 + $0x2c] sm:$0xf]
      %v3329 = vld [vmem:[%s3316 + $0x30] sm:$0xf]
      %v3330 = vld [vmem:[%s3316 + $0x34] sm:$0xf]
      %v3331 = vld [vmem:[%s3316 + $0x38] sm:$0xf]
      %v3332 = vld [vmem:[%s3316 + $0x3c] sm:$0xf]
      %v3349 = vunpack.c.l.b16 %v3317
      %v3350 = vunpack.c.l.b16 %v3318
      %v3351 = vunpack.c.l.b16 %v3319
      %v3352 = vunpack.c.l.b16 %v3320
      %v3353 = vunpack.c.l.b16 %v3321
      %v3354 = vunpack.c.l.b16 %v3322
      %v3355 = vunpack.c.l.b16 %v3323
      %v3356 = vunpack.c.l.b16 %v3324
      %v3357 = vunpack.c.l.b16 %v3325
      %v3358 = vunpack.c.l.b16 %v3326
      %v3359 = vunpack.c.l.b16 %v3327
      %v3360 = vunpack.c.l.b16 %v3328
      %v3361 = vunpack.c.l.b16 %v3329
      %v3362 = vunpack.c.l.b16 %v3330
      %v3363 = vunpack.c.l.b16 %v3331
      %v3364 = vunpack.c.l.b16 %v3332
      %v3365 = vpack.c.b16 %v3350, %v3349
      %v3366 = vpack.c.b16 %v3352, %v3351
      %v3367 = vpack.c.b16 %v3354, %v3353
      %v3368 = vpack.c.b16 %v3356, %v3355
      %v3369 = vpack.c.b16 %v3358, %v3357
      %v3370 = vpack.c.b16 %v3360, %v3359
      %v3371 = vpack.c.b16 %v3362, %v3361
      %v3372 = vpack.c.b16 %v3364, %v3363
      %3381 = vmatprep.subr.bf16.mxu0 0
      %3382 = vmatpush1.bf16.msra.mxu0 %v3365
      %3383 = vmatprep.subr.bf16.mxu0 0
      %3384 = vmatpush1.bf16.msra.mxu0 %v3366
      %3385 = vmatprep.subr.bf16.mxu0 0
      %3386 = vmatpush1.bf16.msra.mxu0 %v3367
      %3387 = vmatprep.subr.bf16.mxu0 0
      %3388 = vmatpush1.bf16.msra.mxu0 %v3368
      %3389 = vmatprep.subr.bf16.mxu0 0
      %3390 = vmatpush1.bf16.msra.mxu0 %v3369
      %3391 = vmatprep.subr.bf16.mxu0 0
      %3392 = vmatpush1.bf16.msra.mxu0 %v3370
      %3393 = vmatprep.subr.bf16.mxu0 0
      %3394 = vmatpush1.bf16.msra.mxu0 %v3371
      %3395 = vmatprep.subr.bf16.mxu0 0
      %3396 = vmatpush1.bf16.msra.mxu0 %v3372
      %3397 = vmatprep.subr.bf16.mxu0 0
      %3398 = vmatpush1.bf16.msra.mxu0 0
      %3399 = vmatprep.subr.bf16.mxu0 0
      %3400 = vmatpush1.bf16.msra.mxu0 0
      %3401 = vmatprep.subr.bf16.mxu0 0
      %3402 = vmatpush1.bf16.msra.mxu0 0
      %3403 = vmatprep.subr.bf16.mxu0 0
      %3404 = vmatpush1.bf16.msra.mxu0 0
      %3405 = vmatprep.subr.bf16.mxu0 0
      %3406 = vmatpush1.bf16.msra.mxu0 0
      %3407 = vmatprep.subr.bf16.mxu0 0
      %3408 = vmatpush1.bf16.msra.mxu0 0
      %3409 = vmatprep.subr.bf16.mxu0 0
      %3410 = vmatpush1.bf16.msra.mxu0 0
      %3411 = vmatprep.subr.bf16.mxu0 0
      %3412 = vmatpush1.bf16.msra.mxu0 0
      %3413 = vmatprep.mubr.bf16.mxu0 0
      %3414 = vmatmul.mubr.bf16.gmra.mrb[0].mxu0 %v1299
      %v3415 = vpop.f32.mrb[0].mxu0
      %v3416 = vadd.f32 0.0, %v3415
      %v3417 = vpop.f32.mrb[0].mxu0
      %v3418 = vpop.f32.mrb[0].mxu0
      %v3419 = vadd.f32 0.0, %v3418
      %v3420 = vpop.f32.mrb[0].mxu0
      %3421 = vmatprep.mubr.bf16.mxu0 0
      %3422 = vmatmul.mubr.bf16.gmra.mrb[0].mxu0 %v1300
      %v3423 = vpop.f32.mrb[0].mxu0
      %v3424 = vadd.f32 0.0, %v3423
      %v3425 = vpop.f32.mrb[0].mxu0
      %v3426 = vpop.f32.mrb[0].mxu0
      %v3427 = vadd.f32 0.0, %v3426
      %v3428 = vpop.f32.mrb[0].mxu0
      %3429 = vmatprep.mubr.bf16.mxu0 0
      %3430 = vmatmul.mubr.bf16.gmra.mrb[0].mxu0 %v1301
      %v3431 = vpop.f32.mrb[0].mxu0
      %v3432 = vadd.f32 0.0, %v3431
      %v3433 = vpop.f32.mrb[0].mxu0
      %v3434 = vpop.f32.mrb[0].mxu0
      %v3435 = vadd.f32 0.0, %v3434
      %v3436 = vpop.f32.mrb[0].mxu0
      %3437 = vmatprep.mubr.bf16.mxu0 0
      %3438 = vmatmul.mubr.bf16.gmra.mrb[0].mxu0 %v1302
      %v3439 = vpop.f32.mrb[0].mxu0
      %v3440 = vadd.f32 0.0, %v3439
      %v3441 = vpop.f32.mrb[0].mxu0
      %v3442 = vpop.f32.mrb[0].mxu0
      %v3443 = vadd.f32 0.0, %v3442
      %v3444 = vpop.f32.mrb[0].mxu0
      %3445 = vmatprep.mubr.bf16.mxu0 0
      %3446 = vmatmul.mubr.bf16.gmra.mrb[0].mxu0 %v1303
      %v3447 = vpop.f32.mrb[0].mxu0
      %v3448 = vadd.f32 0.0, %v3447
      %v3449 = vpop.f32.mrb[0].mxu0
      %v3450 = vpop.f32.mrb[0].mxu0
      %v3451 = vadd.f32 0.0, %v3450
      %v3452 = vpop.f32.mrb[0].mxu0
      %3453 = vmatprep.mubr.bf16.mxu0 0
      %3454 = vmatmul.mubr.bf16.gmra.mrb[0].mxu0 %v1304
      %v3455 = vpop.f32.mrb[0].mxu0
      %v3456 = vadd.f32 0.0, %v3455
      %v3457 = vpop.f32.mrb[0].mxu0
      %v3458 = vpop.f32.mrb[0].mxu0
      %v3459 = vadd.f32 0.0, %v3458
      %v3460 = vpop.f32.mrb[0].mxu0
      %3461 = vmatprep.mubr.bf16.mxu0 0
      %3462 = vmatmul.mubr.bf16.gmra.mrb[0].mxu0 %v1305
      %v3463 = vpop.f32.mrb[0].mxu0
      %v3464 = vadd.f32 0.0, %v3463
      %v3465 = vpop.f32.mrb[0].mxu0
      %v3466 = vpop.f32.mrb[0].mxu0
      %v3467 = vadd.f32 0.0, %v3466
      %v3468 = vpop.f32.mrb[0].mxu0
      %3469 = vmatprep.mubr.bf16.mxu0 0
      %3470 = vmatmul.mubr.bf16.gmra.mrb[0].mxu0 %v1306
      %v3471 = vpop.f32.mrb[0].mxu0
      %v3472 = vadd.f32 0.0, %v3471
      %v3473 = vpop.f32.mrb[0].mxu0
      %v3474 = vpop.f32.mrb[0].mxu0
      %v3475 = vadd.f32 0.0, %v3474
      %v3476 = vpop.f32.mrb[0].mxu0
      %3477 = vmatprep.mubr.bf16.mxu0 0
      %3478 = vmatmul.mubr.bf16.gmra.mrb[0].mxu0 %v1307
      %v3479 = vpop.f32.mrb[0].mxu0
      %v3480 = vadd.f32 0.0, %v3479
      %v3481 = vpop.f32.mrb[0].mxu0
      %v3482 = vpop.f32.mrb[0].mxu0
      %v3483 = vadd.f32 0.0, %v3482
      %v3484 = vpop.f32.mrb[0].mxu0
      %3485 = vmatprep.mubr.bf16.mxu0 0
      %3486 = vmatmul.mubr.bf16.gmra.mrb[0].mxu0 %v1308
      %v3487 = vpop.f32.mrb[0].mxu0
      %v3488 = vadd.f32 0.0, %v3487
      %v3489 = vpop.f32.mrb[0].mxu0
      %v3490 = vpop.f32.mrb[0].mxu0
      %v3491 = vadd.f32 0.0, %v3490
      %v3492 = vpop.f32.mrb[0].mxu0
      %3493 = vmatprep.mubr.bf16.mxu0 0
      %3494 = vmatmul.mubr.bf16.gmra.mrb[0].mxu0 %v1309
      %v3495 = vpop.f32.mrb[0].mxu0
      %v3496 = vadd.f32 0.0, %v3495
      %v3497 = vpop.f32.mrb[0].mxu0
      %v3498 = vpop.f32.mrb[0].mxu0
      %v3499 = vadd.f32 0.0, %v3498
      %v3500 = vpop.f32.mrb[0].mxu0
      %3501 = vmatprep.mubr.bf16.mxu0 0
      %3502 = vmatmul.mubr.bf16.gmra.mrb[0].mxu0 %v1310
      %v3503 = vpop.f32.mrb[0].mxu0
      %v3504 = vadd.f32 0.0, %v3503
      %v3505 = vpop.f32.mrb[0].mxu0
      %v3506 = vpop.f32.mrb[0].mxu0
      %v3507 = vadd.f32 0.0, %v3506
      %v3508 = vpop.f32.mrb[0].mxu0
      %3509 = vmatprep.mubr.bf16.mxu0 0
      %3510 = vmatmul.mubr.bf16.gmra.mrb[0].mxu0 %v1311
      %v3511 = vpop.f32.mrb[0].mxu0
      %v3512 = vadd.f32 0.0, %v3511
      %v3513 = vpop.f32.mrb[0].mxu0
      %v3514 = vpop.f32.mrb[0].mxu0
      %v3515 = vadd.f32 0.0, %v3514
      %v3516 = vpop.f32.mrb[0].mxu0
      %3517 = vmatprep.mubr.bf16.mxu0 0
      %3518 = vmatmul.mubr.bf16.gmra.mrb[0].mxu0 %v1312
      %v3519 = vpop.f32.mrb[0].mxu0
      %v3520 = vadd.f32 0.0, %v3519
      %v3521 = vpop.f32.mrb[0].mxu0
      %v3522 = vpop.f32.mrb[0].mxu0
      %v3523 = vadd.f32 0.0, %v3522
      %v3524 = vpop.f32.mrb[0].mxu0
      %3525 = vmatprep.mubr.bf16.mxu0 0
      %3526 = vmatmul.mubr.bf16.gmra.mrb[0].mxu0 %v1313
      %v3527 = vpop.f32.mrb[0].mxu0
      %v3528 = vadd.f32 0.0, %v3527
      %v3529 = vpop.f32.mrb[0].mxu0
      %v3530 = vpop.f32.mrb[0].mxu0
      %v3531 = vadd.f32 0.0, %v3530
      %v3532 = vpop.f32.mrb[0].mxu0
      %3533 = vmatprep.mubr.bf16.mxu0 0
      %3534 = vmatmul.mubr.bf16.gmra.mrb[0].mxu0 %v1314
      %v3535 = vpop.f32.mrb[0].mxu0
      %v3536 = vadd.f32 0.0, %v3535
      %v3537 = vpop.f32.mrb[0].mxu0
      %v3538 = vpop.f32.mrb[0].mxu0
      %v3539 = vadd.f32 0.0, %v3538
      %v3540 = vpop.f32.mrb[0].mxu0
      %3541 = vdwg.mxu0
      %v3542 = vadd.f32 %v3284, %v3416
      %v3543 = vadd.f32 %v3285, %v3419
      %v3544 = vadd.f32 %v3286, %v3424
      %v3545 = vadd.f32 %v3287, %v3427
      %v3546 = vadd.f32 %v3288, %v3432
      %v3547 = vadd.f32 %v3289, %v3435
      %v3548 = vadd.f32 %v3290, %v3440
      %v3549 = vadd.f32 %v3291, %v3443
      %v3550 = vadd.f32 %v3292, %v3448
      %v3551 = vadd.f32 %v3293, %v3451
      %v3552 = vadd.f32 %v3294, %v3456
      %v3553 = vadd.f32 %v3295, %v3459
      %v3554 = vadd.f32 %v3296, %v3464
      %v3555 = vadd.f32 %v3297, %v3467
      %v3556 = vadd.f32 %v3298, %v3472
      %v3557 = vadd.f32 %v3299, %v3475
      %v3558 = vadd.f32 %v3300, %v3480
      %v3559 = vadd.f32 %v3301, %v3483
      %v3560 = vadd.f32 %v3302, %v3488
      %v3561 = vadd.f32 %v3303, %v3491
      %v3562 = vadd.f32 %v3304, %v3496
      %v3563 = vadd.f32 %v3305, %v3499
      %v3564 = vadd.f32 %v3306, %v3504
      %v3565 = vadd.f32 %v3307, %v3507
      %v3566 = vadd.f32 %v3308, %v3512
      %v3567 = vadd.f32 %v3309, %v3515
      %v3568 = vadd.f32 %v3310, %v3520
      %v3569 = vadd.f32 %v3311, %v3523
      %v3570 = vadd.f32 %v3312, %v3528
      %v3571 = vadd.f32 %v3313, %v3531
      %v3572 = vadd.f32 %v3314, %v3536
      %v3573 = vadd.f32 %v3315, %v3539
      %s3574 = scalar_lea.vmem %s3, 512
      %v3575 = vld [vmem:[%s3574] sm:$0xf]
      %v3576 = vld [vmem:[%s3574 + $0x4] sm:$0xf]
      %v3577 = vld [vmem:[%s3574 + $0x8] sm:$0xf]
      %v3578 = vld [vmem:[%s3574 + $0xc] sm:$0xf]
      %v3579 = vld [vmem:[%s3574 + $0x10] sm:$0xf]
      %v3580 = vld [vmem:[%s3574 + $0x14] sm:$0xf]
      %v3581 = vld [vmem:[%s3574 + $0x18] sm:$0xf]
      %v3582 = vld [vmem:[%s3574 + $0x1c] sm:$0xf]
      %v3583 = vld [vmem:[%s3574 + $0x20] sm:$0xf]
      %v3584 = vld [vmem:[%s3574 + $0x24] sm:$0xf]
      %v3585 = vld [vmem:[%s3574 + $0x28] sm:$0xf]
      %v3586 = vld [vmem:[%s3574 + $0x2c] sm:$0xf]
      %v3587 = vld [vmem:[%s3574 + $0x30] sm:$0xf]
      %v3588 = vld [vmem:[%s3574 + $0x34] sm:$0xf]
      %v3589 = vld [vmem:[%s3574 + $0x38] sm:$0xf]
      %v3590 = vld [vmem:[%s3574 + $0x3c] sm:$0xf]
      %v3591 = vor.u32 %v3060, %v2798
      %v3592 = vrot.slane %v3069, 1
      %v3593 = vsel %vm1933, %v3591, %v3592
      %v3594 = vor.u32 %v3066, %v3592
      %v3596 = vshll.u32 %v1315, 16
      %v3598 = vrot.slane %v3596, 1
      %v3599 = vsel %vm1933, %v3594, %v3598
      %v3618 = vunpack.c.l.b16 %v3575
      %v3619 = vunpack.c.l.b16 %v3576
      %v3620 = vunpack.c.l.b16 %v3577
      %v3621 = vunpack.c.l.b16 %v3578
      %v3622 = vunpack.c.l.b16 %v3579
      %v3623 = vunpack.c.l.b16 %v3580
      %v3624 = vunpack.c.l.b16 %v3581
      %v3625 = vunpack.c.l.b16 %v3582
      %v3626 = vunpack.c.l.b16 %v3583
      %v3627 = vunpack.c.l.b16 %v3584
      %v3628 = vunpack.c.l.b16 %v3585
      %v3629 = vunpack.c.l.b16 %v3586
      %v3630 = vunpack.c.l.b16 %v3587
      %v3631 = vunpack.c.l.b16 %v3588
      %v3632 = vunpack.c.l.b16 %v3589
      %v3633 = vunpack.c.l.b16 %v3590
      %v3634 = vpack.c.b16 %v3619, %v3618
      %v3635 = vpack.c.b16 %v3621, %v3620
      %v3636 = vpack.c.b16 %v3623, %v3622
      %v3637 = vpack.c.b16 %v3625, %v3624
      %v3638 = vpack.c.b16 %v3627, %v3626
      %v3639 = vpack.c.b16 %v3629, %v3628
      %v3640 = vpack.c.b16 %v3631, %v3630
      %v3641 = vpack.c.b16 %v3633, %v3632
      %3650 = vmatprep.subr.bf16.mxu0 0
      %3651 = vmatpush1.bf16.msra.mxu0 %v3634
      %3652 = vmatprep.subr.bf16.mxu0 0
      %3653 = vmatpush1.bf16.msra.mxu0 %v3635
      %3654 = vmatprep.subr.bf16.mxu0 0
      %3655 = vmatpush1.bf16.msra.mxu0 %v3636
      %3656 = vmatprep.subr.bf16.mxu0 0
      %3657 = vmatpush1.bf16.msra.mxu0 %v3637
      %3658 = vmatprep.subr.bf16.mxu0 0
      %3659 = vmatpush1.bf16.msra.mxu0 %v3638
      %3660 = vmatprep.subr.bf16.mxu0 0
      %3661 = vmatpush1.bf16.msra.mxu0 %v3639
      %3662 = vmatprep.subr.bf16.mxu0 0
      %3663 = vmatpush1.bf16.msra.mxu0 %v3640
      %3664 = vmatprep.subr.bf16.mxu0 0
      %3665 = vmatpush1.bf16.msra.mxu0 %v3641
      %3666 = vmatprep.subr.bf16.mxu0 0
      %3667 = vmatpush1.bf16.msra.mxu0 0
      %3668 = vmatprep.subr.bf16.mxu0 0
      %3669 = vmatpush1.bf16.msra.mxu0 0
      %3670 = vmatprep.subr.bf16.mxu0 0
      %3671 = vmatpush1.bf16.msra.mxu0 0
      %3672 = vmatprep.subr.bf16.mxu0 0
      %3673 = vmatpush1.bf16.msra.mxu0 0
      %3674 = vmatprep.subr.bf16.mxu0 0
      %3675 = vmatpush1.bf16.msra.mxu0 0
      %3676 = vmatprep.subr.bf16.mxu0 0
      %3677 = vmatpush1.bf16.msra.mxu0 0
      %3678 = vmatprep.subr.bf16.mxu0 0
      %3679 = vmatpush1.bf16.msra.mxu0 0
      %3680 = vmatprep.subr.bf16.mxu0 0
      %3681 = vmatpush1.bf16.msra.mxu0 0
      %3682 = vmatprep.mubr.bf16.mxu0 0
      %3683 = vmatmul.mubr.bf16.gmra.mrb[0].mxu0 %v1949
      %v3684 = vpop.f32.mrb[0].mxu0
      %v3685 = vadd.f32 0.0, %v3684
      %v3686 = vpop.f32.mrb[0].mxu0
      %v3687 = vpop.f32.mrb[0].mxu0
      %v3688 = vadd.f32 0.0, %v3687
      %v3689 = vpop.f32.mrb[0].mxu0
      %3690 = vmatprep.mubr.bf16.mxu0 0
      %3691 = vmatmul.mubr.bf16.gmra.mrb[0].mxu0 %v1952
      %v3692 = vpop.f32.mrb[0].mxu0
      %v3693 = vadd.f32 0.0, %v3692
      %v3694 = vpop.f32.mrb[0].mxu0
      %v3695 = vpop.f32.mrb[0].mxu0
      %v3696 = vadd.f32 0.0, %v3695
      %v3697 = vpop.f32.mrb[0].mxu0
      %3698 = vmatprep.mubr.bf16.mxu0 0
      %3699 = vmatmul.mubr.bf16.gmra.mrb[0].mxu0 %v1955
      %v3700 = vpop.f32.mrb[0].mxu0
      %v3701 = vadd.f32 0.0, %v3700
      %v3702 = vpop.f32.mrb[0].mxu0
      %v3703 = vpop.f32.mrb[0].mxu0
      %v3704 = vadd.f32 0.0, %v3703
      %v3705 = vpop.f32.mrb[0].mxu0
      %3706 = vmatprep.mubr.bf16.mxu0 0
      %3707 = vmatmul.mubr.bf16.gmra.mrb[0].mxu0 %v1958
      %v3708 = vpop.f32.mrb[0].mxu0
      %v3709 = vadd.f32 0.0, %v3708
      %v3710 = vpop.f32.mrb[0].mxu0
      %v3711 = vpop.f32.mrb[0].mxu0
      %v3712 = vadd.f32 0.0, %v3711
      %v3713 = vpop.f32.mrb[0].mxu0
      %3714 = vmatprep.mubr.bf16.mxu0 0
      %3715 = vmatmul.mubr.bf16.gmra.mrb[0].mxu0 %v1961
      %v3716 = vpop.f32.mrb[0].mxu0
      %v3717 = vadd.f32 0.0, %v3716
      %v3718 = vpop.f32.mrb[0].mxu0
      %v3719 = vpop.f32.mrb[0].mxu0
      %v3720 = vadd.f32 0.0, %v3719
      %v3721 = vpop.f32.mrb[0].mxu0
      %3722 = vmatprep.mubr.bf16.mxu0 0
      %3723 = vmatmul.mubr.bf16.gmra.mrb[0].mxu0 %v1964
      %v3724 = vpop.f32.mrb[0].mxu0
      %v3725 = vadd.f32 0.0, %v3724
      %v3726 = vpop.f32.mrb[0].mxu0
      %v3727 = vpop.f32.mrb[0].mxu0
      %v3728 = vadd.f32 0.0, %v3727
      %v3729 = vpop.f32.mrb[0].mxu0
      %3730 = vmatprep.mubr.bf16.mxu0 0
      %3731 = vmatmul.mubr.bf16.gmra.mrb[0].mxu0 %v1967
      %v3732 = vpop.f32.mrb[0].mxu0
      %v3733 = vadd.f32 0.0, %v3732
      %v3734 = vpop.f32.mrb[0].mxu0
      %v3735 = vpop.f32.mrb[0].mxu0
      %v3736 = vadd.f32 0.0, %v3735
      %v3737 = vpop.f32.mrb[0].mxu0
      %3738 = vmatprep.mubr.bf16.mxu0 0
      %3739 = vmatmul.mubr.bf16.gmra.mrb[0].mxu0 %v1970
      %v3740 = vpop.f32.mrb[0].mxu0
      %v3741 = vadd.f32 0.0, %v3740
      %v3742 = vpop.f32.mrb[0].mxu0
      %v3743 = vpop.f32.mrb[0].mxu0
      %v3744 = vadd.f32 0.0, %v3743
      %v3745 = vpop.f32.mrb[0].mxu0
      %3746 = vmatprep.mubr.bf16.mxu0 0
      %3747 = vmatmul.mubr.bf16.gmra.mrb[0].mxu0 %v1973
      %v3748 = vpop.f32.mrb[0].mxu0
      %v3749 = vadd.f32 0.0, %v3748
      %v3750 = vpop.f32.mrb[0].mxu0
      %v3751 = vpop.f32.mrb[0].mxu0
      %v3752 = vadd.f32 0.0, %v3751
      %v3753 = vpop.f32.mrb[0].mxu0
      %3754 = vmatprep.mubr.bf16.mxu0 0
      %3755 = vmatmul.mubr.bf16.gmra.mrb[0].mxu0 %v1976
      %v3756 = vpop.f32.mrb[0].mxu0
      %v3757 = vadd.f32 0.0, %v3756
      %v3758 = vpop.f32.mrb[0].mxu0
      %v3759 = vpop.f32.mrb[0].mxu0
      %v3760 = vadd.f32 0.0, %v3759
      %v3761 = vpop.f32.mrb[0].mxu0
      %3762 = vmatprep.mubr.bf16.mxu0 0
      %3763 = vmatmul.mubr.bf16.gmra.mrb[0].mxu0 %v1979
      %v3764 = vpop.f32.mrb[0].mxu0
      %v3765 = vadd.f32 0.0, %v3764
      %v3766 = vpop.f32.mrb[0].mxu0
      %v3767 = vpop.f32.mrb[0].mxu0
      %v3768 = vadd.f32 0.0, %v3767
      %v3769 = vpop.f32.mrb[0].mxu0
      %3770 = vmatprep.mubr.bf16.mxu0 0
      %3771 = vmatmul.mubr.bf16.gmra.mrb[0].mxu0 %v1985
      %v3772 = vpop.f32.mrb[0].mxu0
      %v3773 = vadd.f32 0.0, %v3772
      %v3774 = vpop.f32.mrb[0].mxu0
      %v3775 = vpop.f32.mrb[0].mxu0
      %v3776 = vadd.f32 0.0, %v3775
      %v3777 = vpop.f32.mrb[0].mxu0
      %3778 = vmatprep.mubr.bf16.mxu0 0
      %3779 = vmatmul.mubr.bf16.gmra.mrb[0].mxu0 %v2793
      %v3780 = vpop.f32.mrb[0].mxu0
      %v3781 = vadd.f32 0.0, %v3780
      %v3782 = vpop.f32.mrb[0].mxu0
      %v3783 = vpop.f32.mrb[0].mxu0
      %v3784 = vadd.f32 0.0, %v3783
      %v3785 = vpop.f32.mrb[0].mxu0
      %3786 = vmatprep.mubr.bf16.mxu0 0
      %3787 = vmatmul.mubr.bf16.gmra.mrb[0].mxu0 %v2799
      %v3788 = vpop.f32.mrb[0].mxu0
      %v3789 = vadd.f32 0.0, %v3788
      %v3790 = vpop.f32.mrb[0].mxu0
      %v3791 = vpop.f32.mrb[0].mxu0
      %v3792 = vadd.f32 0.0, %v3791
      %v3793 = vpop.f32.mrb[0].mxu0
      %3794 = vmatprep.mubr.bf16.mxu0 0
      %3795 = vmatmul.mubr.bf16.gmra.mrb[0].mxu0 %v3593
      %v3796 = vpop.f32.mrb[0].mxu0
      %v3797 = vadd.f32 0.0, %v3796
      %v3798 = vpop.f32.mrb[0].mxu0
      %v3799 = vpop.f32.mrb[0].mxu0
      %v3800 = vadd.f32 0.0, %v3799
      %v3801 = vpop.f32.mrb[0].mxu0
      %3802 = vmatprep.mubr.bf16.mxu0 0
      %3803 = vmatmul.mubr.bf16.gmra.mrb[0].mxu0 %v3599
      %v3804 = vpop.f32.mrb[0].mxu0
      %v3805 = vadd.f32 0.0, %v3804
      %v3806 = vpop.f32.mrb[0].mxu0
      %v3807 = vpop.f32.mrb[0].mxu0
      %v3808 = vadd.f32 0.0, %v3807
      %v3809 = vpop.f32.mrb[0].mxu0
      %3810 = vdwg.mxu0
      %v3811 = vadd.f32 %v3542, %v3685
      %v3812 = vadd.f32 %v3543, %v3688
      %v3813 = vadd.f32 %v3544, %v3693
      %v3814 = vadd.f32 %v3545, %v3696
      %v3815 = vadd.f32 %v3546, %v3701
      %v3816 = vadd.f32 %v3547, %v3704
      %v3817 = vadd.f32 %v3548, %v3709
      %v3818 = vadd.f32 %v3549, %v3712
      %v3819 = vadd.f32 %v3550, %v3717
      %v3820 = vadd.f32 %v3551, %v3720
      %v3821 = vadd.f32 %v3552, %v3725
      %v3822 = vadd.f32 %v3553, %v3728
      %v3823 = vadd.f32 %v3554, %v3733
      %v3824 = vadd.f32 %v3555, %v3736
      %v3825 = vadd.f32 %v3556, %v3741
      %v3826 = vadd.f32 %v3557, %v3744
      %v3827 = vadd.f32 %v3558, %v3749
      %v3828 = vadd.f32 %v3559, %v3752
      %v3829 = vadd.f32 %v3560, %v3757
      %v3830 = vadd.f32 %v3561, %v3760
      %v3831 = vadd.f32 %v3562, %v3765
      %v3832 = vadd.f32 %v3563, %v3768
      %v3833 = vadd.f32 %v3564, %v3773
      %v3834 = vadd.f32 %v3565, %v3776
      %v3835 = vadd.f32 %v3566, %v3781
      %v3836 = vadd.f32 %v3567, %v3784
      %v3837 = vadd.f32 %v3568, %v3789
      %v3838 = vadd.f32 %v3569, %v3792
      %v3839 = vadd.f32 %v3570, %v3797
      %v3840 = vadd.f32 %v3571, %v3800
      %v3841 = vadd.f32 %v3572, %v3805
      %v3842 = vadd.f32 %v3573, %v3808
      %v3843 = vpack.c.bf16 %v3812, %v3811
      %v3844 = vpack.c.bf16 %v3814, %v3813
      %v3845 = vpack.c.bf16 %v3816, %v3815
      %v3846 = vpack.c.bf16 %v3818, %v3817
      %v3847 = vpack.c.bf16 %v3820, %v3819
      %v3848 = vpack.c.bf16 %v3822, %v3821
      %v3849 = vpack.c.bf16 %v3824, %v3823
      %v3850 = vpack.c.bf16 %v3826, %v3825
      %v3851 = vpack.c.bf16 %v3828, %v3827
      %v3852 = vpack.c.bf16 %v3830, %v3829
      %v3853 = vpack.c.bf16 %v3832, %v3831
      %v3854 = vpack.c.bf16 %v3834, %v3833
      %v3855 = vpack.c.bf16 %v3836, %v3835
      %v3856 = vpack.c.bf16 %v3838, %v3837
      %v3857 = vpack.c.bf16 %v3840, %v3839
      %v3858 = vpack.c.bf16 %v3842, %v3841
      %v3875 = vunpack.c.l.b16 %v3843
      %v3876 = vunpack.c.h.b16 %v3843
      %v3877 = vunpack.c.l.b16 %v3844
      %v3878 = vunpack.c.h.b16 %v3844
      %v3879 = vunpack.c.l.b16 %v3845
      %v3880 = vunpack.c.h.b16 %v3845
      %v3881 = vunpack.c.l.b16 %v3846
      %v3882 = vunpack.c.h.b16 %v3846
      %v3883 = vunpack.c.l.b16 %v3847
      %v3884 = vunpack.c.h.b16 %v3847
      %v3885 = vunpack.c.l.b16 %v3848
      %v3886 = vunpack.c.h.b16 %v3848
      %v3887 = vunpack.c.l.b16 %v3849
      %v3888 = vunpack.c.h.b16 %v3849
      %v3889 = vunpack.c.l.b16 %v3850
      %v3890 = vunpack.c.h.b16 %v3850
      %v3891 = vunpack.c.l.b16 %v3851
      %v3892 = vunpack.c.h.b16 %v3851
      %v3893 = vunpack.c.l.b16 %v3852
      %v3894 = vunpack.c.h.b16 %v3852
      %v3895 = vunpack.c.l.b16 %v3853
      %v3896 = vunpack.c.h.b16 %v3853
      %v3897 = vunpack.c.l.b16 %v3854
      %v3898 = vunpack.c.h.b16 %v3854
      %v3899 = vunpack.c.l.b16 %v3855
      %v3900 = vunpack.c.h.b16 %v3855
      %v3901 = vunpack.c.l.b16 %v3856
      %v3902 = vunpack.c.h.b16 %v3856
      %v3903 = vunpack.c.l.b16 %v3857
      %v3904 = vunpack.c.h.b16 %v3857
      %v3905 = vunpack.c.l.b16 %v3858
      %v3906 = vunpack.c.h.b16 %v3858
      %v3907 = vpack.c.b16 %v3875, %v3875
      %v3908 = vpack.c.b16 %v3876, %v3876
      %v3909 = vpack.c.b16 %v3877, %v3877
      %v3910 = vpack.c.b16 %v3878, %v3878
      %v3911 = vpack.c.b16 %v3879, %v3879
      %v3912 = vpack.c.b16 %v3880, %v3880
      %v3913 = vpack.c.b16 %v3881, %v3881
      %v3914 = vpack.c.b16 %v3882, %v3882
      %v3915 = vpack.c.b16 %v3883, %v3883
      %v3916 = vpack.c.b16 %v3884, %v3884
      %v3917 = vpack.c.b16 %v3885, %v3885
      %v3918 = vpack.c.b16 %v3886, %v3886
      %v3919 = vpack.c.b16 %v3887, %v3887
      %v3920 = vpack.c.b16 %v3888, %v3888
      %v3921 = vpack.c.b16 %v3889, %v3889
      %v3922 = vpack.c.b16 %v3890, %v3890
      %v3923 = vpack.c.b16 %v3891, %v3891
      %v3924 = vpack.c.b16 %v3892, %v3892
      %v3925 = vpack.c.b16 %v3893, %v3893
      %v3926 = vpack.c.b16 %v3894, %v3894
      %v3927 = vpack.c.b16 %v3895, %v3895
      %v3928 = vpack.c.b16 %v3896, %v3896
      %v3929 = vpack.c.b16 %v3897, %v3897
      %v3930 = vpack.c.b16 %v3898, %v3898
      %v3931 = vpack.c.b16 %v3899, %v3899
      %v3932 = vpack.c.b16 %v3900, %v3900
      %v3933 = vpack.c.b16 %v3901, %v3901
      %v3934 = vpack.c.b16 %v3902, %v3902
      %v3935 = vpack.c.b16 %v3903, %v3903
      %v3936 = vpack.c.b16 %v3904, %v3904
      %v3937 = vpack.c.b16 %v3905, %v3905
      %v3938 = vpack.c.b16 %v3906, %v3906
      %3971 = vst [vmem:[%s457] sm:$0xf] %v3907
      %3972 = vst [vmem:[%s457 + $0x4] sm:$0xf] %v3908
      %3973 = vst [vmem:[%s457 + $0x8] sm:$0xf] %v3909
      %3974 = vst [vmem:[%s457 + $0xc] sm:$0xf] %v3910
      %3975 = vst [vmem:[%s457 + $0x10] sm:$0xf] %v3911
      %3976 = vst [vmem:[%s457 + $0x14] sm:$0xf] %v3912
      %3977 = vst [vmem:[%s457 + $0x18] sm:$0xf] %v3913
      %3978 = vst [vmem:[%s457 + $0x1c] sm:$0xf] %v3914
      %3979 = vst [vmem:[%s457 + $0x20] sm:$0xf] %v3915
      %3980 = vst [vmem:[%s457 + $0x24] sm:$0xf] %v3916
      %3981 = vst [vmem:[%s457 + $0x28] sm:$0xf] %v3917
      %3982 = vst [vmem:[%s457 + $0x2c] sm:$0xf] %v3918
      %3983 = vst [vmem:[%s457 + $0x30] sm:$0xf] %v3919
      %3984 = vst [vmem:[%s457 + $0x34] sm:$0xf] %v3920
      %3985 = vst [vmem:[%s457 + $0x38] sm:$0xf] %v3921
      %3986 = vst [vmem:[%s457 + $0x3c] sm:$0xf] %v3922
      %3987 = vst [vmem:[%s457 + $0x40] sm:$0xf] %v3923
      %3988 = vst [vmem:[%s457 + $0x44] sm:$0xf] %v3924
      %3989 = vst [vmem:[%s457 + $0x48] sm:$0xf] %v3925
      %3990 = vst [vmem:[%s457 + $0x4c] sm:$0xf] %v3926
      %3991 = vst [vmem:[%s457 + $0x50] sm:$0xf] %v3927
      %3992 = vst [vmem:[%s457 + $0x54] sm:$0xf] %v3928
      %3993 = vst [vmem:[%s457 + $0x58] sm:$0xf] %v3929
      %3994 = vst [vmem:[%s457 + $0x5c] sm:$0xf] %v3930
      %3995 = vst [vmem:[%s457 + $0x60] sm:$0xf] %v3931
      %3996 = vst [vmem:[%s457 + $0x64] sm:$0xf] %v3932
      %3997 = vst [vmem:[%s457 + $0x68] sm:$0xf] %v3933
      %3998 = vst [vmem:[%s457 + $0x6c] sm:$0xf] %v3934
      %3999 = vst [vmem:[%s457 + $0x70] sm:$0xf] %v3935
      %4000 = vst [vmem:[%s457 + $0x74] sm:$0xf] %v3936
      %4001 = vst [vmem:[%s457 + $0x78] sm:$0xf] %v3937
      %4002 = vst [vmem:[%s457 + $0x7c] sm:$0xf] %v3938
      %v4003 = vmul.f32 %v3811, %v1212
      %v4004 = vmul.f32 %v3812, %v1213
      %v4005 = vmul.f32 %v3813, %v1214
      %v4006 = vmul.f32 %v3814, %v1215
      %v4007 = vmul.f32 %v3815, %v1216
      %v4008 = vmul.f32 %v3816, %v1217
      %v4009 = vmul.f32 %v3817, %v1218
      %v4010 = vmul.f32 %v3818, %v1219
      %v4011 = vmul.f32 %v3819, %v1220
      %v4012 = vmul.f32 %v3820, %v1221
      %v4013 = vmul.f32 %v3821, %v1222
      %v4014 = vmul.f32 %v3822, %v1223
      %v4015 = vmul.f32 %v3823, %v1224
      %v4016 = vmul.f32 %v3824, %v1225
      %v4017 = vmul.f32 %v3825, %v1226
      %v4018 = vmul.f32 %v3826, %v1227
      %v4019 = vmul.f32 %v3827, %v1228
      %v4020 = vmul.f32 %v3828, %v1229
      %v4021 = vmul.f32 %v3829, %v1230
      %v4022 = vmul.f32 %v3830, %v1231
      %v4023 = vmul.f32 %v3831, %v1232
      %v4024 = vmul.f32 %v3832, %v1233
      %v4025 = vmul.f32 %v3833, %v1234
      %v4026 = vmul.f32 %v3834, %v1235
      %v4027 = vmul.f32 %v3835, %v1236
      %v4028 = vmul.f32 %v3836, %v1237
      %v4029 = vmul.f32 %v3837, %v1238
      %v4030 = vmul.f32 %v3838, %v1239
      %v4031 = vmul.f32 %v3839, %v1240
      %v4032 = vmul.f32 %v3840, %v1241
      %v4033 = vmul.f32 %v3841, %v1242
      %v4034 = vmul.f32 %v3842, %v1243
      %v4035 = vadd.f32 %v4003, %v4004
      %v4036 = vadd.f32 %v4035, %v4005
      %v4037 = vadd.f32 %v4036, %v4006
      %v4038 = vadd.f32 %v4037, %v4007
      %v4039 = vadd.f32 %v4038, %v4008
      %v4040 = vadd.f32 %v4039, %v4009
      %v4041 = vadd.f32 %v4040, %v4010
      %v4042 = vadd.f32 %v4041, %v4011
      %v4043 = vadd.f32 %v4042, %v4012
      %v4044 = vadd.f32 %v4043, %v4013
      %v4045 = vadd.f32 %v4044, %v4014
      %v4046 = vadd.f32 %v4045, %v4015
      %v4047 = vadd.f32 %v4046, %v4016
      %v4048 = vadd.f32 %v4047, %v4017
      %v4049 = vadd.f32 %v4048, %v4018
      %v4050 = vadd.f32 %v4049, %v4019
      %v4051 = vadd.f32 %v4050, %v4020
      %v4052 = vadd.f32 %v4051, %v4021
      %v4053 = vadd.f32 %v4052, %v4022
      %v4054 = vadd.f32 %v4053, %v4023
      %v4055 = vadd.f32 %v4054, %v4024
      %v4056 = vadd.f32 %v4055, %v4025
      %v4057 = vadd.f32 %v4056, %v4026
      %v4058 = vadd.f32 %v4057, %v4027
      %v4059 = vadd.f32 %v4058, %v4028
      %v4060 = vadd.f32 %v4059, %v4029
      %v4061 = vadd.f32 %v4060, %v4030
      %v4062 = vadd.f32 %v4061, %v4031
      %v4063 = vadd.f32 %v4062, %v4032
      %v4064 = vadd.f32 %v4063, %v4033
      %v4065 = vadd.f32 %v4064, %v4034
      %v4066 = vrot.slane %v4065, 4
      %v4067 = vadd.f32 %v4065, %v4066
      %v4068 = vrot.slane %v4067, 2
      %v4069 = vadd.f32 %v4067, %v4068
      %v4070 = vrot.slane %v4069, 1
      %v4071 = vadd.f32 %v4069, %v4070
      %v4072 = vmul.f32 %v4003, %v3811
      %v4073 = vmul.f32 %v4004, %v3812
      %v4074 = vmul.f32 %v4005, %v3813
      %v4075 = vmul.f32 %v4006, %v3814
      %v4076 = vmul.f32 %v4007, %v3815
      %v4077 = vmul.f32 %v4008, %v3816
      %v4078 = vmul.f32 %v4009, %v3817
      %v4079 = vmul.f32 %v4010, %v3818
      %v4080 = vmul.f32 %v4011, %v3819
      %v4081 = vmul.f32 %v4012, %v3820
      %v4082 = vmul.f32 %v4013, %v3821
      %v4083 = vmul.f32 %v4014, %v3822
      %v4084 = vmul.f32 %v4015, %v3823
      %v4085 = vmul.f32 %v4016, %v3824
      %v4086 = vmul.f32 %v4017, %v3825
      %v4087 = vmul.f32 %v4018, %v3826
      %v4088 = vmul.f32 %v4019, %v3827
      %v4089 = vmul.f32 %v4020, %v3828
      %v4090 = vmul.f32 %v4021, %v3829
      %v4091 = vmul.f32 %v4022, %v3830
      %v4092 = vmul.f32 %v4023, %v3831
      %v4093 = vmul.f32 %v4024, %v3832
      %v4094 = vmul.f32 %v4025, %v3833
      %v4095 = vmul.f32 %v4026, %v3834
      %v4096 = vmul.f32 %v4027, %v3835
      %v4097 = vmul.f32 %v4028, %v3836
      %v4098 = vmul.f32 %v4029, %v3837
      %v4099 = vmul.f32 %v4030, %v3838
      %v4100 = vmul.f32 %v4031, %v3839
      %v4101 = vmul.f32 %v4032, %v3840
      %v4102 = vmul.f32 %v4033, %v3841
      %v4103 = vmul.f32 %v4034, %v3842
      %v4104 = vadd.f32 %v4072, %v4073
      %v4105 = vadd.f32 %v4104, %v4074
      %v4106 = vadd.f32 %v4105, %v4075
      %v4107 = vadd.f32 %v4106, %v4076
      %v4108 = vadd.f32 %v4107, %v4077
      %v4109 = vadd.f32 %v4108, %v4078
      %v4110 = vadd.f32 %v4109, %v4079
      %v4111 = vadd.f32 %v4110, %v4080
      %v4112 = vadd.f32 %v4111, %v4081
      %v4113 = vadd.f32 %v4112, %v4082
      %v4114 = vadd.f32 %v4113, %v4083
      %v4115 = vadd.f32 %v4114, %v4084
      %v4116 = vadd.f32 %v4115, %v4085
      %v4117 = vadd.f32 %v4116, %v4086
      %v4118 = vadd.f32 %v4117, %v4087
      %v4119 = vadd.f32 %v4118, %v4088
      %v4120 = vadd.f32 %v4119, %v4089
      %v4121 = vadd.f32 %v4120, %v4090
      %v4122 = vadd.f32 %v4121, %v4091
      %v4123 = vadd.f32 %v4122, %v4092
      %v4124 = vadd.f32 %v4123, %v4093
      %v4125 = vadd.f32 %v4124, %v4094
      %v4126 = vadd.f32 %v4125, %v4095
      %v4127 = vadd.f32 %v4126, %v4096
      %v4128 = vadd.f32 %v4127, %v4097
      %v4129 = vadd.f32 %v4128, %v4098
      %v4130 = vadd.f32 %v4129, %v4099
      %v4131 = vadd.f32 %v4130, %v4100
      %v4132 = vadd.f32 %v4131, %v4101
      %v4133 = vadd.f32 %v4132, %v4102
      %v4134 = vadd.f32 %v4133, %v4103
      %v4135 = vrot.slane %v4134, 4
      %v4136 = vadd.f32 %v4134, %v4135
      %v4137 = vrot.slane %v4136, 2
      %v4138 = vadd.f32 %v4136, %v4137
      %v4139 = vrot.slane %v4138, 1
      %v4140 = vadd.f32 %v4138, %v4139
      %vm4141 = vcmask 1040384
      %v4142 = vsel %vm4141, %v4071, %v4140
      %4143 = vst [vmem:[%s466] sm:$0x3] %v4142
      %s4144 = smul.u32 32, %s24
      %p4145 = scmp.lt.s32.totalorder %s23, 1
      %s4146 = scalar_select %p4145, %s23, 1
      %p4147 = scmp.lt.s32.totalorder %s4144, 63
      %s4148 = scalar_select %p4147, %s4144, 63
      %s4149 = smul.addr %s4146, 64
      %s4150 = sadd.s32 %s4148, %s4149
      %s4151 = smul.addr %s4150, 4
      %s4152 = scalar_lea.vmem %s6, %s4151
      %p4153 = scmp.lt.s32.totalorder %s23, 1
      %s4154 = scalar_select %p4153, %s23, 1
      %p4155 = scmp.lt.s32.totalorder %s24, 1
      %s4156 = scalar_select %p4155, %s24, 1
      %s4157 = smul.addr %s4154, 2
      %s4158 = sadd.s32 %s4156, %s4157
      %s4159 = smul.addr %s4158, 2
      %s4160 = scalar_lea.vmem %s7, %s4159
      // Predicated region
      $region45: #{_forward_impl.8} parent=43 // pred_check
        %p4161 = pneg %p214
      $region46: #{_forward_impl.8} parent=43 // pred_check_branch
        %4163 = sbr.rel (%p4161) target = $region48
      $region47: #{_forward_impl.8} parent=43 // pred_region
        %s4164 = smul.u32 32, %s24
      $region48: #{_forward_impl.8} parent=43 // pred_fallthru
        _
      // Predicated region
      $region49: #{_forward_impl.8} parent=43 // pred_check
        %p4165 = pneg %p242
      $region50: #{_forward_impl.8} parent=43 // pred_check_branch
        %4167 = sbr.rel (%p4165) target = $region52
      $region51: #{_forward_impl.8} parent=43 // pred_region
        _
      $region52: #{_forward_impl.8} parent=43 // pred_fallthru
        _
    $region44: #{_forward_impl.8} parent=5 // pred_fallthru
      _
    %p4168 = scmp.le.s32.totalorder 2, %s14
    // Predicated region
    $region53: #{_forward_impl.8} parent=5 // pred_check
      %p4169 = pneg %p4168
    $region54: #{_forward_impl.8} parent=5 // pred_check_branch
      %4171 = sbr.rel (%p4169) target = $region56
    $region55: #{_forward_impl.8} parent=5 // pred_region
      %s4172 = ssub.s32 %s14, 2
      // Predicated region
      $region57: #{_forward_impl.8} parent=55 // pred_check
        %p4173 = pneg %p220
      $region58: #{_forward_impl.8} parent=55 // pred_check_branch
        %4175 = sbr.rel (%p4173) target = $region60
      $region59: #{_forward_impl.8} parent=55 // pred_region
        %s4176 = smul.u32 32, %s26
        %p4177 = scmp.lt.s32.totalorder %s25, 1
        %s4178 = scalar_select %p4177, %s25, 1
        %p4179 = scmp.lt.s32.totalorder %s4176, 63
        %s4180 = scalar_select %p4179, %s4176, 63
        %s4181 = smul.addr %s4178, 64
        %s4182 = sadd.s32 %s4180, %s4181
        %s4183 = smul.addr %s4182, 4
        %s4184 = scalar_lea.vmem %s6, %s4183
      $region60: #{_forward_impl.8} parent=55 // pred_fallthru
        _
      // Predicated region
      $region61: #{_forward_impl.8} parent=55 // pred_check
        %p4185 = pneg %p248
      $region62: #{_forward_impl.8} parent=55 // pred_check_branch
        %4187 = sbr.rel (%p4185) target = $region64
      $region63: #{_forward_impl.8} parent=55 // pred_region
        %p4188 = scmp.lt.s32.totalorder %s25, 1
        %s4189 = scalar_select %p4188, %s25, 1
        %p4190 = scmp.lt.s32.totalorder %s26, 1
        %s4191 = scalar_select %p4190, %s26, 1
        %s4192 = smul.addr %s4189, 2
        %s4193 = sadd.s32 %s4191, %s4192
        %s4194 = smul.addr %s4193, 2
        %s4195 = scalar_lea.vmem %s7, %s4194
      $region64: #{_forward_impl.8} parent=55 // pred_fallthru
        _
    $region56: #{_forward_impl.8} parent=5 // pred_fallthru
      _
  $region6: #{_forward_impl.8} parent=0 // loop_footer
    %s18 = sadd.s32 1, %s14
  $region7: #{_forward_impl.8} parent=0 // loop_footer_branch
    %13 = sbr.rel target = $region3
  $region8: #{_forward_impl.8} parent=0 // loop_exit
    _

</llo_original>
